<compile_context>
chip_gen: v5e
topology: v5e:2x2
jax: 0.10.0
libtpu: 0.0.40
codegen_flags: <defaults>
</compile_context>

<pallas_src>
import numpy as np

import jax
import jax.numpy as jnp
from jax.experimental import pallas as pl
from jax.experimental.pallas import tpu as pltpu

# ----------------------- model configuration (small) -----------------------
BATCH = 2
N_CHANNELS = 1
N_CLASS = 2
DEPTH = 3          # unet_depth
SF = 8             # unet_scale_factor
SPATIAL = 16

assert DEPTH >= 2

OFF = 128          # lane offset of the data region inside every slab
LANE = 128


def _round_up(x, m):
    return ((x + m - 1) // m) * m


def _geom(s):
    hp = wp = s + 2
    l = BATCH * hp * wp
    lp = _round_up(l, LANE)
    p = wp + 1                       # max |tap shift| in flat index space
    e = OFF + lp + LANE              # trailing strip >= p, lane-dense total
    return dict(s=s, hp=hp, wp=wp, L=l, Lp=lp, P=p, E=e)


def _plan():
    sizes = [SPATIAL // (2 ** i) for i in range(DEPTH)]
    geoms = {s: _geom(s) for s in sizes}
    down = []
    cin = N_CHANNELS
    for i in range(DEPTH):
        cout = SF * 2 ** i
        down.append((cin, cout, sizes[i]))
        cin = cout
    up = []
    for i in range(DEPTH - 1):
        up.append((SF * 2 ** (DEPTH - 1 - i), SF * 2 ** (DEPTH - 2 - i),
                   sizes[DEPTH - 2 - i]))
    return sizes, geoms, down, up


# ------------------------- host-built constant matrices ---------------------
def _interior_mask_np(g):
    m = np.zeros((BATCH, g["hp"], g["wp"]), np.float32)
    m[:, 1:g["s"] + 1, 1:g["s"] + 1] = 1.0
    m = m.reshape(1, -1)
    return np.pad(m, ((0, 0), (0, g["Lp"] - g["L"])))


def _pool_scatter_np(g_src, g_dst):
    """0/1 matrix: flat-padded level-i values -> flat-padded pooled layout."""
    S = np.zeros((g_src["Lp"], g_dst["Lp"]), np.float32)
    so = g_dst["s"]
    for b in range(BATCH):
        for r in range(so):
            for c in range(so):
                q = (b * g_src["hp"] * g_src["wp"]
                     + (2 * r + 1) * g_src["wp"] + (2 * c + 1))
                o = (b * g_dst["hp"] * g_dst["wp"]
                     + (r + 1) * g_dst["wp"] + (c + 1))
                S[q, o] = 1.0
    return S


def _interp_matrix_np(n_in, n_out):
    """1-D linear interpolation matrix, align_corners=True."""
    A = np.zeros((n_out, n_in), np.float64)
    if n_in == 1:
        A[:, 0] = 1.0
        return A
    for i in range(n_out):
        src = i * (n_in - 1) / (n_out - 1)
        lo = min(int(np.floor(src)), n_in - 2)
        frac = src - lo
        A[i, lo] += 1.0 - frac
        A[i, lo + 1] += frac
    return A


def _upsample_scatter_np(g_src, g_dst):
    """Gather(interior) + separable bilinear x2 + scatter(into padded layout)."""
    s_in, s_out = g_src["s"], g_dst["s"]
    A = _interp_matrix_np(s_in, s_out)
    U = np.zeros((g_src["Lp"], g_dst["Lp"]), np.float64)
    for b in range(BATCH):
        for ro in range(s_out):
            for co in range(s_out):
                o = (b * g_dst["hp"] * g_dst["wp"]
                     + (ro + 1) * g_dst["wp"] + (co + 1))
                for ri in range(s_in):
                    ah = A[ro, ri]
                    if ah == 0.0:
                        continue
                    for ci in range(s_in):
                        aw = A[co, ci]
                        if aw == 0.0:
                            continue
                        q = (b * g_src["hp"] * g_src["wp"]
                             + (ri + 1) * g_src["wp"] + (ci + 1))
                        U[q, o] += ah * aw
    return U.astype(np.float32)


# ------------------------------ fused UNet kernel ----------------------------
def _make_kernel(sizes, geoms, down_cfg, up_cfg):
    n_up = len(up_cfg)

    def init_slab(ref, g):
        c, e = ref.shape
        lp = g["Lp"]
        ref[:, 0:OFF] = jnp.zeros((c, OFF), jnp.float32)
        ref[:, OFF + lp:] = jnp.zeros((c, e - OFF - lp), jnp.float32)

    def conv3x3(src_ref, col_ref, w_ref, b_ref, mask_ref, cin, cout, g):
        lp, wp, p = g["Lp"], g["wp"], g["P"]
        if cin >= 8:
            # im2col: 9 shifted slices -> one (cout, 9*cin) x (9*cin, Lp) dot
            for t in range(9):
                dy, dx = divmod(t, 3)
                ro = OFF - p + dy * wp + dx
                col_ref[t * cin:(t + 1) * cin, 0:lp] = src_ref[:, ro:ro + lp]
            acc = jnp.dot(w_ref[...],
                          col_ref[0:9 * cin, 0:lp].astype(jnp.bfloat16),
                          preferred_element_type=jnp.float32)
        else:
            # tiny cin: VPU broadcast path with f32 weights (no MXU, no col)
            acc = jnp.zeros((cout, lp), jnp.float32)
            for t in range(9):
                dy, dx = divmod(t, 3)
                ro = OFF - p + dy * wp + dx
                sl = src_ref[:, ro:ro + lp].astype(jnp.float32)
                for ci in range(cin):
                    idx = t * cin + ci
                    acc = acc + w_ref[:, idx:idx + 1] * sl[ci:ci + 1, :]
        return jnp.maximum(acc + b_ref[...], 0.0) * mask_ref[...]

    def double_conv(src_ref, mid_ref, col_ref, p_refs, mask_ref, cin, cout, g):
        w1, b1, w2, b2 = p_refs
        h1 = conv3x3(src_ref, col_ref, w1, b1, mask_ref, cin, cout, g)
        mid_ref[:, OFF:OFF + g["Lp"]] = h1            # re-zero-padded by mask
        return conv3x3(mid_ref, col_ref, w2, b2, mask_ref, cout, cout, g)

    def maxpool_into(src_ref, dst_ref, s_ref, g_src, g_dst):
        lp, wp = g_src["Lp"], g_src["wp"]
        m = jnp.maximum(
            jnp.maximum(src_ref[:, OFF:OFF + lp],
                        src_ref[:, OFF + 1:OFF + 1 + lp]),
            jnp.maximum(src_ref[:, OFF + wp:OFF + wp + lp],
                        src_ref[:, OFF + wp + 1:OFF + wp + 1 + lp]))
        pooled = jnp.dot(m.astype(jnp.bfloat16), s_ref[...],
                         preferred_element_type=jnp.float32)
        dst_ref[:, OFF:OFF + g_dst["Lp"]] = pooled

    def upsample_into(src_ref, dst_ref, u_ref, g_src, g_dst):
        up = jnp.dot(src_ref[:, OFF:OFF + g_src["Lp"]].astype(jnp.bfloat16),
                     u_ref[...], preferred_element_type=jnp.float32)
        dst_ref[:, OFF:OFF + g_dst["Lp"]] = up

    def kernel(*refs):
        it = iter(refs)
        x_ref = next(it)
        down_p = [tuple(next(it) for _ in range(4)) for _ in range(DEPTH)]
        up_p = [tuple(next(it) for _ in range(4)) for _ in range(n_up)]
        wf_ref = next(it)
        bf_ref = next(it)
        mask_refs = {s: next(it) for s in sizes}
        pool_refs = [next(it) for _ in range(DEPTH - 1)]
        upm_refs = [next(it) for _ in range(n_up)]
        o_ref = next(it)
        col_ref = next(it)
        down_slabs = []
        for i in range(DEPTH):
            in_ref = None if i == 0 else next(it)
            down_slabs.append((in_ref, next(it), next(it)))
        up_slabs = []
        for i in range(n_up):
            in_ref = next(it)
            mid_ref = next(it)
            out_ref = next(it) if i != n_up - 1 else None
            up_slabs.append((in_ref, mid_ref, out_ref))

        # zero only the pad strips around each slab's data region
        for i, (_, _, s) in enumerate(down_cfg):
            for r in down_slabs[i]:
                if r is not None:
                    init_slab(r, geoms[s])
        for i, (_, _, s) in enumerate(up_cfg):
            for r in up_slabs[i]:
                if r is not None:
                    init_slab(r, geoms[s])

        # ------------------------------ down path ------------------------------
        for i, (cin, cout, s) in enumerate(down_cfg):
            g = geoms[s]
            in_ref, mid_ref, out_ref = down_slabs[i]
            src = x_ref if i == 0 else in_ref
            y = double_conv(src, mid_ref, col_ref, down_p[i],
                            mask_refs[s], cin, cout, g)
            out_ref[:, OFF:OFF + g["Lp"]] = y
            if i != DEPTH - 1:
                maxpool_into(out_ref, down_slabs[i + 1][0], pool_refs[i],
                             g, geoms[sizes[i + 1]])

        # ------------------------------- up path -------------------------------
        src_slab = down_slabs[DEPTH - 1][2]
        src_g = geoms[sizes[DEPTH - 1]]
        y_last = None
        for i, (cin, cout, s) in enumerate(up_cfg):
            g = geoms[s]
            in_ref, mid_ref, out_ref = up_slabs[i]
            upsample_into(src_slab, in_ref, upm_refs[i], src_g, g)
            y = double_conv(in_ref, mid_ref, col_ref, up_p[i],
                            mask_refs[s], cin, cout, g)
            skip_ref = down_slabs[DEPTH - 2 - i][2]
            y = y + skip_ref[:, OFF:OFF + g["Lp"]]
            if out_ref is not None:
                out_ref[:, OFF:OFF + g["Lp"]] = y
                src_slab, src_g = out_ref, g
            else:
                y_last = y

        # -------- head: 1x1 conv -> softmax(dim=C, exact) -> * input mask -------
        g0 = geoms[sizes[0]]
        logits = jnp.dot(wf_ref[...], y_last,
                         preferred_element_type=jnp.float32) + bf_ref[...]
        m = logits[0:1, :]
        for k in range(1, N_CLASS):
            m = jnp.maximum(m, logits[k:k + 1, :])
        e = jnp.exp(logits - m)
        denom = e[0:1, :]
        for k in range(1, N_CLASS):
            denom = denom + e[k:k + 1, :]
        probs = e * (1.0 / denom)
        old = x_ref[:, OFF:OFF + g0["Lp"]]        # (N_CHANNELS, Lp0) f32
        o_ref[...] = probs * old                  # single lane-dense store

    return kernel


# ------------------------------ parameters ----------------------------------
def init_params(key):
    def conv_w(k, kh, kw, cin, cout):
        k1, k2 = jax.random.split(k)
        fan_in = kh * kw * cin
        w = jax.random.normal(k1, (kh, kw, cin, cout), jnp.float32) / np.sqrt(float(fan_in))
        b = 0.01 * jax.random.normal(k2, (cout,), jnp.float32)
        return w, b

    def pack(w, ci, co):
        # (3,3,ci,co) -> (co, 9*ci); row t*ci+ci_idx = w[dy,dx,ci_idx,co], t=3*dy+dx
        wf = jnp.transpose(w, (3, 0, 1, 2)).reshape(co, 9 * ci)
        return wf.astype(jnp.bfloat16) if ci >= 8 else wf   # f32 for tiny cin (VPU path)

    def double_conv_p(k, cin, cout):
        k1, k2 = jax.random.split(k)
        w1, b1 = conv_w(k1, 3, 3, cin, cout)
        w2, b2 = conv_w(k2, 3, 3, cout, cout)
        return (pack(w1, cin, cout), b1.reshape(cout, 1),
                pack(w2, cout, cout), b2.reshape(cout, 1))

    _, _, down_cfg, up_cfg = _plan()
    keys = jax.random.split(key, DEPTH + len(up_cfg) + 1)
    down = [double_conv_p(keys[i], cin, cout)
            for i, (cin, cout, _) in enumerate(down_cfg)]
    up = [double_conv_p(keys[DEPTH + i], cin, cout)
          for i, (cin, cout, _) in enumerate(up_cfg)]
    wf, bf = conv_w(keys[-1], 1, 1, SF, N_CLASS)
    final = (jnp.transpose(wf.reshape(SF, N_CLASS)),     # (N_CLASS, SF) f32
             bf.reshape(N_CLASS, 1))                     # (N_CLASS, 1)  f32
    return {"down": down, "up": up, "final": final}


# ------------------------------- forward ------------------------------------
def unet_forward(params, x):
    sizes, geoms, down_cfg, up_cfg = _plan()
    n_up = len(up_cfg)
    g0 = geoms[sizes[0]]

    # trace-time constants: interior masks, pool / upsample matrices
    masks = [jnp.asarray(_interior_mask_np(geoms[s])) for s in sizes]
    pool_mats = [jnp.asarray(_pool_scatter_np(geoms[sizes[i]], geoms[sizes[i + 1]]),
                             dtype=jnp.bfloat16) for i in range(DEPTH - 1)]
    up_mats = [jnp.asarray(_upsample_scatter_np(geoms[sizes[DEPTH - 1 - i]],
                                                geoms[sizes[DEPTH - 2 - i]]),
                           dtype=jnp.bfloat16) for i in range(n_up)]

    # input in flat-padded "slab" layout (data starts at lane OFF); also 'old'
    xpad = jnp.pad(x.astype(jnp.float32), ((0, 0), (0, 0), (1, 1), (1, 1)))
    xflat = jnp.transpose(xpad, (1, 0, 2, 3)).reshape(N_CHANNELS, g0["L"])
    x_slab = jnp.pad(xflat, ((0, 0), (OFF, g0["E"] - OFF - g0["L"])))

    inputs, specs = [], []

    def add(a):
        a = jnp.asarray(a)
        nd = a.ndim
        inputs.append(a)
        specs.append(pl.BlockSpec(a.shape, lambda nd=nd: (0,) * nd))

    add(x_slab)
    for p4 in params["down"]:
        for t in p4:
            add(t)
    for p4 in params["up"]:
        for t in p4:
            add(t)
    add(params["final"][0])
    add(params["final"][1])
    for m in masks:
        add(m)
    for s in pool_mats:
        add(s)
    for u in up_mats:
        add(u)

    # scratch: shared im2col buffer + all inter-level activation slabs (f32)
    ks = []
    for (cin, cout, _) in down_cfg + up_cfg:
        if cin >= 8:
            ks.append(9 * cin)
        ks.append(9 * cout)
    max_k = max(ks)
    max_lp = max(geoms[s]["Lp"] for s in sizes)
    scratch = [pltpu.VMEM((max_k, max_lp), jnp.float32)]
    for i, (cin, cout, s) in enumerate(down_cfg):
        e = geoms[s]["E"]
        if i > 0:
            scratch.append(pltpu.VMEM((cin, e), jnp.float32))    # in (pooled)
        scratch.append(pltpu.VMEM((cout, e), jnp.float32))       # mid
        scratch.append(pltpu.VMEM((cout, e), jnp.float32))       # out / skip
    for i, (cin, cout, s) in enumerate(up_cfg):
        e = geoms[s]["E"]
        scratch.append(pltpu.VMEM((cin, e), jnp.float32))        # in (upsampled)
        scratch.append(pltpu.VMEM((cout, e), jnp.float32))       # mid
        if i != n_up - 1:
            scratch.append(pltpu.VMEM((cout, e), jnp.float32))   # out

    kernel = _make_kernel(sizes, geoms, down_cfg, up_cfg)
    out = pl.pallas_call(
        kernel,
        out_shape=jax.ShapeDtypeStruct((N_CLASS, g0["Lp"]), jnp.float32),
        in_specs=specs,
        out_specs=pl.BlockSpec((N_CLASS, g0["Lp"]), lambda: (0, 0)),
        scratch_shapes=scratch,
    )(*inputs)

    y = out[:, :g0["L"]].reshape(N_CLASS, BATCH, g0["hp"], g0["wp"])[:, :, 1:-1, 1:-1]
    return jnp.transpose(y, (1, 0, 2, 3))                        # (N, n_class, H, W)


# --------------------------------- main --------------------------------------
if __name__ == "__main__":
    key = jax.random.PRNGKey(0)
    pkey, xkey = jax.random.split(key)
    params = init_params(pkey)
    x = jax.random.normal(xkey, (BATCH, N_CHANNELS, SPATIAL, SPATIAL), jnp.float32)

    fwd = jax.jit(unet_forward)
    out = jax.block_until_ready(fwd(params, x))
    assert out.shape == (BATCH, N_CLASS, SPATIAL, SPATIAL)
    assert bool(jnp.all(jnp.isfinite(out)))
    print("KERNEL_OK")
</pallas_src>

<mosaic_0001>
module attributes {stable_mosaic.version = 11 : i64} {
  func.func @kernel(%arg0: memref<1x1024xf32, #tpu.memory_space<vmem>>, %arg1: memref<8x9xf32, #tpu.memory_space<vmem>>, %arg2: memref<8x1xf32, #tpu.memory_space<vmem>>, %arg3: memref<8x72xbf16, #tpu.memory_space<vmem>>, %arg4: memref<8x1xf32, #tpu.memory_space<vmem>>, %arg5: memref<16x72xbf16, #tpu.memory_space<vmem>>, %arg6: memref<16x1xf32, #tpu.memory_space<vmem>>, %arg7: memref<16x144xbf16, #tpu.memory_space<vmem>>, %arg8: memref<16x1xf32, #tpu.memory_space<vmem>>, %arg9: memref<32x144xbf16, #tpu.memory_space<vmem>>, %arg10: memref<32x1xf32, #tpu.memory_space<vmem>>, %arg11: memref<32x288xbf16, #tpu.memory_space<vmem>>, %arg12: memref<32x1xf32, #tpu.memory_space<vmem>>, %arg13: memref<16x288xbf16, #tpu.memory_space<vmem>>, %arg14: memref<16x1xf32, #tpu.memory_space<vmem>>, %arg15: memref<16x144xbf16, #tpu.memory_space<vmem>>, %arg16: memref<16x1xf32, #tpu.memory_space<vmem>>, %arg17: memref<8x144xbf16, #tpu.memory_space<vmem>>, %arg18: memref<8x1xf32, #tpu.memory_space<vmem>>, %arg19: memref<8x72xbf16, #tpu.memory_space<vmem>>, %arg20: memref<8x1xf32, #tpu.memory_space<vmem>>, %arg21: memref<2x8xf32, #tpu.memory_space<vmem>>, %arg22: memref<2x1xf32, #tpu.memory_space<vmem>>, %arg23: memref<1x768xf32, #tpu.memory_space<vmem>>, %arg24: memref<1x256xf32, #tpu.memory_space<vmem>>, %arg25: memref<1x128xf32, #tpu.memory_space<vmem>>, %arg26: memref<768x256xbf16, #tpu.memory_space<vmem>>, %arg27: memref<256x128xbf16, #tpu.memory_space<vmem>>, %arg28: memref<128x256xbf16, #tpu.memory_space<vmem>>, %arg29: memref<256x768xbf16, #tpu.memory_space<vmem>>, %arg30: memref<2x768xf32, #tpu.memory_space<vmem>>, %arg31: memref<288x768xf32, #tpu.memory_space<vmem>>, %arg32: memref<8x1024xf32, #tpu.memory_space<vmem>>, %arg33: memref<8x1024xf32, #tpu.memory_space<vmem>>, %arg34: memref<8x512xf32, #tpu.memory_space<vmem>>, %arg35: memref<16x512xf32, #tpu.memory_space<vmem>>, %arg36: memref<16x512xf32, #tpu.memory_space<vmem>>, %arg37: memref<16x384xf32, #tpu.memory_space<vmem>>, %arg38: memref<32x384xf32, #tpu.memory_space<vmem>>, %arg39: memref<32x384xf32, #tpu.memory_space<vmem>>, %arg40: memref<32x512xf32, #tpu.memory_space<vmem>>, %arg41: memref<16x512xf32, #tpu.memory_space<vmem>>, %arg42: memref<16x512xf32, #tpu.memory_space<vmem>>, %arg43: memref<16x1024xf32, #tpu.memory_space<vmem>>, %arg44: memref<8x1024xf32, #tpu.memory_space<vmem>>) attributes {dimension_semantics = [], scalar_prefetch = 0 : i64, scratch_operands = 14 : i64, tpu.core_type = #tpu.core_type<tc>} {
    %cst = arith.constant 0.000000e+00 : f32
    %0 = vector.broadcast %cst : f32 to vector<8x128xf32>
    %c0 = arith.constant 0 : index
    %c0_0 = arith.constant 0 : index
    %1 = vector.load %arg32[%c0, %c0_0] : memref<8x1024xf32, #tpu.memory_space<vmem>>, vector<8x128xf32>
    tpu.vector_store %arg32[%c0, %c0_0], %0 {strides = array<i32>} : memref<8x1024xf32, #tpu.memory_space<vmem>>, vector<8x128xf32>,
    %cst_1 = arith.constant 0.000000e+00 : f32
    %2 = vector.broadcast %cst_1 : f32 to vector<8x128xf32>
    %c0_2 = arith.constant 0 : index
    %c896 = arith.constant 896 : index
    %3 = vector.load %arg32[%c0_2, %c896] : memref<8x1024xf32, #tpu.memory_space<vmem>>, vector<8x128xf32>
    tpu.vector_store %arg32[%c0_2, %c896], %2 {strides = array<i32>} : memref<8x1024xf32, #tpu.memory_space<vmem>>, vector<8x128xf32>,
    %cst_3 = arith.constant 0.000000e+00 : f32
    %4 = vector.broadcast %cst_3 : f32 to vector<8x128xf32>
    %c0_4 = arith.constant 0 : index
    %c0_5 = arith.constant 0 : index
    %5 = vector.load %arg33[%c0_4, %c0_5] : memref<8x1024xf32, #tpu.memory_space<vmem>>, vector<8x128xf32>
    tpu.vector_store %arg33[%c0_4, %c0_5], %4 {strides = array<i32>} : memref<8x1024xf32, #tpu.memory_space<vmem>>, vector<8x128xf32>,
    %cst_6 = arith.constant 0.000000e+00 : f32
    %6 = vector.broadcast %cst_6 : f32 to vector<8x128xf32>
    %c0_7 = arith.constant 0 : index
    %c896_8 = arith.constant 896 : index
    %7 = vector.load %arg33[%c0_7, %c896_8] : memref<8x1024xf32, #tpu.memory_space<vmem>>, vector<8x128xf32>
    tpu.vector_store %arg33[%c0_7, %c896_8], %6 {strides = array<i32>} : memref<8x1024xf32, #tpu.memory_space<vmem>>, vector<8x128xf32>,
    %cst_9 = arith.constant 0.000000e+00 : f32
    %8 = vector.broadcast %cst_9 : f32 to vector<8x128xf32>
    %c0_10 = arith.constant 0 : index
    %c0_11 = arith.constant 0 : index
    %9 = vector.load %arg34[%c0_10, %c0_11] : memref<8x512xf32, #tpu.memory_space<vmem>>, vector<8x128xf32>
    tpu.vector_store %arg34[%c0_10, %c0_11], %8 {strides = array<i32>} : memref<8x512xf32, #tpu.memory_space<vmem>>, vector<8x128xf32>,
    %cst_12 = arith.constant 0.000000e+00 : f32
    %10 = vector.broadcast %cst_12 : f32 to vector<8x128xf32>
    %c0_13 = arith.constant 0 : index
    %c384 = arith.constant 384 : index
    %11 = vector.load %arg34[%c0_13, %c384] : memref<8x512xf32, #tpu.memory_space<vmem>>, vector<8x128xf32>
    tpu.vector_store %arg34[%c0_13, %c384], %10 {strides = array<i32>} : memref<8x512xf32, #tpu.memory_space<vmem>>, vector<8x128xf32>,
    %cst_14 = arith.constant 0.000000e+00 : f32
    %12 = vector.broadcast %cst_14 : f32 to vector<16x128xf32>
    %c0_15 = arith.constant 0 : index
    %c0_16 = arith.constant 0 : index
    %13 = vector.load %arg35[%c0_15, %c0_16] : memref<16x512xf32, #tpu.memory_space<vmem>>, vector<16x128xf32>
    tpu.vector_store %arg35[%c0_15, %c0_16], %12 {strides = array<i32>} : memref<16x512xf32, #tpu.memory_space<vmem>>, vector<16x128xf32>,
    %cst_17 = arith.constant 0.000000e+00 : f32
    %14 = vector.broadcast %cst_17 : f32 to vector<16x128xf32>
    %c0_18 = arith.constant 0 : index
    %c384_19 = arith.constant 384 : index
    %15 = vector.load %arg35[%c0_18, %c384_19] : memref<16x512xf32, #tpu.memory_space<vmem>>, vector<16x128xf32>
    tpu.vector_store %arg35[%c0_18, %c384_19], %14 {strides = array<i32>} : memref<16x512xf32, #tpu.memory_space<vmem>>, vector<16x128xf32>,
    %cst_20 = arith.constant 0.000000e+00 : f32
    %16 = vector.broadcast %cst_20 : f32 to vector<16x128xf32>
    %c0_21 = arith.constant 0 : index
    %c0_22 = arith.constant 0 : index
    %17 = vector.load %arg36[%c0_21, %c0_22] : memref<16x512xf32, #tpu.memory_space<vmem>>, vector<16x128xf32>
    tpu.vector_store %arg36[%c0_21, %c0_22], %16 {strides = array<i32>} : memref<16x512xf32, #tpu.memory_space<vmem>>, vector<16x128xf32>,
    %cst_23 = arith.constant 0.000000e+00 : f32
    %18 = vector.broadcast %cst_23 : f32 to vector<16x128xf32>
    %c0_24 = arith.constant 0 : index
    %c384_25 = arith.constant 384 : index
    %19 = vector.load %arg36[%c0_24, %c384_25] : memref<16x512xf32, #tpu.memory_space<vmem>>, vector<16x128xf32>
    tpu.vector_store %arg36[%c0_24, %c384_25], %18 {strides = array<i32>} : memref<16x512xf32, #tpu.memory_space<vmem>>, vector<16x128xf32>,
    %cst_26 = arith.constant 0.000000e+00 : f32
    %20 = vector.broadcast %cst_26 : f32 to vector<16x128xf32>
    %c0_27 = arith.constant 0 : index
    %c0_28 = arith.constant 0 : index
    %21 = vector.load %arg37[%c0_27, %c0_28] : memref<16x384xf32, #tpu.memory_space<vmem>>, vector<16x128xf32>
    tpu.vector_store %arg37[%c0_27, %c0_28], %20 {strides = array<i32>} : memref<16x384xf32, #tpu.memory_space<vmem>>, vector<16x128xf32>,
    %cst_29 = arith.constant 0.000000e+00 : f32
    %22 = vector.broadcast %cst_29 : f32 to vector<16x128xf32>
    %c0_30 = arith.constant 0 : index
    %c256 = arith.constant 256 : index
    %23 = vector.load %arg37[%c0_30, %c256] : memref<16x384xf32, #tpu.memory_space<vmem>>, vector<16x128xf32>
    tpu.vector_store %arg37[%c0_30, %c256], %22 {strides = array<i32>} : memref<16x384xf32, #tpu.memory_space<vmem>>, vector<16x128xf32>,
    %cst_31 = arith.constant 0.000000e+00 : f32
    %24 = vector.broadcast %cst_31 : f32 to vector<32x128xf32>
    %c0_32 = arith.constant 0 : index
    %c0_33 = arith.constant 0 : index
    %25 = vector.load %arg38[%c0_32, %c0_33] : memref<32x384xf32, #tpu.memory_space<vmem>>, vector<32x128xf32>
    tpu.vector_store %arg38[%c0_32, %c0_33], %24 {strides = array<i32>} : memref<32x384xf32, #tpu.memory_space<vmem>>, vector<32x128xf32>,
    %cst_34 = arith.constant 0.000000e+00 : f32
    %26 = vector.broadcast %cst_34 : f32 to vector<32x128xf32>
    %c0_35 = arith.constant 0 : index
    %c256_36 = arith.constant 256 : index
    %27 = vector.load %arg38[%c0_35, %c256_36] : memref<32x384xf32, #tpu.memory_space<vmem>>, vector<32x128xf32>
    tpu.vector_store %arg38[%c0_35, %c256_36], %26 {strides = array<i32>} : memref<32x384xf32, #tpu.memory_space<vmem>>, vector<32x128xf32>,
    %cst_37 = arith.constant 0.000000e+00 : f32
    %28 = vector.broadcast %cst_37 : f32 to vector<32x128xf32>
    %c0_38 = arith.constant 0 : index
    %c0_39 = arith.constant 0 : index
    %29 = vector.load %arg39[%c0_38, %c0_39] : memref<32x384xf32, #tpu.memory_space<vmem>>, vector<32x128xf32>
    tpu.vector_store %arg39[%c0_38, %c0_39], %28 {strides = array<i32>} : memref<32x384xf32, #tpu.memory_space<vmem>>, vector<32x128xf32>,
    %cst_40 = arith.constant 0.000000e+00 : f32
    %30 = vector.broadcast %cst_40 : f32 to vector<32x128xf32>
    %c0_41 = arith.constant 0 : index
    %c256_42 = arith.constant 256 : index
    %31 = vector.load %arg39[%c0_41, %c256_42] : memref<32x384xf32, #tpu.memory_space<vmem>>, vector<32x128xf32>
    tpu.vector_store %arg39[%c0_41, %c256_42], %30 {strides = array<i32>} : memref<32x384xf32, #tpu.memory_space<vmem>>, vector<32x128xf32>,
    %cst_43 = arith.constant 0.000000e+00 : f32
    %32 = vector.broadcast %cst_43 : f32 to vector<32x128xf32>
    %c0_44 = arith.constant 0 : index
    %c0_45 = arith.constant 0 : index
    %33 = vector.load %arg40[%c0_44, %c0_45] : memref<32x512xf32, #tpu.memory_space<vmem>>, vector<32x128xf32>
    tpu.vector_store %arg40[%c0_44, %c0_45], %32 {strides = array<i32>} : memref<32x512xf32, #tpu.memory_space<vmem>>, vector<32x128xf32>,
    %cst_46 = arith.constant 0.000000e+00 : f32
    %34 = vector.broadcast %cst_46 : f32 to vector<32x128xf32>
    %c0_47 = arith.constant 0 : index
    %c384_48 = arith.constant 384 : index
    %35 = vector.load %arg40[%c0_47, %c384_48] : memref<32x512xf32, #tpu.memory_space<vmem>>, vector<32x128xf32>
    tpu.vector_store %arg40[%c0_47, %c384_48], %34 {strides = array<i32>} : memref<32x512xf32, #tpu.memory_space<vmem>>, vector<32x128xf32>,
    %cst_49 = arith.constant 0.000000e+00 : f32
    %36 = vector.broadcast %cst_49 : f32 to vector<16x128xf32>
    %c0_50 = arith.constant 0 : index
    %c0_51 = arith.constant 0 : index
    %37 = vector.load %arg41[%c0_50, %c0_51] : memref<16x512xf32, #tpu.memory_space<vmem>>, vector<16x128xf32>
    tpu.vector_store %arg41[%c0_50, %c0_51], %36 {strides = array<i32>} : memref<16x512xf32, #tpu.memory_space<vmem>>, vector<16x128xf32>,
    %cst_52 = arith.constant 0.000000e+00 : f32
    %38 = vector.broadcast %cst_52 : f32 to vector<16x128xf32>
    %c0_53 = arith.constant 0 : index
    %c384_54 = arith.constant 384 : index
    %39 = vector.load %arg41[%c0_53, %c384_54] : memref<16x512xf32, #tpu.memory_space<vmem>>, vector<16x128xf32>
    tpu.vector_store %arg41[%c0_53, %c384_54], %38 {strides = array<i32>} : memref<16x512xf32, #tpu.memory_space<vmem>>, vector<16x128xf32>,
    %cst_55 = arith.constant 0.000000e+00 : f32
    %40 = vector.broadcast %cst_55 : f32 to vector<16x128xf32>
    %c0_56 = arith.constant 0 : index
    %c0_57 = arith.constant 0 : index
    %41 = vector.load %arg42[%c0_56, %c0_57] : memref<16x512xf32, #tpu.memory_space<vmem>>, vector<16x128xf32>
    tpu.vector_store %arg42[%c0_56, %c0_57], %40 {strides = array<i32>} : memref<16x512xf32, #tpu.memory_space<vmem>>, vector<16x128xf32>,
    %cst_58 = arith.constant 0.000000e+00 : f32
    %42 = vector.broadcast %cst_58 : f32 to vector<16x128xf32>
    %c0_59 = arith.constant 0 : index
    %c384_60 = arith.constant 384 : index
    %43 = vector.load %arg42[%c0_59, %c384_60] : memref<16x512xf32, #tpu.memory_space<vmem>>, vector<16x128xf32>
    tpu.vector_store %arg42[%c0_59, %c384_60], %42 {strides = array<i32>} : memref<16x512xf32, #tpu.memory_space<vmem>>, vector<16x128xf32>,
    %cst_61 = arith.constant 0.000000e+00 : f32
    %44 = vector.broadcast %cst_61 : f32 to vector<16x128xf32>
    %c0_62 = arith.constant 0 : index
    %c0_63 = arith.constant 0 : index
    %45 = vector.load %arg43[%c0_62, %c0_63] : memref<16x1024xf32, #tpu.memory_space<vmem>>, vector<16x128xf32>
    tpu.vector_store %arg43[%c0_62, %c0_63], %44 {strides = array<i32>} : memref<16x1024xf32, #tpu.memory_space<vmem>>, vector<16x128xf32>,
    %cst_64 = arith.constant 0.000000e+00 : f32
    %46 = vector.broadcast %cst_64 : f32 to vector<16x128xf32>
    %c0_65 = arith.constant 0 : index
    %c896_66 = arith.constant 896 : index
    %47 = vector.load %arg43[%c0_65, %c896_66] : memref<16x1024xf32, #tpu.memory_space<vmem>>, vector<16x128xf32>
    tpu.vector_store %arg43[%c0_65, %c896_66], %46 {strides = array<i32>} : memref<16x1024xf32, #tpu.memory_space<vmem>>, vector<16x128xf32>,
    %cst_67 = arith.constant 0.000000e+00 : f32
    %48 = vector.broadcast %cst_67 : f32 to vector<8x128xf32>
    %c0_68 = arith.constant 0 : index
    %c0_69 = arith.constant 0 : index
    %49 = vector.load %arg44[%c0_68, %c0_69] : memref<8x1024xf32, #tpu.memory_space<vmem>>, vector<8x128xf32>
    tpu.vector_store %arg44[%c0_68, %c0_69], %48 {strides = array<i32>} : memref<8x1024xf32, #tpu.memory_space<vmem>>, vector<8x128xf32>,
    %cst_70 = arith.constant 0.000000e+00 : f32
    %50 = vector.broadcast %cst_70 : f32 to vector<8x128xf32>
    %c0_71 = arith.constant 0 : index
    %c896_72 = arith.constant 896 : index
    %51 = vector.load %arg44[%c0_71, %c896_72] : memref<8x1024xf32, #tpu.memory_space<vmem>>, vector<8x128xf32>
    tpu.vector_store %arg44[%c0_71, %c896_72], %50 {strides = array<i32>} : memref<8x1024xf32, #tpu.memory_space<vmem>>, vector<8x128xf32>,
    %cst_73 = arith.constant 0.000000e+00 : f32
    %52 = vector.broadcast %cst_73 : f32 to vector<8x768xf32>
    %c0_74 = arith.constant 0 : index
    %c109 = arith.constant 109 : index
    %53 = vector.load %arg0[%c0_74, %c109] : memref<1x1024xf32, #tpu.memory_space<vmem>>, vector<1x768xf32>
    %c0_75 = arith.constant 0 : index
    %c0_76 = arith.constant 0 : index
    %54 = vector.load %arg1[%c0_75, %c0_76] : memref<8x9xf32, #tpu.memory_space<vmem>>, vector<8x1xf32>
    %55 = vector.broadcast %54 : vector<8x1xf32> to vector<8x768xf32>
    %56 = vector.broadcast %53 : vector<1x768xf32> to vector<8x768xf32>
    %57 = arith.mulf %55, %56 : vector<8x768xf32>
    %58 = arith.addf %52, %57 : vector<8x768xf32>
    %c0_77 = arith.constant 0 : index
    %c110 = arith.constant 110 : index
    %59 = vector.load %arg0[%c0_77, %c110] : memref<1x1024xf32, #tpu.memory_space<vmem>>, vector<1x768xf32>
    %c0_78 = arith.constant 0 : index
    %c1 = arith.constant 1 : index
    %60 = vector.load %arg1[%c0_78, %c1] : memref<8x9xf32, #tpu.memory_space<vmem>>, vector<8x1xf32>
    %61 = vector.broadcast %60 : vector<8x1xf32> to vector<8x768xf32>
    %62 = vector.broadcast %59 : vector<1x768xf32> to vector<8x768xf32>
    %63 = arith.mulf %61, %62 : vector<8x768xf32>
    %64 = arith.addf %58, %63 : vector<8x768xf32>
    %c0_79 = arith.constant 0 : index
    %c111 = arith.constant 111 : index
    %65 = vector.load %arg0[%c0_79, %c111] : memref<1x1024xf32, #tpu.memory_space<vmem>>, vector<1x768xf32>
    %c0_80 = arith.constant 0 : index
    %c2 = arith.constant 2 : index
    %66 = vector.load %arg1[%c0_80, %c2] : memref<8x9xf32, #tpu.memory_space<vmem>>, vector<8x1xf32>
    %67 = vector.broadcast %66 : vector<8x1xf32> to vector<8x768xf32>
    %68 = vector.broadcast %65 : vector<1x768xf32> to vector<8x768xf32>
    %69 = arith.mulf %67, %68 : vector<8x768xf32>
    %70 = arith.addf %64, %69 : vector<8x768xf32>
    %c0_81 = arith.constant 0 : index
    %c127 = arith.constant 127 : index
    %71 = vector.load %arg0[%c0_81, %c127] : memref<1x1024xf32, #tpu.memory_space<vmem>>, vector<1x768xf32>
    %c0_82 = arith.constant 0 : index
    %c3 = arith.constant 3 : index
    %72 = vector.load %arg1[%c0_82, %c3] : memref<8x9xf32, #tpu.memory_space<vmem>>, vector<8x1xf32>
    %73 = vector.broadcast %72 : vector<8x1xf32> to vector<8x768xf32>
    %74 = vector.broadcast %71 : vector<1x768xf32> to vector<8x768xf32>
    %75 = arith.mulf %73, %74 : vector<8x768xf32>
    %76 = arith.addf %70, %75 : vector<8x768xf32>
    %c0_83 = arith.constant 0 : index
    %c128 = arith.constant 128 : index
    %77 = vector.load %arg0[%c0_83, %c128] : memref<1x1024xf32, #tpu.memory_space<vmem>>, vector<1x768xf32>
    %c0_84 = arith.constant 0 : index
    %c4 = arith.constant 4 : index
    %78 = vector.load %arg1[%c0_84, %c4] : memref<8x9xf32, #tpu.memory_space<vmem>>, vector<8x1xf32>
    %79 = vector.broadcast %78 : vector<8x1xf32> to vector<8x768xf32>
    %80 = vector.broadcast %77 : vector<1x768xf32> to vector<8x768xf32>
    %81 = arith.mulf %79, %80 : vector<8x768xf32>
    %82 = arith.addf %76, %81 : vector<8x768xf32>
    %c0_85 = arith.constant 0 : index
    %c129 = arith.constant 129 : index
    %83 = vector.load %arg0[%c0_85, %c129] : memref<1x1024xf32, #tpu.memory_space<vmem>>, vector<1x768xf32>
    %c0_86 = arith.constant 0 : index
    %c5 = arith.constant 5 : index
    %84 = vector.load %arg1[%c0_86, %c5] : memref<8x9xf32, #tpu.memory_space<vmem>>, vector<8x1xf32>
    %85 = vector.broadcast %84 : vector<8x1xf32> to vector<8x768xf32>
    %86 = vector.broadcast %83 : vector<1x768xf32> to vector<8x768xf32>
    %87 = arith.mulf %85, %86 : vector<8x768xf32>
    %88 = arith.addf %82, %87 : vector<8x768xf32>
    %c0_87 = arith.constant 0 : index
    %c145 = arith.constant 145 : index
    %89 = vector.load %arg0[%c0_87, %c145] : memref<1x1024xf32, #tpu.memory_space<vmem>>, vector<1x768xf32>
    %c0_88 = arith.constant 0 : index
    %c6 = arith.constant 6 : index
    %90 = vector.load %arg1[%c0_88, %c6] : memref<8x9xf32, #tpu.memory_space<vmem>>, vector<8x1xf32>
    %91 = vector.broadcast %90 : vector<8x1xf32> to vector<8x768xf32>
    %92 = vector.broadcast %89 : vector<1x768xf32> to vector<8x768xf32>
    %93 = arith.mulf %91, %92 : vector<8x768xf32>
    %94 = arith.addf %88, %93 : vector<8x768xf32>
    %c0_89 = arith.constant 0 : index
    %c146 = arith.constant 146 : index
    %95 = vector.load %arg0[%c0_89, %c146] : memref<1x1024xf32, #tpu.memory_space<vmem>>, vector<1x768xf32>
    %c0_90 = arith.constant 0 : index
    %c7 = arith.constant 7 : index
    %96 = vector.load %arg1[%c0_90, %c7] : memref<8x9xf32, #tpu.memory_space<vmem>>, vector<8x1xf32>
    %97 = vector.broadcast %96 : vector<8x1xf32> to vector<8x768xf32>
    %98 = vector.broadcast %95 : vector<1x768xf32> to vector<8x768xf32>
    %99 = arith.mulf %97, %98 : vector<8x768xf32>
    %100 = arith.addf %94, %99 : vector<8x768xf32>
    %c0_91 = arith.constant 0 : index
    %c147 = arith.constant 147 : index
    %101 = vector.load %arg0[%c0_91, %c147] : memref<1x1024xf32, #tpu.memory_space<vmem>>, vector<1x768xf32>
    %c0_92 = arith.constant 0 : index
    %c8 = arith.constant 8 : index
    %102 = vector.load %arg1[%c0_92, %c8] : memref<8x9xf32, #tpu.memory_space<vmem>>, vector<8x1xf32>
    %103 = vector.broadcast %102 : vector<8x1xf32> to vector<8x768xf32>
    %104 = vector.broadcast %101 : vector<1x768xf32> to vector<8x768xf32>
    %105 = arith.mulf %103, %104 : vector<8x768xf32>
    %106 = arith.addf %100, %105 : vector<8x768xf32>
    %c0_93 = arith.constant 0 : index
    %c0_94 = arith.constant 0 : index
    %107 = vector.load %arg2[%c0_93, %c0_94] : memref<8x1xf32, #tpu.memory_space<vmem>>, vector<8x1xf32>
    %108 = vector.broadcast %107 : vector<8x1xf32> to vector<8x768xf32>
    %109 = arith.addf %106, %108 : vector<8x768xf32>
    %cst_95 = arith.constant 0.000000e+00 : f32
    %110 = vector.broadcast %cst_95 : f32 to vector<8x768xf32>
    %111 = arith.maximumf %109, %110 : vector<8x768xf32>
    %c0_96 = arith.constant 0 : index
    %c0_97 = arith.constant 0 : index
    %112 = vector.load %arg23[%c0_96, %c0_97] : memref<1x768xf32, #tpu.memory_space<vmem>>, vector<1x768xf32>
    %113 = vector.broadcast %112 : vector<1x768xf32> to vector<8x768xf32>
    %114 = arith.mulf %111, %113 : vector<8x768xf32>
    %c0_98 = arith.constant 0 : index
    %c128_99 = arith.constant 128 : index
    %115 = vector.load %arg32[%c0_98, %c128_99] : memref<8x1024xf32, #tpu.memory_space<vmem>>, vector<8x768xf32>
    tpu.vector_store %arg32[%c0_98, %c128_99], %114 {strides = array<i32>} : memref<8x1024xf32, #tpu.memory_space<vmem>>, vector<8x768xf32>,
    %c0_100 = arith.constant 0 : index
    %c109_101 = arith.constant 109 : index
    %116 = vector.load %arg32[%c0_100, %c109_101] : memref<8x1024xf32, #tpu.memory_space<vmem>>, vector<8x768xf32>
    %c0_102 = arith.constant 0 : index
    %c0_103 = arith.constant 0 : index
    %117 = vector.load %arg31[%c0_102, %c0_103] : memref<288x768xf32, #tpu.memory_space<vmem>>, vector<8x768xf32>
    tpu.vector_store %arg31[%c0_102, %c0_103], %116 {strides = array<i32>} : memref<288x768xf32, #tpu.memory_space<vmem>>, vector<8x768xf32>,
    %c0_104 = arith.constant 0 : index
    %c110_105 = arith.constant 110 : index
    %118 = vector.load %arg32[%c0_104, %c110_105] : memref<8x1024xf32, #tpu.memory_space<vmem>>, vector<8x768xf32>
    %c8_106 = arith.constant 8 : index
    %c0_107 = arith.constant 0 : index
    %119 = vector.load %arg31[%c8_106, %c0_107] : memref<288x768xf32, #tpu.memory_space<vmem>>, vector<8x768xf32>
    tpu.vector_store %arg31[%c8_106, %c0_107], %118 {strides = array<i32>} : memref<288x768xf32, #tpu.memory_space<vmem>>, vector<8x768xf32>,
    %c0_108 = arith.constant 0 : index
    %c111_109 = arith.constant 111 : index
    %120 = vector.load %arg32[%c0_108, %c111_109] : memref<8x1024xf32, #tpu.memory_space<vmem>>, vector<8x768xf32>
    %c16 = arith.constant 16 : index
    %c0_110 = arith.constant 0 : index
    %121 = vector.load %arg31[%c16, %c0_110] : memref<288x768xf32, #tpu.memory_space<vmem>>, vector<8x768xf32>
    tpu.vector_store %arg31[%c16, %c0_110], %120 {strides = array<i32>} : memref<288x768xf32, #tpu.memory_space<vmem>>, vector<8x768xf32>,
    %c0_111 = arith.constant 0 : index
    %c127_112 = arith.constant 127 : index
    %122 = vector.load %arg32[%c0_111, %c127_112] : memref<8x1024xf32, #tpu.memory_space<vmem>>, vector<8x768xf32>
    %c24 = arith.constant 24 : index
    %c0_113 = arith.constant 0 : index
    %123 = vector.load %arg31[%c24, %c0_113] : memref<288x768xf32, #tpu.memory_space<vmem>>, vector<8x768xf32>
    tpu.vector_store %arg31[%c24, %c0_113], %122 {strides = array<i32>} : memref<288x768xf32, #tpu.memory_space<vmem>>, vector<8x768xf32>,
    %c0_114 = arith.constant 0 : index
    %c128_115 = arith.constant 128 : index
    %124 = vector.load %arg32[%c0_114, %c128_115] : memref<8x1024xf32, #tpu.memory_space<vmem>>, vector<8x768xf32>
    %c32 = arith.constant 32 : index
    %c0_116 = arith.constant 0 : index
    %125 = vector.load %arg31[%c32, %c0_116] : memref<288x768xf32, #tpu.memory_space<vmem>>, vector<8x768xf32>
    tpu.vector_store %arg31[%c32, %c0_116], %124 {strides = array<i32>} : memref<288x768xf32, #tpu.memory_space<vmem>>, vector<8x768xf32>,
    %c0_117 = arith.constant 0 : index
    %c129_118 = arith.constant 129 : index
    %126 = vector.load %arg32[%c0_117, %c129_118] : memref<8x1024xf32, #tpu.memory_space<vmem>>, vector<8x768xf32>
    %c40 = arith.constant 40 : index
    %c0_119 = arith.constant 0 : index
    %127 = vector.load %arg31[%c40, %c0_119] : memref<288x768xf32, #tpu.memory_space<vmem>>, vector<8x768xf32>
    tpu.vector_store %arg31[%c40, %c0_119], %126 {strides = array<i32>} : memref<288x768xf32, #tpu.memory_space<vmem>>, vector<8x768xf32>,
    %c0_120 = arith.constant 0 : index
    %c145_121 = arith.constant 145 : index
    %128 = vector.load %arg32[%c0_120, %c145_121] : memref<8x1024xf32, #tpu.memory_space<vmem>>, vector<8x768xf32>
    %c48 = arith.constant 48 : index
    %c0_122 = arith.constant 0 : index
    %129 = vector.load %arg31[%c48, %c0_122] : memref<288x768xf32, #tpu.memory_space<vmem>>, vector<8x768xf32>
    tpu.vector_store %arg31[%c48, %c0_122], %128 {strides = array<i32>} : memref<288x768xf32, #tpu.memory_space<vmem>>, vector<8x768xf32>,
    %c0_123 = arith.constant 0 : index
    %c146_124 = arith.constant 146 : index
    %130 = vector.load %arg32[%c0_123, %c146_124] : memref<8x1024xf32, #tpu.memory_space<vmem>>, vector<8x768xf32>
    %c56 = arith.constant 56 : index
    %c0_125 = arith.constant 0 : index
    %131 = vector.load %arg31[%c56, %c0_125] : memref<288x768xf32, #tpu.memory_space<vmem>>, vector<8x768xf32>
    tpu.vector_store %arg31[%c56, %c0_125], %130 {strides = array<i32>} : memref<288x768xf32, #tpu.memory_space<vmem>>, vector<8x768xf32>,
    %c0_126 = arith.constant 0 : index
    %c147_127 = arith.constant 147 : index
    %132 = vector.load %arg32[%c0_126, %c147_127] : memref<8x1024xf32, #tpu.memory_space<vmem>>, vector<8x768xf32>
    %c64 = arith.constant 64 : index
    %c0_128 = arith.constant 0 : index
    %133 = vector.load %arg31[%c64, %c0_128] : memref<288x768xf32, #tpu.memory_space<vmem>>, vector<8x768xf32>
    tpu.vector_store %arg31[%c64, %c0_128], %132 {strides = array<i32>} : memref<288x768xf32, #tpu.memory_space<vmem>>, vector<8x768xf32>,
    %c0_129 = arith.constant 0 : index
    %c0_130 = arith.constant 0 : index
    %134 = vector.load %arg3[%c0_129, %c0_130] : memref<8x72xbf16, #tpu.memory_space<vmem>>, vector<8x72xbf16>
    %c0_131 = arith.constant 0 : index
    %c0_132 = arith.constant 0 : index
    %135 = vector.load %arg31[%c0_131, %c0_132] : memref<288x768xf32, #tpu.memory_space<vmem>>, vector<72x768xf32>
    %136 = arith.truncf %135 : vector<72x768xf32> to vector<72x768xbf16>
    %cst_133 = arith.constant dense<0.000000e+00> : vector<8x768xf32>
    %137 = tpu.matmul %134, %136, %cst_133 {dimension_numbers = #tpu.dot_dimension_numbers<[1], [0], [0], [1], [0, 0, 1, 1], [], []>} : vector<8x72xbf16>, vector<72x768xbf16>, vector<8x768xf32> -> vector<8x768xf32>
    %c0_134 = arith.constant 0 : index
    %c0_135 = arith.constant 0 : index
    %138 = vector.load %arg4[%c0_134, %c0_135] : memref<8x1xf32, #tpu.memory_space<vmem>>, vector<8x1xf32>
    %139 = vector.broadcast %138 : vector<8x1xf32> to vector<8x768xf32>
    %140 = arith.addf %137, %139 : vector<8x768xf32>
    %cst_136 = arith.constant 0.000000e+00 : f32
    %141 = vector.broadcast %cst_136 : f32 to vector<8x768xf32>
    %142 = arith.maximumf %140, %141 : vector<8x768xf32>
    %c0_137 = arith.constant 0 : index
    %c0_138 = arith.constant 0 : index
    %143 = vector.load %arg23[%c0_137, %c0_138] : memref<1x768xf32, #tpu.memory_space<vmem>>, vector<1x768xf32>
    %144 = vector.broadcast %143 : vector<1x768xf32> to vector<8x768xf32>
    %145 = arith.mulf %142, %144 : vector<8x768xf32>
    %c0_139 = arith.constant 0 : index
    %c128_140 = arith.constant 128 : index
    %146 = vector.load %arg33[%c0_139, %c128_140] : memref<8x1024xf32, #tpu.memory_space<vmem>>, vector<8x768xf32>
    tpu.vector_store %arg33[%c0_139, %c128_140], %145 {strides = array<i32>} : memref<8x1024xf32, #tpu.memory_space<vmem>>, vector<8x768xf32>,
    %c0_141 = arith.constant 0 : index
    %c128_142 = arith.constant 128 : index
    %147 = vector.load %arg33[%c0_141, %c128_142] : memref<8x1024xf32, #tpu.memory_space<vmem>>, vector<8x768xf32>
    %c0_143 = arith.constant 0 : index
    %c129_144 = arith.constant 129 : index
    %148 = vector.load %arg33[%c0_143, %c129_144] : memref<8x1024xf32, #tpu.memory_space<vmem>>, vector<8x768xf32>
    %149 = arith.maximumf %147, %148 : vector<8x768xf32>
    %c0_145 = arith.constant 0 : index
    %c146_146 = arith.constant 146 : index
    %150 = vector.load %arg33[%c0_145, %c146_146] : memref<8x1024xf32, #tpu.memory_space<vmem>>, vector<8x768xf32>
    %c0_147 = arith.constant 0 : index
    %c147_148 = arith.constant 147 : index
    %151 = vector.load %arg33[%c0_147, %c147_148] : memref<8x1024xf32, #tpu.memory_space<vmem>>, vector<8x768xf32>
    %152 = arith.maximumf %150, %151 : vector<8x768xf32>
    %153 = arith.maximumf %149, %152 : vector<8x768xf32>
    %154 = arith.truncf %153 : vector<8x768xf32> to vector<8x768xbf16>
    %c0_149 = arith.constant 0 : index
    %c0_150 = arith.constant 0 : index
    %155 = vector.load %arg26[%c0_149, %c0_150] : memref<768x256xbf16, #tpu.memory_space<vmem>>, vector<768x256xbf16>
    %cst_151 = arith.constant dense<0.000000e+00> : vector<8x256xf32>
    %156 = tpu.matmul %154, %155, %cst_151 {dimension_numbers = #tpu.dot_dimension_numbers<[1], [0], [0], [1], [0, 0, 1, 1], [], []>} : vector<8x768xbf16>, vector<768x256xbf16>, vector<8x256xf32> -> vector<8x256xf32>
    %c0_152 = arith.constant 0 : index
    %c128_153 = arith.constant 128 : index
    %157 = vector.load %arg34[%c0_152, %c128_153] : memref<8x512xf32, #tpu.memory_space<vmem>>, vector<8x256xf32>
    tpu.vector_store %arg34[%c0_152, %c128_153], %156 {strides = array<i32>} : memref<8x512xf32, #tpu.memory_space<vmem>>, vector<8x256xf32>,
    %c0_154 = arith.constant 0 : index
    %c117 = arith.constant 117 : index
    %158 = vector.load %arg34[%c0_154, %c117] : memref<8x512xf32, #tpu.memory_space<vmem>>, vector<8x256xf32>
    %c0_155 = arith.constant 0 : index
    %c0_156 = arith.constant 0 : index
    %159 = vector.load %arg31[%c0_155, %c0_156] : memref<288x768xf32, #tpu.memory_space<vmem>>, vector<8x256xf32>
    tpu.vector_store %arg31[%c0_155, %c0_156], %158 {strides = array<i32>} : memref<288x768xf32, #tpu.memory_space<vmem>>, vector<8x256xf32>,
    %c0_157 = arith.constant 0 : index
    %c118 = arith.constant 118 : index
    %160 = vector.load %arg34[%c0_157, %c118] : memref<8x512xf32, #tpu.memory_space<vmem>>, vector<8x256xf32>
    %c8_158 = arith.constant 8 : index
    %c0_159 = arith.constant 0 : index
    %161 = vector.load %arg31[%c8_158, %c0_159] : memref<288x768xf32, #tpu.memory_space<vmem>>, vector<8x256xf32>
    tpu.vector_store %arg31[%c8_158, %c0_159], %160 {strides = array<i32>} : memref<288x768xf32, #tpu.memory_space<vmem>>, vector<8x256xf32>,
    %c0_160 = arith.constant 0 : index
    %c119 = arith.constant 119 : index
    %162 = vector.load %arg34[%c0_160, %c119] : memref<8x512xf32, #tpu.memory_space<vmem>>, vector<8x256xf32>
    %c16_161 = arith.constant 16 : index
    %c0_162 = arith.constant 0 : index
    %163 = vector.load %arg31[%c16_161, %c0_162] : memref<288x768xf32, #tpu.memory_space<vmem>>, vector<8x256xf32>
    tpu.vector_store %arg31[%c16_161, %c0_162], %162 {strides = array<i32>} : memref<288x768xf32, #tpu.memory_space<vmem>>, vector<8x256xf32>,
    %c0_163 = arith.constant 0 : index
    %c127_164 = arith.constant 127 : index
    %164 = vector.load %arg34[%c0_163, %c127_164] : memref<8x512xf32, #tpu.memory_space<vmem>>, vector<8x256xf32>
    %c24_165 = arith.constant 24 : index
    %c0_166 = arith.constant 0 : index
    %165 = vector.load %arg31[%c24_165, %c0_166] : memref<288x768xf32, #tpu.memory_space<vmem>>, vector<8x256xf32>
    tpu.vector_store %arg31[%c24_165, %c0_166], %164 {strides = array<i32>} : memref<288x768xf32, #tpu.memory_space<vmem>>, vector<8x256xf32>,
    %c0_167 = arith.constant 0 : index
    %c128_168 = arith.constant 128 : index
    %166 = vector.load %arg34[%c0_167, %c128_168] : memref<8x512xf32, #tpu.memory_space<vmem>>, vector<8x256xf32>
    %c32_169 = arith.constant 32 : index
    %c0_170 = arith.constant 0 : index
    %167 = vector.load %arg31[%c32_169, %c0_170] : memref<288x768xf32, #tpu.memory_space<vmem>>, vector<8x256xf32>
    tpu.vector_store %arg31[%c32_169, %c0_170], %166 {strides = array<i32>} : memref<288x768xf32, #tpu.memory_space<vmem>>, vector<8x256xf32>,
    %c0_171 = arith.constant 0 : index
    %c129_172 = arith.constant 129 : index
    %168 = vector.load %arg34[%c0_171, %c129_172] : memref<8x512xf32, #tpu.memory_space<vmem>>, vector<8x256xf32>
    %c40_173 = arith.constant 40 : index
    %c0_174 = arith.constant 0 : index
    %169 = vector.load %arg31[%c40_173, %c0_174] : memref<288x768xf32, #tpu.memory_space<vmem>>, vector<8x256xf32>
    tpu.vector_store %arg31[%c40_173, %c0_174], %168 {strides = array<i32>} : memref<288x768xf32, #tpu.memory_space<vmem>>, vector<8x256xf32>,
    %c0_175 = arith.constant 0 : index
    %c137 = arith.constant 137 : index
    %170 = vector.load %arg34[%c0_175, %c137] : memref<8x512xf32, #tpu.memory_space<vmem>>, vector<8x256xf32>
    %c48_176 = arith.constant 48 : index
    %c0_177 = arith.constant 0 : index
    %171 = vector.load %arg31[%c48_176, %c0_177] : memref<288x768xf32, #tpu.memory_space<vmem>>, vector<8x256xf32>
    tpu.vector_store %arg31[%c48_176, %c0_177], %170 {strides = array<i32>} : memref<288x768xf32, #tpu.memory_space<vmem>>, vector<8x256xf32>,
    %c0_178 = arith.constant 0 : index
    %c138 = arith.constant 138 : index
    %172 = vector.load %arg34[%c0_178, %c138] : memref<8x512xf32, #tpu.memory_space<vmem>>, vector<8x256xf32>
    %c56_179 = arith.constant 56 : index
    %c0_180 = arith.constant 0 : index
    %173 = vector.load %arg31[%c56_179, %c0_180] : memref<288x768xf32, #tpu.memory_space<vmem>>, vector<8x256xf32>
    tpu.vector_store %arg31[%c56_179, %c0_180], %172 {strides = array<i32>} : memref<288x768xf32, #tpu.memory_space<vmem>>, vector<8x256xf32>,
    %c0_181 = arith.constant 0 : index
    %c139 = arith.constant 139 : index
    %174 = vector.load %arg34[%c0_181, %c139] : memref<8x512xf32, #tpu.memory_space<vmem>>, vector<8x256xf32>
    %c64_182 = arith.constant 64 : index
    %c0_183 = arith.constant 0 : index
    %175 = vector.load %arg31[%c64_182, %c0_183] : memref<288x768xf32, #tpu.memory_space<vmem>>, vector<8x256xf32>
    tpu.vector_store %arg31[%c64_182, %c0_183], %174 {strides = array<i32>} : memref<288x768xf32, #tpu.memory_space<vmem>>, vector<8x256xf32>,
    %c0_184 = arith.constant 0 : index
    %c0_185 = arith.constant 0 : index
    %176 = vector.load %arg5[%c0_184, %c0_185] : memref<16x72xbf16, #tpu.memory_space<vmem>>, vector<16x72xbf16>
    %c0_186 = arith.constant 0 : index
    %c0_187 = arith.constant 0 : index
    %177 = vector.load %arg31[%c0_186, %c0_187] : memref<288x768xf32, #tpu.memory_space<vmem>>, vector<72x256xf32>
    %178 = arith.truncf %177 : vector<72x256xf32> to vector<72x256xbf16>
    %cst_188 = arith.constant dense<0.000000e+00> : vector<16x256xf32>
    %179 = tpu.matmul %176, %178, %cst_188 {dimension_numbers = #tpu.dot_dimension_numbers<[1], [0], [0], [1], [0, 0, 1, 1], [], []>} : vector<16x72xbf16>, vector<72x256xbf16>, vector<16x256xf32> -> vector<16x256xf32>
    %c0_189 = arith.constant 0 : index
    %c0_190 = arith.constant 0 : index
    %180 = vector.load %arg6[%c0_189, %c0_190] : memref<16x1xf32, #tpu.memory_space<vmem>>, vector<16x1xf32>
    %181 = vector.broadcast %180 : vector<16x1xf32> to vector<16x256xf32>
    %182 = arith.addf %179, %181 : vector<16x256xf32>
    %cst_191 = arith.constant 0.000000e+00 : f32
    %183 = vector.broadcast %cst_191 : f32 to vector<16x256xf32>
    %184 = arith.maximumf %182, %183 : vector<16x256xf32>
    %c0_192 = arith.constant 0 : index
    %c0_193 = arith.constant 0 : index
    %185 = vector.load %arg24[%c0_192, %c0_193] : memref<1x256xf32, #tpu.memory_space<vmem>>, vector<1x256xf32>
    %186 = vector.broadcast %185 : vector<1x256xf32> to vector<16x256xf32>
    %187 = arith.mulf %184, %186 : vector<16x256xf32>
    %c0_194 = arith.constant 0 : index
    %c128_195 = arith.constant 128 : index
    %188 = vector.load %arg35[%c0_194, %c128_195] : memref<16x512xf32, #tpu.memory_space<vmem>>, vector<16x256xf32>
    tpu.vector_store %arg35[%c0_194, %c128_195], %187 {strides = array<i32>} : memref<16x512xf32, #tpu.memory_space<vmem>>, vector<16x256xf32>,
    %c0_196 = arith.constant 0 : index
    %c117_197 = arith.constant 117 : index
    %189 = vector.load %arg35[%c0_196, %c117_197] : memref<16x512xf32, #tpu.memory_space<vmem>>, vector<16x256xf32>
    %c0_198 = arith.constant 0 : index
    %c0_199 = arith.constant 0 : index
    %190 = vector.load %arg31[%c0_198, %c0_199] : memref<288x768xf32, #tpu.memory_space<vmem>>, vector<16x256xf32>
    tpu.vector_store %arg31[%c0_198, %c0_199], %189 {strides = array<i32>} : memref<288x768xf32, #tpu.memory_space<vmem>>, vector<16x256xf32>,
    %c0_200 = arith.constant 0 : index
    %c118_201 = arith.constant 118 : index
    %191 = vector.load %arg35[%c0_200, %c118_201] : memref<16x512xf32, #tpu.memory_space<vmem>>, vector<16x256xf32>
    %c16_202 = arith.constant 16 : index
    %c0_203 = arith.constant 0 : index
    %192 = vector.load %arg31[%c16_202, %c0_203] : memref<288x768xf32, #tpu.memory_space<vmem>>, vector<16x256xf32>
    tpu.vector_store %arg31[%c16_202, %c0_203], %191 {strides = array<i32>} : memref<288x768xf32, #tpu.memory_space<vmem>>, vector<16x256xf32>,
    %c0_204 = arith.constant 0 : index
    %c119_205 = arith.constant 119 : index
    %193 = vector.load %arg35[%c0_204, %c119_205] : memref<16x512xf32, #tpu.memory_space<vmem>>, vector<16x256xf32>
    %c32_206 = arith.constant 32 : index
    %c0_207 = arith.constant 0 : index
    %194 = vector.load %arg31[%c32_206, %c0_207] : memref<288x768xf32, #tpu.memory_space<vmem>>, vector<16x256xf32>
    tpu.vector_store %arg31[%c32_206, %c0_207], %193 {strides = array<i32>} : memref<288x768xf32, #tpu.memory_space<vmem>>, vector<16x256xf32>,
    %c0_208 = arith.constant 0 : index
    %c127_209 = arith.constant 127 : index
    %195 = vector.load %arg35[%c0_208, %c127_209] : memref<16x512xf32, #tpu.memory_space<vmem>>, vector<16x256xf32>
    %c48_210 = arith.constant 48 : index
    %c0_211 = arith.constant 0 : index
    %196 = vector.load %arg31[%c48_210, %c0_211] : memref<288x768xf32, #tpu.memory_space<vmem>>, vector<16x256xf32>
    tpu.vector_store %arg31[%c48_210, %c0_211], %195 {strides = array<i32>} : memref<288x768xf32, #tpu.memory_space<vmem>>, vector<16x256xf32>,
    %c0_212 = arith.constant 0 : index
    %c128_213 = arith.constant 128 : index
    %197 = vector.load %arg35[%c0_212, %c128_213] : memref<16x512xf32, #tpu.memory_space<vmem>>, vector<16x256xf32>
    %c64_214 = arith.constant 64 : index
    %c0_215 = arith.constant 0 : index
    %198 = vector.load %arg31[%c64_214, %c0_215] : memref<288x768xf32, #tpu.memory_space<vmem>>, vector<16x256xf32>
    tpu.vector_store %arg31[%c64_214, %c0_215], %197 {strides = array<i32>} : memref<288x768xf32, #tpu.memory_space<vmem>>, vector<16x256xf32>,
    %c0_216 = arith.constant 0 : index
    %c129_217 = arith.constant 129 : index
    %199 = vector.load %arg35[%c0_216, %c129_217] : memref<16x512xf32, #tpu.memory_space<vmem>>, vector<16x256xf32>
    %c80 = arith.constant 80 : index
    %c0_218 = arith.constant 0 : index
    %200 = vector.load %arg31[%c80, %c0_218] : memref<288x768xf32, #tpu.memory_space<vmem>>, vector<16x256xf32>
    tpu.vector_store %arg31[%c80, %c0_218], %199 {strides = array<i32>} : memref<288x768xf32, #tpu.memory_space<vmem>>, vector<16x256xf32>,
    %c0_219 = arith.constant 0 : index
    %c137_220 = arith.constant 137 : index
    %201 = vector.load %arg35[%c0_219, %c137_220] : memref<16x512xf32, #tpu.memory_space<vmem>>, vector<16x256xf32>
    %c96 = arith.constant 96 : index
    %c0_221 = arith.constant 0 : index
    %202 = vector.load %arg31[%c96, %c0_221] : memref<288x768xf32, #tpu.memory_space<vmem>>, vector<16x256xf32>
    tpu.vector_store %arg31[%c96, %c0_221], %201 {strides = array<i32>} : memref<288x768xf32, #tpu.memory_space<vmem>>, vector<16x256xf32>,
    %c0_222 = arith.constant 0 : index
    %c138_223 = arith.constant 138 : index
    %203 = vector.load %arg35[%c0_222, %c138_223] : memref<16x512xf32, #tpu.memory_space<vmem>>, vector<16x256xf32>
    %c112 = arith.constant 112 : index
    %c0_224 = arith.constant 0 : index
    %204 = vector.load %arg31[%c112, %c0_224] : memref<288x768xf32, #tpu.memory_space<vmem>>, vector<16x256xf32>
    tpu.vector_store %arg31[%c112, %c0_224], %203 {strides = array<i32>} : memref<288x768xf32, #tpu.memory_space<vmem>>, vector<16x256xf32>,
    %c0_225 = arith.constant 0 : index
    %c139_226 = arith.constant 139 : index
    %205 = vector.load %arg35[%c0_225, %c139_226] : memref<16x512xf32, #tpu.memory_space<vmem>>, vector<16x256xf32>
    %c128_227 = arith.constant 128 : index
    %c0_228 = arith.constant 0 : index
    %206 = vector.load %arg31[%c128_227, %c0_228] : memref<288x768xf32, #tpu.memory_space<vmem>>, vector<16x256xf32>
    tpu.vector_store %arg31[%c128_227, %c0_228], %205 {strides = array<i32>} : memref<288x768xf32, #tpu.memory_space<vmem>>, vector<16x256xf32>,
    %c0_229 = arith.constant 0 : index
    %c0_230 = arith.constant 0 : index
    %207 = vector.load %arg7[%c0_229, %c0_230] : memref<16x144xbf16, #tpu.memory_space<vmem>>, vector<16x144xbf16>
    %c0_231 = arith.constant 0 : index
    %c0_232 = arith.constant 0 : index
    %208 = vector.load %arg31[%c0_231, %c0_232] : memref<288x768xf32, #tpu.memory_space<vmem>>, vector<144x256xf32>
    %209 = arith.truncf %208 : vector<144x256xf32> to vector<144x256xbf16>
    %cst_233 = arith.constant dense<0.000000e+00> : vector<16x256xf32>
    %210 = tpu.matmul %207, %209, %cst_233 {dimension_numbers = #tpu.dot_dimension_numbers<[1], [0], [0], [1], [0, 0, 1, 1], [], []>} : vector<16x144xbf16>, vector<144x256xbf16>, vector<16x256xf32> -> vector<16x256xf32>
    %c0_234 = arith.constant 0 : index
    %c0_235 = arith.constant 0 : index
    %211 = vector.load %arg8[%c0_234, %c0_235] : memref<16x1xf32, #tpu.memory_space<vmem>>, vector<16x1xf32>
    %212 = vector.broadcast %211 : vector<16x1xf32> to vector<16x256xf32>
    %213 = arith.addf %210, %212 : vector<16x256xf32>
    %cst_236 = arith.constant 0.000000e+00 : f32
    %214 = vector.broadcast %cst_236 : f32 to vector<16x256xf32>
    %215 = arith.maximumf %213, %214 : vector<16x256xf32>
    %c0_237 = arith.constant 0 : index
    %c0_238 = arith.constant 0 : index
    %216 = vector.load %arg24[%c0_237, %c0_238] : memref<1x256xf32, #tpu.memory_space<vmem>>, vector<1x256xf32>
    %217 = vector.broadcast %216 : vector<1x256xf32> to vector<16x256xf32>
    %218 = arith.mulf %215, %217 : vector<16x256xf32>
    %c0_239 = arith.constant 0 : index
    %c128_240 = arith.constant 128 : index
    %219 = vector.load %arg36[%c0_239, %c128_240] : memref<16x512xf32, #tpu.memory_space<vmem>>, vector<16x256xf32>
    tpu.vector_store %arg36[%c0_239, %c128_240], %218 {strides = array<i32>} : memref<16x512xf32, #tpu.memory_space<vmem>>, vector<16x256xf32>,
    %c0_241 = arith.constant 0 : index
    %c128_242 = arith.constant 128 : index
    %220 = vector.load %arg36[%c0_241, %c128_242] : memref<16x512xf32, #tpu.memory_space<vmem>>, vector<16x256xf32>
    %c0_243 = arith.constant 0 : index
    %c129_244 = arith.constant 129 : index
    %221 = vector.load %arg36[%c0_243, %c129_244] : memref<16x512xf32, #tpu.memory_space<vmem>>, vector<16x256xf32>
    %222 = arith.maximumf %220, %221 : vector<16x256xf32>
    %c0_245 = arith.constant 0 : index
    %c138_246 = arith.constant 138 : index
    %223 = vector.load %arg36[%c0_245, %c138_246] : memref<16x512xf32, #tpu.memory_space<vmem>>, vector<16x256xf32>
    %c0_247 = arith.constant 0 : index
    %c139_248 = arith.constant 139 : index
    %224 = vector.load %arg36[%c0_247, %c139_248] : memref<16x512xf32, #tpu.memory_space<vmem>>, vector<16x256xf32>
    %225 = arith.maximumf %223, %224 : vector<16x256xf32>
    %226 = arith.maximumf %222, %225 : vector<16x256xf32>
    %227 = arith.truncf %226 : vector<16x256xf32> to vector<16x256xbf16>
    %c0_249 = arith.constant 0 : index
    %c0_250 = arith.constant 0 : index
    %228 = vector.load %arg27[%c0_249, %c0_250] : memref<256x128xbf16, #tpu.memory_space<vmem>>, vector<256x128xbf16>
    %cst_251 = arith.constant dense<0.000000e+00> : vector<16x128xf32>
    %229 = tpu.matmul %227, %228, %cst_251 {dimension_numbers = #tpu.dot_dimension_numbers<[1], [0], [0], [1], [0, 0, 1, 1], [], []>} : vector<16x256xbf16>, vector<256x128xbf16>, vector<16x128xf32> -> vector<16x128xf32>
    %c0_252 = arith.constant 0 : index
    %c128_253 = arith.constant 128 : index
    %230 = vector.load %arg37[%c0_252, %c128_253] : memref<16x384xf32, #tpu.memory_space<vmem>>, vector<16x128xf32>
    tpu.vector_store %arg37[%c0_252, %c128_253], %229 {strides = array<i32>} : memref<16x384xf32, #tpu.memory_space<vmem>>, vector<16x128xf32>,
    %c0_254 = arith.constant 0 : index
    %c121 = arith.constant 121 : index
    %231 = vector.load %arg37[%c0_254, %c121] : memref<16x384xf32, #tpu.memory_space<vmem>>, vector<16x128xf32>
    %c0_255 = arith.constant 0 : index
    %c0_256 = arith.constant 0 : index
    %232 = vector.load %arg31[%c0_255, %c0_256] : memref<288x768xf32, #tpu.memory_space<vmem>>, vector<16x128xf32>
    tpu.vector_store %arg31[%c0_255, %c0_256], %231 {strides = array<i32>} : memref<288x768xf32, #tpu.memory_space<vmem>>, vector<16x128xf32>,
    %c0_257 = arith.constant 0 : index
    %c122 = arith.constant 122 : index
    %233 = vector.load %arg37[%c0_257, %c122] : memref<16x384xf32, #tpu.memory_space<vmem>>, vector<16x128xf32>
    %c16_258 = arith.constant 16 : index
    %c0_259 = arith.constant 0 : index
    %234 = vector.load %arg31[%c16_258, %c0_259] : memref<288x768xf32, #tpu.memory_space<vmem>>, vector<16x128xf32>
    tpu.vector_store %arg31[%c16_258, %c0_259], %233 {strides = array<i32>} : memref<288x768xf32, #tpu.memory_space<vmem>>, vector<16x128xf32>,
    %c0_260 = arith.constant 0 : index
    %c123 = arith.constant 123 : index
    %235 = vector.load %arg37[%c0_260, %c123] : memref<16x384xf32, #tpu.memory_space<vmem>>, vector<16x128xf32>
    %c32_261 = arith.constant 32 : index
    %c0_262 = arith.constant 0 : index
    %236 = vector.load %arg31[%c32_261, %c0_262] : memref<288x768xf32, #tpu.memory_space<vmem>>, vector<16x128xf32>
    tpu.vector_store %arg31[%c32_261, %c0_262], %235 {strides = array<i32>} : memref<288x768xf32, #tpu.memory_space<vmem>>, vector<16x128xf32>,
    %c0_263 = arith.constant 0 : index
    %c127_264 = arith.constant 127 : index
    %237 = vector.load %arg37[%c0_263, %c127_264] : memref<16x384xf32, #tpu.memory_space<vmem>>, vector<16x128xf32>
    %c48_265 = arith.constant 48 : index
    %c0_266 = arith.constant 0 : index
    %238 = vector.load %arg31[%c48_265, %c0_266] : memref<288x768xf32, #tpu.memory_space<vmem>>, vector<16x128xf32>
    tpu.vector_store %arg31[%c48_265, %c0_266], %237 {strides = array<i32>} : memref<288x768xf32, #tpu.memory_space<vmem>>, vector<16x128xf32>,
    %c0_267 = arith.constant 0 : index
    %c128_268 = arith.constant 128 : index
    %239 = vector.load %arg37[%c0_267, %c128_268] : memref<16x384xf32, #tpu.memory_space<vmem>>, vector<16x128xf32>
    %c64_269 = arith.constant 64 : index
    %c0_270 = arith.constant 0 : index
    %240 = vector.load %arg31[%c64_269, %c0_270] : memref<288x768xf32, #tpu.memory_space<vmem>>, vector<16x128xf32>
    tpu.vector_store %arg31[%c64_269, %c0_270], %239 {strides = array<i32>} : memref<288x768xf32, #tpu.memory_space<vmem>>, vector<16x128xf32>,
    %c0_271 = arith.constant 0 : index
    %c129_272 = arith.constant 129 : index
    %241 = vector.load %arg37[%c0_271, %c129_272] : memref<16x384xf32, #tpu.memory_space<vmem>>, vector<16x128xf32>
    %c80_273 = arith.constant 80 : index
    %c0_274 = arith.constant 0 : index
    %242 = vector.load %arg31[%c80_273, %c0_274] : memref<288x768xf32, #tpu.memory_space<vmem>>, vector<16x128xf32>
    tpu.vector_store %arg31[%c80_273, %c0_274], %241 {strides = array<i32>} : memref<288x768xf32, #tpu.memory_space<vmem>>, vector<16x128xf32>,
    %c0_275 = arith.constant 0 : index
    %c133 = arith.constant 133 : index
    %243 = vector.load %arg37[%c0_275, %c133] : memref<16x384xf32, #tpu.memory_space<vmem>>, vector<16x128xf32>
    %c96_276 = arith.constant 96 : index
    %c0_277 = arith.constant 0 : index
    %244 = vector.load %arg31[%c96_276, %c0_277] : memref<288x768xf32, #tpu.memory_space<vmem>>, vector<16x128xf32>
    tpu.vector_store %arg31[%c96_276, %c0_277], %243 {strides = array<i32>} : memref<288x768xf32, #tpu.memory_space<vmem>>, vector<16x128xf32>,
    %c0_278 = arith.constant 0 : index
    %c134 = arith.constant 134 : index
    %245 = vector.load %arg37[%c0_278, %c134] : memref<16x384xf32, #tpu.memory_space<vmem>>, vector<16x128xf32>
    %c112_279 = arith.constant 112 : index
    %c0_280 = arith.constant 0 : index
    %246 = vector.load %arg31[%c112_279, %c0_280] : memref<288x768xf32, #tpu.memory_space<vmem>>, vector<16x128xf32>
    tpu.vector_store %arg31[%c112_279, %c0_280], %245 {strides = array<i32>} : memref<288x768xf32, #tpu.memory_space<vmem>>, vector<16x128xf32>,
    %c0_281 = arith.constant 0 : index
    %c135 = arith.constant 135 : index
    %247 = vector.load %arg37[%c0_281, %c135] : memref<16x384xf32, #tpu.memory_space<vmem>>, vector<16x128xf32>
    %c128_282 = arith.constant 128 : index
    %c0_283 = arith.constant 0 : index
    %248 = vector.load %arg31[%c128_282, %c0_283] : memref<288x768xf32, #tpu.memory_space<vmem>>, vector<16x128xf32>
    tpu.vector_store %arg31[%c128_282, %c0_283], %247 {strides = array<i32>} : memref<288x768xf32, #tpu.memory_space<vmem>>, vector<16x128xf32>,
    %c0_284 = arith.constant 0 : index
    %c0_285 = arith.constant 0 : index
    %249 = vector.load %arg9[%c0_284, %c0_285] : memref<32x144xbf16, #tpu.memory_space<vmem>>, vector<32x144xbf16>
    %c0_286 = arith.constant 0 : index
    %c0_287 = arith.constant 0 : index
    %250 = vector.load %arg31[%c0_286, %c0_287] : memref<288x768xf32, #tpu.memory_space<vmem>>, vector<144x128xf32>
    %251 = arith.truncf %250 : vector<144x128xf32> to vector<144x128xbf16>
    %cst_288 = arith.constant dense<0.000000e+00> : vector<32x128xf32>
    %252 = tpu.matmul %249, %251, %cst_288 {dimension_numbers = #tpu.dot_dimension_numbers<[1], [0], [0], [1], [0, 0, 1, 1], [], []>} : vector<32x144xbf16>, vector<144x128xbf16>, vector<32x128xf32> -> vector<32x128xf32>
    %c0_289 = arith.constant 0 : index
    %c0_290 = arith.constant 0 : index
    %253 = vector.load %arg10[%c0_289, %c0_290] : memref<32x1xf32, #tpu.memory_space<vmem>>, vector<32x1xf32>
    %254 = vector.broadcast %253 : vector<32x1xf32> to vector<32x128xf32>
    %255 = arith.addf %252, %254 : vector<32x128xf32>
    %cst_291 = arith.constant 0.000000e+00 : f32
    %256 = vector.broadcast %cst_291 : f32 to vector<32x128xf32>
    %257 = arith.maximumf %255, %256 : vector<32x128xf32>
    %c0_292 = arith.constant 0 : index
    %c0_293 = arith.constant 0 : index
    %258 = vector.load %arg25[%c0_292, %c0_293] : memref<1x128xf32, #tpu.memory_space<vmem>>, vector<1x128xf32>
    %259 = vector.broadcast %258 : vector<1x128xf32> to vector<32x128xf32>
    %260 = arith.mulf %257, %259 : vector<32x128xf32>
    %c0_294 = arith.constant 0 : index
    %c128_295 = arith.constant 128 : index
    %261 = vector.load %arg38[%c0_294, %c128_295] : memref<32x384xf32, #tpu.memory_space<vmem>>, vector<32x128xf32>
    tpu.vector_store %arg38[%c0_294, %c128_295], %260 {strides = array<i32>} : memref<32x384xf32, #tpu.memory_space<vmem>>, vector<32x128xf32>,
    %c0_296 = arith.constant 0 : index
    %c121_297 = arith.constant 121 : index
    %262 = vector.load %arg38[%c0_296, %c121_297] : memref<32x384xf32, #tpu.memory_space<vmem>>, vector<32x128xf32>
    %c0_298 = arith.constant 0 : index
    %c0_299 = arith.constant 0 : index
    %263 = vector.load %arg31[%c0_298, %c0_299] : memref<288x768xf32, #tpu.memory_space<vmem>>, vector<32x128xf32>
    tpu.vector_store %arg31[%c0_298, %c0_299], %262 {strides = array<i32>} : memref<288x768xf32, #tpu.memory_space<vmem>>, vector<32x128xf32>,
    %c0_300 = arith.constant 0 : index
    %c122_301 = arith.constant 122 : index
    %264 = vector.load %arg38[%c0_300, %c122_301] : memref<32x384xf32, #tpu.memory_space<vmem>>, vector<32x128xf32>
    %c32_302 = arith.constant 32 : index
    %c0_303 = arith.constant 0 : index
    %265 = vector.load %arg31[%c32_302, %c0_303] : memref<288x768xf32, #tpu.memory_space<vmem>>, vector<32x128xf32>
    tpu.vector_store %arg31[%c32_302, %c0_303], %264 {strides = array<i32>} : memref<288x768xf32, #tpu.memory_space<vmem>>, vector<32x128xf32>,
    %c0_304 = arith.constant 0 : index
    %c123_305 = arith.constant 123 : index
    %266 = vector.load %arg38[%c0_304, %c123_305] : memref<32x384xf32, #tpu.memory_space<vmem>>, vector<32x128xf32>
    %c64_306 = arith.constant 64 : index
    %c0_307 = arith.constant 0 : index
    %267 = vector.load %arg31[%c64_306, %c0_307] : memref<288x768xf32, #tpu.memory_space<vmem>>, vector<32x128xf32>
    tpu.vector_store %arg31[%c64_306, %c0_307], %266 {strides = array<i32>} : memref<288x768xf32, #tpu.memory_space<vmem>>, vector<32x128xf32>,
    %c0_308 = arith.constant 0 : index
    %c127_309 = arith.constant 127 : index
    %268 = vector.load %arg38[%c0_308, %c127_309] : memref<32x384xf32, #tpu.memory_space<vmem>>, vector<32x128xf32>
    %c96_310 = arith.constant 96 : index
    %c0_311 = arith.constant 0 : index
    %269 = vector.load %arg31[%c96_310, %c0_311] : memref<288x768xf32, #tpu.memory_space<vmem>>, vector<32x128xf32>
    tpu.vector_store %arg31[%c96_310, %c0_311], %268 {strides = array<i32>} : memref<288x768xf32, #tpu.memory_space<vmem>>, vector<32x128xf32>,
    %c0_312 = arith.constant 0 : index
    %c128_313 = arith.constant 128 : index
    %270 = vector.load %arg38[%c0_312, %c128_313] : memref<32x384xf32, #tpu.memory_space<vmem>>, vector<32x128xf32>
    %c128_314 = arith.constant 128 : index
    %c0_315 = arith.constant 0 : index
    %271 = vector.load %arg31[%c128_314, %c0_315] : memref<288x768xf32, #tpu.memory_space<vmem>>, vector<32x128xf32>
    tpu.vector_store %arg31[%c128_314, %c0_315], %270 {strides = array<i32>} : memref<288x768xf32, #tpu.memory_space<vmem>>, vector<32x128xf32>,
    %c0_316 = arith.constant 0 : index
    %c129_317 = arith.constant 129 : index
    %272 = vector.load %arg38[%c0_316, %c129_317] : memref<32x384xf32, #tpu.memory_space<vmem>>, vector<32x128xf32>
    %c160 = arith.constant 160 : index
    %c0_318 = arith.constant 0 : index
    %273 = vector.load %arg31[%c160, %c0_318] : memref<288x768xf32, #tpu.memory_space<vmem>>, vector<32x128xf32>
    tpu.vector_store %arg31[%c160, %c0_318], %272 {strides = array<i32>} : memref<288x768xf32, #tpu.memory_space<vmem>>, vector<32x128xf32>,
    %c0_319 = arith.constant 0 : index
    %c133_320 = arith.constant 133 : index
    %274 = vector.load %arg38[%c0_319, %c133_320] : memref<32x384xf32, #tpu.memory_space<vmem>>, vector<32x128xf32>
    %c192 = arith.constant 192 : index
    %c0_321 = arith.constant 0 : index
    %275 = vector.load %arg31[%c192, %c0_321] : memref<288x768xf32, #tpu.memory_space<vmem>>, vector<32x128xf32>
    tpu.vector_store %arg31[%c192, %c0_321], %274 {strides = array<i32>} : memref<288x768xf32, #tpu.memory_space<vmem>>, vector<32x128xf32>,
    %c0_322 = arith.constant 0 : index
    %c134_323 = arith.constant 134 : index
    %276 = vector.load %arg38[%c0_322, %c134_323] : memref<32x384xf32, #tpu.memory_space<vmem>>, vector<32x128xf32>
    %c224 = arith.constant 224 : index
    %c0_324 = arith.constant 0 : index
    %277 = vector.load %arg31[%c224, %c0_324] : memref<288x768xf32, #tpu.memory_space<vmem>>, vector<32x128xf32>
    tpu.vector_store %arg31[%c224, %c0_324], %276 {strides = array<i32>} : memref<288x768xf32, #tpu.memory_space<vmem>>, vector<32x128xf32>,
    %c0_325 = arith.constant 0 : index
    %c135_326 = arith.constant 135 : index
    %278 = vector.load %arg38[%c0_325, %c135_326] : memref<32x384xf32, #tpu.memory_space<vmem>>, vector<32x128xf32>
    %c256_327 = arith.constant 256 : index
    %c0_328 = arith.constant 0 : index
    %279 = vector.load %arg31[%c256_327, %c0_328] : memref<288x768xf32, #tpu.memory_space<vmem>>, vector<32x128xf32>
    tpu.vector_store %arg31[%c256_327, %c0_328], %278 {strides = array<i32>} : memref<288x768xf32, #tpu.memory_space<vmem>>, vector<32x128xf32>,
    %c0_329 = arith.constant 0 : index
    %c0_330 = arith.constant 0 : index
    %280 = vector.load %arg11[%c0_329, %c0_330] : memref<32x288xbf16, #tpu.memory_space<vmem>>, vector<32x288xbf16>
    %c0_331 = arith.constant 0 : index
    %c0_332 = arith.constant 0 : index
    %281 = vector.load %arg31[%c0_331, %c0_332] : memref<288x768xf32, #tpu.memory_space<vmem>>, vector<288x128xf32>
    %282 = arith.truncf %281 : vector<288x128xf32> to vector<288x128xbf16>
    %cst_333 = arith.constant dense<0.000000e+00> : vector<32x128xf32>
    %283 = tpu.matmul %280, %282, %cst_333 {dimension_numbers = #tpu.dot_dimension_numbers<[1], [0], [0], [1], [0, 0, 1, 1], [], []>} : vector<32x288xbf16>, vector<288x128xbf16>, vector<32x128xf32> -> vector<32x128xf32>
    %c0_334 = arith.constant 0 : index
    %c0_335 = arith.constant 0 : index
    %284 = vector.load %arg12[%c0_334, %c0_335] : memref<32x1xf32, #tpu.memory_space<vmem>>, vector<32x1xf32>
    %285 = vector.broadcast %284 : vector<32x1xf32> to vector<32x128xf32>
    %286 = arith.addf %283, %285 : vector<32x128xf32>
    %cst_336 = arith.constant 0.000000e+00 : f32
    %287 = vector.broadcast %cst_336 : f32 to vector<32x128xf32>
    %288 = arith.maximumf %286, %287 : vector<32x128xf32>
    %c0_337 = arith.constant 0 : index
    %c0_338 = arith.constant 0 : index
    %289 = vector.load %arg25[%c0_337, %c0_338] : memref<1x128xf32, #tpu.memory_space<vmem>>, vector<1x128xf32>
    %290 = vector.broadcast %289 : vector<1x128xf32> to vector<32x128xf32>
    %291 = arith.mulf %288, %290 : vector<32x128xf32>
    %c0_339 = arith.constant 0 : index
    %c128_340 = arith.constant 128 : index
    %292 = vector.load %arg39[%c0_339, %c128_340] : memref<32x384xf32, #tpu.memory_space<vmem>>, vector<32x128xf32>
    tpu.vector_store %arg39[%c0_339, %c128_340], %291 {strides = array<i32>} : memref<32x384xf32, #tpu.memory_space<vmem>>, vector<32x128xf32>,
    %c0_341 = arith.constant 0 : index
    %c128_342 = arith.constant 128 : index
    %293 = vector.load %arg39[%c0_341, %c128_342] : memref<32x384xf32, #tpu.memory_space<vmem>>, vector<32x128xf32>
    %294 = arith.truncf %293 : vector<32x128xf32> to vector<32x128xbf16>
    %c0_343 = arith.constant 0 : index
    %c0_344 = arith.constant 0 : index
    %295 = vector.load %arg28[%c0_343, %c0_344] : memref<128x256xbf16, #tpu.memory_space<vmem>>, vector<128x256xbf16>
    %cst_345 = arith.constant dense<0.000000e+00> : vector<32x256xf32>
    %296 = tpu.matmul %294, %295, %cst_345 {dimension_numbers = #tpu.dot_dimension_numbers<[1], [0], [0], [1], [0, 0, 1, 1], [], []>} : vector<32x128xbf16>, vector<128x256xbf16>, vector<32x256xf32> -> vector<32x256xf32>
    %c0_346 = arith.constant 0 : index
    %c128_347 = arith.constant 128 : index
    %297 = vector.load %arg40[%c0_346, %c128_347] : memref<32x512xf32, #tpu.memory_space<vmem>>, vector<32x256xf32>
    tpu.vector_store %arg40[%c0_346, %c128_347], %296 {strides = array<i32>} : memref<32x512xf32, #tpu.memory_space<vmem>>, vector<32x256xf32>,
    %c0_348 = arith.constant 0 : index
    %c117_349 = arith.constant 117 : index
    %298 = vector.load %arg40[%c0_348, %c117_349] : memref<32x512xf32, #tpu.memory_space<vmem>>, vector<32x256xf32>
    %c0_350 = arith.constant 0 : index
    %c0_351 = arith.constant 0 : index
    %299 = vector.load %arg31[%c0_350, %c0_351] : memref<288x768xf32, #tpu.memory_space<vmem>>, vector<32x256xf32>
    tpu.vector_store %arg31[%c0_350, %c0_351], %298 {strides = array<i32>} : memref<288x768xf32, #tpu.memory_space<vmem>>, vector<32x256xf32>,
    %c0_352 = arith.constant 0 : index
    %c118_353 = arith.constant 118 : index
    %300 = vector.load %arg40[%c0_352, %c118_353] : memref<32x512xf32, #tpu.memory_space<vmem>>, vector<32x256xf32>
    %c32_354 = arith.constant 32 : index
    %c0_355 = arith.constant 0 : index
    %301 = vector.load %arg31[%c32_354, %c0_355] : memref<288x768xf32, #tpu.memory_space<vmem>>, vector<32x256xf32>
    tpu.vector_store %arg31[%c32_354, %c0_355], %300 {strides = array<i32>} : memref<288x768xf32, #tpu.memory_space<vmem>>, vector<32x256xf32>,
    %c0_356 = arith.constant 0 : index
    %c119_357 = arith.constant 119 : index
    %302 = vector.load %arg40[%c0_356, %c119_357] : memref<32x512xf32, #tpu.memory_space<vmem>>, vector<32x256xf32>
    %c64_358 = arith.constant 64 : index
    %c0_359 = arith.constant 0 : index
    %303 = vector.load %arg31[%c64_358, %c0_359] : memref<288x768xf32, #tpu.memory_space<vmem>>, vector<32x256xf32>
    tpu.vector_store %arg31[%c64_358, %c0_359], %302 {strides = array<i32>} : memref<288x768xf32, #tpu.memory_space<vmem>>, vector<32x256xf32>,
    %c0_360 = arith.constant 0 : index
    %c127_361 = arith.constant 127 : index
    %304 = vector.load %arg40[%c0_360, %c127_361] : memref<32x512xf32, #tpu.memory_space<vmem>>, vector<32x256xf32>
    %c96_362 = arith.constant 96 : index
    %c0_363 = arith.constant 0 : index
    %305 = vector.load %arg31[%c96_362, %c0_363] : memref<288x768xf32, #tpu.memory_space<vmem>>, vector<32x256xf32>
    tpu.vector_store %arg31[%c96_362, %c0_363], %304 {strides = array<i32>} : memref<288x768xf32, #tpu.memory_space<vmem>>, vector<32x256xf32>,
    %c0_364 = arith.constant 0 : index
    %c128_365 = arith.constant 128 : index
    %306 = vector.load %arg40[%c0_364, %c128_365] : memref<32x512xf32, #tpu.memory_space<vmem>>, vector<32x256xf32>
    %c128_366 = arith.constant 128 : index
    %c0_367 = arith.constant 0 : index
    %307 = vector.load %arg31[%c128_366, %c0_367] : memref<288x768xf32, #tpu.memory_space<vmem>>, vector<32x256xf32>
    tpu.vector_store %arg31[%c128_366, %c0_367], %306 {strides = array<i32>} : memref<288x768xf32, #tpu.memory_space<vmem>>, vector<32x256xf32>,
    %c0_368 = arith.constant 0 : index
    %c129_369 = arith.constant 129 : index
    %308 = vector.load %arg40[%c0_368, %c129_369] : memref<32x512xf32, #tpu.memory_space<vmem>>, vector<32x256xf32>
    %c160_370 = arith.constant 160 : index
    %c0_371 = arith.constant 0 : index
    %309 = vector.load %arg31[%c160_370, %c0_371] : memref<288x768xf32, #tpu.memory_space<vmem>>, vector<32x256xf32>
    tpu.vector_store %arg31[%c160_370, %c0_371], %308 {strides = array<i32>} : memref<288x768xf32, #tpu.memory_space<vmem>>, vector<32x256xf32>,
    %c0_372 = arith.constant 0 : index
    %c137_373 = arith.constant 137 : index
    %310 = vector.load %arg40[%c0_372, %c137_373] : memref<32x512xf32, #tpu.memory_space<vmem>>, vector<32x256xf32>
    %c192_374 = arith.constant 192 : index
    %c0_375 = arith.constant 0 : index
    %311 = vector.load %arg31[%c192_374, %c0_375] : memref<288x768xf32, #tpu.memory_space<vmem>>, vector<32x256xf32>
    tpu.vector_store %arg31[%c192_374, %c0_375], %310 {strides = array<i32>} : memref<288x768xf32, #tpu.memory_space<vmem>>, vector<32x256xf32>,
    %c0_376 = arith.constant 0 : index
    %c138_377 = arith.constant 138 : index
    %312 = vector.load %arg40[%c0_376, %c138_377] : memref<32x512xf32, #tpu.memory_space<vmem>>, vector<32x256xf32>
    %c224_378 = arith.constant 224 : index
    %c0_379 = arith.constant 0 : index
    %313 = vector.load %arg31[%c224_378, %c0_379] : memref<288x768xf32, #tpu.memory_space<vmem>>, vector<32x256xf32>
    tpu.vector_store %arg31[%c224_378, %c0_379], %312 {strides = array<i32>} : memref<288x768xf32, #tpu.memory_space<vmem>>, vector<32x256xf32>,
    %c0_380 = arith.constant 0 : index
    %c139_381 = arith.constant 139 : index
    %314 = vector.load %arg40[%c0_380, %c139_381] : memref<32x512xf32, #tpu.memory_space<vmem>>, vector<32x256xf32>
    %c256_382 = arith.constant 256 : index
    %c0_383 = arith.constant 0 : index
    %315 = vector.load %arg31[%c256_382, %c0_383] : memref<288x768xf32, #tpu.memory_space<vmem>>, vector<32x256xf32>
    tpu.vector_store %arg31[%c256_382, %c0_383], %314 {strides = array<i32>} : memref<288x768xf32, #tpu.memory_space<vmem>>, vector<32x256xf32>,
    %c0_384 = arith.constant 0 : index
    %c0_385 = arith.constant 0 : index
    %316 = vector.load %arg13[%c0_384, %c0_385] : memref<16x288xbf16, #tpu.memory_space<vmem>>, vector<16x288xbf16>
    %c0_386 = arith.constant 0 : index
    %c0_387 = arith.constant 0 : index
    %317 = vector.load %arg31[%c0_386, %c0_387] : memref<288x768xf32, #tpu.memory_space<vmem>>, vector<288x256xf32>
    %318 = arith.truncf %317 : vector<288x256xf32> to vector<288x256xbf16>
    %cst_388 = arith.constant dense<0.000000e+00> : vector<16x256xf32>
    %319 = tpu.matmul %316, %318, %cst_388 {dimension_numbers = #tpu.dot_dimension_numbers<[1], [0], [0], [1], [0, 0, 1, 1], [], []>} : vector<16x288xbf16>, vector<288x256xbf16>, vector<16x256xf32> -> vector<16x256xf32>
    %c0_389 = arith.constant 0 : index
    %c0_390 = arith.constant 0 : index
    %320 = vector.load %arg14[%c0_389, %c0_390] : memref<16x1xf32, #tpu.memory_space<vmem>>, vector<16x1xf32>
    %321 = vector.broadcast %320 : vector<16x1xf32> to vector<16x256xf32>
    %322 = arith.addf %319, %321 : vector<16x256xf32>
    %cst_391 = arith.constant 0.000000e+00 : f32
    %323 = vector.broadcast %cst_391 : f32 to vector<16x256xf32>
    %324 = arith.maximumf %322, %323 : vector<16x256xf32>
    %c0_392 = arith.constant 0 : index
    %c0_393 = arith.constant 0 : index
    %325 = vector.load %arg24[%c0_392, %c0_393] : memref<1x256xf32, #tpu.memory_space<vmem>>, vector<1x256xf32>
    %326 = vector.broadcast %325 : vector<1x256xf32> to vector<16x256xf32>
    %327 = arith.mulf %324, %326 : vector<16x256xf32>
    %c0_394 = arith.constant 0 : index
    %c128_395 = arith.constant 128 : index
    %328 = vector.load %arg41[%c0_394, %c128_395] : memref<16x512xf32, #tpu.memory_space<vmem>>, vector<16x256xf32>
    tpu.vector_store %arg41[%c0_394, %c128_395], %327 {strides = array<i32>} : memref<16x512xf32, #tpu.memory_space<vmem>>, vector<16x256xf32>,
    %c0_396 = arith.constant 0 : index
    %c117_397 = arith.constant 117 : index
    %329 = vector.load %arg41[%c0_396, %c117_397] : memref<16x512xf32, #tpu.memory_space<vmem>>, vector<16x256xf32>
    %c0_398 = arith.constant 0 : index
    %c0_399 = arith.constant 0 : index
    %330 = vector.load %arg31[%c0_398, %c0_399] : memref<288x768xf32, #tpu.memory_space<vmem>>, vector<16x256xf32>
    tpu.vector_store %arg31[%c0_398, %c0_399], %329 {strides = array<i32>} : memref<288x768xf32, #tpu.memory_space<vmem>>, vector<16x256xf32>,
    %c0_400 = arith.constant 0 : index
    %c118_401 = arith.constant 118 : index
    %331 = vector.load %arg41[%c0_400, %c118_401] : memref<16x512xf32, #tpu.memory_space<vmem>>, vector<16x256xf32>
    %c16_402 = arith.constant 16 : index
    %c0_403 = arith.constant 0 : index
    %332 = vector.load %arg31[%c16_402, %c0_403] : memref<288x768xf32, #tpu.memory_space<vmem>>, vector<16x256xf32>
    tpu.vector_store %arg31[%c16_402, %c0_403], %331 {strides = array<i32>} : memref<288x768xf32, #tpu.memory_space<vmem>>, vector<16x256xf32>,
    %c0_404 = arith.constant 0 : index
    %c119_405 = arith.constant 119 : index
    %333 = vector.load %arg41[%c0_404, %c119_405] : memref<16x512xf32, #tpu.memory_space<vmem>>, vector<16x256xf32>
    %c32_406 = arith.constant 32 : index
    %c0_407 = arith.constant 0 : index
    %334 = vector.load %arg31[%c32_406, %c0_407] : memref<288x768xf32, #tpu.memory_space<vmem>>, vector<16x256xf32>
    tpu.vector_store %arg31[%c32_406, %c0_407], %333 {strides = array<i32>} : memref<288x768xf32, #tpu.memory_space<vmem>>, vector<16x256xf32>,
    %c0_408 = arith.constant 0 : index
    %c127_409 = arith.constant 127 : index
    %335 = vector.load %arg41[%c0_408, %c127_409] : memref<16x512xf32, #tpu.memory_space<vmem>>, vector<16x256xf32>
    %c48_410 = arith.constant 48 : index
    %c0_411 = arith.constant 0 : index
    %336 = vector.load %arg31[%c48_410, %c0_411] : memref<288x768xf32, #tpu.memory_space<vmem>>, vector<16x256xf32>
    tpu.vector_store %arg31[%c48_410, %c0_411], %335 {strides = array<i32>} : memref<288x768xf32, #tpu.memory_space<vmem>>, vector<16x256xf32>,
    %c0_412 = arith.constant 0 : index
    %c128_413 = arith.constant 128 : index
    %337 = vector.load %arg41[%c0_412, %c128_413] : memref<16x512xf32, #tpu.memory_space<vmem>>, vector<16x256xf32>
    %c64_414 = arith.constant 64 : index
    %c0_415 = arith.constant 0 : index
    %338 = vector.load %arg31[%c64_414, %c0_415] : memref<288x768xf32, #tpu.memory_space<vmem>>, vector<16x256xf32>
    tpu.vector_store %arg31[%c64_414, %c0_415], %337 {strides = array<i32>} : memref<288x768xf32, #tpu.memory_space<vmem>>, vector<16x256xf32>,
    %c0_416 = arith.constant 0 : index
    %c129_417 = arith.constant 129 : index
    %339 = vector.load %arg41[%c0_416, %c129_417] : memref<16x512xf32, #tpu.memory_space<vmem>>, vector<16x256xf32>
    %c80_418 = arith.constant 80 : index
    %c0_419 = arith.constant 0 : index
    %340 = vector.load %arg31[%c80_418, %c0_419] : memref<288x768xf32, #tpu.memory_space<vmem>>, vector<16x256xf32>
    tpu.vector_store %arg31[%c80_418, %c0_419], %339 {strides = array<i32>} : memref<288x768xf32, #tpu.memory_space<vmem>>, vector<16x256xf32>,
    %c0_420 = arith.constant 0 : index
    %c137_421 = arith.constant 137 : index
    %341 = vector.load %arg41[%c0_420, %c137_421] : memref<16x512xf32, #tpu.memory_space<vmem>>, vector<16x256xf32>
    %c96_422 = arith.constant 96 : index
    %c0_423 = arith.constant 0 : index
    %342 = vector.load %arg31[%c96_422, %c0_423] : memref<288x768xf32, #tpu.memory_space<vmem>>, vector<16x256xf32>
    tpu.vector_store %arg31[%c96_422, %c0_423], %341 {strides = array<i32>} : memref<288x768xf32, #tpu.memory_space<vmem>>, vector<16x256xf32>,
    %c0_424 = arith.constant 0 : index
    %c138_425 = arith.constant 138 : index
    %343 = vector.load %arg41[%c0_424, %c138_425] : memref<16x512xf32, #tpu.memory_space<vmem>>, vector<16x256xf32>
    %c112_426 = arith.constant 112 : index
    %c0_427 = arith.constant 0 : index
    %344 = vector.load %arg31[%c112_426, %c0_427] : memref<288x768xf32, #tpu.memory_space<vmem>>, vector<16x256xf32>
    tpu.vector_store %arg31[%c112_426, %c0_427], %343 {strides = array<i32>} : memref<288x768xf32, #tpu.memory_space<vmem>>, vector<16x256xf32>,
    %c0_428 = arith.constant 0 : index
    %c139_429 = arith.constant 139 : index
    %345 = vector.load %arg41[%c0_428, %c139_429] : memref<16x512xf32, #tpu.memory_space<vmem>>, vector<16x256xf32>
    %c128_430 = arith.constant 128 : index
    %c0_431 = arith.constant 0 : index
    %346 = vector.load %arg31[%c128_430, %c0_431] : memref<288x768xf32, #tpu.memory_space<vmem>>, vector<16x256xf32>
    tpu.vector_store %arg31[%c128_430, %c0_431], %345 {strides = array<i32>} : memref<288x768xf32, #tpu.memory_space<vmem>>, vector<16x256xf32>,
    %c0_432 = arith.constant 0 : index
    %c0_433 = arith.constant 0 : index
    %347 = vector.load %arg15[%c0_432, %c0_433] : memref<16x144xbf16, #tpu.memory_space<vmem>>, vector<16x144xbf16>
    %c0_434 = arith.constant 0 : index
    %c0_435 = arith.constant 0 : index
    %348 = vector.load %arg31[%c0_434, %c0_435] : memref<288x768xf32, #tpu.memory_space<vmem>>, vector<144x256xf32>
    %349 = arith.truncf %348 : vector<144x256xf32> to vector<144x256xbf16>
    %cst_436 = arith.constant dense<0.000000e+00> : vector<16x256xf32>
    %350 = tpu.matmul %347, %349, %cst_436 {dimension_numbers = #tpu.dot_dimension_numbers<[1], [0], [0], [1], [0, 0, 1, 1], [], []>} : vector<16x144xbf16>, vector<144x256xbf16>, vector<16x256xf32> -> vector<16x256xf32>
    %c0_437 = arith.constant 0 : index
    %c0_438 = arith.constant 0 : index
    %351 = vector.load %arg16[%c0_437, %c0_438] : memref<16x1xf32, #tpu.memory_space<vmem>>, vector<16x1xf32>
    %352 = vector.broadcast %351 : vector<16x1xf32> to vector<16x256xf32>
    %353 = arith.addf %350, %352 : vector<16x256xf32>
    %cst_439 = arith.constant 0.000000e+00 : f32
    %354 = vector.broadcast %cst_439 : f32 to vector<16x256xf32>
    %355 = arith.maximumf %353, %354 : vector<16x256xf32>
    %c0_440 = arith.constant 0 : index
    %c0_441 = arith.constant 0 : index
    %356 = vector.load %arg24[%c0_440, %c0_441] : memref<1x256xf32, #tpu.memory_space<vmem>>, vector<1x256xf32>
    %357 = vector.broadcast %356 : vector<1x256xf32> to vector<16x256xf32>
    %358 = arith.mulf %355, %357 : vector<16x256xf32>
    %c0_442 = arith.constant 0 : index
    %c128_443 = arith.constant 128 : index
    %359 = vector.load %arg36[%c0_442, %c128_443] : memref<16x512xf32, #tpu.memory_space<vmem>>, vector<16x256xf32>
    %360 = arith.addf %358, %359 : vector<16x256xf32>
    %c0_444 = arith.constant 0 : index
    %c128_445 = arith.constant 128 : index
    %361 = vector.load %arg42[%c0_444, %c128_445] : memref<16x512xf32, #tpu.memory_space<vmem>>, vector<16x256xf32>
    tpu.vector_store %arg42[%c0_444, %c128_445], %360 {strides = array<i32>} : memref<16x512xf32, #tpu.memory_space<vmem>>, vector<16x256xf32>,
    %c0_446 = arith.constant 0 : index
    %c128_447 = arith.constant 128 : index
    %362 = vector.load %arg42[%c0_446, %c128_447] : memref<16x512xf32, #tpu.memory_space<vmem>>, vector<16x256xf32>
    %363 = arith.truncf %362 : vector<16x256xf32> to vector<16x256xbf16>
    %c0_448 = arith.constant 0 : index
    %c0_449 = arith.constant 0 : index
    %364 = vector.load %arg29[%c0_448, %c0_449] : memref<256x768xbf16, #tpu.memory_space<vmem>>, vector<256x768xbf16>
    %cst_450 = arith.constant dense<0.000000e+00> : vector<16x768xf32>
    %365 = tpu.matmul %363, %364, %cst_450 {dimension_numbers = #tpu.dot_dimension_numbers<[1], [0], [0], [1], [0, 0, 1, 1], [], []>} : vector<16x256xbf16>, vector<256x768xbf16>, vector<16x768xf32> -> vector<16x768xf32>
    %c0_451 = arith.constant 0 : index
    %c128_452 = arith.constant 128 : index
    %366 = vector.load %arg43[%c0_451, %c128_452] : memref<16x1024xf32, #tpu.memory_space<vmem>>, vector<16x768xf32>
    tpu.vector_store %arg43[%c0_451, %c128_452], %365 {strides = array<i32>} : memref<16x1024xf32, #tpu.memory_space<vmem>>, vector<16x768xf32>,
    %c0_453 = arith.constant 0 : index
    %c109_454 = arith.constant 109 : index
    %367 = vector.load %arg43[%c0_453, %c109_454] : memref<16x1024xf32, #tpu.memory_space<vmem>>, vector<16x768xf32>
    %c0_455 = arith.constant 0 : index
    %c0_456 = arith.constant 0 : index
    %368 = vector.load %arg31[%c0_455, %c0_456] : memref<288x768xf32, #tpu.memory_space<vmem>>, vector<16x768xf32>
    tpu.vector_store %arg31[%c0_455, %c0_456], %367 {strides = array<i32>} : memref<288x768xf32, #tpu.memory_space<vmem>>, vector<16x768xf32>,
    %c0_457 = arith.constant 0 : index
    %c110_458 = arith.constant 110 : index
    %369 = vector.load %arg43[%c0_457, %c110_458] : memref<16x1024xf32, #tpu.memory_space<vmem>>, vector<16x768xf32>
    %c16_459 = arith.constant 16 : index
    %c0_460 = arith.constant 0 : index
    %370 = vector.load %arg31[%c16_459, %c0_460] : memref<288x768xf32, #tpu.memory_space<vmem>>, vector<16x768xf32>
    tpu.vector_store %arg31[%c16_459, %c0_460], %369 {strides = array<i32>} : memref<288x768xf32, #tpu.memory_space<vmem>>, vector<16x768xf32>,
    %c0_461 = arith.constant 0 : index
    %c111_462 = arith.constant 111 : index
    %371 = vector.load %arg43[%c0_461, %c111_462] : memref<16x1024xf32, #tpu.memory_space<vmem>>, vector<16x768xf32>
    %c32_463 = arith.constant 32 : index
    %c0_464 = arith.constant 0 : index
    %372 = vector.load %arg31[%c32_463, %c0_464] : memref<288x768xf32, #tpu.memory_space<vmem>>, vector<16x768xf32>
    tpu.vector_store %arg31[%c32_463, %c0_464], %371 {strides = array<i32>} : memref<288x768xf32, #tpu.memory_space<vmem>>, vector<16x768xf32>,
    %c0_465 = arith.constant 0 : index
    %c127_466 = arith.constant 127 : index
    %373 = vector.load %arg43[%c0_465, %c127_466] : memref<16x1024xf32, #tpu.memory_space<vmem>>, vector<16x768xf32>
    %c48_467 = arith.constant 48 : index
    %c0_468 = arith.constant 0 : index
    %374 = vector.load %arg31[%c48_467, %c0_468] : memref<288x768xf32, #tpu.memory_space<vmem>>, vector<16x768xf32>
    tpu.vector_store %arg31[%c48_467, %c0_468], %373 {strides = array<i32>} : memref<288x768xf32, #tpu.memory_space<vmem>>, vector<16x768xf32>,
    %c0_469 = arith.constant 0 : index
    %c128_470 = arith.constant 128 : index
    %375 = vector.load %arg43[%c0_469, %c128_470] : memref<16x1024xf32, #tpu.memory_space<vmem>>, vector<16x768xf32>
    %c64_471 = arith.constant 64 : index
    %c0_472 = arith.constant 0 : index
    %376 = vector.load %arg31[%c64_471, %c0_472] : memref<288x768xf32, #tpu.memory_space<vmem>>, vector<16x768xf32>
    tpu.vector_store %arg31[%c64_471, %c0_472], %375 {strides = array<i32>} : memref<288x768xf32, #tpu.memory_space<vmem>>, vector<16x768xf32>,
    %c0_473 = arith.constant 0 : index
    %c129_474 = arith.constant 129 : index
    %377 = vector.load %arg43[%c0_473, %c129_474] : memref<16x1024xf32, #tpu.memory_space<vmem>>, vector<16x768xf32>
    %c80_475 = arith.constant 80 : index
    %c0_476 = arith.constant 0 : index
    %378 = vector.load %arg31[%c80_475, %c0_476] : memref<288x768xf32, #tpu.memory_space<vmem>>, vector<16x768xf32>
    tpu.vector_store %arg31[%c80_475, %c0_476], %377 {strides = array<i32>} : memref<288x768xf32, #tpu.memory_space<vmem>>, vector<16x768xf32>,
    %c0_477 = arith.constant 0 : index
    %c145_478 = arith.constant 145 : index
    %379 = vector.load %arg43[%c0_477, %c145_478] : memref<16x1024xf32, #tpu.memory_space<vmem>>, vector<16x768xf32>
    %c96_479 = arith.constant 96 : index
    %c0_480 = arith.constant 0 : index
    %380 = vector.load %arg31[%c96_479, %c0_480] : memref<288x768xf32, #tpu.memory_space<vmem>>, vector<16x768xf32>
    tpu.vector_store %arg31[%c96_479, %c0_480], %379 {strides = array<i32>} : memref<288x768xf32, #tpu.memory_space<vmem>>, vector<16x768xf32>,
    %c0_481 = arith.constant 0 : index
    %c146_482 = arith.constant 146 : index
    %381 = vector.load %arg43[%c0_481, %c146_482] : memref<16x1024xf32, #tpu.memory_space<vmem>>, vector<16x768xf32>
    %c112_483 = arith.constant 112 : index
    %c0_484 = arith.constant 0 : index
    %382 = vector.load %arg31[%c112_483, %c0_484] : memref<288x768xf32, #tpu.memory_space<vmem>>, vector<16x768xf32>
    tpu.vector_store %arg31[%c112_483, %c0_484], %381 {strides = array<i32>} : memref<288x768xf32, #tpu.memory_space<vmem>>, vector<16x768xf32>,
    %c0_485 = arith.constant 0 : index
    %c147_486 = arith.constant 147 : index
    %383 = vector.load %arg43[%c0_485, %c147_486] : memref<16x1024xf32, #tpu.memory_space<vmem>>, vector<16x768xf32>
    %c128_487 = arith.constant 128 : index
    %c0_488 = arith.constant 0 : index
    %384 = vector.load %arg31[%c128_487, %c0_488] : memref<288x768xf32, #tpu.memory_space<vmem>>, vector<16x768xf32>
    tpu.vector_store %arg31[%c128_487, %c0_488], %383 {strides = array<i32>} : memref<288x768xf32, #tpu.memory_space<vmem>>, vector<16x768xf32>,
    %c0_489 = arith.constant 0 : index
    %c0_490 = arith.constant 0 : index
    %385 = vector.load %arg17[%c0_489, %c0_490] : memref<8x144xbf16, #tpu.memory_space<vmem>>, vector<8x144xbf16>
    %c0_491 = arith.constant 0 : index
    %c0_492 = arith.constant 0 : index
    %386 = vector.load %arg31[%c0_491, %c0_492] : memref<288x768xf32, #tpu.memory_space<vmem>>, vector<144x768xf32>
    %387 = arith.truncf %386 : vector<144x768xf32> to vector<144x768xbf16>
    %cst_493 = arith.constant dense<0.000000e+00> : vector<8x768xf32>
    %388 = tpu.matmul %385, %387, %cst_493 {dimension_numbers = #tpu.dot_dimension_numbers<[1], [0], [0], [1], [0, 0, 1, 1], [], []>} : vector<8x144xbf16>, vector<144x768xbf16>, vector<8x768xf32> -> vector<8x768xf32>
    %c0_494 = arith.constant 0 : index
    %c0_495 = arith.constant 0 : index
    %389 = vector.load %arg18[%c0_494, %c0_495] : memref<8x1xf32, #tpu.memory_space<vmem>>, vector<8x1xf32>
    %390 = vector.broadcast %389 : vector<8x1xf32> to vector<8x768xf32>
    %391 = arith.addf %388, %390 : vector<8x768xf32>
    %cst_496 = arith.constant 0.000000e+00 : f32
    %392 = vector.broadcast %cst_496 : f32 to vector<8x768xf32>
    %393 = arith.maximumf %391, %392 : vector<8x768xf32>
    %c0_497 = arith.constant 0 : index
    %c0_498 = arith.constant 0 : index
    %394 = vector.load %arg23[%c0_497, %c0_498] : memref<1x768xf32, #tpu.memory_space<vmem>>, vector<1x768xf32>
    %395 = vector.broadcast %394 : vector<1x768xf32> to vector<8x768xf32>
    %396 = arith.mulf %393, %395 : vector<8x768xf32>
    %c0_499 = arith.constant 0 : index
    %c128_500 = arith.constant 128 : index
    %397 = vector.load %arg44[%c0_499, %c128_500] : memref<8x1024xf32, #tpu.memory_space<vmem>>, vector<8x768xf32>
    tpu.vector_store %arg44[%c0_499, %c128_500], %396 {strides = array<i32>} : memref<8x1024xf32, #tpu.memory_space<vmem>>, vector<8x768xf32>,
    %c0_501 = arith.constant 0 : index
    %c109_502 = arith.constant 109 : index
    %398 = vector.load %arg44[%c0_501, %c109_502] : memref<8x1024xf32, #tpu.memory_space<vmem>>, vector<8x768xf32>
    %c0_503 = arith.constant 0 : index
    %c0_504 = arith.constant 0 : index
    %399 = vector.load %arg31[%c0_503, %c0_504] : memref<288x768xf32, #tpu.memory_space<vmem>>, vector<8x768xf32>
    tpu.vector_store %arg31[%c0_503, %c0_504], %398 {strides = array<i32>} : memref<288x768xf32, #tpu.memory_space<vmem>>, vector<8x768xf32>,
    %c0_505 = arith.constant 0 : index
    %c110_506 = arith.constant 110 : index
    %400 = vector.load %arg44[%c0_505, %c110_506] : memref<8x1024xf32, #tpu.memory_space<vmem>>, vector<8x768xf32>
    %c8_507 = arith.constant 8 : index
    %c0_508 = arith.constant 0 : index
    %401 = vector.load %arg31[%c8_507, %c0_508] : memref<288x768xf32, #tpu.memory_space<vmem>>, vector<8x768xf32>
    tpu.vector_store %arg31[%c8_507, %c0_508], %400 {strides = array<i32>} : memref<288x768xf32, #tpu.memory_space<vmem>>, vector<8x768xf32>,
    %c0_509 = arith.constant 0 : index
    %c111_510 = arith.constant 111 : index
    %402 = vector.load %arg44[%c0_509, %c111_510] : memref<8x1024xf32, #tpu.memory_space<vmem>>, vector<8x768xf32>
    %c16_511 = arith.constant 16 : index
    %c0_512 = arith.constant 0 : index
    %403 = vector.load %arg31[%c16_511, %c0_512] : memref<288x768xf32, #tpu.memory_space<vmem>>, vector<8x768xf32>
    tpu.vector_store %arg31[%c16_511, %c0_512], %402 {strides = array<i32>} : memref<288x768xf32, #tpu.memory_space<vmem>>, vector<8x768xf32>,
    %c0_513 = arith.constant 0 : index
    %c127_514 = arith.constant 127 : index
    %404 = vector.load %arg44[%c0_513, %c127_514] : memref<8x1024xf32, #tpu.memory_space<vmem>>, vector<8x768xf32>
    %c24_515 = arith.constant 24 : index
    %c0_516 = arith.constant 0 : index
    %405 = vector.load %arg31[%c24_515, %c0_516] : memref<288x768xf32, #tpu.memory_space<vmem>>, vector<8x768xf32>
    tpu.vector_store %arg31[%c24_515, %c0_516], %404 {strides = array<i32>} : memref<288x768xf32, #tpu.memory_space<vmem>>, vector<8x768xf32>,
    %c0_517 = arith.constant 0 : index
    %c128_518 = arith.constant 128 : index
    %406 = vector.load %arg44[%c0_517, %c128_518] : memref<8x1024xf32, #tpu.memory_space<vmem>>, vector<8x768xf32>
    %c32_519 = arith.constant 32 : index
    %c0_520 = arith.constant 0 : index
    %407 = vector.load %arg31[%c32_519, %c0_520] : memref<288x768xf32, #tpu.memory_space<vmem>>, vector<8x768xf32>
    tpu.vector_store %arg31[%c32_519, %c0_520], %406 {strides = array<i32>} : memref<288x768xf32, #tpu.memory_space<vmem>>, vector<8x768xf32>,
    %c0_521 = arith.constant 0 : index
    %c129_522 = arith.constant 129 : index
    %408 = vector.load %arg44[%c0_521, %c129_522] : memref<8x1024xf32, #tpu.memory_space<vmem>>, vector<8x768xf32>
    %c40_523 = arith.constant 40 : index
    %c0_524 = arith.constant 0 : index
    %409 = vector.load %arg31[%c40_523, %c0_524] : memref<288x768xf32, #tpu.memory_space<vmem>>, vector<8x768xf32>
    tpu.vector_store %arg31[%c40_523, %c0_524], %408 {strides = array<i32>} : memref<288x768xf32, #tpu.memory_space<vmem>>, vector<8x768xf32>,
    %c0_525 = arith.constant 0 : index
    %c145_526 = arith.constant 145 : index
    %410 = vector.load %arg44[%c0_525, %c145_526] : memref<8x1024xf32, #tpu.memory_space<vmem>>, vector<8x768xf32>
    %c48_527 = arith.constant 48 : index
    %c0_528 = arith.constant 0 : index
    %411 = vector.load %arg31[%c48_527, %c0_528] : memref<288x768xf32, #tpu.memory_space<vmem>>, vector<8x768xf32>
    tpu.vector_store %arg31[%c48_527, %c0_528], %410 {strides = array<i32>} : memref<288x768xf32, #tpu.memory_space<vmem>>, vector<8x768xf32>,
    %c0_529 = arith.constant 0 : index
    %c146_530 = arith.constant 146 : index
    %412 = vector.load %arg44[%c0_529, %c146_530] : memref<8x1024xf32, #tpu.memory_space<vmem>>, vector<8x768xf32>
    %c56_531 = arith.constant 56 : index
    %c0_532 = arith.constant 0 : index
    %413 = vector.load %arg31[%c56_531, %c0_532] : memref<288x768xf32, #tpu.memory_space<vmem>>, vector<8x768xf32>
    tpu.vector_store %arg31[%c56_531, %c0_532], %412 {strides = array<i32>} : memref<288x768xf32, #tpu.memory_space<vmem>>, vector<8x768xf32>,
    %c0_533 = arith.constant 0 : index
    %c147_534 = arith.constant 147 : index
    %414 = vector.load %arg44[%c0_533, %c147_534] : memref<8x1024xf32, #tpu.memory_space<vmem>>, vector<8x768xf32>
    %c64_535 = arith.constant 64 : index
    %c0_536 = arith.constant 0 : index
    %415 = vector.load %arg31[%c64_535, %c0_536] : memref<288x768xf32, #tpu.memory_space<vmem>>, vector<8x768xf32>
    tpu.vector_store %arg31[%c64_535, %c0_536], %414 {strides = array<i32>} : memref<288x768xf32, #tpu.memory_space<vmem>>, vector<8x768xf32>,
    %c0_537 = arith.constant 0 : index
    %c0_538 = arith.constant 0 : index
    %416 = vector.load %arg19[%c0_537, %c0_538] : memref<8x72xbf16, #tpu.memory_space<vmem>>, vector<8x72xbf16>
    %c0_539 = arith.constant 0 : index
    %c0_540 = arith.constant 0 : index
    %417 = vector.load %arg31[%c0_539, %c0_540] : memref<288x768xf32, #tpu.memory_space<vmem>>, vector<72x768xf32>
    %418 = arith.truncf %417 : vector<72x768xf32> to vector<72x768xbf16>
    %cst_541 = arith.constant dense<0.000000e+00> : vector<8x768xf32>
    %419 = tpu.matmul %416, %418, %cst_541 {dimension_numbers = #tpu.dot_dimension_numbers<[1], [0], [0], [1], [0, 0, 1, 1], [], []>} : vector<8x72xbf16>, vector<72x768xbf16>, vector<8x768xf32> -> vector<8x768xf32>
    %c0_542 = arith.constant 0 : index
    %c0_543 = arith.constant 0 : index
    %420 = vector.load %arg20[%c0_542, %c0_543] : memref<8x1xf32, #tpu.memory_space<vmem>>, vector<8x1xf32>
    %421 = vector.broadcast %420 : vector<8x1xf32> to vector<8x768xf32>
    %422 = arith.addf %419, %421 : vector<8x768xf32>
    %cst_544 = arith.constant 0.000000e+00 : f32
    %423 = vector.broadcast %cst_544 : f32 to vector<8x768xf32>
    %424 = arith.maximumf %422, %423 : vector<8x768xf32>
    %c0_545 = arith.constant 0 : index
    %c0_546 = arith.constant 0 : index
    %425 = vector.load %arg23[%c0_545, %c0_546] : memref<1x768xf32, #tpu.memory_space<vmem>>, vector<1x768xf32>
    %426 = vector.broadcast %425 : vector<1x768xf32> to vector<8x768xf32>
    %427 = arith.mulf %424, %426 : vector<8x768xf32>
    %c0_547 = arith.constant 0 : index
    %c128_548 = arith.constant 128 : index
    %428 = vector.load %arg33[%c0_547, %c128_548] : memref<8x1024xf32, #tpu.memory_space<vmem>>, vector<8x768xf32>
    %429 = arith.addf %427, %428 : vector<8x768xf32>
    %c0_549 = arith.constant 0 : index
    %c0_550 = arith.constant 0 : index
    %430 = vector.load %arg21[%c0_549, %c0_550] : memref<2x8xf32, #tpu.memory_space<vmem>>, vector<2x8xf32>
    %cst_551 = arith.constant dense<0.000000e+00> : vector<2x768xf32>
    %431 = tpu.matmul %430, %429, %cst_551 {dimension_numbers = #tpu.dot_dimension_numbers<[1], [0], [0], [1], [0, 0, 1, 1], [], []>} : vector<2x8xf32>, vector<8x768xf32>, vector<2x768xf32> -> vector<2x768xf32>
    %c0_552 = arith.constant 0 : index
    %c0_553 = arith.constant 0 : index
    %432 = vector.load %arg22[%c0_552, %c0_553] : memref<2x1xf32, #tpu.memory_space<vmem>>, vector<2x1xf32>
    %433 = vector.broadcast %432 : vector<2x1xf32> to vector<2x768xf32>
    %434 = arith.addf %431, %433 : vector<2x768xf32>
    %435 = vector.extract_strided_slice %434 {offsets = [0, 0], sizes = [1, 768], strides = [1, 1]} : vector<2x768xf32> to vector<1x768xf32>
    %436 = vector.extract_strided_slice %434 {offsets = [1, 0], sizes = [1, 768], strides = [1, 1]} : vector<2x768xf32> to vector<1x768xf32>
    %437 = arith.maximumf %435, %436 : vector<1x768xf32>
    %438 = vector.broadcast %437 : vector<1x768xf32> to vector<2x768xf32>
    %439 = arith.subf %434, %438 : vector<2x768xf32>
    %440 = math.exp %439 : vector<2x768xf32>
    %441 = vector.extract_strided_slice %440 {offsets = [0, 0], sizes = [1, 768], strides = [1, 1]} : vector<2x768xf32> to vector<1x768xf32>
    %442 = vector.extract_strided_slice %440 {offsets = [1, 0], sizes = [1, 768], strides = [1, 1]} : vector<2x768xf32> to vector<1x768xf32>
    %443 = arith.addf %441, %442 : vector<1x768xf32>
    %cst_554 = arith.constant 1.000000e+00 : f32
    %444 = vector.broadcast %cst_554 : f32 to vector<1x768xf32>
    %445 = arith.divf %444, %443 : vector<1x768xf32>
    %446 = vector.broadcast %445 : vector<1x768xf32> to vector<2x768xf32>
    %447 = arith.mulf %440, %446 : vector<2x768xf32>
    %c0_555 = arith.constant 0 : index
    %c128_556 = arith.constant 128 : index
    %448 = vector.load %arg0[%c0_555, %c128_556] : memref<1x1024xf32, #tpu.memory_space<vmem>>, vector<1x768xf32>
    %449 = vector.broadcast %448 : vector<1x768xf32> to vector<2x768xf32>
    %450 = arith.mulf %447, %449 : vector<2x768xf32>
    %c0_557 = arith.constant 0 : index
    %c0_558 = arith.constant 0 : index
    %451 = vector.load %arg30[%c0_557, %c0_558] : memref<2x768xf32, #tpu.memory_space<vmem>>, vector<2x768xf32>
    tpu.vector_store %arg30[%c0_557, %c0_558], %450 {strides = array<i32>} : memref<2x768xf32, #tpu.memory_space<vmem>>, vector<2x768xf32>,
    return
  }
}

</mosaic_0001>

<llo_original>
// kernel: unet_forward.1
$region0: #{unet_forward.1}
  #allocation0 [shape = 'u32[]', space=smem, size = 0x4, offset = 0x4, fixed_abs, tag = 'smem constant byte address 0x4 - core index']
  #allocation1 [shape = 'u32[72,128]{1,0:T(1,128)}', space=vmem, size = 0x9000, scoped, tag = 'internal scratch']
  #allocation2 [shape = 'f32[288,768]{1,0:T(8,128)}', space=vmem, size = 0xd8000, scoped, tag = 'scratch operand']
  #allocation3 [shape = 'f32[8,1024]{1,0:T(8,128)}', space=vmem, size = 0x8000, scoped, tag = 'scratch operand']
  #allocation4 [shape = 'f32[8,1024]{1,0:T(8,128)}', space=vmem, size = 0x8000, scoped, tag = 'scratch operand']
  #allocation5 [shape = 'f32[8,512]{1,0:T(8,128)}', space=vmem, size = 0x4000, scoped, tag = 'scratch operand']
  #allocation6 [shape = 'f32[16,512]{1,0:T(8,128)}', space=vmem, size = 0x8000, scoped, tag = 'scratch operand']
  #allocation7 [shape = 'f32[16,512]{1,0:T(8,128)}', space=vmem, size = 0x8000, scoped, tag = 'scratch operand']
  #allocation8 [shape = 'f32[16,384]{1,0:T(8,128)}', space=vmem, size = 0x6000, scoped, tag = 'scratch operand']
  #allocation9 [shape = 'f32[32,384]{1,0:T(8,128)}', space=vmem, size = 0xc000, scoped, tag = 'scratch operand']
  #allocation10 [shape = 'f32[32,384]{1,0:T(8,128)}', space=vmem, size = 0xc000, scoped, tag = 'scratch operand']
  #allocation11 [shape = 'f32[32,512]{1,0:T(8,128)}', space=vmem, size = 0x10000, scoped, tag = 'scratch operand']
  #allocation12 [shape = 'f32[16,512]{1,0:T(8,128)}', space=vmem, size = 0x8000, scoped, tag = 'scratch operand']
  #allocation13 [shape = 'f32[16,512]{1,0:T(8,128)}', space=vmem, size = 0x8000, scoped, tag = 'scratch operand']
  #allocation14 [shape = 'f32[16,1024]{1,0:T(8,128)}', space=vmem, size = 0x10000, scoped, tag = 'scratch operand']
  #allocation15 [shape = 'f32[8,1024]{1,0:T(8,128)}', space=vmem, size = 0x8000, scoped, tag = 'scratch operand']
  %s0 = inlined_call_operand.smem [shape: u32[31], index: -1, kind: input, shape index: {}]
  %s1 = sld [smem:[%s0]]
  %s2 = scalar_lea.smem %s0, 1
  %s3 = sld [smem:[%s2]]
  %s4 = scalar_lea.smem %s0, 2
  %s5 = sld [smem:[%s4]]
  %s6 = scalar_lea.smem %s0, 3
  %s7 = sld [smem:[%s6]]
  %s8 = scalar_lea.smem %s0, 4
  %s9 = sld [smem:[%s8]]
  %s10 = scalar_lea.smem %s0, 5
  %s11 = sld [smem:[%s10]]
  %s12 = scalar_lea.smem %s0, 6
  %s13 = sld [smem:[%s12]]
  %s14 = scalar_lea.smem %s0, 7
  %s15 = sld [smem:[%s14]]
  %s16 = scalar_lea.smem %s0, 8
  %s17 = sld [smem:[%s16]]
  %s18 = scalar_lea.smem %s0, 9
  %s19 = sld [smem:[%s18]]
  %s20 = scalar_lea.smem %s0, 10
  %s21 = sld [smem:[%s20]]
  %s22 = scalar_lea.smem %s0, 11
  %s23 = sld [smem:[%s22]]
  %s24 = scalar_lea.smem %s0, 12
  %s25 = sld [smem:[%s24]]
  %s26 = scalar_lea.smem %s0, 13
  %s27 = sld [smem:[%s26]]
  %s28 = scalar_lea.smem %s0, 14
  %s29 = sld [smem:[%s28]]
  %s30 = scalar_lea.smem %s0, 15
  %s31 = sld [smem:[%s30]]
  %s32 = scalar_lea.smem %s0, 16
  %s33 = sld [smem:[%s32]]
  %s34 = scalar_lea.smem %s0, 17
  %s35 = sld [smem:[%s34]]
  %s36 = scalar_lea.smem %s0, 18
  %s37 = sld [smem:[%s36]]
  %s38 = scalar_lea.smem %s0, 19
  %s39 = sld [smem:[%s38]]
  %s40 = scalar_lea.smem %s0, 20
  %s41 = sld [smem:[%s40]]
  %s42 = scalar_lea.smem %s0, 21
  %s43 = sld [smem:[%s42]]
  %s44 = scalar_lea.smem %s0, 22
  %s45 = sld [smem:[%s44]]
  %s46 = scalar_lea.smem %s0, 23
  %s47 = sld [smem:[%s46]]
  %s48 = scalar_lea.smem %s0, 24
  %s49 = sld [smem:[%s48]]
  %s50 = scalar_lea.smem %s0, 25
  %s51 = sld [smem:[%s50]]
  %s52 = scalar_lea.smem %s0, 26
  %s53 = sld [smem:[%s52]]
  %s54 = scalar_lea.smem %s0, 27
  %s55 = sld [smem:[%s54]]
  %s56 = scalar_lea.smem %s0, 28
  %s57 = sld [smem:[%s56]]
  %s58 = scalar_lea.smem %s0, 29
  %s59 = sld [smem:[%s58]]
  %s60 = scalar_lea.smem %s0, 30
  %s61 = sld [smem:[%s60]]
  %s62 = sld [smem:[#allocation0]]
  $region142: #{unet_forward.1} parent=0
    _
  %s64 = ssub.s32 1, %s62
  %s65 = scalar_select 0, %s64, %s62
  $region1: #{unet_forward.1} parent=0
    #allocation16 [shape = 'u8[393216]{0}', space=vmem, size = 0x60000, scoped, tag = 'input window, operand 26, single buffered']
    #allocation17 [shape = 's32[1]{0}', space=sflag, size = 0x4, scoped, tag = 'scoped memory for unet_forward.1']
    #allocation18 [shape = 'u8[65536]{0}', space=vmem, size = 0x10000, scoped, tag = 'input window, operand 28, single buffered']
    #allocation19 [shape = 's32[1]{0}', space=sflag, size = 0x4, scoped, tag = 'scoped memory for unet_forward.1']
    #allocation20 [shape = 'u8[393216]{0}', space=vmem, size = 0x60000, scoped, tag = 'input window, operand 29, single buffered']
    %66 = vsyncpa [#allocation17], 0
    %67 = vsyncpa [#allocation19], 0
    // Predicated region
    $region2: #{unet_forward.1} parent=1 // pred_check
      _
    $region3: #{unet_forward.1} parent=1 // pred_check_branch
      %69 = sbr.rel (0) target = $region5
    $region4: #{unet_forward.1} parent=1 // pred_region
      _
    $region5: #{unet_forward.1} parent=1 // pred_fallthru
      _
    // Predicated region
    $region6: #{unet_forward.1} parent=1 // pred_check
      _
    $region7: #{unet_forward.1} parent=1 // pred_check_branch
      %71 = sbr.rel (0) target = $region9
    $region8: #{unet_forward.1} parent=1 // pred_region
      _
    $region9: #{unet_forward.1} parent=1 // pred_fallthru
      _
    // Predicated region
    $region10: #{unet_forward.1} parent=1 // pred_check
      _
    $region11: #{unet_forward.1} parent=1 // pred_check_branch
      %73 = sbr.rel (0) target = $region13
    $region12: #{unet_forward.1} parent=1 // pred_region
      _
    $region13: #{unet_forward.1} parent=1 // pred_fallthru
      _
    // Predicated region
    $region14: #{unet_forward.1} parent=1 // pred_check
      _
    $region15: #{unet_forward.1} parent=1 // pred_check_branch
      %75 = sbr.rel (0) target = $region17
    $region16: #{unet_forward.1} parent=1 // pred_region
      _
    $region17: #{unet_forward.1} parent=1 // pred_fallthru
      _
    // Predicated region
    $region18: #{unet_forward.1} parent=1 // pred_check
      _
    $region19: #{unet_forward.1} parent=1 // pred_check_branch
      %77 = sbr.rel (0) target = $region21
    $region20: #{unet_forward.1} parent=1 // pred_region
      _
    $region21: #{unet_forward.1} parent=1 // pred_fallthru
      _
    // Predicated region
    $region22: #{unet_forward.1} parent=1 // pred_check
      _
    $region23: #{unet_forward.1} parent=1 // pred_check_branch
      %79 = sbr.rel (0) target = $region25
    $region24: #{unet_forward.1} parent=1 // pred_region
      _
    $region25: #{unet_forward.1} parent=1 // pred_fallthru
      _
    // Predicated region
    $region26: #{unet_forward.1} parent=1 // pred_check
      _
    $region27: #{unet_forward.1} parent=1 // pred_check_branch
      %81 = sbr.rel (0) target = $region29
    $region28: #{unet_forward.1} parent=1 // pred_region
      _
    $region29: #{unet_forward.1} parent=1 // pred_fallthru
      _
    // Predicated region
    $region30: #{unet_forward.1} parent=1 // pred_check
      _
    $region31: #{unet_forward.1} parent=1 // pred_check_branch
      %83 = sbr.rel (0) target = $region33
    $region32: #{unet_forward.1} parent=1 // pred_region
      _
    $region33: #{unet_forward.1} parent=1 // pred_fallthru
      _
    // Predicated region
    $region34: #{unet_forward.1} parent=1 // pred_check
      _
    $region35: #{unet_forward.1} parent=1 // pred_check_branch
      %85 = sbr.rel (0) target = $region37
    $region36: #{unet_forward.1} parent=1 // pred_region
      _
    $region37: #{unet_forward.1} parent=1 // pred_fallthru
      _
    // Predicated region
    $region38: #{unet_forward.1} parent=1 // pred_check
      _
    $region39: #{unet_forward.1} parent=1 // pred_check_branch
      %87 = sbr.rel (0) target = $region41
    $region40: #{unet_forward.1} parent=1 // pred_region
      _
    $region41: #{unet_forward.1} parent=1 // pred_fallthru
      _
    // Predicated region
    $region42: #{unet_forward.1} parent=1 // pred_check
      _
    $region43: #{unet_forward.1} parent=1 // pred_check_branch
      %89 = sbr.rel (0) target = $region45
    $region44: #{unet_forward.1} parent=1 // pred_region
      _
    $region45: #{unet_forward.1} parent=1 // pred_fallthru
      _
    // Predicated region
    $region46: #{unet_forward.1} parent=1 // pred_check
      _
    $region47: #{unet_forward.1} parent=1 // pred_check_branch
      %91 = sbr.rel (0) target = $region49
    $region48: #{unet_forward.1} parent=1 // pred_region
      _
    $region49: #{unet_forward.1} parent=1 // pred_fallthru
      _
    // Predicated region
    $region50: #{unet_forward.1} parent=1 // pred_check
      _
    $region51: #{unet_forward.1} parent=1 // pred_check_branch
      %93 = sbr.rel (0) target = $region53
    $region52: #{unet_forward.1} parent=1 // pred_region
      _
    $region53: #{unet_forward.1} parent=1 // pred_fallthru
      _
    // Predicated region
    $region54: #{unet_forward.1} parent=1 // pred_check
      _
    $region55: #{unet_forward.1} parent=1 // pred_check_branch
      %95 = sbr.rel (0) target = $region57
    $region56: #{unet_forward.1} parent=1 // pred_region
      _
    $region57: #{unet_forward.1} parent=1 // pred_fallthru
      _
    // Predicated region
    $region58: #{unet_forward.1} parent=1 // pred_check
      _
    $region59: #{unet_forward.1} parent=1 // pred_check_branch
      %97 = sbr.rel (0) target = $region61
    $region60: #{unet_forward.1} parent=1 // pred_region
      _
    $region61: #{unet_forward.1} parent=1 // pred_fallthru
      _
    // Predicated region
    $region62: #{unet_forward.1} parent=1 // pred_check
      _
    $region63: #{unet_forward.1} parent=1 // pred_check_branch
      %99 = sbr.rel (0) target = $region65
    $region64: #{unet_forward.1} parent=1 // pred_region
      _
    $region65: #{unet_forward.1} parent=1 // pred_fallthru
      _
    // Predicated region
    $region66: #{unet_forward.1} parent=1 // pred_check
      _
    $region67: #{unet_forward.1} parent=1 // pred_check_branch
      %101 = sbr.rel (0) target = $region69
    $region68: #{unet_forward.1} parent=1 // pred_region
      _
    $region69: #{unet_forward.1} parent=1 // pred_fallthru
      _
    // Predicated region
    $region70: #{unet_forward.1} parent=1 // pred_check
      _
    $region71: #{unet_forward.1} parent=1 // pred_check_branch
      %103 = sbr.rel (0) target = $region73
    $region72: #{unet_forward.1} parent=1 // pred_region
      _
    $region73: #{unet_forward.1} parent=1 // pred_fallthru
      _
    // Predicated region
    $region74: #{unet_forward.1} parent=1 // pred_check
      _
    $region75: #{unet_forward.1} parent=1 // pred_check_branch
      %105 = sbr.rel (0) target = $region77
    $region76: #{unet_forward.1} parent=1 // pred_region
      _
    $region77: #{unet_forward.1} parent=1 // pred_fallthru
      _
    // Predicated region
    $region78: #{unet_forward.1} parent=1 // pred_check
      _
    $region79: #{unet_forward.1} parent=1 // pred_check_branch
      %107 = sbr.rel (0) target = $region81
    $region80: #{unet_forward.1} parent=1 // pred_region
      _
    $region81: #{unet_forward.1} parent=1 // pred_fallthru
      _
    // Predicated region
    $region82: #{unet_forward.1} parent=1 // pred_check
      _
    $region83: #{unet_forward.1} parent=1 // pred_check_branch
      %109 = sbr.rel (0) target = $region85
    $region84: #{unet_forward.1} parent=1 // pred_region
      _
    $region85: #{unet_forward.1} parent=1 // pred_fallthru
      _
    // Predicated region
    $region86: #{unet_forward.1} parent=1 // pred_check
      _
    $region87: #{unet_forward.1} parent=1 // pred_check_branch
      %111 = sbr.rel (0) target = $region89
    $region88: #{unet_forward.1} parent=1 // pred_region
      _
    $region89: #{unet_forward.1} parent=1 // pred_fallthru
      _
    // Predicated region
    $region90: #{unet_forward.1} parent=1 // pred_check
      _
    $region91: #{unet_forward.1} parent=1 // pred_check_branch
      %113 = sbr.rel (0) target = $region93
    $region92: #{unet_forward.1} parent=1 // pred_region
      _
    $region93: #{unet_forward.1} parent=1 // pred_fallthru
      _
    // Predicated region
    $region94: #{unet_forward.1} parent=1 // pred_check
      _
    $region95: #{unet_forward.1} parent=1 // pred_check_branch
      %115 = sbr.rel (0) target = $region97
    $region96: #{unet_forward.1} parent=1 // pred_region
      _
    $region97: #{unet_forward.1} parent=1 // pred_fallthru
      _
    // Predicated region
    $region98: #{unet_forward.1} parent=1 // pred_check
      _
    $region99: #{unet_forward.1} parent=1 // pred_check_branch
      %117 = sbr.rel (0) target = $region101
    $region100: #{unet_forward.1} parent=1 // pred_region
      _
    $region101: #{unet_forward.1} parent=1 // pred_fallthru
      _
    // Predicated region
    $region102: #{unet_forward.1} parent=1 // pred_check
      _
    $region103: #{unet_forward.1} parent=1 // pred_check_branch
      %119 = sbr.rel (0) target = $region105
    $region104: #{unet_forward.1} parent=1 // pred_region
      _
    $region105: #{unet_forward.1} parent=1 // pred_fallthru
      _
    // Predicated region
    $region106: #{unet_forward.1} parent=1 // pred_check
      _
    $region107: #{unet_forward.1} parent=1 // pred_check_branch
      %121 = sbr.rel (0) target = $region109
    $region108: #{unet_forward.1} parent=1 // pred_region
      %123 = vsyncadd [#allocation17], 0
      %s124 = sshll.u32 %s53, 4
      %s125 = int_to_ptr.hbm [resolvable:$true] %s124
      %s126 = sshll.u32 [#allocation16], 4
      %s127 = int_to_ptr.vmem [resolvable:$true] %s126
      %132 = dma.hbm_to_vmem [thread:$0]  %s125, 12288, %s127, [#allocation17], 128, 128, 8
    $region109: #{unet_forward.1} parent=1 // pred_fallthru
      _
    // Predicated region
    $region110: #{unet_forward.1} parent=1 // pred_check
      _
    $region111: #{unet_forward.1} parent=1 // pred_check_branch
      %134 = sbr.rel (0) target = $region113
    $region112: #{unet_forward.1} parent=1 // pred_region
      _
    $region113: #{unet_forward.1} parent=1 // pred_fallthru
      _
    // Predicated region
    $region114: #{unet_forward.1} parent=1 // pred_check
      _
    $region115: #{unet_forward.1} parent=1 // pred_check_branch
      %136 = sbr.rel (0) target = $region117
    $region116: #{unet_forward.1} parent=1 // pred_region
      %138 = vsyncadd [#allocation19], 0
      %s139 = sshll.u32 %s57, 4
      %s140 = int_to_ptr.hbm [resolvable:$true] %s139
      %s141 = sshll.u32 [#allocation18], 4
      %s142 = int_to_ptr.vmem [resolvable:$true] %s141
      %147 = dma.hbm_to_vmem [thread:$0]  %s140, 2048, %s142, [#allocation19], 128, 128, 8
    $region117: #{unet_forward.1} parent=1 // pred_fallthru
      _
    // Predicated region
    $region118: #{unet_forward.1} parent=1 // pred_check
      _
    $region119: #{unet_forward.1} parent=1 // pred_check_branch
      %149 = sbr.rel (0) target = $region121
    $region120: #{unet_forward.1} parent=1 // pred_region
      %151 = vsyncadd [#allocation19], 0
      %s152 = sshll.u32 %s59, 4
      %s153 = int_to_ptr.hbm [resolvable:$true] %s152
      %s154 = sshll.u32 [#allocation20], 4
      %s155 = int_to_ptr.vmem [resolvable:$true] %s154
      %160 = dma.hbm_to_vmem [thread:$0]  %s153, 12288, %s155, [#allocation19], 384, 384, 24
    $region121: #{unet_forward.1} parent=1 // pred_fallthru
      _
    // Predicated region
    $region122: #{unet_forward.1} parent=1 // pred_check
      _
    $region123: #{unet_forward.1} parent=1 // pred_check_branch
      %162 = sbr.rel (0) target = $region125
    $region124: #{unet_forward.1} parent=1 // pred_region
      %164 = dma.done [#allocation17], 12288
    $region125: #{unet_forward.1} parent=1 // pred_fallthru
      _
    // Predicated region
    $region126: #{unet_forward.1} parent=1 // pred_check
      _
    $region127: #{unet_forward.1} parent=1 // pred_check_branch
      %166 = sbr.rel (0) target = $region129
    $region128: #{unet_forward.1} parent=1 // pred_region
      %168 = dma.done [#allocation19], 2048
    $region129: #{unet_forward.1} parent=1 // pred_fallthru
      _
    // Predicated region
    $region130: #{unet_forward.1} parent=1 // pred_check
      _
    $region131: #{unet_forward.1} parent=1 // pred_check_branch
      %170 = sbr.rel (0) target = $region133
    $region132: #{unet_forward.1} parent=1 // pred_region
      %172 = dma.done [#allocation19], 12288
    $region133: #{unet_forward.1} parent=1 // pred_fallthru
      _
    %174 = vst [vmem:[#allocation3] sm:$0xff] 0.0
    %175 = vst [vmem:[#allocation3 + $0x38] sm:$0xff] 0.0
    %176 = vst [vmem:[#allocation4] sm:$0xff] 0.0
    %177 = vst [vmem:[#allocation4 + $0x38] sm:$0xff] 0.0
    %178 = vst [vmem:[#allocation5] sm:$0xff] 0.0
    %179 = vst [vmem:[#allocation5 + $0x18] sm:$0xff] 0.0
    %180 = vst [vmem:[#allocation6] sm:$0xff] 0.0
    %181 = vst [vmem:[#allocation6 + $0x20] sm:$0xff] 0.0
    %182 = vst [vmem:[#allocation6 + $0x18] sm:$0xff] 0.0
    %183 = vst [vmem:[#allocation6 + $0x38] sm:$0xff] 0.0
    %184 = vst [vmem:[#allocation7] sm:$0xff] 0.0
    %185 = vst [vmem:[#allocation7 + $0x20] sm:$0xff] 0.0
    %186 = vst [vmem:[#allocation7 + $0x18] sm:$0xff] 0.0
    %187 = vst [vmem:[#allocation7 + $0x38] sm:$0xff] 0.0
    %188 = vst [vmem:[#allocation8] sm:$0xff] 0.0
    %189 = vst [vmem:[#allocation8 + $0x18] sm:$0xff] 0.0
    %190 = vst [vmem:[#allocation8 + $0x10] sm:$0xff] 0.0
    %191 = vst [vmem:[#allocation8 + $0x28] sm:$0xff] 0.0
    %192 = vst [vmem:[#allocation9] sm:$0xff] 0.0
    %193 = vst [vmem:[#allocation9 + $0x18] sm:$0xff] 0.0
    %194 = vst [vmem:[#allocation9 + $0x30] sm:$0xff] 0.0
    %195 = vst [vmem:[#allocation9 + $0x48] sm:$0xff] 0.0
    %196 = vst [vmem:[#allocation9 + $0x10] sm:$0xff] 0.0
    %197 = vst [vmem:[#allocation9 + $0x28] sm:$0xff] 0.0
    %198 = vst [vmem:[#allocation9 + $0x40] sm:$0xff] 0.0
    %199 = vst [vmem:[#allocation9 + $0x58] sm:$0xff] 0.0
    %200 = vst [vmem:[#allocation10] sm:$0xff] 0.0
    %201 = vst [vmem:[#allocation10 + $0x18] sm:$0xff] 0.0
    %202 = vst [vmem:[#allocation10 + $0x30] sm:$0xff] 0.0
    %203 = vst [vmem:[#allocation10 + $0x48] sm:$0xff] 0.0
    %204 = vst [vmem:[#allocation10 + $0x10] sm:$0xff] 0.0
    %205 = vst [vmem:[#allocation10 + $0x28] sm:$0xff] 0.0
    %206 = vst [vmem:[#allocation10 + $0x40] sm:$0xff] 0.0
    %207 = vst [vmem:[#allocation10 + $0x58] sm:$0xff] 0.0
    %208 = vst [vmem:[#allocation11] sm:$0xff] 0.0
    %209 = vst [vmem:[#allocation11 + $0x20] sm:$0xff] 0.0
    %210 = vst [vmem:[#allocation11 + $0x40] sm:$0xff] 0.0
    %211 = vst [vmem:[#allocation11 + $0x60] sm:$0xff] 0.0
    %212 = vst [vmem:[#allocation11 + $0x18] sm:$0xff] 0.0
    %213 = vst [vmem:[#allocation11 + $0x38] sm:$0xff] 0.0
    %214 = vst [vmem:[#allocation11 + $0x58] sm:$0xff] 0.0
    %215 = vst [vmem:[#allocation11 + $0x78] sm:$0xff] 0.0
    %216 = vst [vmem:[#allocation12] sm:$0xff] 0.0
    %217 = vst [vmem:[#allocation12 + $0x20] sm:$0xff] 0.0
    %218 = vst [vmem:[#allocation12 + $0x18] sm:$0xff] 0.0
    %219 = vst [vmem:[#allocation12 + $0x38] sm:$0xff] 0.0
    %220 = vst [vmem:[#allocation13] sm:$0xff] 0.0
    %221 = vst [vmem:[#allocation13 + $0x20] sm:$0xff] 0.0
    %222 = vst [vmem:[#allocation13 + $0x18] sm:$0xff] 0.0
    %223 = vst [vmem:[#allocation13 + $0x38] sm:$0xff] 0.0
    %224 = vst [vmem:[#allocation14] sm:$0xff] 0.0
    %225 = vst [vmem:[#allocation14 + $0x40] sm:$0xff] 0.0
    %226 = vst [vmem:[#allocation14 + $0x38] sm:$0xff] 0.0
    %227 = vst [vmem:[#allocation14 + $0x78] sm:$0xff] 0.0
    %228 = vst [vmem:[#allocation15] sm:$0xff] 0.0
    %229 = vst [vmem:[#allocation15 + $0x38] sm:$0xff] 0.0
    %v230 = vld [vmem:[%s1] sm:$0x7f]
    %v231 = vld [vmem:[%s3] sm:$0xff]
    %233 = vset.pattern.permute.xlu0 0
    %234 = vperm.xlu0 %233, %v231
    %v235 = vpop.permute.xlu0 %234
    %v238 = vperm.slane %v230, 0
    %v239 = vperm.slane %v230, 1
    %v240 = vperm.slane %v230, 2
    %v241 = vperm.slane %v230, 3
    %v242 = vperm.slane %v230, 4
    %v243 = vperm.slane %v230, 5
    %v244 = vperm.slane %v230, 6
    %v252 = vmul.f32 %v235, %v238
    %v253 = vmul.f32 %v235, %v239
    %v254 = vmul.f32 %v235, %v240
    %v255 = vmul.f32 %v235, %v241
    %v256 = vmul.f32 %v235, %v242
    %v257 = vmul.f32 %v235, %v243
    %v258 = vmul.f32 %v235, %v244
    %v259 = vadd.f32 %v252, 0.0
    %v260 = vadd.f32 %v253, 0.0
    %v261 = vadd.f32 %v254, 0.0
    %v262 = vadd.f32 %v255, 0.0
    %v263 = vadd.f32 %v256, 0.0
    %v264 = vadd.f32 %v257, 0.0
    %v265 = vadd.f32 %v258, 0.0
    %266 = vset.pattern.permute.xlu0 1
    %267 = vperm.xlu0 %266, %v231
    %v268 = vpop.permute.xlu0 %267
    %v270 = vmul.f32 %v268, %v238
    %v271 = vmul.f32 %v268, %v239
    %v272 = vmul.f32 %v268, %v240
    %v273 = vmul.f32 %v268, %v241
    %v274 = vmul.f32 %v268, %v242
    %v275 = vmul.f32 %v268, %v243
    %v276 = vmul.f32 %v268, %v244
    %284 = vrot.lane.b32.xlu0 %v270, 127
    %v285 = vpop.permute.xlu0 %284
    %286 = vrot.lane.b32.xlu0 %v271, 127
    %v287 = vpop.permute.xlu0 %286
    %288 = vrot.lane.b32.xlu0 %v272, 127
    %v289 = vpop.permute.xlu0 %288
    %290 = vrot.lane.b32.xlu0 %v273, 127
    %v291 = vpop.permute.xlu0 %290
    %292 = vrot.lane.b32.xlu0 %v274, 127
    %v293 = vpop.permute.xlu0 %292
    %294 = vrot.lane.b32.xlu0 %v275, 127
    %v295 = vpop.permute.xlu0 %294
    %296 = vrot.lane.b32.xlu0 %v276, 127
    %v297 = vpop.permute.xlu0 %296
    %vm298 = vcmask 1039360
    %v299 = vsel %vm298, %v285, %v287
    %v300 = vsel %vm298, %v287, %v289
    %v301 = vsel %vm298, %v289, %v291
    %v302 = vsel %vm298, %v291, %v293
    %v303 = vsel %vm298, %v293, %v295
    %v304 = vsel %vm298, %v295, %v297
    %v312 = vadd.f32 %v259, %v299
    %v313 = vadd.f32 %v260, %v300
    %v314 = vadd.f32 %v261, %v301
    %v315 = vadd.f32 %v262, %v302
    %v316 = vadd.f32 %v263, %v303
    %v317 = vadd.f32 %v264, %v304
    %v318 = vadd.f32 %v265, %v297
    %319 = vset.pattern.permute.xlu0 2
    %320 = vperm.xlu0 %319, %v231
    %v321 = vpop.permute.xlu0 %320
    %v323 = vmul.f32 %v321, %v238
    %v324 = vmul.f32 %v321, %v239
    %v325 = vmul.f32 %v321, %v240
    %v326 = vmul.f32 %v321, %v241
    %v327 = vmul.f32 %v321, %v242
    %v328 = vmul.f32 %v321, %v243
    %v329 = vmul.f32 %v321, %v244
    %337 = vrot.lane.b32.xlu0 %v323, 126
    %v338 = vpop.permute.xlu0 %337
    %339 = vrot.lane.b32.xlu0 %v324, 126
    %v340 = vpop.permute.xlu0 %339
    %341 = vrot.lane.b32.xlu0 %v325, 126
    %v342 = vpop.permute.xlu0 %341
    %343 = vrot.lane.b32.xlu0 %v326, 126
    %v344 = vpop.permute.xlu0 %343
    %345 = vrot.lane.b32.xlu0 %v327, 126
    %v346 = vpop.permute.xlu0 %345
    %347 = vrot.lane.b32.xlu0 %v328, 126
    %v348 = vpop.permute.xlu0 %347
    %349 = vrot.lane.b32.xlu0 %v329, 126
    %v350 = vpop.permute.xlu0 %349
    %vm351 = vcmask 1031168
    %v352 = vsel %vm351, %v338, %v340
    %v353 = vsel %vm351, %v340, %v342
    %v354 = vsel %vm351, %v342, %v344
    %v355 = vsel %vm351, %v344, %v346
    %v356 = vsel %vm351, %v346, %v348
    %v357 = vsel %vm351, %v348, %v350
    %v365 = vadd.f32 %v312, %v352
    %v366 = vadd.f32 %v313, %v353
    %v367 = vadd.f32 %v314, %v354
    %v368 = vadd.f32 %v315, %v355
    %v369 = vadd.f32 %v316, %v356
    %v370 = vadd.f32 %v317, %v357
    %v371 = vadd.f32 %v318, %v350
    %372 = vset.pattern.permute.xlu0 3
    %373 = vperm.xlu0 %372, %v231
    %v374 = vpop.permute.xlu0 %373
    %v376 = vmul.f32 %v374, %v238
    %v377 = vmul.f32 %v374, %v239
    %v378 = vmul.f32 %v374, %v240
    %v379 = vmul.f32 %v374, %v241
    %v380 = vmul.f32 %v374, %v242
    %v381 = vmul.f32 %v374, %v243
    %v382 = vmul.f32 %v374, %v244
    %390 = vrot.lane.b32.xlu0 %v376, 110
    %v391 = vpop.permute.xlu0 %390
    %392 = vrot.lane.b32.xlu0 %v377, 110
    %v393 = vpop.permute.xlu0 %392
    %394 = vrot.lane.b32.xlu0 %v378, 110
    %v395 = vpop.permute.xlu0 %394
    %396 = vrot.lane.b32.xlu0 %v379, 110
    %v397 = vpop.permute.xlu0 %396
    %398 = vrot.lane.b32.xlu0 %v380, 110
    %v399 = vpop.permute.xlu0 %398
    %400 = vrot.lane.b32.xlu0 %v381, 110
    %v401 = vpop.permute.xlu0 %400
    %402 = vrot.lane.b32.xlu0 %v382, 110
    %v403 = vpop.permute.xlu0 %402
    %vm404 = vcmask 900096
    %v405 = vsel %vm404, %v391, %v393
    %v406 = vsel %vm404, %v393, %v395
    %v407 = vsel %vm404, %v395, %v397
    %v408 = vsel %vm404, %v397, %v399
    %v409 = vsel %vm404, %v399, %v401
    %v410 = vsel %vm404, %v401, %v403
    %v418 = vadd.f32 %v365, %v405
    %v419 = vadd.f32 %v366, %v406
    %v420 = vadd.f32 %v367, %v407
    %v421 = vadd.f32 %v368, %v408
    %v422 = vadd.f32 %v369, %v409
    %v423 = vadd.f32 %v370, %v410
    %v424 = vadd.f32 %v371, %v403
    %v425 = vld [vmem:[%s1 + $0x1] sm:$0x3f]
    %426 = vset.pattern.permute.xlu0 4
    %427 = vperm.xlu0 %426, %v231
    %v428 = vpop.permute.xlu0 %427
    %v431 = vperm.slane %v425, 0
    %v432 = vperm.slane %v425, 1
    %v433 = vperm.slane %v425, 2
    %v434 = vperm.slane %v425, 3
    %v435 = vperm.slane %v425, 4
    %v436 = vperm.slane %v425, 5
    %v443 = vmul.f32 %v428, %v431
    %v444 = vmul.f32 %v428, %v432
    %v445 = vmul.f32 %v428, %v433
    %v446 = vmul.f32 %v428, %v434
    %v447 = vmul.f32 %v428, %v435
    %v448 = vmul.f32 %v428, %v436
    %455 = vrot.lane.b32.xlu0 %v443, 109
    %v456 = vpop.permute.xlu0 %455
    %457 = vrot.lane.b32.xlu0 %v444, 109
    %v458 = vpop.permute.xlu0 %457
    %459 = vrot.lane.b32.xlu0 %v445, 109
    %v460 = vpop.permute.xlu0 %459
    %461 = vrot.lane.b32.xlu0 %v446, 109
    %v462 = vpop.permute.xlu0 %461
    %463 = vrot.lane.b32.xlu0 %v447, 109
    %v464 = vpop.permute.xlu0 %463
    %465 = vrot.lane.b32.xlu0 %v448, 109
    %v466 = vpop.permute.xlu0 %465
    %vm467 = vcmask 891904
    %v468 = vsel %vm467, %v456, %v458
    %v469 = vsel %vm467, %v458, %v460
    %v470 = vsel %vm467, %v460, %v462
    %v471 = vsel %vm467, %v462, %v464
    %v472 = vsel %vm467, %v464, %v466
    %v480 = vadd.f32 %v418, %v456
    %v481 = vadd.f32 %v419, %v468
    %v482 = vadd.f32 %v420, %v469
    %v483 = vadd.f32 %v421, %v470
    %v484 = vadd.f32 %v422, %v471
    %v485 = vadd.f32 %v423, %v472
    %v486 = vadd.f32 %v424, %v466
    %v487 = vld [vmem:[%s1 + $0x1] sm:$0x7f]
    %488 = vset.pattern.permute.xlu0 5
    %489 = vperm.xlu0 %488, %v231
    %v490 = vpop.permute.xlu0 %489
    %v493 = vperm.slane %v487, 0
    %v494 = vperm.slane %v487, 1
    %v495 = vperm.slane %v487, 2
    %v496 = vperm.slane %v487, 3
    %v497 = vperm.slane %v487, 4
    %v498 = vperm.slane %v487, 5
    %v499 = vperm.slane %v487, 6
    %v507 = vmul.f32 %v490, %v493
    %v508 = vmul.f32 %v490, %v494
    %v509 = vmul.f32 %v490, %v495
    %v510 = vmul.f32 %v490, %v496
    %v511 = vmul.f32 %v490, %v497
    %v512 = vmul.f32 %v490, %v498
    %v513 = vmul.f32 %v490, %v499
    %521 = vrot.lane.b32.xlu0 %v507, 108
    %v522 = vpop.permute.xlu0 %521
    %523 = vrot.lane.b32.xlu0 %v508, 108
    %v524 = vpop.permute.xlu0 %523
    %525 = vrot.lane.b32.xlu0 %v509, 108
    %v526 = vpop.permute.xlu0 %525
    %527 = vrot.lane.b32.xlu0 %v510, 108
    %v528 = vpop.permute.xlu0 %527
    %529 = vrot.lane.b32.xlu0 %v511, 108
    %v530 = vpop.permute.xlu0 %529
    %531 = vrot.lane.b32.xlu0 %v512, 108
    %v532 = vpop.permute.xlu0 %531
    %533 = vrot.lane.b32.xlu0 %v513, 108
    %v534 = vpop.permute.xlu0 %533
    %vm535 = vcmask 883712
    %v536 = vsel %vm535, %v522, %v524
    %v537 = vsel %vm535, %v524, %v526
    %v538 = vsel %vm535, %v526, %v528
    %v539 = vsel %vm535, %v528, %v530
    %v540 = vsel %vm535, %v530, %v532
    %v541 = vsel %vm535, %v532, %v534
    %v549 = vadd.f32 %v480, %v522
    %v550 = vadd.f32 %v481, %v536
    %v551 = vadd.f32 %v482, %v537
    %v552 = vadd.f32 %v483, %v538
    %v553 = vadd.f32 %v484, %v539
    %v554 = vadd.f32 %v485, %v540
    %v555 = vadd.f32 %v486, %v541
    %556 = vset.pattern.permute.xlu0 6
    %557 = vperm.xlu0 %556, %v231
    %v558 = vpop.permute.xlu0 %557
    %v560 = vmul.f32 %v558, %v493
    %v561 = vmul.f32 %v558, %v494
    %v562 = vmul.f32 %v558, %v495
    %v563 = vmul.f32 %v558, %v496
    %v564 = vmul.f32 %v558, %v497
    %v565 = vmul.f32 %v558, %v498
    %v566 = vmul.f32 %v558, %v499
    %574 = vrot.lane.b32.xlu0 %v560, 92
    %v575 = vpop.permute.xlu0 %574
    %576 = vrot.lane.b32.xlu0 %v561, 92
    %v577 = vpop.permute.xlu0 %576
    %578 = vrot.lane.b32.xlu0 %v562, 92
    %v579 = vpop.permute.xlu0 %578
    %580 = vrot.lane.b32.xlu0 %v563, 92
    %v581 = vpop.permute.xlu0 %580
    %582 = vrot.lane.b32.xlu0 %v564, 92
    %v583 = vpop.permute.xlu0 %582
    %584 = vrot.lane.b32.xlu0 %v565, 92
    %v585 = vpop.permute.xlu0 %584
    %586 = vrot.lane.b32.xlu0 %v566, 92
    %v587 = vpop.permute.xlu0 %586
    %vm588 = vcmask 752640
    %v589 = vsel %vm588, %v575, %v577
    %v590 = vsel %vm588, %v577, %v579
    %v591 = vsel %vm588, %v579, %v581
    %v592 = vsel %vm588, %v581, %v583
    %v593 = vsel %vm588, %v583, %v585
    %v594 = vsel %vm588, %v585, %v587
    %v602 = vadd.f32 %v549, %v575
    %v603 = vadd.f32 %v550, %v589
    %v604 = vadd.f32 %v551, %v590
    %v605 = vadd.f32 %v552, %v591
    %v606 = vadd.f32 %v553, %v592
    %v607 = vadd.f32 %v554, %v593
    %v608 = vadd.f32 %v555, %v594
    %609 = vset.pattern.permute.xlu0 7
    %610 = vperm.xlu0 %609, %v231
    %v611 = vpop.permute.xlu0 %610
    %v613 = vmul.f32 %v611, %v493
    %v614 = vmul.f32 %v611, %v494
    %v615 = vmul.f32 %v611, %v495
    %v616 = vmul.f32 %v611, %v496
    %v617 = vmul.f32 %v611, %v497
    %v618 = vmul.f32 %v611, %v498
    %v619 = vmul.f32 %v611, %v499
    %627 = vrot.lane.b32.xlu0 %v613, 91
    %v628 = vpop.permute.xlu0 %627
    %629 = vrot.lane.b32.xlu0 %v614, 91
    %v630 = vpop.permute.xlu0 %629
    %631 = vrot.lane.b32.xlu0 %v615, 91
    %v632 = vpop.permute.xlu0 %631
    %633 = vrot.lane.b32.xlu0 %v616, 91
    %v634 = vpop.permute.xlu0 %633
    %635 = vrot.lane.b32.xlu0 %v617, 91
    %v636 = vpop.permute.xlu0 %635
    %637 = vrot.lane.b32.xlu0 %v618, 91
    %v638 = vpop.permute.xlu0 %637
    %639 = vrot.lane.b32.xlu0 %v619, 91
    %v640 = vpop.permute.xlu0 %639
    %vm641 = vcmask 744448
    %v642 = vsel %vm641, %v628, %v630
    %v643 = vsel %vm641, %v630, %v632
    %v644 = vsel %vm641, %v632, %v634
    %v645 = vsel %vm641, %v634, %v636
    %v646 = vsel %vm641, %v636, %v638
    %v647 = vsel %vm641, %v638, %v640
    %v655 = vadd.f32 %v602, %v628
    %v656 = vadd.f32 %v603, %v642
    %v657 = vadd.f32 %v604, %v643
    %v658 = vadd.f32 %v605, %v644
    %v659 = vadd.f32 %v606, %v645
    %v660 = vadd.f32 %v607, %v646
    %v661 = vadd.f32 %v608, %v647
    %662 = vset.pattern.permute.xlu0 8
    %663 = vperm.xlu0 %662, %v231
    %v664 = vpop.permute.xlu0 %663
    %v666 = vmul.f32 %v664, %v493
    %v667 = vmul.f32 %v664, %v494
    %v668 = vmul.f32 %v664, %v495
    %v669 = vmul.f32 %v664, %v496
    %v670 = vmul.f32 %v664, %v497
    %v671 = vmul.f32 %v664, %v498
    %v672 = vmul.f32 %v664, %v499
    %680 = vrot.lane.b32.xlu0 %v666, 90
    %v681 = vpop.permute.xlu0 %680
    %682 = vrot.lane.b32.xlu0 %v667, 90
    %v683 = vpop.permute.xlu0 %682
    %684 = vrot.lane.b32.xlu0 %v668, 90
    %v685 = vpop.permute.xlu0 %684
    %686 = vrot.lane.b32.xlu0 %v669, 90
    %v687 = vpop.permute.xlu0 %686
    %688 = vrot.lane.b32.xlu0 %v670, 90
    %v689 = vpop.permute.xlu0 %688
    %690 = vrot.lane.b32.xlu0 %v671, 90
    %v691 = vpop.permute.xlu0 %690
    %692 = vrot.lane.b32.xlu0 %v672, 90
    %v693 = vpop.permute.xlu0 %692
    %vm694 = vcmask 736256
    %v695 = vsel %vm694, %v681, %v683
    %v696 = vsel %vm694, %v683, %v685
    %v697 = vsel %vm694, %v685, %v687
    %v698 = vsel %vm694, %v687, %v689
    %v699 = vsel %vm694, %v689, %v691
    %v700 = vsel %vm694, %v691, %v693
    %v708 = vadd.f32 %v655, %v681
    %v709 = vadd.f32 %v656, %v695
    %v710 = vadd.f32 %v657, %v696
    %v711 = vadd.f32 %v658, %v697
    %v712 = vadd.f32 %v659, %v698
    %v713 = vadd.f32 %v660, %v699
    %v714 = vadd.f32 %v661, %v700
    %v715 = vld [vmem:[%s5] sm:$0xff]
    %717 = vset.pattern.permute.xlu0 0
    %718 = vperm.xlu0 %717, %v715
    %v719 = vpop.permute.xlu0 %718
    %v721 = vadd.f32 %v708, %v719
    %v722 = vadd.f32 %v709, %v719
    %v723 = vadd.f32 %v710, %v719
    %v724 = vadd.f32 %v711, %v719
    %v725 = vadd.f32 %v712, %v719
    %v726 = vadd.f32 %v713, %v719
    %v727 = vadd.f32 %v714, %v719
    %v728 = vmax.f32 %v721, 0.0
    %v729 = vmax.f32 %v722, 0.0
    %v730 = vmax.f32 %v723, 0.0
    %v731 = vmax.f32 %v724, 0.0
    %v732 = vmax.f32 %v725, 0.0
    %v733 = vmax.f32 %v726, 0.0
    %v734 = vmax.f32 %v727, 0.0
    %v735 = vld [vmem:[%s47] sm:$0x3f]
    %v737 = vperm.slane %v735, 0
    %v738 = vperm.slane %v735, 1
    %v739 = vperm.slane %v735, 2
    %v740 = vperm.slane %v735, 3
    %v741 = vperm.slane %v735, 4
    %v742 = vperm.slane %v735, 5
    %743 = vrot.lane.b32.xlu0 %v737, 109
    %v744 = vpop.permute.xlu0 %743
    %745 = vrot.lane.b32.xlu0 %v738, 109
    %v746 = vpop.permute.xlu0 %745
    %747 = vrot.lane.b32.xlu0 %v739, 109
    %v748 = vpop.permute.xlu0 %747
    %749 = vrot.lane.b32.xlu0 %v740, 109
    %v750 = vpop.permute.xlu0 %749
    %751 = vrot.lane.b32.xlu0 %v741, 109
    %v752 = vpop.permute.xlu0 %751
    %753 = vrot.lane.b32.xlu0 %v742, 109
    %v754 = vpop.permute.xlu0 %753
    %v755 = vsel %vm467, %v744, %v746
    %v756 = vsel %vm467, %v746, %v748
    %v757 = vsel %vm467, %v748, %v750
    %v758 = vsel %vm467, %v750, %v752
    %v759 = vsel %vm467, %v752, %v754
    %v767 = vmul.f32 %v728, %v744
    %v768 = vmul.f32 %v729, %v755
    %v769 = vmul.f32 %v730, %v756
    %v770 = vmul.f32 %v731, %v757
    %v771 = vmul.f32 %v732, %v758
    %v772 = vmul.f32 %v733, %v759
    %v773 = vmul.f32 %v734, %v754
    %781 = vrot.lane.b32.xlu0 %v767, 19
    %v782 = vpop.permute.xlu0 %781
    %783 = vrot.lane.b32.xlu0 %v768, 19
    %v784 = vpop.permute.xlu0 %783
    %785 = vrot.lane.b32.xlu0 %v769, 19
    %v786 = vpop.permute.xlu0 %785
    %787 = vrot.lane.b32.xlu0 %v770, 19
    %v788 = vpop.permute.xlu0 %787
    %789 = vrot.lane.b32.xlu0 %v771, 19
    %v790 = vpop.permute.xlu0 %789
    %791 = vrot.lane.b32.xlu0 %v772, 19
    %v792 = vpop.permute.xlu0 %791
    %793 = vrot.lane.b32.xlu0 %v773, 19
    %v794 = vpop.permute.xlu0 %793
    %vm795 = vcmask 154624
    %v796 = vsel %vm795, %v782, %v784
    %v797 = vsel %vm795, %v784, %v786
    %v798 = vsel %vm795, %v786, %v788
    %v799 = vsel %vm795, %v788, %v790
    %v800 = vsel %vm795, %v790, %v792
    %v801 = vsel %vm795, %v792, %v794
    %808 = vst [vmem:[#allocation3 + $0x8] sm:$0xff] %v796
    %809 = vst [vmem:[#allocation3 + $0x10] sm:$0xff] %v797
    %810 = vst [vmem:[#allocation3 + $0x18] sm:$0xff] %v798
    %811 = vst [vmem:[#allocation3 + $0x20] sm:$0xff] %v799
    %812 = vst [vmem:[#allocation3 + $0x28] sm:$0xff] %v800
    %813 = vst [vmem:[#allocation3 + $0x30] sm:$0xff] %v801
    %v814 = vld [vmem:[#allocation3] sm:$0xff]
    %v815 = vld [vmem:[#allocation3 + $0x8] sm:$0xff]
    %v816 = vld [vmem:[#allocation3 + $0x10] sm:$0xff]
    %v817 = vld [vmem:[#allocation3 + $0x18] sm:$0xff]
    %v818 = vld [vmem:[#allocation3 + $0x20] sm:$0xff]
    %v819 = vld [vmem:[#allocation3 + $0x28] sm:$0xff]
    %v820 = vld [vmem:[#allocation3 + $0x30] sm:$0xff]
    %828 = vrot.lane.b32.xlu0 %v814, 19
    %v829 = vpop.permute.xlu0 %828
    %830 = vrot.lane.b32.xlu0 %v815, 19
    %v831 = vpop.permute.xlu0 %830
    %832 = vrot.lane.b32.xlu0 %v816, 19
    %v833 = vpop.permute.xlu0 %832
    %834 = vrot.lane.b32.xlu0 %v817, 19
    %v835 = vpop.permute.xlu0 %834
    %836 = vrot.lane.b32.xlu0 %v818, 19
    %v837 = vpop.permute.xlu0 %836
    %838 = vrot.lane.b32.xlu0 %v819, 19
    %v839 = vpop.permute.xlu0 %838
    %840 = vrot.lane.b32.xlu0 %v820, 19
    %v841 = vpop.permute.xlu0 %840
    %v842 = vsel %vm795, %v829, %v831
    %v843 = vsel %vm795, %v831, %v833
    %v844 = vsel %vm795, %v833, %v835
    %v845 = vsel %vm795, %v835, %v837
    %v846 = vsel %vm795, %v837, %v839
    %v847 = vsel %vm795, %v839, %v841
    %854 = vst [vmem:[#allocation2] sm:$0xff] %v842
    %855 = vst [vmem:[#allocation2 + $0x8] sm:$0xff] %v843
    %856 = vst [vmem:[#allocation2 + $0x10] sm:$0xff] %v844
    %857 = vst [vmem:[#allocation2 + $0x18] sm:$0xff] %v845
    %858 = vst [vmem:[#allocation2 + $0x20] sm:$0xff] %v846
    %859 = vst [vmem:[#allocation2 + $0x28] sm:$0xff] %v847
    %v860 = vld [vmem:[#allocation3] sm:$0xff]
    %v861 = vld [vmem:[#allocation3 + $0x8] sm:$0xff]
    %v862 = vld [vmem:[#allocation3 + $0x10] sm:$0xff]
    %v863 = vld [vmem:[#allocation3 + $0x18] sm:$0xff]
    %v864 = vld [vmem:[#allocation3 + $0x20] sm:$0xff]
    %v865 = vld [vmem:[#allocation3 + $0x28] sm:$0xff]
    %v866 = vld [vmem:[#allocation3 + $0x30] sm:$0xff]
    %874 = vrot.lane.b32.xlu0 %v860, 18
    %v875 = vpop.permute.xlu0 %874
    %876 = vrot.lane.b32.xlu0 %v861, 18
    %v877 = vpop.permute.xlu0 %876
    %878 = vrot.lane.b32.xlu0 %v862, 18
    %v879 = vpop.permute.xlu0 %878
    %880 = vrot.lane.b32.xlu0 %v863, 18
    %v881 = vpop.permute.xlu0 %880
    %882 = vrot.lane.b32.xlu0 %v864, 18
    %v883 = vpop.permute.xlu0 %882
    %884 = vrot.lane.b32.xlu0 %v865, 18
    %v885 = vpop.permute.xlu0 %884
    %886 = vrot.lane.b32.xlu0 %v866, 18
    %v887 = vpop.permute.xlu0 %886
    %vm888 = vcmask 146432
    %v889 = vsel %vm888, %v875, %v877
    %v890 = vsel %vm888, %v877, %v879
    %v891 = vsel %vm888, %v879, %v881
    %v892 = vsel %vm888, %v881, %v883
    %v893 = vsel %vm888, %v883, %v885
    %v894 = vsel %vm888, %v885, %v887
    %901 = vst [vmem:[#allocation2 + $0x30] sm:$0xff] %v889
    %902 = vst [vmem:[#allocation2 + $0x38] sm:$0xff] %v890
    %903 = vst [vmem:[#allocation2 + $0x40] sm:$0xff] %v891
    %904 = vst [vmem:[#allocation2 + $0x48] sm:$0xff] %v892
    %905 = vst [vmem:[#allocation2 + $0x50] sm:$0xff] %v893
    %906 = vst [vmem:[#allocation2 + $0x58] sm:$0xff] %v894
    %v907 = vld [vmem:[#allocation3] sm:$0xff]
    %v908 = vld [vmem:[#allocation3 + $0x8] sm:$0xff]
    %v909 = vld [vmem:[#allocation3 + $0x10] sm:$0xff]
    %v910 = vld [vmem:[#allocation3 + $0x18] sm:$0xff]
    %v911 = vld [vmem:[#allocation3 + $0x20] sm:$0xff]
    %v912 = vld [vmem:[#allocation3 + $0x28] sm:$0xff]
    %v913 = vld [vmem:[#allocation3 + $0x30] sm:$0xff]
    %921 = vrot.lane.b32.xlu0 %v907, 17
    %v922 = vpop.permute.xlu0 %921
    %923 = vrot.lane.b32.xlu0 %v908, 17
    %v924 = vpop.permute.xlu0 %923
    %925 = vrot.lane.b32.xlu0 %v909, 17
    %v926 = vpop.permute.xlu0 %925
    %927 = vrot.lane.b32.xlu0 %v910, 17
    %v928 = vpop.permute.xlu0 %927
    %929 = vrot.lane.b32.xlu0 %v911, 17
    %v930 = vpop.permute.xlu0 %929
    %931 = vrot.lane.b32.xlu0 %v912, 17
    %v932 = vpop.permute.xlu0 %931
    %933 = vrot.lane.b32.xlu0 %v913, 17
    %v934 = vpop.permute.xlu0 %933
    %vm935 = vcmask 138240
    %v936 = vsel %vm935, %v922, %v924
    %v937 = vsel %vm935, %v924, %v926
    %v938 = vsel %vm935, %v926, %v928
    %v939 = vsel %vm935, %v928, %v930
    %v940 = vsel %vm935, %v930, %v932
    %v941 = vsel %vm935, %v932, %v934
    %948 = vst [vmem:[#allocation2 + $0x60] sm:$0xff] %v936
    %949 = vst [vmem:[#allocation2 + $0x68] sm:$0xff] %v937
    %950 = vst [vmem:[#allocation2 + $0x70] sm:$0xff] %v938
    %951 = vst [vmem:[#allocation2 + $0x78] sm:$0xff] %v939
    %952 = vst [vmem:[#allocation2 + $0x80] sm:$0xff] %v940
    %953 = vst [vmem:[#allocation2 + $0x88] sm:$0xff] %v941
    %v954 = vld [vmem:[#allocation3] sm:$0xff]
    %v955 = vld [vmem:[#allocation3 + $0x8] sm:$0xff]
    %v956 = vld [vmem:[#allocation3 + $0x10] sm:$0xff]
    %v957 = vld [vmem:[#allocation3 + $0x18] sm:$0xff]
    %v958 = vld [vmem:[#allocation3 + $0x20] sm:$0xff]
    %v959 = vld [vmem:[#allocation3 + $0x28] sm:$0xff]
    %v960 = vld [vmem:[#allocation3 + $0x30] sm:$0xff]
    %968 = vrot.lane.b32.xlu0 %v954, 1
    %v969 = vpop.permute.xlu0 %968
    %970 = vrot.lane.b32.xlu0 %v955, 1
    %v971 = vpop.permute.xlu0 %970
    %972 = vrot.lane.b32.xlu0 %v956, 1
    %v973 = vpop.permute.xlu0 %972
    %974 = vrot.lane.b32.xlu0 %v957, 1
    %v975 = vpop.permute.xlu0 %974
    %976 = vrot.lane.b32.xlu0 %v958, 1
    %v977 = vpop.permute.xlu0 %976
    %978 = vrot.lane.b32.xlu0 %v959, 1
    %v979 = vpop.permute.xlu0 %978
    %980 = vrot.lane.b32.xlu0 %v960, 1
    %v981 = vpop.permute.xlu0 %980
    %vm982 = vcmask 7168
    %v983 = vsel %vm982, %v969, %v971
    %v984 = vsel %vm982, %v971, %v973
    %v985 = vsel %vm982, %v973, %v975
    %v986 = vsel %vm982, %v975, %v977
    %v987 = vsel %vm982, %v977, %v979
    %v988 = vsel %vm982, %v979, %v981
    %995 = vst [vmem:[#allocation2 + $0x90] sm:$0xff] %v983
    %996 = vst [vmem:[#allocation2 + $0x98] sm:$0xff] %v984
    %997 = vst [vmem:[#allocation2 + $0xa0] sm:$0xff] %v985
    %998 = vst [vmem:[#allocation2 + $0xa8] sm:$0xff] %v986
    %999 = vst [vmem:[#allocation2 + $0xb0] sm:$0xff] %v987
    %1000 = vst [vmem:[#allocation2 + $0xb8] sm:$0xff] %v988
    %v1001 = vld [vmem:[#allocation3 + $0x8] sm:$0xff]
    %v1002 = vld [vmem:[#allocation3 + $0x10] sm:$0xff]
    %v1003 = vld [vmem:[#allocation3 + $0x18] sm:$0xff]
    %v1004 = vld [vmem:[#allocation3 + $0x20] sm:$0xff]
    %v1005 = vld [vmem:[#allocation3 + $0x28] sm:$0xff]
    %v1006 = vld [vmem:[#allocation3 + $0x30] sm:$0xff]
    %1007 = vst [vmem:[#allocation2 + $0xc0] sm:$0xff] %v1001
    %1008 = vst [vmem:[#allocation2 + $0xc8] sm:$0xff] %v1002
    %1009 = vst [vmem:[#allocation2 + $0xd0] sm:$0xff] %v1003
    %1010 = vst [vmem:[#allocation2 + $0xd8] sm:$0xff] %v1004
    %1011 = vst [vmem:[#allocation2 + $0xe0] sm:$0xff] %v1005
    %1012 = vst [vmem:[#allocation2 + $0xe8] sm:$0xff] %v1006
    %v1013 = vld [vmem:[#allocation3 + $0x8] sm:$0xff]
    %v1014 = vld [vmem:[#allocation3 + $0x10] sm:$0xff]
    %v1015 = vld [vmem:[#allocation3 + $0x18] sm:$0xff]
    %v1016 = vld [vmem:[#allocation3 + $0x20] sm:$0xff]
    %v1017 = vld [vmem:[#allocation3 + $0x28] sm:$0xff]
    %v1018 = vld [vmem:[#allocation3 + $0x30] sm:$0xff]
    %v1019 = vld [vmem:[#allocation3 + $0x38] sm:$0xff]
    %1027 = vrot.lane.b32.xlu0 %v1013, 127
    %v1028 = vpop.permute.xlu0 %1027
    %1029 = vrot.lane.b32.xlu0 %v1014, 127
    %v1030 = vpop.permute.xlu0 %1029
    %1031 = vrot.lane.b32.xlu0 %v1015, 127
    %v1032 = vpop.permute.xlu0 %1031
    %1033 = vrot.lane.b32.xlu0 %v1016, 127
    %v1034 = vpop.permute.xlu0 %1033
    %1035 = vrot.lane.b32.xlu0 %v1017, 127
    %v1036 = vpop.permute.xlu0 %1035
    %1037 = vrot.lane.b32.xlu0 %v1018, 127
    %v1038 = vpop.permute.xlu0 %1037
    %1039 = vrot.lane.b32.xlu0 %v1019, 127
    %v1040 = vpop.permute.xlu0 %1039
    %v1041 = vsel %vm298, %v1028, %v1030
    %v1042 = vsel %vm298, %v1030, %v1032
    %v1043 = vsel %vm298, %v1032, %v1034
    %v1044 = vsel %vm298, %v1034, %v1036
    %v1045 = vsel %vm298, %v1036, %v1038
    %v1046 = vsel %vm298, %v1038, %v1040
    %1053 = vst [vmem:[#allocation2 + $0xf0] sm:$0xff] %v1041
    %1054 = vst [vmem:[#allocation2 + $0xf8] sm:$0xff] %v1042
    %1055 = vst [vmem:[#allocation2 + $0x100] sm:$0xff] %v1043
    %1056 = vst [vmem:[#allocation2 + $0x108] sm:$0xff] %v1044
    %1057 = vst [vmem:[#allocation2 + $0x110] sm:$0xff] %v1045
    %1058 = vst [vmem:[#allocation2 + $0x118] sm:$0xff] %v1046
    %v1059 = vld [vmem:[#allocation3 + $0x8] sm:$0xff]
    %v1060 = vld [vmem:[#allocation3 + $0x10] sm:$0xff]
    %v1061 = vld [vmem:[#allocation3 + $0x18] sm:$0xff]
    %v1062 = vld [vmem:[#allocation3 + $0x20] sm:$0xff]
    %v1063 = vld [vmem:[#allocation3 + $0x28] sm:$0xff]
    %v1064 = vld [vmem:[#allocation3 + $0x30] sm:$0xff]
    %v1065 = vld [vmem:[#allocation3 + $0x38] sm:$0xff]
    %1073 = vrot.lane.b32.xlu0 %v1059, 111
    %v1074 = vpop.permute.xlu0 %1073
    %1075 = vrot.lane.b32.xlu0 %v1060, 111
    %v1076 = vpop.permute.xlu0 %1075
    %1077 = vrot.lane.b32.xlu0 %v1061, 111
    %v1078 = vpop.permute.xlu0 %1077
    %1079 = vrot.lane.b32.xlu0 %v1062, 111
    %v1080 = vpop.permute.xlu0 %1079
    %1081 = vrot.lane.b32.xlu0 %v1063, 111
    %v1082 = vpop.permute.xlu0 %1081
    %1083 = vrot.lane.b32.xlu0 %v1064, 111
    %v1084 = vpop.permute.xlu0 %1083
    %1085 = vrot.lane.b32.xlu0 %v1065, 111
    %v1086 = vpop.permute.xlu0 %1085
    %vm1087 = vcmask 908288
    %v1088 = vsel %vm1087, %v1074, %v1076
    %v1089 = vsel %vm1087, %v1076, %v1078
    %v1090 = vsel %vm1087, %v1078, %v1080
    %v1091 = vsel %vm1087, %v1080, %v1082
    %v1092 = vsel %vm1087, %v1082, %v1084
    %v1093 = vsel %vm1087, %v1084, %v1086
    %1100 = vst [vmem:[#allocation2 + $0x120] sm:$0xff] %v1088
    %1101 = vst [vmem:[#allocation2 + $0x128] sm:$0xff] %v1089
    %1102 = vst [vmem:[#allocation2 + $0x130] sm:$0xff] %v1090
    %1103 = vst [vmem:[#allocation2 + $0x138] sm:$0xff] %v1091
    %1104 = vst [vmem:[#allocation2 + $0x140] sm:$0xff] %v1092
    %1105 = vst [vmem:[#allocation2 + $0x148] sm:$0xff] %v1093
    %v1106 = vld [vmem:[#allocation3 + $0x8] sm:$0xff]
    %v1107 = vld [vmem:[#allocation3 + $0x10] sm:$0xff]
    %v1108 = vld [vmem:[#allocation3 + $0x18] sm:$0xff]
    %v1109 = vld [vmem:[#allocation3 + $0x20] sm:$0xff]
    %v1110 = vld [vmem:[#allocation3 + $0x28] sm:$0xff]
    %v1111 = vld [vmem:[#allocation3 + $0x30] sm:$0xff]
    %v1112 = vld [vmem:[#allocation3 + $0x38] sm:$0xff]
    %1120 = vrot.lane.b32.xlu0 %v1106, 110
    %v1121 = vpop.permute.xlu0 %1120
    %1122 = vrot.lane.b32.xlu0 %v1107, 110
    %v1123 = vpop.permute.xlu0 %1122
    %1124 = vrot.lane.b32.xlu0 %v1108, 110
    %v1125 = vpop.permute.xlu0 %1124
    %1126 = vrot.lane.b32.xlu0 %v1109, 110
    %v1127 = vpop.permute.xlu0 %1126
    %1128 = vrot.lane.b32.xlu0 %v1110, 110
    %v1129 = vpop.permute.xlu0 %1128
    %1130 = vrot.lane.b32.xlu0 %v1111, 110
    %v1131 = vpop.permute.xlu0 %1130
    %1132 = vrot.lane.b32.xlu0 %v1112, 110
    %v1133 = vpop.permute.xlu0 %1132
    %v1134 = vsel %vm404, %v1121, %v1123
    %v1135 = vsel %vm404, %v1123, %v1125
    %v1136 = vsel %vm404, %v1125, %v1127
    %v1137 = vsel %vm404, %v1127, %v1129
    %v1138 = vsel %vm404, %v1129, %v1131
    %v1139 = vsel %vm404, %v1131, %v1133
    %1146 = vst [vmem:[#allocation2 + $0x150] sm:$0xff] %v1134
    %1147 = vst [vmem:[#allocation2 + $0x158] sm:$0xff] %v1135
    %1148 = vst [vmem:[#allocation2 + $0x160] sm:$0xff] %v1136
    %1149 = vst [vmem:[#allocation2 + $0x168] sm:$0xff] %v1137
    %1150 = vst [vmem:[#allocation2 + $0x170] sm:$0xff] %v1138
    %1151 = vst [vmem:[#allocation2 + $0x178] sm:$0xff] %v1139
    %v1152 = vld [vmem:[#allocation3 + $0x8] sm:$0xff]
    %v1153 = vld [vmem:[#allocation3 + $0x10] sm:$0xff]
    %v1154 = vld [vmem:[#allocation3 + $0x18] sm:$0xff]
    %v1155 = vld [vmem:[#allocation3 + $0x20] sm:$0xff]
    %v1156 = vld [vmem:[#allocation3 + $0x28] sm:$0xff]
    %v1157 = vld [vmem:[#allocation3 + $0x30] sm:$0xff]
    %v1158 = vld [vmem:[#allocation3 + $0x38] sm:$0xff]
    %1166 = vrot.lane.b32.xlu0 %v1152, 109
    %v1167 = vpop.permute.xlu0 %1166
    %1168 = vrot.lane.b32.xlu0 %v1153, 109
    %v1169 = vpop.permute.xlu0 %1168
    %1170 = vrot.lane.b32.xlu0 %v1154, 109
    %v1171 = vpop.permute.xlu0 %1170
    %1172 = vrot.lane.b32.xlu0 %v1155, 109
    %v1173 = vpop.permute.xlu0 %1172
    %1174 = vrot.lane.b32.xlu0 %v1156, 109
    %v1175 = vpop.permute.xlu0 %1174
    %1176 = vrot.lane.b32.xlu0 %v1157, 109
    %v1177 = vpop.permute.xlu0 %1176
    %1178 = vrot.lane.b32.xlu0 %v1158, 109
    %v1179 = vpop.permute.xlu0 %1178
    %v1180 = vsel %vm467, %v1167, %v1169
    %v1181 = vsel %vm467, %v1169, %v1171
    %v1182 = vsel %vm467, %v1171, %v1173
    %v1183 = vsel %vm467, %v1173, %v1175
    %v1184 = vsel %vm467, %v1175, %v1177
    %v1185 = vsel %vm467, %v1177, %v1179
    %1192 = vst [vmem:[#allocation2 + $0x180] sm:$0xff] %v1180
    %1193 = vst [vmem:[#allocation2 + $0x188] sm:$0xff] %v1181
    %1194 = vst [vmem:[#allocation2 + $0x190] sm:$0xff] %v1182
    %1195 = vst [vmem:[#allocation2 + $0x198] sm:$0xff] %v1183
    %1196 = vst [vmem:[#allocation2 + $0x1a0] sm:$0xff] %v1184
    %1197 = vst [vmem:[#allocation2 + $0x1a8] sm:$0xff] %v1185
    %v1198 = vld [vmem:[%s7] sm:$0xf]
    %v1199 = vld [vmem:[#allocation2] sm:$0xff]
    %v1200 = vld [vmem:[#allocation2 + $0x8] sm:$0xff]
    %v1201 = vld [vmem:[#allocation2 + $0x10] sm:$0xff]
    %v1202 = vld [vmem:[#allocation2 + $0x18] sm:$0xff]
    %v1203 = vld [vmem:[#allocation2 + $0x20] sm:$0xff]
    %v1204 = vld [vmem:[#allocation2 + $0x28] sm:$0xff]
    %v1205 = vld [vmem:[#allocation2 + $0x30] sm:$0xff]
    %v1206 = vld [vmem:[#allocation2 + $0x38] sm:$0xff]
    %v1207 = vld [vmem:[#allocation2 + $0x40] sm:$0xff]
    %v1208 = vld [vmem:[#allocation2 + $0x48] sm:$0xff]
    %v1209 = vld [vmem:[#allocation2 + $0x50] sm:$0xff]
    %v1210 = vld [vmem:[#allocation2 + $0x58] sm:$0xff]
    %v1211 = vld [vmem:[#allocation2 + $0x60] sm:$0xff]
    %v1212 = vld [vmem:[#allocation2 + $0x68] sm:$0xff]
    %v1213 = vld [vmem:[#allocation2 + $0x70] sm:$0xff]
    %v1214 = vld [vmem:[#allocation2 + $0x78] sm:$0xff]
    %v1215 = vld [vmem:[#allocation2 + $0x80] sm:$0xff]
    %v1216 = vld [vmem:[#allocation2 + $0x88] sm:$0xff]
    %v1217 = vld [vmem:[#allocation2 + $0x90] sm:$0xff]
    %v1218 = vld [vmem:[#allocation2 + $0x98] sm:$0xff]
    %v1219 = vld [vmem:[#allocation2 + $0xa0] sm:$0xff]
    %v1220 = vld [vmem:[#allocation2 + $0xa8] sm:$0xff]
    %v1221 = vld [vmem:[#allocation2 + $0xb0] sm:$0xff]
    %v1222 = vld [vmem:[#allocation2 + $0xb8] sm:$0xff]
    %v1223 = vld [vmem:[#allocation2 + $0xc0] sm:$0xff]
    %v1224 = vld [vmem:[#allocation2 + $0xc8] sm:$0xff]
    %v1225 = vld [vmem:[#allocation2 + $0xd0] sm:$0xff]
    %v1226 = vld [vmem:[#allocation2 + $0xd8] sm:$0xff]
    %v1227 = vld [vmem:[#allocation2 + $0xe0] sm:$0xff]
    %v1228 = vld [vmem:[#allocation2 + $0xe8] sm:$0xff]
    %v1229 = vld [vmem:[#allocation2 + $0xf0] sm:$0xff]
    %v1230 = vld [vmem:[#allocation2 + $0xf8] sm:$0xff]
    %v1231 = vld [vmem:[#allocation2 + $0x100] sm:$0xff]
    %v1232 = vld [vmem:[#allocation2 + $0x108] sm:$0xff]
    %v1233 = vld [vmem:[#allocation2 + $0x110] sm:$0xff]
    %v1234 = vld [vmem:[#allocation2 + $0x118] sm:$0xff]
    %v1235 = vld [vmem:[#allocation2 + $0x120] sm:$0xff]
    %v1236 = vld [vmem:[#allocation2 + $0x128] sm:$0xff]
    %v1237 = vld [vmem:[#allocation2 + $0x130] sm:$0xff]
    %v1238 = vld [vmem:[#allocation2 + $0x138] sm:$0xff]
    %v1239 = vld [vmem:[#allocation2 + $0x140] sm:$0xff]
    %v1240 = vld [vmem:[#allocation2 + $0x148] sm:$0xff]
    %v1241 = vld [vmem:[#allocation2 + $0x150] sm:$0xff]
    %v1242 = vld [vmem:[#allocation2 + $0x158] sm:$0xff]
    %v1243 = vld [vmem:[#allocation2 + $0x160] sm:$0xff]
    %v1244 = vld [vmem:[#allocation2 + $0x168] sm:$0xff]
    %v1245 = vld [vmem:[#allocation2 + $0x170] sm:$0xff]
    %v1246 = vld [vmem:[#allocation2 + $0x178] sm:$0xff]
    %v1247 = vld [vmem:[#allocation2 + $0x180] sm:$0xff]
    %v1248 = vld [vmem:[#allocation2 + $0x188] sm:$0xff]
    %v1249 = vld [vmem:[#allocation2 + $0x190] sm:$0xff]
    %v1250 = vld [vmem:[#allocation2 + $0x198] sm:$0xff]
    %v1251 = vld [vmem:[#allocation2 + $0x1a0] sm:$0xff]
    %v1252 = vld [vmem:[#allocation2 + $0x1a8] sm:$0xff]
    %v1253 = vpack.c.bf16 %v1205, %v1199
    %v1254 = vpack.c.bf16 %v1206, %v1200
    %v1255 = vpack.c.bf16 %v1207, %v1201
    %v1256 = vpack.c.bf16 %v1208, %v1202
    %v1257 = vpack.c.bf16 %v1209, %v1203
    %v1258 = vpack.c.bf16 %v1210, %v1204
    %v1259 = vpack.c.bf16 %v1217, %v1211
    %v1260 = vpack.c.bf16 %v1218, %v1212
    %v1261 = vpack.c.bf16 %v1219, %v1213
    %v1262 = vpack.c.bf16 %v1220, %v1214
    %v1263 = vpack.c.bf16 %v1221, %v1215
    %v1264 = vpack.c.bf16 %v1222, %v1216
    %v1265 = vpack.c.bf16 %v1229, %v1223
    %v1266 = vpack.c.bf16 %v1230, %v1224
    %v1267 = vpack.c.bf16 %v1231, %v1225
    %v1268 = vpack.c.bf16 %v1232, %v1226
    %v1269 = vpack.c.bf16 %v1233, %v1227
    %v1270 = vpack.c.bf16 %v1234, %v1228
    %v1271 = vpack.c.bf16 %v1241, %v1235
    %v1272 = vpack.c.bf16 %v1242, %v1236
    %v1273 = vpack.c.bf16 %v1243, %v1237
    %v1274 = vpack.c.bf16 %v1244, %v1238
    %v1275 = vpack.c.bf16 %v1245, %v1239
    %v1276 = vpack.c.bf16 %v1246, %v1240
    %v1277 = vpack.c.bf16 %v1247, %v1247
    %v1278 = vpack.c.bf16 %v1248, %v1248
    %v1279 = vpack.c.bf16 %v1249, %v1249
    %v1280 = vpack.c.bf16 %v1250, %v1250
    %v1281 = vpack.c.bf16 %v1251, %v1251
    %v1282 = vpack.c.bf16 %v1252, %v1252
    %v1283 = vld [vmem:[%s9] sm:$0xff]
    %1285 = vset.pattern.permute.xlu0 0
    %1286 = vperm.xlu0 %1285, %v1283
    %v1287 = vpop.permute.xlu0 %1286
    %vm1289 = vcmask 588800
    %v1291 = vsel %vm1289, %v1198, 0
    %vm1293 = vcmask 1043456
    %v1295 = vsel %vm1293, %v1277, 0
    %v1298 = vsel %vm1293, %v1278, 0
    %v1301 = vsel %vm1293, %v1279, 0
    %v1304 = vsel %vm1293, %v1280, 0
    %v1307 = vsel %vm1293, %v1281, 0
    %v1310 = vsel %vm1293, %v1282, 0
    %1312 = vmatpush.bf16.msra.mxu0 0
    %1313 = vmatpush.bf16.msra.mxu0 0
    %1314 = vmatpush.bf16.msra.mxu0 0
    %1315 = vmatpush.bf16.msra.mxu0 %v1295
    %1316 = vmatpush.bf16.msra.mxu0 %v1271
    %1317 = vmatpush.bf16.msra.mxu0 %v1265
    %1318 = vmatpush.bf16.msra.mxu0 %v1259
    %1319 = vmatpush.bf16.msra.mxu0 %v1253
    %1320 = vmatmul.bf16.gmra.mxu0 %v1291
    %v1321 = vpop.f32.mrf.mxu0
    %v1322 = vadd.f32 %v1287, %v1321
    %v1323 = vpop.f32.mrf.mxu0
    %1324 = vdwg.mxu0
    %1325 = vmatpush.bf16.msra.mxu0 0
    %1326 = vmatpush.bf16.msra.mxu0 0
    %1327 = vmatpush.bf16.msra.mxu0 0
    %1328 = vmatpush.bf16.msra.mxu0 %v1298
    %1329 = vmatpush.bf16.msra.mxu0 %v1272
    %1330 = vmatpush.bf16.msra.mxu0 %v1266
    %1331 = vmatpush.bf16.msra.mxu0 %v1260
    %1332 = vmatpush.bf16.msra.mxu0 %v1254
    %1333 = vmatmul.bf16.gmra.mxu0 %v1291
    %v1334 = vpop.f32.mrf.mxu0
    %v1335 = vadd.f32 %v1287, %v1334
    %v1336 = vpop.f32.mrf.mxu0
    %1337 = vdwg.mxu0
    %1338 = vmatpush.bf16.msra.mxu0 0
    %1339 = vmatpush.bf16.msra.mxu0 0
    %1340 = vmatpush.bf16.msra.mxu0 0
    %1341 = vmatpush.bf16.msra.mxu0 %v1301
    %1342 = vmatpush.bf16.msra.mxu0 %v1273
    %1343 = vmatpush.bf16.msra.mxu0 %v1267
    %1344 = vmatpush.bf16.msra.mxu0 %v1261
    %1345 = vmatpush.bf16.msra.mxu0 %v1255
    %1346 = vmatmul.bf16.gmra.mxu0 %v1291
    %v1347 = vpop.f32.mrf.mxu0
    %v1348 = vadd.f32 %v1287, %v1347
    %v1349 = vpop.f32.mrf.mxu0
    %1350 = vdwg.mxu0
    %1351 = vmatpush.bf16.msra.mxu0 0
    %1352 = vmatpush.bf16.msra.mxu0 0
    %1353 = vmatpush.bf16.msra.mxu0 0
    %1354 = vmatpush.bf16.msra.mxu0 %v1304
    %1355 = vmatpush.bf16.msra.mxu0 %v1274
    %1356 = vmatpush.bf16.msra.mxu0 %v1268
    %1357 = vmatpush.bf16.msra.mxu0 %v1262
    %1358 = vmatpush.bf16.msra.mxu0 %v1256
    %1359 = vmatmul.bf16.gmra.mxu0 %v1291
    %v1360 = vpop.f32.mrf.mxu0
    %v1361 = vadd.f32 %v1287, %v1360
    %v1362 = vpop.f32.mrf.mxu0
    %1363 = vdwg.mxu0
    %1364 = vmatpush.bf16.msra.mxu0 0
    %1365 = vmatpush.bf16.msra.mxu0 0
    %1366 = vmatpush.bf16.msra.mxu0 0
    %1367 = vmatpush.bf16.msra.mxu0 %v1307
    %1368 = vmatpush.bf16.msra.mxu0 %v1275
    %1369 = vmatpush.bf16.msra.mxu0 %v1269
    %1370 = vmatpush.bf16.msra.mxu0 %v1263
    %1371 = vmatpush.bf16.msra.mxu0 %v1257
    %1372 = vmatmul.bf16.gmra.mxu0 %v1291
    %v1373 = vpop.f32.mrf.mxu0
    %v1374 = vadd.f32 %v1287, %v1373
    %v1375 = vpop.f32.mrf.mxu0
    %1376 = vdwg.mxu0
    %1377 = vmatpush.bf16.msra.mxu0 0
    %1378 = vmatpush.bf16.msra.mxu0 0
    %1379 = vmatpush.bf16.msra.mxu0 0
    %1380 = vmatpush.bf16.msra.mxu0 %v1310
    %1381 = vmatpush.bf16.msra.mxu0 %v1276
    %1382 = vmatpush.bf16.msra.mxu0 %v1270
    %1383 = vmatpush.bf16.msra.mxu0 %v1264
    %1384 = vmatpush.bf16.msra.mxu0 %v1258
    %1385 = vmatmul.bf16.gmra.mxu0 %v1291
    %v1386 = vpop.f32.mrf.mxu0
    %v1387 = vadd.f32 %v1287, %v1386
    %v1388 = vpop.f32.mrf.mxu0
    %1389 = vdwg.mxu0
    %v1390 = vmax.f32 %v1322, 0.0
    %v1391 = vmax.f32 %v1335, 0.0
    %v1392 = vmax.f32 %v1348, 0.0
    %v1393 = vmax.f32 %v1361, 0.0
    %v1394 = vmax.f32 %v1374, 0.0
    %v1395 = vmax.f32 %v1387, 0.0
    %v1396 = vld [vmem:[%s47] sm:$0x3f]
    %v1398 = vperm.slane %v1396, 0
    %v1399 = vperm.slane %v1396, 1
    %v1400 = vperm.slane %v1396, 2
    %v1401 = vperm.slane %v1396, 3
    %v1402 = vperm.slane %v1396, 4
    %v1403 = vperm.slane %v1396, 5
    %v1410 = vmul.f32 %v1390, %v1398
    %v1411 = vmul.f32 %v1391, %v1399
    %v1412 = vmul.f32 %v1392, %v1400
    %v1413 = vmul.f32 %v1393, %v1401
    %v1414 = vmul.f32 %v1394, %v1402
    %v1415 = vmul.f32 %v1395, %v1403
    %1416 = vst [vmem:[#allocation4 + $0x8] sm:$0xff] %v1410
    %1417 = vst [vmem:[#allocation4 + $0x10] sm:$0xff] %v1411
    %1418 = vst [vmem:[#allocation4 + $0x18] sm:$0xff] %v1412
    %1419 = vst [vmem:[#allocation4 + $0x20] sm:$0xff] %v1413
    %1420 = vst [vmem:[#allocation4 + $0x28] sm:$0xff] %v1414
    %1421 = vst [vmem:[#allocation4 + $0x30] sm:$0xff] %v1415
    %v1422 = vld [vmem:[#allocation4 + $0x8] sm:$0xff]
    %v1423 = vld [vmem:[#allocation4 + $0x10] sm:$0xff]
    %v1424 = vld [vmem:[#allocation4 + $0x18] sm:$0xff]
    %v1425 = vld [vmem:[#allocation4 + $0x20] sm:$0xff]
    %v1426 = vld [vmem:[#allocation4 + $0x28] sm:$0xff]
    %v1427 = vld [vmem:[#allocation4 + $0x30] sm:$0xff]
    %v1428 = vld [vmem:[#allocation4 + $0x8] sm:$0xff]
    %v1429 = vld [vmem:[#allocation4 + $0x10] sm:$0xff]
    %v1430 = vld [vmem:[#allocation4 + $0x18] sm:$0xff]
    %v1431 = vld [vmem:[#allocation4 + $0x20] sm:$0xff]
    %v1432 = vld [vmem:[#allocation4 + $0x28] sm:$0xff]
    %v1433 = vld [vmem:[#allocation4 + $0x30] sm:$0xff]
    %v1434 = vld [vmem:[#allocation4 + $0x38] sm:$0xff]
    %1442 = vrot.lane.b32.xlu0 %v1428, 127
    %v1443 = vpop.permute.xlu0 %1442
    %1444 = vrot.lane.b32.xlu0 %v1429, 127
    %v1445 = vpop.permute.xlu0 %1444
    %1446 = vrot.lane.b32.xlu0 %v1430, 127
    %v1447 = vpop.permute.xlu0 %1446
    %1448 = vrot.lane.b32.xlu0 %v1431, 127
    %v1449 = vpop.permute.xlu0 %1448
    %1450 = vrot.lane.b32.xlu0 %v1432, 127
    %v1451 = vpop.permute.xlu0 %1450
    %1452 = vrot.lane.b32.xlu0 %v1433, 127
    %v1453 = vpop.permute.xlu0 %1452
    %1454 = vrot.lane.b32.xlu0 %v1434, 127
    %v1455 = vpop.permute.xlu0 %1454
    %v1456 = vsel %vm298, %v1443, %v1445
    %v1457 = vsel %vm298, %v1445, %v1447
    %v1458 = vsel %vm298, %v1447, %v1449
    %v1459 = vsel %vm298, %v1449, %v1451
    %v1460 = vsel %vm298, %v1451, %v1453
    %v1461 = vsel %vm298, %v1453, %v1455
    %v1468 = vmax.f32 %v1422, %v1456
    %v1469 = vmax.f32 %v1423, %v1457
    %v1470 = vmax.f32 %v1424, %v1458
    %v1471 = vmax.f32 %v1425, %v1459
    %v1472 = vmax.f32 %v1426, %v1460
    %v1473 = vmax.f32 %v1427, %v1461
    %v1475 = vmax.f32 %v1428, %v1456
    %v1476 = vmax.f32 %v1429, %v1457
    %v1477 = vmax.f32 %v1430, %v1458
    %v1478 = vmax.f32 %v1431, %v1459
    %v1479 = vmax.f32 %v1432, %v1460
    %v1480 = vmax.f32 %v1433, %v1461
    %v1481 = vmax.f32 %v1434, %v1455
    %1489 = vrot.lane.b32.xlu0 %v1475, 110
    %v1490 = vpop.permute.xlu0 %1489
    %1491 = vrot.lane.b32.xlu0 %v1476, 110
    %v1492 = vpop.permute.xlu0 %1491
    %1493 = vrot.lane.b32.xlu0 %v1477, 110
    %v1494 = vpop.permute.xlu0 %1493
    %1495 = vrot.lane.b32.xlu0 %v1478, 110
    %v1496 = vpop.permute.xlu0 %1495
    %1497 = vrot.lane.b32.xlu0 %v1479, 110
    %v1498 = vpop.permute.xlu0 %1497
    %1499 = vrot.lane.b32.xlu0 %v1480, 110
    %v1500 = vpop.permute.xlu0 %1499
    %1501 = vrot.lane.b32.xlu0 %v1481, 110
    %v1502 = vpop.permute.xlu0 %1501
    %v1503 = vsel %vm404, %v1490, %v1492
    %v1504 = vsel %vm404, %v1492, %v1494
    %v1505 = vsel %vm404, %v1494, %v1496
    %v1506 = vsel %vm404, %v1496, %v1498
    %v1507 = vsel %vm404, %v1498, %v1500
    %v1508 = vsel %vm404, %v1500, %v1502
    %v1515 = vmax.f32 %v1468, %v1503
    %v1516 = vmax.f32 %v1469, %v1504
    %v1517 = vmax.f32 %v1470, %v1505
    %v1518 = vmax.f32 %v1471, %v1506
    %v1519 = vmax.f32 %v1472, %v1507
    %v1520 = vmax.f32 %v1473, %v1508
    %v1521 = vpack.c.bf16 %v1515, %v1515
    %v1522 = vpack.c.bf16 %v1516, %v1516
    %v1523 = vpack.c.bf16 %v1517, %v1517
    %v1524 = vpack.c.bf16 %v1518, %v1518
    %v1525 = vpack.c.bf16 %v1519, %v1519
    %v1526 = vpack.c.bf16 %v1520, %v1520
    %v1527 = vld [vmem:[#allocation16] sm:$0xff]
    %v1528 = vld [vmem:[#allocation16 + $0x8] sm:$0xff]
    %v1529 = vld [vmem:[#allocation16 + $0x10] sm:$0xff]
    %v1530 = vld [vmem:[#allocation16 + $0x18] sm:$0xff]
    %v1531 = vld [vmem:[#allocation16 + $0x20] sm:$0xff]
    %v1532 = vld [vmem:[#allocation16 + $0x28] sm:$0xff]
    %v1533 = vld [vmem:[#allocation16 + $0x30] sm:$0xff]
    %v1534 = vld [vmem:[#allocation16 + $0x38] sm:$0xff]
    %v1535 = vld [vmem:[#allocation16 + $0x40] sm:$0xff]
    %v1536 = vld [vmem:[#allocation16 + $0x48] sm:$0xff]
    %v1537 = vld [vmem:[#allocation16 + $0x50] sm:$0xff]
    %v1538 = vld [vmem:[#allocation16 + $0x58] sm:$0xff]
    %v1539 = vld [vmem:[#allocation16 + $0x60] sm:$0xff]
    %v1540 = vld [vmem:[#allocation16 + $0x68] sm:$0xff]
    %v1541 = vld [vmem:[#allocation16 + $0x70] sm:$0xff]
    %v1542 = vld [vmem:[#allocation16 + $0x78] sm:$0xff]
    %v1543 = vld [vmem:[#allocation16 + $0x80] sm:$0xff]
    %v1544 = vld [vmem:[#allocation16 + $0x88] sm:$0xff]
    %v1545 = vld [vmem:[#allocation16 + $0x90] sm:$0xff]
    %v1546 = vld [vmem:[#allocation16 + $0x98] sm:$0xff]
    %v1547 = vld [vmem:[#allocation16 + $0xa0] sm:$0xff]
    %v1548 = vld [vmem:[#allocation16 + $0xa8] sm:$0xff]
    %v1549 = vld [vmem:[#allocation16 + $0xb0] sm:$0xff]
    %v1550 = vld [vmem:[#allocation16 + $0xb8] sm:$0xff]
    %v1551 = vld [vmem:[#allocation16 + $0xc0] sm:$0xff]
    %v1552 = vld [vmem:[#allocation16 + $0xc8] sm:$0xff]
    %v1553 = vld [vmem:[#allocation16 + $0xd0] sm:$0xff]
    %v1554 = vld [vmem:[#allocation16 + $0xd8] sm:$0xff]
    %v1555 = vld [vmem:[#allocation16 + $0xe0] sm:$0xff]
    %v1556 = vld [vmem:[#allocation16 + $0xe8] sm:$0xff]
    %v1557 = vld [vmem:[#allocation16 + $0xf0] sm:$0xff]
    %v1558 = vld [vmem:[#allocation16 + $0xf8] sm:$0xff]
    %v1559 = vld [vmem:[#allocation16 + $0x100] sm:$0xff]
    %v1560 = vld [vmem:[#allocation16 + $0x108] sm:$0xff]
    %v1561 = vld [vmem:[#allocation16 + $0x110] sm:$0xff]
    %v1562 = vld [vmem:[#allocation16 + $0x118] sm:$0xff]
    %v1563 = vld [vmem:[#allocation16 + $0x120] sm:$0xff]
    %v1564 = vld [vmem:[#allocation16 + $0x128] sm:$0xff]
    %v1565 = vld [vmem:[#allocation16 + $0x130] sm:$0xff]
    %v1566 = vld [vmem:[#allocation16 + $0x138] sm:$0xff]
    %v1567 = vld [vmem:[#allocation16 + $0x140] sm:$0xff]
    %v1568 = vld [vmem:[#allocation16 + $0x148] sm:$0xff]
    %v1569 = vld [vmem:[#allocation16 + $0x150] sm:$0xff]
    %v1570 = vld [vmem:[#allocation16 + $0x158] sm:$0xff]
    %v1571 = vld [vmem:[#allocation16 + $0x160] sm:$0xff]
    %v1572 = vld [vmem:[#allocation16 + $0x168] sm:$0xff]
    %v1573 = vld [vmem:[#allocation16 + $0x170] sm:$0xff]
    %v1574 = vld [vmem:[#allocation16 + $0x178] sm:$0xff]
    %v1575 = vld [vmem:[#allocation16 + $0x180] sm:$0xff]
    %v1576 = vld [vmem:[#allocation16 + $0x188] sm:$0xff]
    %v1577 = vld [vmem:[#allocation16 + $0x190] sm:$0xff]
    %v1578 = vld [vmem:[#allocation16 + $0x198] sm:$0xff]
    %v1579 = vld [vmem:[#allocation16 + $0x1a0] sm:$0xff]
    %v1580 = vld [vmem:[#allocation16 + $0x1a8] sm:$0xff]
    %v1581 = vld [vmem:[#allocation16 + $0x1b0] sm:$0xff]
    %v1582 = vld [vmem:[#allocation16 + $0x1b8] sm:$0xff]
    %v1583 = vld [vmem:[#allocation16 + $0x1c0] sm:$0xff]
    %v1584 = vld [vmem:[#allocation16 + $0x1c8] sm:$0xff]
    %v1585 = vld [vmem:[#allocation16 + $0x1d0] sm:$0xff]
    %v1586 = vld [vmem:[#allocation16 + $0x1d8] sm:$0xff]
    %v1587 = vld [vmem:[#allocation16 + $0x1e0] sm:$0xff]
    %v1588 = vld [vmem:[#allocation16 + $0x1e8] sm:$0xff]
    %v1589 = vld [vmem:[#allocation16 + $0x1f0] sm:$0xff]
    %v1590 = vld [vmem:[#allocation16 + $0x1f8] sm:$0xff]
    %v1591 = vld [vmem:[#allocation16 + $0x200] sm:$0xff]
    %v1592 = vld [vmem:[#allocation16 + $0x208] sm:$0xff]
    %v1593 = vld [vmem:[#allocation16 + $0x210] sm:$0xff]
    %v1594 = vld [vmem:[#allocation16 + $0x218] sm:$0xff]
    %v1595 = vld [vmem:[#allocation16 + $0x220] sm:$0xff]
    %v1596 = vld [vmem:[#allocation16 + $0x228] sm:$0xff]
    %v1597 = vld [vmem:[#allocation16 + $0x230] sm:$0xff]
    %v1598 = vld [vmem:[#allocation16 + $0x238] sm:$0xff]
    %v1599 = vld [vmem:[#allocation16 + $0x240] sm:$0xff]
    %v1600 = vld [vmem:[#allocation16 + $0x248] sm:$0xff]
    %v1601 = vld [vmem:[#allocation16 + $0x250] sm:$0xff]
    %v1602 = vld [vmem:[#allocation16 + $0x258] sm:$0xff]
    %v1603 = vld [vmem:[#allocation16 + $0x260] sm:$0xff]
    %v1604 = vld [vmem:[#allocation16 + $0x268] sm:$0xff]
    %v1605 = vld [vmem:[#allocation16 + $0x270] sm:$0xff]
    %v1606 = vld [vmem:[#allocation16 + $0x278] sm:$0xff]
    %v1607 = vld [vmem:[#allocation16 + $0x280] sm:$0xff]
    %v1608 = vld [vmem:[#allocation16 + $0x288] sm:$0xff]
    %v1609 = vld [vmem:[#allocation16 + $0x290] sm:$0xff]
    %v1610 = vld [vmem:[#allocation16 + $0x298] sm:$0xff]
    %v1611 = vld [vmem:[#allocation16 + $0x2a0] sm:$0xff]
    %v1612 = vld [vmem:[#allocation16 + $0x2a8] sm:$0xff]
    %v1613 = vld [vmem:[#allocation16 + $0x2b0] sm:$0xff]
    %v1614 = vld [vmem:[#allocation16 + $0x2b8] sm:$0xff]
    %v1615 = vld [vmem:[#allocation16 + $0x2c0] sm:$0xff]
    %v1616 = vld [vmem:[#allocation16 + $0x2c8] sm:$0xff]
    %v1617 = vld [vmem:[#allocation16 + $0x2d0] sm:$0xff]
    %v1618 = vld [vmem:[#allocation16 + $0x2d8] sm:$0xff]
    %v1619 = vld [vmem:[#allocation16 + $0x2e0] sm:$0xff]
    %v1620 = vld [vmem:[#allocation16 + $0x2e8] sm:$0xff]
    %v1621 = vld [vmem:[#allocation16 + $0x2f0] sm:$0xff]
    %v1622 = vld [vmem:[#allocation16 + $0x2f8] sm:$0xff]
    %v1719 = vunpack.c.l.b16 %v1527
    %v1720 = vunpack.c.h.b16 %v1527
    %v1721 = vunpack.c.l.b16 %v1528
    %v1722 = vunpack.c.h.b16 %v1528
    %v1723 = vunpack.c.l.b16 %v1529
    %v1724 = vunpack.c.h.b16 %v1529
    %v1725 = vunpack.c.l.b16 %v1530
    %v1726 = vunpack.c.h.b16 %v1530
    %v1727 = vunpack.c.l.b16 %v1531
    %v1728 = vunpack.c.h.b16 %v1531
    %v1729 = vunpack.c.l.b16 %v1532
    %v1730 = vunpack.c.h.b16 %v1532
    %v1731 = vunpack.c.l.b16 %v1533
    %v1732 = vunpack.c.h.b16 %v1533
    %v1733 = vunpack.c.l.b16 %v1534
    %v1734 = vunpack.c.h.b16 %v1534
    %v1735 = vunpack.c.l.b16 %v1535
    %v1736 = vunpack.c.h.b16 %v1535
    %v1737 = vunpack.c.l.b16 %v1536
    %v1738 = vunpack.c.h.b16 %v1536
    %v1739 = vunpack.c.l.b16 %v1537
    %v1740 = vunpack.c.h.b16 %v1537
    %v1741 = vunpack.c.l.b16 %v1538
    %v1742 = vunpack.c.h.b16 %v1538
    %v1743 = vunpack.c.l.b16 %v1539
    %v1744 = vunpack.c.h.b16 %v1539
    %v1745 = vunpack.c.l.b16 %v1540
    %v1746 = vunpack.c.h.b16 %v1540
    %v1747 = vunpack.c.l.b16 %v1541
    %v1748 = vunpack.c.h.b16 %v1541
    %v1749 = vunpack.c.l.b16 %v1542
    %v1750 = vunpack.c.h.b16 %v1542
    %v1751 = vunpack.c.l.b16 %v1543
    %v1752 = vunpack.c.h.b16 %v1543
    %v1753 = vunpack.c.l.b16 %v1544
    %v1754 = vunpack.c.h.b16 %v1544
    %v1755 = vunpack.c.l.b16 %v1545
    %v1756 = vunpack.c.h.b16 %v1545
    %v1757 = vunpack.c.l.b16 %v1546
    %v1758 = vunpack.c.h.b16 %v1546
    %v1759 = vunpack.c.l.b16 %v1547
    %v1760 = vunpack.c.h.b16 %v1547
    %v1761 = vunpack.c.l.b16 %v1548
    %v1762 = vunpack.c.h.b16 %v1548
    %v1763 = vunpack.c.l.b16 %v1549
    %v1764 = vunpack.c.h.b16 %v1549
    %v1765 = vunpack.c.l.b16 %v1550
    %v1766 = vunpack.c.h.b16 %v1550
    %v1767 = vunpack.c.l.b16 %v1551
    %v1768 = vunpack.c.h.b16 %v1551
    %v1769 = vunpack.c.l.b16 %v1552
    %v1770 = vunpack.c.h.b16 %v1552
    %v1771 = vunpack.c.l.b16 %v1553
    %v1772 = vunpack.c.h.b16 %v1553
    %v1773 = vunpack.c.l.b16 %v1554
    %v1774 = vunpack.c.h.b16 %v1554
    %v1775 = vunpack.c.l.b16 %v1555
    %v1776 = vunpack.c.h.b16 %v1555
    %v1777 = vunpack.c.l.b16 %v1556
    %v1778 = vunpack.c.h.b16 %v1556
    %v1779 = vunpack.c.l.b16 %v1557
    %v1780 = vunpack.c.h.b16 %v1557
    %v1781 = vunpack.c.l.b16 %v1558
    %v1782 = vunpack.c.h.b16 %v1558
    %v1783 = vunpack.c.l.b16 %v1559
    %v1784 = vunpack.c.h.b16 %v1559
    %v1785 = vunpack.c.l.b16 %v1560
    %v1786 = vunpack.c.h.b16 %v1560
    %v1787 = vunpack.c.l.b16 %v1561
    %v1788 = vunpack.c.h.b16 %v1561
    %v1789 = vunpack.c.l.b16 %v1562
    %v1790 = vunpack.c.h.b16 %v1562
    %v1791 = vunpack.c.l.b16 %v1563
    %v1792 = vunpack.c.h.b16 %v1563
    %v1793 = vunpack.c.l.b16 %v1564
    %v1794 = vunpack.c.h.b16 %v1564
    %v1795 = vunpack.c.l.b16 %v1565
    %v1796 = vunpack.c.h.b16 %v1565
    %v1797 = vunpack.c.l.b16 %v1566
    %v1798 = vunpack.c.h.b16 %v1566
    %v1799 = vunpack.c.l.b16 %v1567
    %v1800 = vunpack.c.h.b16 %v1567
    %v1801 = vunpack.c.l.b16 %v1568
    %v1802 = vunpack.c.h.b16 %v1568
    %v1803 = vunpack.c.l.b16 %v1569
    %v1804 = vunpack.c.h.b16 %v1569
    %v1805 = vunpack.c.l.b16 %v1570
    %v1806 = vunpack.c.h.b16 %v1570
    %v1807 = vunpack.c.l.b16 %v1571
    %v1808 = vunpack.c.h.b16 %v1571
    %v1809 = vunpack.c.l.b16 %v1572
    %v1810 = vunpack.c.h.b16 %v1572
    %v1811 = vunpack.c.l.b16 %v1573
    %v1812 = vunpack.c.h.b16 %v1573
    %v1813 = vunpack.c.l.b16 %v1574
    %v1814 = vunpack.c.h.b16 %v1574
    %v1815 = vunpack.c.l.b16 %v1575
    %v1816 = vunpack.c.h.b16 %v1575
    %v1817 = vunpack.c.l.b16 %v1576
    %v1818 = vunpack.c.h.b16 %v1576
    %v1819 = vunpack.c.l.b16 %v1577
    %v1820 = vunpack.c.h.b16 %v1577
    %v1821 = vunpack.c.l.b16 %v1578
    %v1822 = vunpack.c.h.b16 %v1578
    %v1823 = vunpack.c.l.b16 %v1579
    %v1824 = vunpack.c.h.b16 %v1579
    %v1825 = vunpack.c.l.b16 %v1580
    %v1826 = vunpack.c.h.b16 %v1580
    %v1827 = vunpack.c.l.b16 %v1581
    %v1828 = vunpack.c.h.b16 %v1581
    %v1829 = vunpack.c.l.b16 %v1582
    %v1830 = vunpack.c.h.b16 %v1582
    %v1831 = vunpack.c.l.b16 %v1583
    %v1832 = vunpack.c.h.b16 %v1583
    %v1833 = vunpack.c.l.b16 %v1584
    %v1834 = vunpack.c.h.b16 %v1584
    %v1835 = vunpack.c.l.b16 %v1585
    %v1836 = vunpack.c.h.b16 %v1585
    %v1837 = vunpack.c.l.b16 %v1586
    %v1838 = vunpack.c.h.b16 %v1586
    %v1839 = vunpack.c.l.b16 %v1587
    %v1840 = vunpack.c.h.b16 %v1587
    %v1841 = vunpack.c.l.b16 %v1588
    %v1842 = vunpack.c.h.b16 %v1588
    %v1843 = vunpack.c.l.b16 %v1589
    %v1844 = vunpack.c.h.b16 %v1589
    %v1845 = vunpack.c.l.b16 %v1590
    %v1846 = vunpack.c.h.b16 %v1590
    %v1847 = vunpack.c.l.b16 %v1591
    %v1848 = vunpack.c.h.b16 %v1591
    %v1849 = vunpack.c.l.b16 %v1592
    %v1850 = vunpack.c.h.b16 %v1592
    %v1851 = vunpack.c.l.b16 %v1593
    %v1852 = vunpack.c.h.b16 %v1593
    %v1853 = vunpack.c.l.b16 %v1594
    %v1854 = vunpack.c.h.b16 %v1594
    %v1855 = vunpack.c.l.b16 %v1595
    %v1856 = vunpack.c.h.b16 %v1595
    %v1857 = vunpack.c.l.b16 %v1596
    %v1858 = vunpack.c.h.b16 %v1596
    %v1859 = vunpack.c.l.b16 %v1597
    %v1860 = vunpack.c.h.b16 %v1597
    %v1861 = vunpack.c.l.b16 %v1598
    %v1862 = vunpack.c.h.b16 %v1598
    %v1863 = vunpack.c.l.b16 %v1599
    %v1864 = vunpack.c.h.b16 %v1599
    %v1865 = vunpack.c.l.b16 %v1600
    %v1866 = vunpack.c.h.b16 %v1600
    %v1867 = vunpack.c.l.b16 %v1601
    %v1868 = vunpack.c.h.b16 %v1601
    %v1869 = vunpack.c.l.b16 %v1602
    %v1870 = vunpack.c.h.b16 %v1602
    %v1871 = vunpack.c.l.b16 %v1603
    %v1872 = vunpack.c.h.b16 %v1603
    %v1873 = vunpack.c.l.b16 %v1604
    %v1874 = vunpack.c.h.b16 %v1604
    %v1875 = vunpack.c.l.b16 %v1605
    %v1876 = vunpack.c.h.b16 %v1605
    %v1877 = vunpack.c.l.b16 %v1606
    %v1878 = vunpack.c.h.b16 %v1606
    %v1879 = vunpack.c.l.b16 %v1607
    %v1880 = vunpack.c.h.b16 %v1607
    %v1881 = vunpack.c.l.b16 %v1608
    %v1882 = vunpack.c.h.b16 %v1608
    %v1883 = vunpack.c.l.b16 %v1609
    %v1884 = vunpack.c.h.b16 %v1609
    %v1885 = vunpack.c.l.b16 %v1610
    %v1886 = vunpack.c.h.b16 %v1610
    %v1887 = vunpack.c.l.b16 %v1611
    %v1888 = vunpack.c.h.b16 %v1611
    %v1889 = vunpack.c.l.b16 %v1612
    %v1890 = vunpack.c.h.b16 %v1612
    %v1891 = vunpack.c.l.b16 %v1613
    %v1892 = vunpack.c.h.b16 %v1613
    %v1893 = vunpack.c.l.b16 %v1614
    %v1894 = vunpack.c.h.b16 %v1614
    %v1895 = vunpack.c.l.b16 %v1615
    %v1896 = vunpack.c.h.b16 %v1615
    %v1897 = vunpack.c.l.b16 %v1616
    %v1898 = vunpack.c.h.b16 %v1616
    %v1899 = vunpack.c.l.b16 %v1617
    %v1900 = vunpack.c.h.b16 %v1617
    %v1901 = vunpack.c.l.b16 %v1618
    %v1902 = vunpack.c.h.b16 %v1618
    %v1903 = vunpack.c.l.b16 %v1619
    %v1904 = vunpack.c.h.b16 %v1619
    %v1905 = vunpack.c.l.b16 %v1620
    %v1906 = vunpack.c.h.b16 %v1620
    %v1907 = vunpack.c.l.b16 %v1621
    %v1908 = vunpack.c.h.b16 %v1621
    %v1909 = vunpack.c.l.b16 %v1622
    %v1910 = vunpack.c.h.b16 %v1622
    %v1911 = vpack.c.b16 %v1721, %v1719
    %v1912 = vpack.c.b16 %v1722, %v1720
    %v1913 = vpack.c.b16 %v1725, %v1723
    %v1914 = vpack.c.b16 %v1726, %v1724
    %v1915 = vpack.c.b16 %v1729, %v1727
    %v1916 = vpack.c.b16 %v1730, %v1728
    %v1917 = vpack.c.b16 %v1733, %v1731
    %v1918 = vpack.c.b16 %v1734, %v1732
    %v1919 = vpack.c.b16 %v1737, %v1735
    %v1920 = vpack.c.b16 %v1738, %v1736
    %v1921 = vpack.c.b16 %v1741, %v1739
    %v1922 = vpack.c.b16 %v1742, %v1740
    %v1923 = vpack.c.b16 %v1745, %v1743
    %v1924 = vpack.c.b16 %v1746, %v1744
    %v1925 = vpack.c.b16 %v1749, %v1747
    %v1926 = vpack.c.b16 %v1750, %v1748
    %v1927 = vpack.c.b16 %v1753, %v1751
    %v1928 = vpack.c.b16 %v1754, %v1752
    %v1929 = vpack.c.b16 %v1757, %v1755
    %v1930 = vpack.c.b16 %v1758, %v1756
    %v1931 = vpack.c.b16 %v1761, %v1759
    %v1932 = vpack.c.b16 %v1762, %v1760
    %v1933 = vpack.c.b16 %v1765, %v1763
    %v1934 = vpack.c.b16 %v1766, %v1764
    %v1935 = vpack.c.b16 %v1769, %v1767
    %v1936 = vpack.c.b16 %v1770, %v1768
    %v1937 = vpack.c.b16 %v1773, %v1771
    %v1938 = vpack.c.b16 %v1774, %v1772
    %v1939 = vpack.c.b16 %v1777, %v1775
    %v1940 = vpack.c.b16 %v1778, %v1776
    %v1941 = vpack.c.b16 %v1781, %v1779
    %v1942 = vpack.c.b16 %v1782, %v1780
    %v1943 = vpack.c.b16 %v1785, %v1783
    %v1944 = vpack.c.b16 %v1786, %v1784
    %v1945 = vpack.c.b16 %v1789, %v1787
    %v1946 = vpack.c.b16 %v1790, %v1788
    %v1947 = vpack.c.b16 %v1793, %v1791
    %v1948 = vpack.c.b16 %v1794, %v1792
    %v1949 = vpack.c.b16 %v1797, %v1795
    %v1950 = vpack.c.b16 %v1798, %v1796
    %v1951 = vpack.c.b16 %v1801, %v1799
    %v1952 = vpack.c.b16 %v1802, %v1800
    %v1953 = vpack.c.b16 %v1805, %v1803
    %v1954 = vpack.c.b16 %v1806, %v1804
    %v1955 = vpack.c.b16 %v1809, %v1807
    %v1956 = vpack.c.b16 %v1810, %v1808
    %v1957 = vpack.c.b16 %v1813, %v1811
    %v1958 = vpack.c.b16 %v1814, %v1812
    %v1959 = vpack.c.b16 %v1817, %v1815
    %v1960 = vpack.c.b16 %v1818, %v1816
    %v1961 = vpack.c.b16 %v1821, %v1819
    %v1962 = vpack.c.b16 %v1822, %v1820
    %v1963 = vpack.c.b16 %v1825, %v1823
    %v1964 = vpack.c.b16 %v1826, %v1824
    %v1965 = vpack.c.b16 %v1829, %v1827
    %v1966 = vpack.c.b16 %v1830, %v1828
    %v1967 = vpack.c.b16 %v1833, %v1831
    %v1968 = vpack.c.b16 %v1834, %v1832
    %v1969 = vpack.c.b16 %v1837, %v1835
    %v1970 = vpack.c.b16 %v1838, %v1836
    %v1971 = vpack.c.b16 %v1841, %v1839
    %v1972 = vpack.c.b16 %v1842, %v1840
    %v1973 = vpack.c.b16 %v1845, %v1843
    %v1974 = vpack.c.b16 %v1846, %v1844
    %v1975 = vpack.c.b16 %v1849, %v1847
    %v1976 = vpack.c.b16 %v1850, %v1848
    %v1977 = vpack.c.b16 %v1853, %v1851
    %v1978 = vpack.c.b16 %v1854, %v1852
    %v1979 = vpack.c.b16 %v1857, %v1855
    %v1980 = vpack.c.b16 %v1858, %v1856
    %v1981 = vpack.c.b16 %v1861, %v1859
    %v1982 = vpack.c.b16 %v1862, %v1860
    %v1983 = vpack.c.b16 %v1865, %v1863
    %v1984 = vpack.c.b16 %v1866, %v1864
    %v1985 = vpack.c.b16 %v1869, %v1867
    %v1986 = vpack.c.b16 %v1870, %v1868
    %v1987 = vpack.c.b16 %v1873, %v1871
    %v1988 = vpack.c.b16 %v1874, %v1872
    %v1989 = vpack.c.b16 %v1877, %v1875
    %v1990 = vpack.c.b16 %v1878, %v1876
    %v1991 = vpack.c.b16 %v1881, %v1879
    %v1992 = vpack.c.b16 %v1882, %v1880
    %v1993 = vpack.c.b16 %v1885, %v1883
    %v1994 = vpack.c.b16 %v1886, %v1884
    %v1995 = vpack.c.b16 %v1889, %v1887
    %v1996 = vpack.c.b16 %v1890, %v1888
    %v1997 = vpack.c.b16 %v1893, %v1891
    %v1998 = vpack.c.b16 %v1894, %v1892
    %v1999 = vpack.c.b16 %v1897, %v1895
    %v2000 = vpack.c.b16 %v1898, %v1896
    %v2001 = vpack.c.b16 %v1901, %v1899
    %v2002 = vpack.c.b16 %v1902, %v1900
    %v2003 = vpack.c.b16 %v1905, %v1903
    %v2004 = vpack.c.b16 %v1906, %v1904
    %v2005 = vpack.c.b16 %v1909, %v1907
    %v2006 = vpack.c.b16 %v1910, %v1908
    %2103 = vmatpush.bf16.msra.mxu0 %v1925
    %2104 = vmatpush.bf16.msra.mxu0 %v1923
    %2105 = vmatpush.bf16.msra.mxu0 %v1921
    %2106 = vmatpush.bf16.msra.mxu0 %v1919
    %2107 = vmatpush.bf16.msra.mxu0 %v1917
    %2108 = vmatpush.bf16.msra.mxu0 %v1915
    %2109 = vmatpush.bf16.msra.mxu0 %v1913
    %2110 = vmatpush.bf16.msra.mxu0 %v1911
    %2111 = vmatmul.bf16.gmra.mxu0 %v1521
    %v2112 = vpop.f32.mrf.mxu0
    %v2113 = vadd.f32 0.0, %v2112
    %v2114 = vpop.f32.mrf.mxu0
    %2115 = vdwg.mxu0
    %2116 = vmatpush.bf16.msra.mxu0 %v1941
    %2117 = vmatpush.bf16.msra.mxu0 %v1939
    %2118 = vmatpush.bf16.msra.mxu0 %v1937
    %2119 = vmatpush.bf16.msra.mxu0 %v1935
    %2120 = vmatpush.bf16.msra.mxu0 %v1933
    %2121 = vmatpush.bf16.msra.mxu0 %v1931
    %2122 = vmatpush.bf16.msra.mxu0 %v1929
    %2123 = vmatpush.bf16.msra.mxu0 %v1927
    %2124 = vmatmul.bf16.gmra.mxu0 %v1522
    %v2125 = vpop.f32.mrf.mxu0
    %v2126 = vadd.f32 %v2113, %v2125
    %v2127 = vpop.f32.mrf.mxu0
    %2128 = vdwg.mxu0
    %2129 = vmatpush.bf16.msra.mxu0 %v1957
    %2130 = vmatpush.bf16.msra.mxu0 %v1955
    %2131 = vmatpush.bf16.msra.mxu0 %v1953
    %2132 = vmatpush.bf16.msra.mxu0 %v1951
    %2133 = vmatpush.bf16.msra.mxu0 %v1949
    %2134 = vmatpush.bf16.msra.mxu0 %v1947
    %2135 = vmatpush.bf16.msra.mxu0 %v1945
    %2136 = vmatpush.bf16.msra.mxu0 %v1943
    %2137 = vmatmul.bf16.gmra.mxu0 %v1523
    %v2138 = vpop.f32.mrf.mxu0
    %v2139 = vadd.f32 %v2126, %v2138
    %v2140 = vpop.f32.mrf.mxu0
    %2141 = vdwg.mxu0
    %2142 = vmatpush.bf16.msra.mxu0 %v1973
    %2143 = vmatpush.bf16.msra.mxu0 %v1971
    %2144 = vmatpush.bf16.msra.mxu0 %v1969
    %2145 = vmatpush.bf16.msra.mxu0 %v1967
    %2146 = vmatpush.bf16.msra.mxu0 %v1965
    %2147 = vmatpush.bf16.msra.mxu0 %v1963
    %2148 = vmatpush.bf16.msra.mxu0 %v1961
    %2149 = vmatpush.bf16.msra.mxu0 %v1959
    %2150 = vmatmul.bf16.gmra.mxu0 %v1524
    %v2151 = vpop.f32.mrf.mxu0
    %v2152 = vadd.f32 %v2139, %v2151
    %v2153 = vpop.f32.mrf.mxu0
    %2154 = vdwg.mxu0
    %2155 = vmatpush.bf16.msra.mxu0 %v1989
    %2156 = vmatpush.bf16.msra.mxu0 %v1987
    %2157 = vmatpush.bf16.msra.mxu0 %v1985
    %2158 = vmatpush.bf16.msra.mxu0 %v1983
    %2159 = vmatpush.bf16.msra.mxu0 %v1981
    %2160 = vmatpush.bf16.msra.mxu0 %v1979
    %2161 = vmatpush.bf16.msra.mxu0 %v1977
    %2162 = vmatpush.bf16.msra.mxu0 %v1975
    %2163 = vmatmul.bf16.gmra.mxu0 %v1525
    %v2164 = vpop.f32.mrf.mxu0
    %v2165 = vadd.f32 %v2152, %v2164
    %v2166 = vpop.f32.mrf.mxu0
    %2167 = vdwg.mxu0
    %2168 = vmatpush.bf16.msra.mxu0 %v2005
    %2169 = vmatpush.bf16.msra.mxu0 %v2003
    %2170 = vmatpush.bf16.msra.mxu0 %v2001
    %2171 = vmatpush.bf16.msra.mxu0 %v1999
    %2172 = vmatpush.bf16.msra.mxu0 %v1997
    %2173 = vmatpush.bf16.msra.mxu0 %v1995
    %2174 = vmatpush.bf16.msra.mxu0 %v1993
    %2175 = vmatpush.bf16.msra.mxu0 %v1991
    %2176 = vmatmul.bf16.gmra.mxu0 %v1526
    %v2177 = vpop.f32.mrf.mxu0
    %v2178 = vadd.f32 %v2165, %v2177
    %v2179 = vpop.f32.mrf.mxu0
    %2180 = vdwg.mxu0
    %2181 = vmatpush.bf16.msra.mxu0 %v1926
    %2182 = vmatpush.bf16.msra.mxu0 %v1924
    %2183 = vmatpush.bf16.msra.mxu0 %v1922
    %2184 = vmatpush.bf16.msra.mxu0 %v1920
    %2185 = vmatpush.bf16.msra.mxu0 %v1918
    %2186 = vmatpush.bf16.msra.mxu0 %v1916
    %2187 = vmatpush.bf16.msra.mxu0 %v1914
    %2188 = vmatpush.bf16.msra.mxu0 %v1912
    %2189 = vmatmul.bf16.gmra.mxu0 %v1521
    %v2190 = vpop.f32.mrf.mxu0
    %v2191 = vadd.f32 0.0, %v2190
    %v2192 = vpop.f32.mrf.mxu0
    %2193 = vdwg.mxu0
    %2194 = vmatpush.bf16.msra.mxu0 %v1942
    %2195 = vmatpush.bf16.msra.mxu0 %v1940
    %2196 = vmatpush.bf16.msra.mxu0 %v1938
    %2197 = vmatpush.bf16.msra.mxu0 %v1936
    %2198 = vmatpush.bf16.msra.mxu0 %v1934
    %2199 = vmatpush.bf16.msra.mxu0 %v1932
    %2200 = vmatpush.bf16.msra.mxu0 %v1930
    %2201 = vmatpush.bf16.msra.mxu0 %v1928
    %2202 = vmatmul.bf16.gmra.mxu0 %v1522
    %v2203 = vpop.f32.mrf.mxu0
    %v2204 = vadd.f32 %v2191, %v2203
    %v2205 = vpop.f32.mrf.mxu0
    %2206 = vdwg.mxu0
    %2207 = vmatpush.bf16.msra.mxu0 %v1958
    %2208 = vmatpush.bf16.msra.mxu0 %v1956
    %2209 = vmatpush.bf16.msra.mxu0 %v1954
    %2210 = vmatpush.bf16.msra.mxu0 %v1952
    %2211 = vmatpush.bf16.msra.mxu0 %v1950
    %2212 = vmatpush.bf16.msra.mxu0 %v1948
    %2213 = vmatpush.bf16.msra.mxu0 %v1946
    %2214 = vmatpush.bf16.msra.mxu0 %v1944
    %2215 = vmatmul.bf16.gmra.mxu0 %v1523
    %v2216 = vpop.f32.mrf.mxu0
    %v2217 = vadd.f32 %v2204, %v2216
    %v2218 = vpop.f32.mrf.mxu0
    %2219 = vdwg.mxu0
    %2220 = vmatpush.bf16.msra.mxu0 %v1974
    %2221 = vmatpush.bf16.msra.mxu0 %v1972
    %2222 = vmatpush.bf16.msra.mxu0 %v1970
    %2223 = vmatpush.bf16.msra.mxu0 %v1968
    %2224 = vmatpush.bf16.msra.mxu0 %v1966
    %2225 = vmatpush.bf16.msra.mxu0 %v1964
    %2226 = vmatpush.bf16.msra.mxu0 %v1962
    %2227 = vmatpush.bf16.msra.mxu0 %v1960
    %2228 = vmatmul.bf16.gmra.mxu0 %v1524
    %v2229 = vpop.f32.mrf.mxu0
    %v2230 = vadd.f32 %v2217, %v2229
    %v2231 = vpop.f32.mrf.mxu0
    %2232 = vdwg.mxu0
    %2233 = vmatpush.bf16.msra.mxu0 %v1990
    %2234 = vmatpush.bf16.msra.mxu0 %v1988
    %2235 = vmatpush.bf16.msra.mxu0 %v1986
    %2236 = vmatpush.bf16.msra.mxu0 %v1984
    %2237 = vmatpush.bf16.msra.mxu0 %v1982
    %2238 = vmatpush.bf16.msra.mxu0 %v1980
    %2239 = vmatpush.bf16.msra.mxu0 %v1978
    %2240 = vmatpush.bf16.msra.mxu0 %v1976
    %2241 = vmatmul.bf16.gmra.mxu0 %v1525
    %v2242 = vpop.f32.mrf.mxu0
    %v2243 = vadd.f32 %v2230, %v2242
    %v2244 = vpop.f32.mrf.mxu0
    %2245 = vdwg.mxu0
    %2246 = vmatpush.bf16.msra.mxu0 %v2006
    %2247 = vmatpush.bf16.msra.mxu0 %v2004
    %2248 = vmatpush.bf16.msra.mxu0 %v2002
    %2249 = vmatpush.bf16.msra.mxu0 %v2000
    %2250 = vmatpush.bf16.msra.mxu0 %v1998
    %2251 = vmatpush.bf16.msra.mxu0 %v1996
    %2252 = vmatpush.bf16.msra.mxu0 %v1994
    %2253 = vmatpush.bf16.msra.mxu0 %v1992
    %2254 = vmatmul.bf16.gmra.mxu0 %v1526
    %v2255 = vpop.f32.mrf.mxu0
    %v2256 = vadd.f32 %v2243, %v2255
    %v2257 = vpop.f32.mrf.mxu0
    %2258 = vdwg.mxu0
    %2259 = vst [vmem:[#allocation5 + $0x8] sm:$0xff] %v2178
    %2260 = vst [vmem:[#allocation5 + $0x10] sm:$0xff] %v2256
    %v2261 = vld [vmem:[#allocation5] sm:$0xff]
    %v2262 = vld [vmem:[#allocation5 + $0x8] sm:$0xff]
    %v2263 = vld [vmem:[#allocation5 + $0x10] sm:$0xff]
    %2267 = vrot.lane.b32.xlu0 %v2261, 11
    %v2268 = vpop.permute.xlu0 %2267
    %2269 = vrot.lane.b32.xlu0 %v2262, 11
    %v2270 = vpop.permute.xlu0 %2269
    %2271 = vrot.lane.b32.xlu0 %v2263, 11
    %v2272 = vpop.permute.xlu0 %2271
    %vm2273 = vcmask 89088
    %v2274 = vsel %vm2273, %v2268, %v2270
    %v2275 = vsel %vm2273, %v2270, %v2272
    %2278 = vst [vmem:[#allocation2] sm:$0xff] %v2274
    %2279 = vst [vmem:[#allocation2 + $0x8] sm:$0xff] %v2275
    %v2280 = vld [vmem:[#allocation5] sm:$0xff]
    %v2281 = vld [vmem:[#allocation5 + $0x8] sm:$0xff]
    %v2282 = vld [vmem:[#allocation5 + $0x10] sm:$0xff]
    %2286 = vrot.lane.b32.xlu0 %v2280, 10
    %v2287 = vpop.permute.xlu0 %2286
    %2288 = vrot.lane.b32.xlu0 %v2281, 10
    %v2289 = vpop.permute.xlu0 %2288
    %2290 = vrot.lane.b32.xlu0 %v2282, 10
    %v2291 = vpop.permute.xlu0 %2290
    %vm2292 = vcmask 80896
    %v2293 = vsel %vm2292, %v2287, %v2289
    %v2294 = vsel %vm2292, %v2289, %v2291
    %2297 = vst [vmem:[#allocation2 + $0x30] sm:$0xff] %v2293
    %2298 = vst [vmem:[#allocation2 + $0x38] sm:$0xff] %v2294
    %v2299 = vld [vmem:[#allocation5] sm:$0xff]
    %v2300 = vld [vmem:[#allocation5 + $0x8] sm:$0xff]
    %v2301 = vld [vmem:[#allocation5 + $0x10] sm:$0xff]
    %2305 = vrot.lane.b32.xlu0 %v2299, 9
    %v2306 = vpop.permute.xlu0 %2305
    %2307 = vrot.lane.b32.xlu0 %v2300, 9
    %v2308 = vpop.permute.xlu0 %2307
    %2309 = vrot.lane.b32.xlu0 %v2301, 9
    %v2310 = vpop.permute.xlu0 %2309
    %vm2311 = vcmask 72704
    %v2312 = vsel %vm2311, %v2306, %v2308
    %v2313 = vsel %vm2311, %v2308, %v2310
    %2316 = vst [vmem:[#allocation2 + $0x60] sm:$0xff] %v2312
    %2317 = vst [vmem:[#allocation2 + $0x68] sm:$0xff] %v2313
    %v2318 = vld [vmem:[#allocation5] sm:$0xff]
    %v2319 = vld [vmem:[#allocation5 + $0x8] sm:$0xff]
    %v2320 = vld [vmem:[#allocation5 + $0x10] sm:$0xff]
    %2324 = vrot.lane.b32.xlu0 %v2318, 1
    %v2325 = vpop.permute.xlu0 %2324
    %2326 = vrot.lane.b32.xlu0 %v2319, 1
    %v2327 = vpop.permute.xlu0 %2326
    %2328 = vrot.lane.b32.xlu0 %v2320, 1
    %v2329 = vpop.permute.xlu0 %2328
    %v2330 = vsel %vm982, %v2325, %v2327
    %v2331 = vsel %vm982, %v2327, %v2329
    %2334 = vst [vmem:[#allocation2 + $0x90] sm:$0xff] %v2330
    %2335 = vst [vmem:[#allocation2 + $0x98] sm:$0xff] %v2331
    %v2336 = vld [vmem:[#allocation5 + $0x8] sm:$0xff]
    %v2337 = vld [vmem:[#allocation5 + $0x10] sm:$0xff]
    %2338 = vst [vmem:[#allocation2 + $0xc0] sm:$0xff] %v2336
    %2339 = vst [vmem:[#allocation2 + $0xc8] sm:$0xff] %v2337
    %v2340 = vld [vmem:[#allocation5 + $0x8] sm:$0xff]
    %v2341 = vld [vmem:[#allocation5 + $0x10] sm:$0xff]
    %v2342 = vld [vmem:[#allocation5 + $0x18] sm:$0xff]
    %2346 = vrot.lane.b32.xlu0 %v2340, 127
    %v2347 = vpop.permute.xlu0 %2346
    %2348 = vrot.lane.b32.xlu0 %v2341, 127
    %v2349 = vpop.permute.xlu0 %2348
    %2350 = vrot.lane.b32.xlu0 %v2342, 127
    %v2351 = vpop.permute.xlu0 %2350
    %v2352 = vsel %vm298, %v2347, %v2349
    %v2353 = vsel %vm298, %v2349, %v2351
    %2356 = vst [vmem:[#allocation2 + $0xf0] sm:$0xff] %v2352
    %2357 = vst [vmem:[#allocation2 + $0xf8] sm:$0xff] %v2353
    %v2358 = vld [vmem:[#allocation5 + $0x8] sm:$0xff]
    %v2359 = vld [vmem:[#allocation5 + $0x10] sm:$0xff]
    %v2360 = vld [vmem:[#allocation5 + $0x18] sm:$0xff]
    %2364 = vrot.lane.b32.xlu0 %v2358, 119
    %v2365 = vpop.permute.xlu0 %2364
    %2366 = vrot.lane.b32.xlu0 %v2359, 119
    %v2367 = vpop.permute.xlu0 %2366
    %2368 = vrot.lane.b32.xlu0 %v2360, 119
    %v2369 = vpop.permute.xlu0 %2368
    %vm2370 = vcmask 973824
    %v2371 = vsel %vm2370, %v2365, %v2367
    %v2372 = vsel %vm2370, %v2367, %v2369
    %2375 = vst [vmem:[#allocation2 + $0x120] sm:$0xff] %v2371
    %2376 = vst [vmem:[#allocation2 + $0x128] sm:$0xff] %v2372
    %v2377 = vld [vmem:[#allocation5 + $0x8] sm:$0xff]
    %v2378 = vld [vmem:[#allocation5 + $0x10] sm:$0xff]
    %v2379 = vld [vmem:[#allocation5 + $0x18] sm:$0xff]
    %2383 = vrot.lane.b32.xlu0 %v2377, 118
    %v2384 = vpop.permute.xlu0 %2383
    %2385 = vrot.lane.b32.xlu0 %v2378, 118
    %v2386 = vpop.permute.xlu0 %2385
    %2387 = vrot.lane.b32.xlu0 %v2379, 118
    %v2388 = vpop.permute.xlu0 %2387
    %vm2389 = vcmask 965632
    %v2390 = vsel %vm2389, %v2384, %v2386
    %v2391 = vsel %vm2389, %v2386, %v2388
    %2394 = vst [vmem:[#allocation2 + $0x150] sm:$0xff] %v2390
    %2395 = vst [vmem:[#allocation2 + $0x158] sm:$0xff] %v2391
    %v2396 = vld [vmem:[#allocation5 + $0x8] sm:$0xff]
    %v2397 = vld [vmem:[#allocation5 + $0x10] sm:$0xff]
    %v2398 = vld [vmem:[#allocation5 + $0x18] sm:$0xff]
    %2402 = vrot.lane.b32.xlu0 %v2396, 117
    %v2403 = vpop.permute.xlu0 %2402
    %2404 = vrot.lane.b32.xlu0 %v2397, 117
    %v2405 = vpop.permute.xlu0 %2404
    %2406 = vrot.lane.b32.xlu0 %v2398, 117
    %v2407 = vpop.permute.xlu0 %2406
    %vm2408 = vcmask 957440
    %v2409 = vsel %vm2408, %v2403, %v2405
    %v2410 = vsel %vm2408, %v2405, %v2407
    %2413 = vst [vmem:[#allocation2 + $0x180] sm:$0xff] %v2409
    %2414 = vst [vmem:[#allocation2 + $0x188] sm:$0xff] %v2410
    %v2415 = vld [vmem:[%s11] sm:$0xf]
    %v2416 = vld [vmem:[%s11 + $0x4] sm:$0xf]
    %v2417 = vld [vmem:[#allocation2] sm:$0xff]
    %v2418 = vld [vmem:[#allocation2 + $0x8] sm:$0xff]
    %v2419 = vld [vmem:[#allocation2 + $0x30] sm:$0xff]
    %v2420 = vld [vmem:[#allocation2 + $0x38] sm:$0xff]
    %v2421 = vld [vmem:[#allocation2 + $0x60] sm:$0xff]
    %v2422 = vld [vmem:[#allocation2 + $0x68] sm:$0xff]
    %v2423 = vld [vmem:[#allocation2 + $0x90] sm:$0xff]
    %v2424 = vld [vmem:[#allocation2 + $0x98] sm:$0xff]
    %v2425 = vld [vmem:[#allocation2 + $0xc0] sm:$0xff]
    %v2426 = vld [vmem:[#allocation2 + $0xc8] sm:$0xff]
    %v2427 = vld [vmem:[#allocation2 + $0xf0] sm:$0xff]
    %v2428 = vld [vmem:[#allocation2 + $0xf8] sm:$0xff]
    %v2429 = vld [vmem:[#allocation2 + $0x120] sm:$0xff]
    %v2430 = vld [vmem:[#allocation2 + $0x128] sm:$0xff]
    %v2431 = vld [vmem:[#allocation2 + $0x150] sm:$0xff]
    %v2432 = vld [vmem:[#allocation2 + $0x158] sm:$0xff]
    %v2433 = vld [vmem:[#allocation2 + $0x180] sm:$0xff]
    %v2434 = vld [vmem:[#allocation2 + $0x188] sm:$0xff]
    %v2435 = vpack.c.bf16 %v2419, %v2417
    %v2436 = vpack.c.bf16 %v2420, %v2418
    %v2437 = vpack.c.bf16 %v2423, %v2421
    %v2438 = vpack.c.bf16 %v2424, %v2422
    %v2439 = vpack.c.bf16 %v2427, %v2425
    %v2440 = vpack.c.bf16 %v2428, %v2426
    %v2441 = vpack.c.bf16 %v2431, %v2429
    %v2442 = vpack.c.bf16 %v2432, %v2430
    %v2443 = vpack.c.bf16 %v2433, %v2433
    %v2444 = vpack.c.bf16 %v2434, %v2434
    %v2445 = vld [vmem:[%s13] sm:$0xff]
    %v2446 = vld [vmem:[%s13 + $0x8] sm:$0xff]
    %2448 = vset.pattern.permute.xlu0 0
    %2449 = vperm.xlu0 %2448, %v2445
    %v2450 = vpop.permute.xlu0 %2449
    %2453 = vset.pattern.permute.xlu0 0
    %2454 = vperm.xlu0 %2453, %v2446
    %v2455 = vpop.permute.xlu0 %2454
    %v2459 = vunpack.c.l.b16 %v2415
    %v2460 = vunpack.c.l.b16 %v2416
    %v2461 = vpack.c.b16 %v2460, %v2459
    %v2463 = vsel %vm1289, %v2461, 0
    %v2466 = vsel %vm1293, %v2443, 0
    %v2469 = vsel %vm1293, %v2444, 0
    %2471 = vmatpush.bf16.msra.mxu0 0
    %2472 = vmatpush.bf16.msra.mxu0 0
    %2473 = vmatpush.bf16.msra.mxu0 0
    %2474 = vmatpush.bf16.msra.mxu0 %v2466
    %2475 = vmatpush.bf16.msra.mxu0 %v2441
    %2476 = vmatpush.bf16.msra.mxu0 %v2439
    %2477 = vmatpush.bf16.msra.mxu0 %v2437
    %2478 = vmatpush.bf16.msra.mxu0 %v2435
    %2479 = vmatmul.bf16.gmra.mxu0 %v2463
    %v2480 = vpop.f32.mrf.mxu0
    %v2481 = vadd.f32 %v2450, %v2480
    %v2482 = vpop.f32.mrf.mxu0
    %v2483 = vadd.f32 %v2455, %v2482
    %2484 = vdwg.mxu0
    %2485 = vmatpush.bf16.msra.mxu0 0
    %2486 = vmatpush.bf16.msra.mxu0 0
    %2487 = vmatpush.bf16.msra.mxu0 0
    %2488 = vmatpush.bf16.msra.mxu0 %v2469
    %2489 = vmatpush.bf16.msra.mxu0 %v2442
    %2490 = vmatpush.bf16.msra.mxu0 %v2440
    %2491 = vmatpush.bf16.msra.mxu0 %v2438
    %2492 = vmatpush.bf16.msra.mxu0 %v2436
    %2493 = vmatmul.bf16.gmra.mxu0 %v2463
    %v2494 = vpop.f32.mrf.mxu0
    %v2495 = vadd.f32 %v2450, %v2494
    %v2496 = vpop.f32.mrf.mxu0
    %v2497 = vadd.f32 %v2455, %v2496
    %2498 = vdwg.mxu0
    %v2499 = vmax.f32 %v2481, 0.0
    %v2500 = vmax.f32 %v2495, 0.0
    %v2501 = vmax.f32 %v2483, 0.0
    %v2502 = vmax.f32 %v2497, 0.0
    %v2503 = vld [vmem:[%s49] sm:$0x3]
    %v2505 = vperm.slane %v2503, 0
    %v2506 = vperm.slane %v2503, 1
    %v2509 = vmul.f32 %v2499, %v2505
    %v2510 = vmul.f32 %v2500, %v2506
    %v2511 = vmul.f32 %v2501, %v2505
    %v2512 = vmul.f32 %v2502, %v2506
    %2513 = vst [vmem:[#allocation6 + $0x8] sm:$0xff] %v2509
    %2514 = vst [vmem:[#allocation6 + $0x10] sm:$0xff] %v2510
    %2515 = vst [vmem:[#allocation6 + $0x28] sm:$0xff] %v2511
    %2516 = vst [vmem:[#allocation6 + $0x30] sm:$0xff] %v2512
    %v2517 = vld [vmem:[#allocation6] sm:$0xff]
    %v2518 = vld [vmem:[#allocation6 + $0x8] sm:$0xff]
    %v2519 = vld [vmem:[#allocation6 + $0x10] sm:$0xff]
    %v2520 = vld [vmem:[#allocation6 + $0x20] sm:$0xff]
    %v2521 = vld [vmem:[#allocation6 + $0x28] sm:$0xff]
    %v2522 = vld [vmem:[#allocation6 + $0x30] sm:$0xff]
    %2529 = vrot.lane.b32.xlu0 %v2517, 11
    %v2530 = vpop.permute.xlu0 %2529
    %2531 = vrot.lane.b32.xlu0 %v2518, 11
    %v2532 = vpop.permute.xlu0 %2531
    %2533 = vrot.lane.b32.xlu0 %v2519, 11
    %v2534 = vpop.permute.xlu0 %2533
    %2535 = vrot.lane.b32.xlu0 %v2520, 11
    %v2536 = vpop.permute.xlu0 %2535
    %2537 = vrot.lane.b32.xlu0 %v2521, 11
    %v2538 = vpop.permute.xlu0 %2537
    %2539 = vrot.lane.b32.xlu0 %v2522, 11
    %v2540 = vpop.permute.xlu0 %2539
    %v2541 = vsel %vm2273, %v2530, %v2532
    %v2542 = vsel %vm2273, %v2532, %v2534
    %v2543 = vsel %vm2273, %v2536, %v2538
    %v2544 = vsel %vm2273, %v2538, %v2540
    %2549 = vst [vmem:[#allocation2] sm:$0xff] %v2541
    %2550 = vst [vmem:[#allocation2 + $0x8] sm:$0xff] %v2542
    %2551 = vst [vmem:[#allocation2 + $0x30] sm:$0xff] %v2543
    %2552 = vst [vmem:[#allocation2 + $0x38] sm:$0xff] %v2544
    %v2553 = vld [vmem:[#allocation6] sm:$0xff]
    %v2554 = vld [vmem:[#allocation6 + $0x8] sm:$0xff]
    %v2555 = vld [vmem:[#allocation6 + $0x10] sm:$0xff]
    %v2556 = vld [vmem:[#allocation6 + $0x20] sm:$0xff]
    %v2557 = vld [vmem:[#allocation6 + $0x28] sm:$0xff]
    %v2558 = vld [vmem:[#allocation6 + $0x30] sm:$0xff]
    %2565 = vrot.lane.b32.xlu0 %v2553, 10
    %v2566 = vpop.permute.xlu0 %2565
    %2567 = vrot.lane.b32.xlu0 %v2554, 10
    %v2568 = vpop.permute.xlu0 %2567
    %2569 = vrot.lane.b32.xlu0 %v2555, 10
    %v2570 = vpop.permute.xlu0 %2569
    %2571 = vrot.lane.b32.xlu0 %v2556, 10
    %v2572 = vpop.permute.xlu0 %2571
    %2573 = vrot.lane.b32.xlu0 %v2557, 10
    %v2574 = vpop.permute.xlu0 %2573
    %2575 = vrot.lane.b32.xlu0 %v2558, 10
    %v2576 = vpop.permute.xlu0 %2575
    %v2577 = vsel %vm2292, %v2566, %v2568
    %v2578 = vsel %vm2292, %v2568, %v2570
    %v2579 = vsel %vm2292, %v2572, %v2574
    %v2580 = vsel %vm2292, %v2574, %v2576
    %2585 = vst [vmem:[#allocation2 + $0x60] sm:$0xff] %v2577
    %2586 = vst [vmem:[#allocation2 + $0x68] sm:$0xff] %v2578
    %2587 = vst [vmem:[#allocation2 + $0x90] sm:$0xff] %v2579
    %2588 = vst [vmem:[#allocation2 + $0x98] sm:$0xff] %v2580
    %v2589 = vld [vmem:[#allocation6] sm:$0xff]
    %v2590 = vld [vmem:[#allocation6 + $0x8] sm:$0xff]
    %v2591 = vld [vmem:[#allocation6 + $0x10] sm:$0xff]
    %v2592 = vld [vmem:[#allocation6 + $0x20] sm:$0xff]
    %v2593 = vld [vmem:[#allocation6 + $0x28] sm:$0xff]
    %v2594 = vld [vmem:[#allocation6 + $0x30] sm:$0xff]
    %2601 = vrot.lane.b32.xlu0 %v2589, 9
    %v2602 = vpop.permute.xlu0 %2601
    %2603 = vrot.lane.b32.xlu0 %v2590, 9
    %v2604 = vpop.permute.xlu0 %2603
    %2605 = vrot.lane.b32.xlu0 %v2591, 9
    %v2606 = vpop.permute.xlu0 %2605
    %2607 = vrot.lane.b32.xlu0 %v2592, 9
    %v2608 = vpop.permute.xlu0 %2607
    %2609 = vrot.lane.b32.xlu0 %v2593, 9
    %v2610 = vpop.permute.xlu0 %2609
    %2611 = vrot.lane.b32.xlu0 %v2594, 9
    %v2612 = vpop.permute.xlu0 %2611
    %v2613 = vsel %vm2311, %v2602, %v2604
    %v2614 = vsel %vm2311, %v2604, %v2606
    %v2615 = vsel %vm2311, %v2608, %v2610
    %v2616 = vsel %vm2311, %v2610, %v2612
    %2621 = vst [vmem:[#allocation2 + $0xc0] sm:$0xff] %v2613
    %2622 = vst [vmem:[#allocation2 + $0xc8] sm:$0xff] %v2614
    %2623 = vst [vmem:[#allocation2 + $0xf0] sm:$0xff] %v2615
    %2624 = vst [vmem:[#allocation2 + $0xf8] sm:$0xff] %v2616
    %v2625 = vld [vmem:[#allocation6] sm:$0xff]
    %v2626 = vld [vmem:[#allocation6 + $0x8] sm:$0xff]
    %v2627 = vld [vmem:[#allocation6 + $0x10] sm:$0xff]
    %v2628 = vld [vmem:[#allocation6 + $0x20] sm:$0xff]
    %v2629 = vld [vmem:[#allocation6 + $0x28] sm:$0xff]
    %v2630 = vld [vmem:[#allocation6 + $0x30] sm:$0xff]
    %2637 = vrot.lane.b32.xlu0 %v2625, 1
    %v2638 = vpop.permute.xlu0 %2637
    %2639 = vrot.lane.b32.xlu0 %v2626, 1
    %v2640 = vpop.permute.xlu0 %2639
    %2641 = vrot.lane.b32.xlu0 %v2627, 1
    %v2642 = vpop.permute.xlu0 %2641
    %2643 = vrot.lane.b32.xlu0 %v2628, 1
    %v2644 = vpop.permute.xlu0 %2643
    %2645 = vrot.lane.b32.xlu0 %v2629, 1
    %v2646 = vpop.permute.xlu0 %2645
    %2647 = vrot.lane.b32.xlu0 %v2630, 1
    %v2648 = vpop.permute.xlu0 %2647
    %v2649 = vsel %vm982, %v2638, %v2640
    %v2650 = vsel %vm982, %v2640, %v2642
    %v2651 = vsel %vm982, %v2644, %v2646
    %v2652 = vsel %vm982, %v2646, %v2648
    %2657 = vst [vmem:[#allocation2 + $0x120] sm:$0xff] %v2649
    %2658 = vst [vmem:[#allocation2 + $0x128] sm:$0xff] %v2650
    %2659 = vst [vmem:[#allocation2 + $0x150] sm:$0xff] %v2651
    %2660 = vst [vmem:[#allocation2 + $0x158] sm:$0xff] %v2652
    %v2661 = vld [vmem:[#allocation6 + $0x8] sm:$0xff]
    %v2662 = vld [vmem:[#allocation6 + $0x10] sm:$0xff]
    %v2663 = vld [vmem:[#allocation6 + $0x28] sm:$0xff]
    %v2664 = vld [vmem:[#allocation6 + $0x30] sm:$0xff]
    %2665 = vst [vmem:[#allocation2 + $0x180] sm:$0xff] %v2661
    %2666 = vst [vmem:[#allocation2 + $0x188] sm:$0xff] %v2662
    %2667 = vst [vmem:[#allocation2 + $0x1b0] sm:$0xff] %v2663
    %2668 = vst [vmem:[#allocation2 + $0x1b8] sm:$0xff] %v2664
    %v2669 = vld [vmem:[#allocation6 + $0x8] sm:$0xff]
    %v2670 = vld [vmem:[#allocation6 + $0x10] sm:$0xff]
    %v2671 = vld [vmem:[#allocation6 + $0x18] sm:$0xff]
    %v2672 = vld [vmem:[#allocation6 + $0x28] sm:$0xff]
    %v2673 = vld [vmem:[#allocation6 + $0x30] sm:$0xff]
    %v2674 = vld [vmem:[#allocation6 + $0x38] sm:$0xff]
    %2681 = vrot.lane.b32.xlu0 %v2669, 127
    %v2682 = vpop.permute.xlu0 %2681
    %2683 = vrot.lane.b32.xlu0 %v2670, 127
    %v2684 = vpop.permute.xlu0 %2683
    %2685 = vrot.lane.b32.xlu0 %v2671, 127
    %v2686 = vpop.permute.xlu0 %2685
    %2687 = vrot.lane.b32.xlu0 %v2672, 127
    %v2688 = vpop.permute.xlu0 %2687
    %2689 = vrot.lane.b32.xlu0 %v2673, 127
    %v2690 = vpop.permute.xlu0 %2689
    %2691 = vrot.lane.b32.xlu0 %v2674, 127
    %v2692 = vpop.permute.xlu0 %2691
    %v2693 = vsel %vm298, %v2682, %v2684
    %v2694 = vsel %vm298, %v2684, %v2686
    %v2695 = vsel %vm298, %v2688, %v2690
    %v2696 = vsel %vm298, %v2690, %v2692
    %2701 = vst [vmem:[#allocation2 + $0x1e0] sm:$0xff] %v2693
    %2702 = vst [vmem:[#allocation2 + $0x1e8] sm:$0xff] %v2694
    %2703 = vst [vmem:[#allocation2 + $0x210] sm:$0xff] %v2695
    %2704 = vst [vmem:[#allocation2 + $0x218] sm:$0xff] %v2696
    %v2705 = vld [vmem:[#allocation6 + $0x8] sm:$0xff]
    %v2706 = vld [vmem:[#allocation6 + $0x10] sm:$0xff]
    %v2707 = vld [vmem:[#allocation6 + $0x18] sm:$0xff]
    %v2708 = vld [vmem:[#allocation6 + $0x28] sm:$0xff]
    %v2709 = vld [vmem:[#allocation6 + $0x30] sm:$0xff]
    %v2710 = vld [vmem:[#allocation6 + $0x38] sm:$0xff]
    %2717 = vrot.lane.b32.xlu0 %v2705, 119
    %v2718 = vpop.permute.xlu0 %2717
    %2719 = vrot.lane.b32.xlu0 %v2706, 119
    %v2720 = vpop.permute.xlu0 %2719
    %2721 = vrot.lane.b32.xlu0 %v2707, 119
    %v2722 = vpop.permute.xlu0 %2721
    %2723 = vrot.lane.b32.xlu0 %v2708, 119
    %v2724 = vpop.permute.xlu0 %2723
    %2725 = vrot.lane.b32.xlu0 %v2709, 119
    %v2726 = vpop.permute.xlu0 %2725
    %2727 = vrot.lane.b32.xlu0 %v2710, 119
    %v2728 = vpop.permute.xlu0 %2727
    %v2729 = vsel %vm2370, %v2718, %v2720
    %v2730 = vsel %vm2370, %v2720, %v2722
    %v2731 = vsel %vm2370, %v2724, %v2726
    %v2732 = vsel %vm2370, %v2726, %v2728
    %2737 = vst [vmem:[#allocation2 + $0x240] sm:$0xff] %v2729
    %2738 = vst [vmem:[#allocation2 + $0x248] sm:$0xff] %v2730
    %2739 = vst [vmem:[#allocation2 + $0x270] sm:$0xff] %v2731
    %2740 = vst [vmem:[#allocation2 + $0x278] sm:$0xff] %v2732
    %v2741 = vld [vmem:[#allocation6 + $0x8] sm:$0xff]
    %v2742 = vld [vmem:[#allocation6 + $0x10] sm:$0xff]
    %v2743 = vld [vmem:[#allocation6 + $0x18] sm:$0xff]
    %v2744 = vld [vmem:[#allocation6 + $0x28] sm:$0xff]
    %v2745 = vld [vmem:[#allocation6 + $0x30] sm:$0xff]
    %v2746 = vld [vmem:[#allocation6 + $0x38] sm:$0xff]
    %2753 = vrot.lane.b32.xlu0 %v2741, 118
    %v2754 = vpop.permute.xlu0 %2753
    %2755 = vrot.lane.b32.xlu0 %v2742, 118
    %v2756 = vpop.permute.xlu0 %2755
    %2757 = vrot.lane.b32.xlu0 %v2743, 118
    %v2758 = vpop.permute.xlu0 %2757
    %2759 = vrot.lane.b32.xlu0 %v2744, 118
    %v2760 = vpop.permute.xlu0 %2759
    %2761 = vrot.lane.b32.xlu0 %v2745, 118
    %v2762 = vpop.permute.xlu0 %2761
    %2763 = vrot.lane.b32.xlu0 %v2746, 118
    %v2764 = vpop.permute.xlu0 %2763
    %v2765 = vsel %vm2389, %v2754, %v2756
    %v2766 = vsel %vm2389, %v2756, %v2758
    %v2767 = vsel %vm2389, %v2760, %v2762
    %v2768 = vsel %vm2389, %v2762, %v2764
    %2773 = vst [vmem:[#allocation2 + $0x2a0] sm:$0xff] %v2765
    %2774 = vst [vmem:[#allocation2 + $0x2a8] sm:$0xff] %v2766
    %2775 = vst [vmem:[#allocation2 + $0x2d0] sm:$0xff] %v2767
    %2776 = vst [vmem:[#allocation2 + $0x2d8] sm:$0xff] %v2768
    %v2777 = vld [vmem:[#allocation6 + $0x8] sm:$0xff]
    %v2778 = vld [vmem:[#allocation6 + $0x10] sm:$0xff]
    %v2779 = vld [vmem:[#allocation6 + $0x18] sm:$0xff]
    %v2780 = vld [vmem:[#allocation6 + $0x28] sm:$0xff]
    %v2781 = vld [vmem:[#allocation6 + $0x30] sm:$0xff]
    %v2782 = vld [vmem:[#allocation6 + $0x38] sm:$0xff]
    %2789 = vrot.lane.b32.xlu0 %v2777, 117
    %v2790 = vpop.permute.xlu0 %2789
    %2791 = vrot.lane.b32.xlu0 %v2778, 117
    %v2792 = vpop.permute.xlu0 %2791
    %2793 = vrot.lane.b32.xlu0 %v2779, 117
    %v2794 = vpop.permute.xlu0 %2793
    %2795 = vrot.lane.b32.xlu0 %v2780, 117
    %v2796 = vpop.permute.xlu0 %2795
    %2797 = vrot.lane.b32.xlu0 %v2781, 117
    %v2798 = vpop.permute.xlu0 %2797
    %2799 = vrot.lane.b32.xlu0 %v2782, 117
    %v2800 = vpop.permute.xlu0 %2799
    %v2801 = vsel %vm2408, %v2790, %v2792
    %v2802 = vsel %vm2408, %v2792, %v2794
    %v2803 = vsel %vm2408, %v2796, %v2798
    %v2804 = vsel %vm2408, %v2798, %v2800
    %2809 = vst [vmem:[#allocation2 + $0x300] sm:$0xff] %v2801
    %2810 = vst [vmem:[#allocation2 + $0x308] sm:$0xff] %v2802
    %2811 = vst [vmem:[#allocation2 + $0x330] sm:$0xff] %v2803
    %2812 = vst [vmem:[#allocation2 + $0x338] sm:$0xff] %v2804
    %v2813 = vld [vmem:[%s15] sm:$0xff]
    %v2814 = vld [vmem:[%s15 + $0x8] sm:$0xff]
    %v2815 = vld [vmem:[#allocation2] sm:$0xff]
    %v2816 = vld [vmem:[#allocation2 + $0x8] sm:$0xff]
    %v2817 = vld [vmem:[#allocation2 + $0x30] sm:$0xff]
    %v2818 = vld [vmem:[#allocation2 + $0x38] sm:$0xff]
    %v2819 = vld [vmem:[#allocation2 + $0x60] sm:$0xff]
    %v2820 = vld [vmem:[#allocation2 + $0x68] sm:$0xff]
    %v2821 = vld [vmem:[#allocation2 + $0x90] sm:$0xff]
    %v2822 = vld [vmem:[#allocation2 + $0x98] sm:$0xff]
    %v2823 = vld [vmem:[#allocation2 + $0xc0] sm:$0xff]
    %v2824 = vld [vmem:[#allocation2 + $0xc8] sm:$0xff]
    %v2825 = vld [vmem:[#allocation2 + $0xf0] sm:$0xff]
    %v2826 = vld [vmem:[#allocation2 + $0xf8] sm:$0xff]
    %v2827 = vld [vmem:[#allocation2 + $0x120] sm:$0xff]
    %v2828 = vld [vmem:[#allocation2 + $0x128] sm:$0xff]
    %v2829 = vld [vmem:[#allocation2 + $0x150] sm:$0xff]
    %v2830 = vld [vmem:[#allocation2 + $0x158] sm:$0xff]
    %v2831 = vld [vmem:[#allocation2 + $0x180] sm:$0xff]
    %v2832 = vld [vmem:[#allocation2 + $0x188] sm:$0xff]
    %v2833 = vld [vmem:[#allocation2 + $0x1b0] sm:$0xff]
    %v2834 = vld [vmem:[#allocation2 + $0x1b8] sm:$0xff]
    %v2835 = vld [vmem:[#allocation2 + $0x1e0] sm:$0xff]
    %v2836 = vld [vmem:[#allocation2 + $0x1e8] sm:$0xff]
    %v2837 = vld [vmem:[#allocation2 + $0x210] sm:$0xff]
    %v2838 = vld [vmem:[#allocation2 + $0x218] sm:$0xff]
    %v2839 = vld [vmem:[#allocation2 + $0x240] sm:$0xff]
    %v2840 = vld [vmem:[#allocation2 + $0x248] sm:$0xff]
    %v2841 = vld [vmem:[#allocation2 + $0x270] sm:$0xff]
    %v2842 = vld [vmem:[#allocation2 + $0x278] sm:$0xff]
    %v2843 = vld [vmem:[#allocation2 + $0x2a0] sm:$0xff]
    %v2844 = vld [vmem:[#allocation2 + $0x2a8] sm:$0xff]
    %v2845 = vld [vmem:[#allocation2 + $0x2d0] sm:$0xff]
    %v2846 = vld [vmem:[#allocation2 + $0x2d8] sm:$0xff]
    %v2847 = vld [vmem:[#allocation2 + $0x300] sm:$0xff]
    %v2848 = vld [vmem:[#allocation2 + $0x308] sm:$0xff]
    %v2849 = vld [vmem:[#allocation2 + $0x330] sm:$0xff]
    %v2850 = vld [vmem:[#allocation2 + $0x338] sm:$0xff]
    %v2851 = vpack.c.bf16 %v2817, %v2815
    %v2852 = vpack.c.bf16 %v2818, %v2816
    %v2853 = vpack.c.bf16 %v2821, %v2819
    %v2854 = vpack.c.bf16 %v2822, %v2820
    %v2855 = vpack.c.bf16 %v2825, %v2823
    %v2856 = vpack.c.bf16 %v2826, %v2824
    %v2857 = vpack.c.bf16 %v2829, %v2827
    %v2858 = vpack.c.bf16 %v2830, %v2828
    %v2859 = vpack.c.bf16 %v2833, %v2831
    %v2860 = vpack.c.bf16 %v2834, %v2832
    %v2861 = vpack.c.bf16 %v2837, %v2835
    %v2862 = vpack.c.bf16 %v2838, %v2836
    %v2863 = vpack.c.bf16 %v2841, %v2839
    %v2864 = vpack.c.bf16 %v2842, %v2840
    %v2865 = vpack.c.bf16 %v2845, %v2843
    %v2866 = vpack.c.bf16 %v2846, %v2844
    %v2867 = vpack.c.bf16 %v2849, %v2847
    %v2868 = vpack.c.bf16 %v2850, %v2848
    %v2869 = vld [vmem:[%s17] sm:$0xff]
    %v2870 = vld [vmem:[%s17 + $0x8] sm:$0xff]
    %2872 = vset.pattern.permute.xlu0 0
    %2873 = vperm.xlu0 %2872, %v2869
    %v2874 = vpop.permute.xlu0 %2873
    %2877 = vset.pattern.permute.xlu0 0
    %2878 = vperm.xlu0 %2877, %v2870
    %v2879 = vpop.permute.xlu0 %2878
    %v2883 = vunpack.c.l.b16 %v2813
    %v2884 = vunpack.c.h.b16 %v2813
    %v2885 = vunpack.c.l.b16 %v2814
    %v2886 = vunpack.c.h.b16 %v2814
    %v2887 = vpack.c.b16 %v2885, %v2883
    %v2888 = vpack.c.b16 %v2886, %v2884
    %vm2890 = vcmask 130048
    %v2892 = vsel %vm2890, %v2888, 0
    %2894 = vmatpush.bf16.msra.mxu0 %v2865
    %2895 = vmatpush.bf16.msra.mxu0 %v2863
    %2896 = vmatpush.bf16.msra.mxu0 %v2861
    %2897 = vmatpush.bf16.msra.mxu0 %v2859
    %2898 = vmatpush.bf16.msra.mxu0 %v2857
    %2899 = vmatpush.bf16.msra.mxu0 %v2855
    %2900 = vmatpush.bf16.msra.mxu0 %v2853
    %2901 = vmatpush.bf16.msra.mxu0 %v2851
    %2902 = vmatmul.bf16.gmra.mxu0 %v2887
    %v2903 = vpop.f32.mrf.mxu0
    %v2904 = vadd.f32 %v2874, %v2903
    %v2905 = vpop.f32.mrf.mxu0
    %v2906 = vadd.f32 %v2879, %v2905
    %2907 = vdwg.mxu0
    %2908 = vmatpush.bf16.msra.mxu0 0
    %2909 = vmatpush.bf16.msra.mxu0 0
    %2910 = vmatpush.bf16.msra.mxu0 0
    %2911 = vmatpush.bf16.msra.mxu0 0
    %2912 = vmatpush.bf16.msra.mxu0 0
    %2913 = vmatpush.bf16.msra.mxu0 0
    %2914 = vmatpush.bf16.msra.mxu0 0
    %2915 = vmatpush.bf16.msra.mxu0 %v2867
    %2916 = vmatmul.bf16.gmra.mxu0 %v2892
    %v2917 = vpop.f32.mrf.mxu0
    %v2918 = vadd.f32 %v2904, %v2917
    %v2919 = vpop.f32.mrf.mxu0
    %v2920 = vadd.f32 %v2906, %v2919
    %2921 = vdwg.mxu0
    %2922 = vmatpush.bf16.msra.mxu0 %v2866
    %2923 = vmatpush.bf16.msra.mxu0 %v2864
    %2924 = vmatpush.bf16.msra.mxu0 %v2862
    %2925 = vmatpush.bf16.msra.mxu0 %v2860
    %2926 = vmatpush.bf16.msra.mxu0 %v2858
    %2927 = vmatpush.bf16.msra.mxu0 %v2856
    %2928 = vmatpush.bf16.msra.mxu0 %v2854
    %2929 = vmatpush.bf16.msra.mxu0 %v2852
    %2930 = vmatmul.bf16.gmra.mxu0 %v2887
    %v2931 = vpop.f32.mrf.mxu0
    %v2932 = vadd.f32 %v2874, %v2931
    %v2933 = vpop.f32.mrf.mxu0
    %v2934 = vadd.f32 %v2879, %v2933
    %2935 = vdwg.mxu0
    %2936 = vmatpush.bf16.msra.mxu0 0
    %2937 = vmatpush.bf16.msra.mxu0 0
    %2938 = vmatpush.bf16.msra.mxu0 0
    %2939 = vmatpush.bf16.msra.mxu0 0
    %2940 = vmatpush.bf16.msra.mxu0 0
    %2941 = vmatpush.bf16.msra.mxu0 0
    %2942 = vmatpush.bf16.msra.mxu0 0
    %2943 = vmatpush.bf16.msra.mxu0 %v2868
    %2944 = vmatmul.bf16.gmra.mxu0 %v2892
    %v2945 = vpop.f32.mrf.mxu0
    %v2946 = vadd.f32 %v2932, %v2945
    %v2947 = vpop.f32.mrf.mxu0
    %v2948 = vadd.f32 %v2934, %v2947
    %2949 = vdwg.mxu0
    %v2950 = vmax.f32 %v2918, 0.0
    %v2951 = vmax.f32 %v2946, 0.0
    %v2952 = vmax.f32 %v2920, 0.0
    %v2953 = vmax.f32 %v2948, 0.0
    %v2954 = vld [vmem:[%s49] sm:$0x3]
    %v2956 = vperm.slane %v2954, 0
    %v2957 = vperm.slane %v2954, 1
    %v2960 = vmul.f32 %v2950, %v2956
    %v2961 = vmul.f32 %v2951, %v2957
    %v2962 = vmul.f32 %v2952, %v2956
    %v2963 = vmul.f32 %v2953, %v2957
    %2964 = vst [vmem:[#allocation7 + $0x8] sm:$0xff] %v2960
    %2965 = vst [vmem:[#allocation7 + $0x10] sm:$0xff] %v2961
    %2966 = vst [vmem:[#allocation7 + $0x28] sm:$0xff] %v2962
    %2967 = vst [vmem:[#allocation7 + $0x30] sm:$0xff] %v2963
    %v2968 = vld [vmem:[#allocation7 + $0x8] sm:$0xff]
    %v2969 = vld [vmem:[#allocation7 + $0x10] sm:$0xff]
    %v2970 = vld [vmem:[#allocation7 + $0x28] sm:$0xff]
    %v2971 = vld [vmem:[#allocation7 + $0x30] sm:$0xff]
    %v2972 = vld [vmem:[#allocation7 + $0x8] sm:$0xff]
    %v2973 = vld [vmem:[#allocation7 + $0x10] sm:$0xff]
    %v2974 = vld [vmem:[#allocation7 + $0x18] sm:$0xff]
    %v2975 = vld [vmem:[#allocation7 + $0x28] sm:$0xff]
    %v2976 = vld [vmem:[#allocation7 + $0x30] sm:$0xff]
    %v2977 = vld [vmem:[#allocation7 + $0x38] sm:$0xff]
    %2984 = vrot.lane.b32.xlu0 %v2972, 127
    %v2985 = vpop.permute.xlu0 %2984
    %2986 = vrot.lane.b32.xlu0 %v2973, 127
    %v2987 = vpop.permute.xlu0 %2986
    %2988 = vrot.lane.b32.xlu0 %v2974, 127
    %v2989 = vpop.permute.xlu0 %2988
    %2990 = vrot.lane.b32.xlu0 %v2975, 127
    %v2991 = vpop.permute.xlu0 %2990
    %2992 = vrot.lane.b32.xlu0 %v2976, 127
    %v2993 = vpop.permute.xlu0 %2992
    %2994 = vrot.lane.b32.xlu0 %v2977, 127
    %v2995 = vpop.permute.xlu0 %2994
    %v2996 = vsel %vm298, %v2985, %v2987
    %v2997 = vsel %vm298, %v2987, %v2989
    %v2998 = vsel %vm298, %v2991, %v2993
    %v2999 = vsel %vm298, %v2993, %v2995
    %v3004 = vmax.f32 %v2968, %v2996
    %v3005 = vmax.f32 %v2969, %v2997
    %v3006 = vmax.f32 %v2970, %v2998
    %v3007 = vmax.f32 %v2971, %v2999
    %v3010 = vmax.f32 %v2972, %v2996
    %v3011 = vmax.f32 %v2973, %v2997
    %v3012 = vmax.f32 %v2974, %v2989
    %v3013 = vmax.f32 %v2975, %v2998
    %v3014 = vmax.f32 %v2976, %v2999
    %v3015 = vmax.f32 %v2977, %v2995
    %3022 = vrot.lane.b32.xlu0 %v3010, 118
    %v3023 = vpop.permute.xlu0 %3022
    %3024 = vrot.lane.b32.xlu0 %v3011, 118
    %v3025 = vpop.permute.xlu0 %3024
    %3026 = vrot.lane.b32.xlu0 %v3012, 118
    %v3027 = vpop.permute.xlu0 %3026
    %3028 = vrot.lane.b32.xlu0 %v3013, 118
    %v3029 = vpop.permute.xlu0 %3028
    %3030 = vrot.lane.b32.xlu0 %v3014, 118
    %v3031 = vpop.permute.xlu0 %3030
    %3032 = vrot.lane.b32.xlu0 %v3015, 118
    %v3033 = vpop.permute.xlu0 %3032
    %v3034 = vsel %vm2389, %v3023, %v3025
    %v3035 = vsel %vm2389, %v3025, %v3027
    %v3036 = vsel %vm2389, %v3029, %v3031
    %v3037 = vsel %vm2389, %v3031, %v3033
    %v3042 = vmax.f32 %v3004, %v3034
    %v3043 = vmax.f32 %v3005, %v3035
    %v3044 = vmax.f32 %v3006, %v3036
    %v3045 = vmax.f32 %v3007, %v3037
    %v3046 = vpack.c.bf16 %v3044, %v3042
    %v3047 = vpack.c.bf16 %v3045, %v3043
    %v3048 = vld [vmem:[%s55] sm:$0xf]
    %v3049 = vld [vmem:[%s55 + $0x4] sm:$0xf]
    %v3050 = vld [vmem:[%s55 + $0x8] sm:$0xf]
    %v3051 = vld [vmem:[%s55 + $0xc] sm:$0xf]
    %v3052 = vld [vmem:[%s55 + $0x10] sm:$0xf]
    %v3053 = vld [vmem:[%s55 + $0x14] sm:$0xf]
    %v3054 = vld [vmem:[%s55 + $0x18] sm:$0xf]
    %v3055 = vld [vmem:[%s55 + $0x1c] sm:$0xf]
    %v3056 = vld [vmem:[%s55 + $0x20] sm:$0xf]
    %v3057 = vld [vmem:[%s55 + $0x24] sm:$0xf]
    %v3058 = vld [vmem:[%s55 + $0x28] sm:$0xf]
    %v3059 = vld [vmem:[%s55 + $0x2c] sm:$0xf]
    %v3060 = vld [vmem:[%s55 + $0x30] sm:$0xf]
    %v3061 = vld [vmem:[%s55 + $0x34] sm:$0xf]
    %v3062 = vld [vmem:[%s55 + $0x38] sm:$0xf]
    %v3063 = vld [vmem:[%s55 + $0x3c] sm:$0xf]
    %v3064 = vld [vmem:[%s55 + $0x40] sm:$0xf]
    %v3065 = vld [vmem:[%s55 + $0x44] sm:$0xf]
    %v3066 = vld [vmem:[%s55 + $0x48] sm:$0xf]
    %v3067 = vld [vmem:[%s55 + $0x4c] sm:$0xf]
    %v3068 = vld [vmem:[%s55 + $0x50] sm:$0xf]
    %v3069 = vld [vmem:[%s55 + $0x54] sm:$0xf]
    %v3070 = vld [vmem:[%s55 + $0x58] sm:$0xf]
    %v3071 = vld [vmem:[%s55 + $0x5c] sm:$0xf]
    %v3072 = vld [vmem:[%s55 + $0x60] sm:$0xf]
    %v3073 = vld [vmem:[%s55 + $0x64] sm:$0xf]
    %v3074 = vld [vmem:[%s55 + $0x68] sm:$0xf]
    %v3075 = vld [vmem:[%s55 + $0x6c] sm:$0xf]
    %v3076 = vld [vmem:[%s55 + $0x70] sm:$0xf]
    %v3077 = vld [vmem:[%s55 + $0x74] sm:$0xf]
    %v3078 = vld [vmem:[%s55 + $0x78] sm:$0xf]
    %v3079 = vld [vmem:[%s55 + $0x7c] sm:$0xf]
    %v3112 = vunpack.c.l.b16 %v3048
    %v3113 = vunpack.c.l.b16 %v3049
    %v3114 = vunpack.c.l.b16 %v3050
    %v3115 = vunpack.c.l.b16 %v3051
    %v3116 = vunpack.c.l.b16 %v3052
    %v3117 = vunpack.c.l.b16 %v3053
    %v3118 = vunpack.c.l.b16 %v3054
    %v3119 = vunpack.c.l.b16 %v3055
    %v3120 = vunpack.c.l.b16 %v3056
    %v3121 = vunpack.c.l.b16 %v3057
    %v3122 = vunpack.c.l.b16 %v3058
    %v3123 = vunpack.c.l.b16 %v3059
    %v3124 = vunpack.c.l.b16 %v3060
    %v3125 = vunpack.c.l.b16 %v3061
    %v3126 = vunpack.c.l.b16 %v3062
    %v3127 = vunpack.c.l.b16 %v3063
    %v3128 = vunpack.c.l.b16 %v3064
    %v3129 = vunpack.c.l.b16 %v3065
    %v3130 = vunpack.c.l.b16 %v3066
    %v3131 = vunpack.c.l.b16 %v3067
    %v3132 = vunpack.c.l.b16 %v3068
    %v3133 = vunpack.c.l.b16 %v3069
    %v3134 = vunpack.c.l.b16 %v3070
    %v3135 = vunpack.c.l.b16 %v3071
    %v3136 = vunpack.c.l.b16 %v3072
    %v3137 = vunpack.c.l.b16 %v3073
    %v3138 = vunpack.c.l.b16 %v3074
    %v3139 = vunpack.c.l.b16 %v3075
    %v3140 = vunpack.c.l.b16 %v3076
    %v3141 = vunpack.c.l.b16 %v3077
    %v3142 = vunpack.c.l.b16 %v3078
    %v3143 = vunpack.c.l.b16 %v3079
    %v3144 = vpack.c.b16 %v3113, %v3112
    %v3145 = vpack.c.b16 %v3115, %v3114
    %v3146 = vpack.c.b16 %v3117, %v3116
    %v3147 = vpack.c.b16 %v3119, %v3118
    %v3148 = vpack.c.b16 %v3121, %v3120
    %v3149 = vpack.c.b16 %v3123, %v3122
    %v3150 = vpack.c.b16 %v3125, %v3124
    %v3151 = vpack.c.b16 %v3127, %v3126
    %v3152 = vpack.c.b16 %v3129, %v3128
    %v3153 = vpack.c.b16 %v3131, %v3130
    %v3154 = vpack.c.b16 %v3133, %v3132
    %v3155 = vpack.c.b16 %v3135, %v3134
    %v3156 = vpack.c.b16 %v3137, %v3136
    %v3157 = vpack.c.b16 %v3139, %v3138
    %v3158 = vpack.c.b16 %v3141, %v3140
    %v3159 = vpack.c.b16 %v3143, %v3142
    %3176 = vmatpush.bf16.msra.mxu0 %v3151
    %3177 = vmatpush.bf16.msra.mxu0 %v3150
    %3178 = vmatpush.bf16.msra.mxu0 %v3149
    %3179 = vmatpush.bf16.msra.mxu0 %v3148
    %3180 = vmatpush.bf16.msra.mxu0 %v3147
    %3181 = vmatpush.bf16.msra.mxu0 %v3146
    %3182 = vmatpush.bf16.msra.mxu0 %v3145
    %3183 = vmatpush.bf16.msra.mxu0 %v3144
    %3184 = vmatmul.bf16.gmra.mxu0 %v3046
    %v3185 = vpop.f32.mrf.mxu0
    %v3186 = vadd.f32 0.0, %v3185
    %v3187 = vpop.f32.mrf.mxu0
    %v3188 = vadd.f32 0.0, %v3187
    %3189 = vdwg.mxu0
    %3190 = vmatpush.bf16.msra.mxu0 %v3159
    %3191 = vmatpush.bf16.msra.mxu0 %v3158
    %3192 = vmatpush.bf16.msra.mxu0 %v3157
    %3193 = vmatpush.bf16.msra.mxu0 %v3156
    %3194 = vmatpush.bf16.msra.mxu0 %v3155
    %3195 = vmatpush.bf16.msra.mxu0 %v3154
    %3196 = vmatpush.bf16.msra.mxu0 %v3153
    %3197 = vmatpush.bf16.msra.mxu0 %v3152
    %3198 = vmatmul.bf16.gmra.mxu0 %v3047
    %v3199 = vpop.f32.mrf.mxu0
    %v3200 = vadd.f32 %v3186, %v3199
    %v3201 = vpop.f32.mrf.mxu0
    %v3202 = vadd.f32 %v3188, %v3201
    %3203 = vdwg.mxu0
    %3204 = vst [vmem:[#allocation8 + $0x8] sm:$0xff] %v3200
    %3205 = vst [vmem:[#allocation8 + $0x20] sm:$0xff] %v3202
    %v3206 = vld [vmem:[#allocation8] sm:$0xff]
    %v3207 = vld [vmem:[#allocation8 + $0x8] sm:$0xff]
    %v3208 = vld [vmem:[#allocation8 + $0x18] sm:$0xff]
    %v3209 = vld [vmem:[#allocation8 + $0x20] sm:$0xff]
    %3214 = vrot.lane.b32.xlu0 %v3206, 7
    %v3215 = vpop.permute.xlu0 %3214
    %3216 = vrot.lane.b32.xlu0 %v3207, 7
    %v3217 = vpop.permute.xlu0 %3216
    %3218 = vrot.lane.b32.xlu0 %v3208, 7
    %v3219 = vpop.permute.xlu0 %3218
    %3220 = vrot.lane.b32.xlu0 %v3209, 7
    %v3221 = vpop.permute.xlu0 %3220
    %vm3222 = vcmask 56320
    %v3223 = vsel %vm3222, %v3215, %v3217
    %v3224 = vsel %vm3222, %v3219, %v3221
    %3227 = vst [vmem:[#allocation2] sm:$0xff] %v3223
    %3228 = vst [vmem:[#allocation2 + $0x30] sm:$0xff] %v3224
    %v3229 = vld [vmem:[#allocation8] sm:$0xff]
    %v3230 = vld [vmem:[#allocation8 + $0x8] sm:$0xff]
    %v3231 = vld [vmem:[#allocation8 + $0x18] sm:$0xff]
    %v3232 = vld [vmem:[#allocation8 + $0x20] sm:$0xff]
    %3237 = vrot.lane.b32.xlu0 %v3229, 6
    %v3238 = vpop.permute.xlu0 %3237
    %3239 = vrot.lane.b32.xlu0 %v3230, 6
    %v3240 = vpop.permute.xlu0 %3239
    %3241 = vrot.lane.b32.xlu0 %v3231, 6
    %v3242 = vpop.permute.xlu0 %3241
    %3243 = vrot.lane.b32.xlu0 %v3232, 6
    %v3244 = vpop.permute.xlu0 %3243
    %vm3245 = vcmask 48128
    %v3246 = vsel %vm3245, %v3238, %v3240
    %v3247 = vsel %vm3245, %v3242, %v3244
    %3250 = vst [vmem:[#allocation2 + $0x60] sm:$0xff] %v3246
    %3251 = vst [vmem:[#allocation2 + $0x90] sm:$0xff] %v3247
    %v3252 = vld [vmem:[#allocation8] sm:$0xff]
    %v3253 = vld [vmem:[#allocation8 + $0x8] sm:$0xff]
    %v3254 = vld [vmem:[#allocation8 + $0x18] sm:$0xff]
    %v3255 = vld [vmem:[#allocation8 + $0x20] sm:$0xff]
    %3260 = vrot.lane.b32.xlu0 %v3252, 5
    %v3261 = vpop.permute.xlu0 %3260
    %3262 = vrot.lane.b32.xlu0 %v3253, 5
    %v3263 = vpop.permute.xlu0 %3262
    %3264 = vrot.lane.b32.xlu0 %v3254, 5
    %v3265 = vpop.permute.xlu0 %3264
    %3266 = vrot.lane.b32.xlu0 %v3255, 5
    %v3267 = vpop.permute.xlu0 %3266
    %vm3268 = vcmask 39936
    %v3269 = vsel %vm3268, %v3261, %v3263
    %v3270 = vsel %vm3268, %v3265, %v3267
    %3273 = vst [vmem:[#allocation2 + $0xc0] sm:$0xff] %v3269
    %3274 = vst [vmem:[#allocation2 + $0xf0] sm:$0xff] %v3270
    %v3275 = vld [vmem:[#allocation8] sm:$0xff]
    %v3276 = vld [vmem:[#allocation8 + $0x8] sm:$0xff]
    %v3277 = vld [vmem:[#allocation8 + $0x18] sm:$0xff]
    %v3278 = vld [vmem:[#allocation8 + $0x20] sm:$0xff]
    %3283 = vrot.lane.b32.xlu0 %v3275, 1
    %v3284 = vpop.permute.xlu0 %3283
    %3285 = vrot.lane.b32.xlu0 %v3276, 1
    %v3286 = vpop.permute.xlu0 %3285
    %3287 = vrot.lane.b32.xlu0 %v3277, 1
    %v3288 = vpop.permute.xlu0 %3287
    %3289 = vrot.lane.b32.xlu0 %v3278, 1
    %v3290 = vpop.permute.xlu0 %3289
    %v3291 = vsel %vm982, %v3284, %v3286
    %v3292 = vsel %vm982, %v3288, %v3290
    %3295 = vst [vmem:[#allocation2 + $0x120] sm:$0xff] %v3291
    %3296 = vst [vmem:[#allocation2 + $0x150] sm:$0xff] %v3292
    %v3297 = vld [vmem:[#allocation8 + $0x8] sm:$0xff]
    %v3298 = vld [vmem:[#allocation8 + $0x20] sm:$0xff]
    %3299 = vst [vmem:[#allocation2 + $0x180] sm:$0xff] %v3297
    %3300 = vst [vmem:[#allocation2 + $0x1b0] sm:$0xff] %v3298
    %v3301 = vld [vmem:[#allocation8 + $0x8] sm:$0xff]
    %v3302 = vld [vmem:[#allocation8 + $0x10] sm:$0xff]
    %v3303 = vld [vmem:[#allocation8 + $0x20] sm:$0xff]
    %v3304 = vld [vmem:[#allocation8 + $0x28] sm:$0xff]
    %3309 = vrot.lane.b32.xlu0 %v3301, 127
    %v3310 = vpop.permute.xlu0 %3309
    %3311 = vrot.lane.b32.xlu0 %v3302, 127
    %v3312 = vpop.permute.xlu0 %3311
    %3313 = vrot.lane.b32.xlu0 %v3303, 127
    %v3314 = vpop.permute.xlu0 %3313
    %3315 = vrot.lane.b32.xlu0 %v3304, 127
    %v3316 = vpop.permute.xlu0 %3315
    %v3317 = vsel %vm298, %v3310, %v3312
    %v3318 = vsel %vm298, %v3314, %v3316
    %3321 = vst [vmem:[#allocation2 + $0x1e0] sm:$0xff] %v3317
    %3322 = vst [vmem:[#allocation2 + $0x210] sm:$0xff] %v3318
    %v3323 = vld [vmem:[#allocation8 + $0x8] sm:$0xff]
    %v3324 = vld [vmem:[#allocation8 + $0x10] sm:$0xff]
    %v3325 = vld [vmem:[#allocation8 + $0x20] sm:$0xff]
    %v3326 = vld [vmem:[#allocation8 + $0x28] sm:$0xff]
    %3331 = vrot.lane.b32.xlu0 %v3323, 123
    %v3332 = vpop.permute.xlu0 %3331
    %3333 = vrot.lane.b32.xlu0 %v3324, 123
    %v3334 = vpop.permute.xlu0 %3333
    %3335 = vrot.lane.b32.xlu0 %v3325, 123
    %v3336 = vpop.permute.xlu0 %3335
    %3337 = vrot.lane.b32.xlu0 %v3326, 123
    %v3338 = vpop.permute.xlu0 %3337
    %vm3339 = vcmask 1006592
    %v3340 = vsel %vm3339, %v3332, %v3334
    %v3341 = vsel %vm3339, %v3336, %v3338
    %3344 = vst [vmem:[#allocation2 + $0x240] sm:$0xff] %v3340
    %3345 = vst [vmem:[#allocation2 + $0x270] sm:$0xff] %v3341
    %v3346 = vld [vmem:[#allocation8 + $0x8] sm:$0xff]
    %v3347 = vld [vmem:[#allocation8 + $0x10] sm:$0xff]
    %v3348 = vld [vmem:[#allocation8 + $0x20] sm:$0xff]
    %v3349 = vld [vmem:[#allocation8 + $0x28] sm:$0xff]
    %3354 = vrot.lane.b32.xlu0 %v3346, 122
    %v3355 = vpop.permute.xlu0 %3354
    %3356 = vrot.lane.b32.xlu0 %v3347, 122
    %v3357 = vpop.permute.xlu0 %3356
    %3358 = vrot.lane.b32.xlu0 %v3348, 122
    %v3359 = vpop.permute.xlu0 %3358
    %3360 = vrot.lane.b32.xlu0 %v3349, 122
    %v3361 = vpop.permute.xlu0 %3360
    %vm3362 = vcmask 998400
    %v3363 = vsel %vm3362, %v3355, %v3357
    %v3364 = vsel %vm3362, %v3359, %v3361
    %3367 = vst [vmem:[#allocation2 + $0x2a0] sm:$0xff] %v3363
    %3368 = vst [vmem:[#allocation2 + $0x2d0] sm:$0xff] %v3364
    %v3369 = vld [vmem:[#allocation8 + $0x8] sm:$0xff]
    %v3370 = vld [vmem:[#allocation8 + $0x10] sm:$0xff]
    %v3371 = vld [vmem:[#allocation8 + $0x20] sm:$0xff]
    %v3372 = vld [vmem:[#allocation8 + $0x28] sm:$0xff]
    %3377 = vrot.lane.b32.xlu0 %v3369, 121
    %v3378 = vpop.permute.xlu0 %3377
    %3379 = vrot.lane.b32.xlu0 %v3370, 121
    %v3380 = vpop.permute.xlu0 %3379
    %3381 = vrot.lane.b32.xlu0 %v3371, 121
    %v3382 = vpop.permute.xlu0 %3381
    %3383 = vrot.lane.b32.xlu0 %v3372, 121
    %v3384 = vpop.permute.xlu0 %3383
    %vm3385 = vcmask 990208
    %v3386 = vsel %vm3385, %v3378, %v3380
    %v3387 = vsel %vm3385, %v3382, %v3384
    %3390 = vst [vmem:[#allocation2 + $0x300] sm:$0xff] %v3386
    %3391 = vst [vmem:[#allocation2 + $0x330] sm:$0xff] %v3387
    %v3392 = vld [vmem:[%s19] sm:$0xff]
    %v3393 = vld [vmem:[%s19 + $0x8] sm:$0xff]
    %v3394 = vld [vmem:[%s19 + $0x10] sm:$0xff]
    %v3395 = vld [vmem:[%s19 + $0x18] sm:$0xff]
    %v3396 = vld [vmem:[#allocation2] sm:$0xff]
    %v3397 = vld [vmem:[#allocation2 + $0x30] sm:$0xff]
    %v3398 = vld [vmem:[#allocation2 + $0x60] sm:$0xff]
    %v3399 = vld [vmem:[#allocation2 + $0x90] sm:$0xff]
    %v3400 = vld [vmem:[#allocation2 + $0xc0] sm:$0xff]
    %v3401 = vld [vmem:[#allocation2 + $0xf0] sm:$0xff]
    %v3402 = vld [vmem:[#allocation2 + $0x120] sm:$0xff]
    %v3403 = vld [vmem:[#allocation2 + $0x150] sm:$0xff]
    %v3404 = vld [vmem:[#allocation2 + $0x180] sm:$0xff]
    %v3405 = vld [vmem:[#allocation2 + $0x1b0] sm:$0xff]
    %v3406 = vld [vmem:[#allocation2 + $0x1e0] sm:$0xff]
    %v3407 = vld [vmem:[#allocation2 + $0x210] sm:$0xff]
    %v3408 = vld [vmem:[#allocation2 + $0x240] sm:$0xff]
    %v3409 = vld [vmem:[#allocation2 + $0x270] sm:$0xff]
    %v3410 = vld [vmem:[#allocation2 + $0x2a0] sm:$0xff]
    %v3411 = vld [vmem:[#allocation2 + $0x2d0] sm:$0xff]
    %v3412 = vld [vmem:[#allocation2 + $0x300] sm:$0xff]
    %v3413 = vld [vmem:[#allocation2 + $0x330] sm:$0xff]
    %v3414 = vpack.c.bf16 %v3397, %v3396
    %v3415 = vpack.c.bf16 %v3399, %v3398
    %v3416 = vpack.c.bf16 %v3401, %v3400
    %v3417 = vpack.c.bf16 %v3403, %v3402
    %v3418 = vpack.c.bf16 %v3405, %v3404
    %v3419 = vpack.c.bf16 %v3407, %v3406
    %v3420 = vpack.c.bf16 %v3409, %v3408
    %v3421 = vpack.c.bf16 %v3411, %v3410
    %v3422 = vpack.c.bf16 %v3413, %v3412
    %v3423 = vld [vmem:[%s21] sm:$0xff]
    %v3424 = vld [vmem:[%s21 + $0x8] sm:$0xff]
    %v3425 = vld [vmem:[%s21 + $0x10] sm:$0xff]
    %v3426 = vld [vmem:[%s21 + $0x18] sm:$0xff]
    %3428 = vset.pattern.permute.xlu0 0
    %3429 = vperm.xlu0 %3428, %v3423
    %v3430 = vpop.permute.xlu0 %3429
    %3433 = vset.pattern.permute.xlu0 0
    %3434 = vperm.xlu0 %3433, %v3424
    %v3435 = vpop.permute.xlu0 %3434
    %3438 = vset.pattern.permute.xlu0 0
    %3439 = vperm.xlu0 %3438, %v3425
    %v3440 = vpop.permute.xlu0 %3439
    %3443 = vset.pattern.permute.xlu0 0
    %3444 = vperm.xlu0 %3443, %v3426
    %v3445 = vpop.permute.xlu0 %3444
    %v3451 = vunpack.c.l.b16 %v3392
    %v3452 = vunpack.c.h.b16 %v3392
    %v3453 = vunpack.c.l.b16 %v3393
    %v3454 = vunpack.c.h.b16 %v3393
    %v3455 = vunpack.c.l.b16 %v3394
    %v3456 = vunpack.c.h.b16 %v3394
    %v3457 = vunpack.c.l.b16 %v3395
    %v3458 = vunpack.c.h.b16 %v3395
    %v3459 = vpack.c.b16 %v3453, %v3451
    %v3460 = vpack.c.b16 %v3454, %v3452
    %v3461 = vpack.c.b16 %v3457, %v3455
    %v3462 = vpack.c.b16 %v3458, %v3456
    %v3466 = vsel %vm2890, %v3460, 0
    %v3469 = vsel %vm2890, %v3462, 0
    %3471 = vmatpush.bf16.msra.mxu0 %v3421
    %3472 = vmatpush.bf16.msra.mxu0 %v3420
    %3473 = vmatpush.bf16.msra.mxu0 %v3419
    %3474 = vmatpush.bf16.msra.mxu0 %v3418
    %3475 = vmatpush.bf16.msra.mxu0 %v3417
    %3476 = vmatpush.bf16.msra.mxu0 %v3416
    %3477 = vmatpush.bf16.msra.mxu0 %v3415
    %3478 = vmatpush.bf16.msra.mxu0 %v3414
    %3479 = vmatmul.bf16.gmra.mxu0 %v3459
    %v3480 = vpop.f32.mrf.mxu0
    %v3481 = vadd.f32 %v3430, %v3480
    %v3482 = vpop.f32.mrf.mxu0
    %v3483 = vadd.f32 %v3435, %v3482
    %3484 = vmatmul.bf16.gmra.mxu0 %v3461
    %v3485 = vpop.f32.mrf.mxu0
    %v3486 = vadd.f32 %v3440, %v3485
    %v3487 = vpop.f32.mrf.mxu0
    %v3488 = vadd.f32 %v3445, %v3487
    %3489 = vdwg.mxu0
    %3490 = vmatpush.bf16.msra.mxu0 0
    %3491 = vmatpush.bf16.msra.mxu0 0
    %3492 = vmatpush.bf16.msra.mxu0 0
    %3493 = vmatpush.bf16.msra.mxu0 0
    %3494 = vmatpush.bf16.msra.mxu0 0
    %3495 = vmatpush.bf16.msra.mxu0 0
    %3496 = vmatpush.bf16.msra.mxu0 0
    %3497 = vmatpush.bf16.msra.mxu0 %v3422
    %3498 = vmatmul.bf16.gmra.mxu0 %v3466
    %v3499 = vpop.f32.mrf.mxu0
    %v3500 = vadd.f32 %v3481, %v3499
    %v3501 = vpop.f32.mrf.mxu0
    %v3502 = vadd.f32 %v3483, %v3501
    %3503 = vmatmul.bf16.gmra.mxu0 %v3469
    %v3504 = vpop.f32.mrf.mxu0
    %v3505 = vadd.f32 %v3486, %v3504
    %v3506 = vpop.f32.mrf.mxu0
    %v3507 = vadd.f32 %v3488, %v3506
    %3508 = vdwg.mxu0
    %v3509 = vmax.f32 %v3500, 0.0
    %v3510 = vmax.f32 %v3502, 0.0
    %v3511 = vmax.f32 %v3505, 0.0
    %v3512 = vmax.f32 %v3507, 0.0
    %v3513 = vld [vmem:[%s51] sm:$0x1]
    %v3515 = vperm.slane %v3513, 0
    %v3517 = vmul.f32 %v3509, %v3515
    %v3518 = vmul.f32 %v3510, %v3515
    %v3519 = vmul.f32 %v3511, %v3515
    %v3520 = vmul.f32 %v3512, %v3515
    %3521 = vst [vmem:[#allocation9 + $0x8] sm:$0xff] %v3517
    %3522 = vst [vmem:[#allocation9 + $0x20] sm:$0xff] %v3518
    %3523 = vst [vmem:[#allocation9 + $0x38] sm:$0xff] %v3519
    %3524 = vst [vmem:[#allocation9 + $0x50] sm:$0xff] %v3520
    %v3525 = vld [vmem:[#allocation9] sm:$0xff]
    %v3526 = vld [vmem:[#allocation9 + $0x8] sm:$0xff]
    %v3527 = vld [vmem:[#allocation9 + $0x18] sm:$0xff]
    %v3528 = vld [vmem:[#allocation9 + $0x20] sm:$0xff]
    %v3529 = vld [vmem:[#allocation9 + $0x30] sm:$0xff]
    %v3530 = vld [vmem:[#allocation9 + $0x38] sm:$0xff]
    %v3531 = vld [vmem:[#allocation9 + $0x48] sm:$0xff]
    %v3532 = vld [vmem:[#allocation9 + $0x50] sm:$0xff]
    %3541 = vrot.lane.b32.xlu0 %v3525, 7
    %v3542 = vpop.permute.xlu0 %3541
    %3543 = vrot.lane.b32.xlu0 %v3526, 7
    %v3544 = vpop.permute.xlu0 %3543
    %3545 = vrot.lane.b32.xlu0 %v3527, 7
    %v3546 = vpop.permute.xlu0 %3545
    %3547 = vrot.lane.b32.xlu0 %v3528, 7
    %v3548 = vpop.permute.xlu0 %3547
    %3549 = vrot.lane.b32.xlu0 %v3529, 7
    %v3550 = vpop.permute.xlu0 %3549
    %3551 = vrot.lane.b32.xlu0 %v3530, 7
    %v3552 = vpop.permute.xlu0 %3551
    %3553 = vrot.lane.b32.xlu0 %v3531, 7
    %v3554 = vpop.permute.xlu0 %3553
    %3555 = vrot.lane.b32.xlu0 %v3532, 7
    %v3556 = vpop.permute.xlu0 %3555
    %v3557 = vsel %vm3222, %v3542, %v3544
    %v3558 = vsel %vm3222, %v3546, %v3548
    %v3559 = vsel %vm3222, %v3550, %v3552
    %v3560 = vsel %vm3222, %v3554, %v3556
    %3565 = vst [vmem:[#allocation2] sm:$0xff] %v3557
    %3566 = vst [vmem:[#allocation2 + $0x30] sm:$0xff] %v3558
    %3567 = vst [vmem:[#allocation2 + $0x60] sm:$0xff] %v3559
    %3568 = vst [vmem:[#allocation2 + $0x90] sm:$0xff] %v3560
    %v3569 = vld [vmem:[#allocation9] sm:$0xff]
    %v3570 = vld [vmem:[#allocation9 + $0x8] sm:$0xff]
    %v3571 = vld [vmem:[#allocation9 + $0x18] sm:$0xff]
    %v3572 = vld [vmem:[#allocation9 + $0x20] sm:$0xff]
    %v3573 = vld [vmem:[#allocation9 + $0x30] sm:$0xff]
    %v3574 = vld [vmem:[#allocation9 + $0x38] sm:$0xff]
    %v3575 = vld [vmem:[#allocation9 + $0x48] sm:$0xff]
    %v3576 = vld [vmem:[#allocation9 + $0x50] sm:$0xff]
    %3585 = vrot.lane.b32.xlu0 %v3569, 6
    %v3586 = vpop.permute.xlu0 %3585
    %3587 = vrot.lane.b32.xlu0 %v3570, 6
    %v3588 = vpop.permute.xlu0 %3587
    %3589 = vrot.lane.b32.xlu0 %v3571, 6
    %v3590 = vpop.permute.xlu0 %3589
    %3591 = vrot.lane.b32.xlu0 %v3572, 6
    %v3592 = vpop.permute.xlu0 %3591
    %3593 = vrot.lane.b32.xlu0 %v3573, 6
    %v3594 = vpop.permute.xlu0 %3593
    %3595 = vrot.lane.b32.xlu0 %v3574, 6
    %v3596 = vpop.permute.xlu0 %3595
    %3597 = vrot.lane.b32.xlu0 %v3575, 6
    %v3598 = vpop.permute.xlu0 %3597
    %3599 = vrot.lane.b32.xlu0 %v3576, 6
    %v3600 = vpop.permute.xlu0 %3599
    %v3601 = vsel %vm3245, %v3586, %v3588
    %v3602 = vsel %vm3245, %v3590, %v3592
    %v3603 = vsel %vm3245, %v3594, %v3596
    %v3604 = vsel %vm3245, %v3598, %v3600
    %3609 = vst [vmem:[#allocation2 + $0xc0] sm:$0xff] %v3601
    %3610 = vst [vmem:[#allocation2 + $0xf0] sm:$0xff] %v3602
    %3611 = vst [vmem:[#allocation2 + $0x120] sm:$0xff] %v3603
    %3612 = vst [vmem:[#allocation2 + $0x150] sm:$0xff] %v3604
    %v3613 = vld [vmem:[#allocation9] sm:$0xff]
    %v3614 = vld [vmem:[#allocation9 + $0x8] sm:$0xff]
    %v3615 = vld [vmem:[#allocation9 + $0x18] sm:$0xff]
    %v3616 = vld [vmem:[#allocation9 + $0x20] sm:$0xff]
    %v3617 = vld [vmem:[#allocation9 + $0x30] sm:$0xff]
    %v3618 = vld [vmem:[#allocation9 + $0x38] sm:$0xff]
    %v3619 = vld [vmem:[#allocation9 + $0x48] sm:$0xff]
    %v3620 = vld [vmem:[#allocation9 + $0x50] sm:$0xff]
    %3629 = vrot.lane.b32.xlu0 %v3613, 5
    %v3630 = vpop.permute.xlu0 %3629
    %3631 = vrot.lane.b32.xlu0 %v3614, 5
    %v3632 = vpop.permute.xlu0 %3631
    %3633 = vrot.lane.b32.xlu0 %v3615, 5
    %v3634 = vpop.permute.xlu0 %3633
    %3635 = vrot.lane.b32.xlu0 %v3616, 5
    %v3636 = vpop.permute.xlu0 %3635
    %3637 = vrot.lane.b32.xlu0 %v3617, 5
    %v3638 = vpop.permute.xlu0 %3637
    %3639 = vrot.lane.b32.xlu0 %v3618, 5
    %v3640 = vpop.permute.xlu0 %3639
    %3641 = vrot.lane.b32.xlu0 %v3619, 5
    %v3642 = vpop.permute.xlu0 %3641
    %3643 = vrot.lane.b32.xlu0 %v3620, 5
    %v3644 = vpop.permute.xlu0 %3643
    %v3645 = vsel %vm3268, %v3630, %v3632
    %v3646 = vsel %vm3268, %v3634, %v3636
    %v3647 = vsel %vm3268, %v3638, %v3640
    %v3648 = vsel %vm3268, %v3642, %v3644
    %3653 = vst [vmem:[#allocation2 + $0x180] sm:$0xff] %v3645
    %3654 = vst [vmem:[#allocation2 + $0x1b0] sm:$0xff] %v3646
    %3655 = vst [vmem:[#allocation2 + $0x1e0] sm:$0xff] %v3647
    %3656 = vst [vmem:[#allocation2 + $0x210] sm:$0xff] %v3648
    %v3657 = vld [vmem:[#allocation9] sm:$0xff]
    %v3658 = vld [vmem:[#allocation9 + $0x8] sm:$0xff]
    %v3659 = vld [vmem:[#allocation9 + $0x18] sm:$0xff]
    %v3660 = vld [vmem:[#allocation9 + $0x20] sm:$0xff]
    %v3661 = vld [vmem:[#allocation9 + $0x30] sm:$0xff]
    %v3662 = vld [vmem:[#allocation9 + $0x38] sm:$0xff]
    %v3663 = vld [vmem:[#allocation9 + $0x48] sm:$0xff]
    %v3664 = vld [vmem:[#allocation9 + $0x50] sm:$0xff]
    %3673 = vrot.lane.b32.xlu0 %v3657, 1
    %v3674 = vpop.permute.xlu0 %3673
    %3675 = vrot.lane.b32.xlu0 %v3658, 1
    %v3676 = vpop.permute.xlu0 %3675
    %3677 = vrot.lane.b32.xlu0 %v3659, 1
    %v3678 = vpop.permute.xlu0 %3677
    %3679 = vrot.lane.b32.xlu0 %v3660, 1
    %v3680 = vpop.permute.xlu0 %3679
    %3681 = vrot.lane.b32.xlu0 %v3661, 1
    %v3682 = vpop.permute.xlu0 %3681
    %3683 = vrot.lane.b32.xlu0 %v3662, 1
    %v3684 = vpop.permute.xlu0 %3683
    %3685 = vrot.lane.b32.xlu0 %v3663, 1
    %v3686 = vpop.permute.xlu0 %3685
    %3687 = vrot.lane.b32.xlu0 %v3664, 1
    %v3688 = vpop.permute.xlu0 %3687
    %v3689 = vsel %vm982, %v3674, %v3676
    %v3690 = vsel %vm982, %v3678, %v3680
    %v3691 = vsel %vm982, %v3682, %v3684
    %v3692 = vsel %vm982, %v3686, %v3688
    %3697 = vst [vmem:[#allocation2 + $0x240] sm:$0xff] %v3689
    %3698 = vst [vmem:[#allocation2 + $0x270] sm:$0xff] %v3690
    %3699 = vst [vmem:[#allocation2 + $0x2a0] sm:$0xff] %v3691
    %3700 = vst [vmem:[#allocation2 + $0x2d0] sm:$0xff] %v3692
    %v3701 = vld [vmem:[#allocation9 + $0x8] sm:$0xff]
    %v3702 = vld [vmem:[#allocation9 + $0x20] sm:$0xff]
    %v3703 = vld [vmem:[#allocation9 + $0x38] sm:$0xff]
    %v3704 = vld [vmem:[#allocation9 + $0x50] sm:$0xff]
    %3705 = vst [vmem:[#allocation2 + $0x300] sm:$0xff] %v3701
    %3706 = vst [vmem:[#allocation2 + $0x330] sm:$0xff] %v3702
    %3707 = vst [vmem:[#allocation2 + $0x360] sm:$0xff] %v3703
    %3708 = vst [vmem:[#allocation2 + $0x390] sm:$0xff] %v3704
    %v3709 = vld [vmem:[#allocation9 + $0x8] sm:$0xff]
    %v3710 = vld [vmem:[#allocation9 + $0x10] sm:$0xff]
    %v3711 = vld [vmem:[#allocation9 + $0x20] sm:$0xff]
    %v3712 = vld [vmem:[#allocation9 + $0x28] sm:$0xff]
    %v3713 = vld [vmem:[#allocation9 + $0x38] sm:$0xff]
    %v3714 = vld [vmem:[#allocation9 + $0x40] sm:$0xff]
    %v3715 = vld [vmem:[#allocation9 + $0x50] sm:$0xff]
    %v3716 = vld [vmem:[#allocation9 + $0x58] sm:$0xff]
    %3725 = vrot.lane.b32.xlu0 %v3709, 127
    %v3726 = vpop.permute.xlu0 %3725
    %3727 = vrot.lane.b32.xlu0 %v3710, 127
    %v3728 = vpop.permute.xlu0 %3727
    %3729 = vrot.lane.b32.xlu0 %v3711, 127
    %v3730 = vpop.permute.xlu0 %3729
    %3731 = vrot.lane.b32.xlu0 %v3712, 127
    %v3732 = vpop.permute.xlu0 %3731
    %3733 = vrot.lane.b32.xlu0 %v3713, 127
    %v3734 = vpop.permute.xlu0 %3733
    %3735 = vrot.lane.b32.xlu0 %v3714, 127
    %v3736 = vpop.permute.xlu0 %3735
    %3737 = vrot.lane.b32.xlu0 %v3715, 127
    %v3738 = vpop.permute.xlu0 %3737
    %3739 = vrot.lane.b32.xlu0 %v3716, 127
    %v3740 = vpop.permute.xlu0 %3739
    %v3741 = vsel %vm298, %v3726, %v3728
    %v3742 = vsel %vm298, %v3730, %v3732
    %v3743 = vsel %vm298, %v3734, %v3736
    %v3744 = vsel %vm298, %v3738, %v3740
    %3749 = vst [vmem:[#allocation2 + $0x3c0] sm:$0xff] %v3741
    %3750 = vst [vmem:[#allocation2 + $0x3f0] sm:$0xff] %v3742
    %3751 = vst [vmem:[#allocation2 + $0x420] sm:$0xff] %v3743
    %3752 = vst [vmem:[#allocation2 + $0x450] sm:$0xff] %v3744
    %v3753 = vld [vmem:[#allocation9 + $0x8] sm:$0xff]
    %v3754 = vld [vmem:[#allocation9 + $0x10] sm:$0xff]
    %v3755 = vld [vmem:[#allocation9 + $0x20] sm:$0xff]
    %v3756 = vld [vmem:[#allocation9 + $0x28] sm:$0xff]
    %v3757 = vld [vmem:[#allocation9 + $0x38] sm:$0xff]
    %v3758 = vld [vmem:[#allocation9 + $0x40] sm:$0xff]
    %v3759 = vld [vmem:[#allocation9 + $0x50] sm:$0xff]
    %v3760 = vld [vmem:[#allocation9 + $0x58] sm:$0xff]
    %3769 = vrot.lane.b32.xlu0 %v3753, 123
    %v3770 = vpop.permute.xlu0 %3769
    %3771 = vrot.lane.b32.xlu0 %v3754, 123
    %v3772 = vpop.permute.xlu0 %3771
    %3773 = vrot.lane.b32.xlu0 %v3755, 123
    %v3774 = vpop.permute.xlu0 %3773
    %3775 = vrot.lane.b32.xlu0 %v3756, 123
    %v3776 = vpop.permute.xlu0 %3775
    %3777 = vrot.lane.b32.xlu0 %v3757, 123
    %v3778 = vpop.permute.xlu0 %3777
    %3779 = vrot.lane.b32.xlu0 %v3758, 123
    %v3780 = vpop.permute.xlu0 %3779
    %3781 = vrot.lane.b32.xlu0 %v3759, 123
    %v3782 = vpop.permute.xlu0 %3781
    %3783 = vrot.lane.b32.xlu0 %v3760, 123
    %v3784 = vpop.permute.xlu0 %3783
    %v3785 = vsel %vm3339, %v3770, %v3772
    %v3786 = vsel %vm3339, %v3774, %v3776
    %v3787 = vsel %vm3339, %v3778, %v3780
    %v3788 = vsel %vm3339, %v3782, %v3784
    %3793 = vst [vmem:[#allocation2 + $0x480] sm:$0xff] %v3785
    %3794 = vst [vmem:[#allocation2 + $0x4b0] sm:$0xff] %v3786
    %3795 = vst [vmem:[#allocation2 + $0x4e0] sm:$0xff] %v3787
    %3796 = vst [vmem:[#allocation2 + $0x510] sm:$0xff] %v3788
    %v3797 = vld [vmem:[#allocation9 + $0x8] sm:$0xff]
    %v3798 = vld [vmem:[#allocation9 + $0x10] sm:$0xff]
    %v3799 = vld [vmem:[#allocation9 + $0x20] sm:$0xff]
    %v3800 = vld [vmem:[#allocation9 + $0x28] sm:$0xff]
    %v3801 = vld [vmem:[#allocation9 + $0x38] sm:$0xff]
    %v3802 = vld [vmem:[#allocation9 + $0x40] sm:$0xff]
    %v3803 = vld [vmem:[#allocation9 + $0x50] sm:$0xff]
    %v3804 = vld [vmem:[#allocation9 + $0x58] sm:$0xff]
    %3813 = vrot.lane.b32.xlu0 %v3797, 122
    %v3814 = vpop.permute.xlu0 %3813
    %3815 = vrot.lane.b32.xlu0 %v3798, 122
    %v3816 = vpop.permute.xlu0 %3815
    %3817 = vrot.lane.b32.xlu0 %v3799, 122
    %v3818 = vpop.permute.xlu0 %3817
    %3819 = vrot.lane.b32.xlu0 %v3800, 122
    %v3820 = vpop.permute.xlu0 %3819
    %3821 = vrot.lane.b32.xlu0 %v3801, 122
    %v3822 = vpop.permute.xlu0 %3821
    %3823 = vrot.lane.b32.xlu0 %v3802, 122
    %v3824 = vpop.permute.xlu0 %3823
    %3825 = vrot.lane.b32.xlu0 %v3803, 122
    %v3826 = vpop.permute.xlu0 %3825
    %3827 = vrot.lane.b32.xlu0 %v3804, 122
    %v3828 = vpop.permute.xlu0 %3827
    %v3829 = vsel %vm3362, %v3814, %v3816
    %v3830 = vsel %vm3362, %v3818, %v3820
    %v3831 = vsel %vm3362, %v3822, %v3824
    %v3832 = vsel %vm3362, %v3826, %v3828
    %3837 = vst [vmem:[#allocation2 + $0x540] sm:$0xff] %v3829
    %3838 = vst [vmem:[#allocation2 + $0x570] sm:$0xff] %v3830
    %3839 = vst [vmem:[#allocation2 + $0x5a0] sm:$0xff] %v3831
    %3840 = vst [vmem:[#allocation2 + $0x5d0] sm:$0xff] %v3832
    %v3841 = vld [vmem:[#allocation9 + $0x8] sm:$0xff]
    %v3842 = vld [vmem:[#allocation9 + $0x10] sm:$0xff]
    %v3843 = vld [vmem:[#allocation9 + $0x20] sm:$0xff]
    %v3844 = vld [vmem:[#allocation9 + $0x28] sm:$0xff]
    %v3845 = vld [vmem:[#allocation9 + $0x38] sm:$0xff]
    %v3846 = vld [vmem:[#allocation9 + $0x40] sm:$0xff]
    %v3847 = vld [vmem:[#allocation9 + $0x50] sm:$0xff]
    %v3848 = vld [vmem:[#allocation9 + $0x58] sm:$0xff]
    %3857 = vrot.lane.b32.xlu0 %v3841, 121
    %v3858 = vpop.permute.xlu0 %3857
    %3859 = vrot.lane.b32.xlu0 %v3842, 121
    %v3860 = vpop.permute.xlu0 %3859
    %3861 = vrot.lane.b32.xlu0 %v3843, 121
    %v3862 = vpop.permute.xlu0 %3861
    %3863 = vrot.lane.b32.xlu0 %v3844, 121
    %v3864 = vpop.permute.xlu0 %3863
    %3865 = vrot.lane.b32.xlu0 %v3845, 121
    %v3866 = vpop.permute.xlu0 %3865
    %3867 = vrot.lane.b32.xlu0 %v3846, 121
    %v3868 = vpop.permute.xlu0 %3867
    %3869 = vrot.lane.b32.xlu0 %v3847, 121
    %v3870 = vpop.permute.xlu0 %3869
    %3871 = vrot.lane.b32.xlu0 %v3848, 121
    %v3872 = vpop.permute.xlu0 %3871
    %v3873 = vsel %vm3385, %v3858, %v3860
    %v3874 = vsel %vm3385, %v3862, %v3864
    %v3875 = vsel %vm3385, %v3866, %v3868
    %v3876 = vsel %vm3385, %v3870, %v3872
    %3881 = vst [vmem:[#allocation2 + $0x600] sm:$0xff] %v3873
    %3882 = vst [vmem:[#allocation2 + $0x630] sm:$0xff] %v3874
    %3883 = vst [vmem:[#allocation2 + $0x660] sm:$0xff] %v3875
    %3884 = vst [vmem:[#allocation2 + $0x690] sm:$0xff] %v3876
    %v3885 = vld [vmem:[%s23] sm:$0xff]
    %v3886 = vld [vmem:[%s23 + $0x8] sm:$0xf]
    %v3887 = vld [vmem:[%s23 + $0xc] sm:$0xff]
    %v3888 = vld [vmem:[%s23 + $0x14] sm:$0xf]
    %v3889 = vld [vmem:[%s23 + $0x18] sm:$0xff]
    %v3890 = vld [vmem:[%s23 + $0x20] sm:$0xf]
    %v3891 = vld [vmem:[%s23 + $0x24] sm:$0xff]
    %v3892 = vld [vmem:[%s23 + $0x2c] sm:$0xf]
    %v3893 = vld [vmem:[#allocation2] sm:$0xff]
    %v3894 = vld [vmem:[#allocation2 + $0x30] sm:$0xff]
    %v3895 = vld [vmem:[#allocation2 + $0x60] sm:$0xff]
    %v3896 = vld [vmem:[#allocation2 + $0x90] sm:$0xff]
    %v3897 = vld [vmem:[#allocation2 + $0xc0] sm:$0xff]
    %v3898 = vld [vmem:[#allocation2 + $0xf0] sm:$0xff]
    %v3899 = vld [vmem:[#allocation2 + $0x120] sm:$0xff]
    %v3900 = vld [vmem:[#allocation2 + $0x150] sm:$0xff]
    %v3901 = vld [vmem:[#allocation2 + $0x180] sm:$0xff]
    %v3902 = vld [vmem:[#allocation2 + $0x1b0] sm:$0xff]
    %v3903 = vld [vmem:[#allocation2 + $0x1e0] sm:$0xff]
    %v3904 = vld [vmem:[#allocation2 + $0x210] sm:$0xff]
    %v3905 = vld [vmem:[#allocation2 + $0x240] sm:$0xff]
    %v3906 = vld [vmem:[#allocation2 + $0x270] sm:$0xff]
    %v3907 = vld [vmem:[#allocation2 + $0x2a0] sm:$0xff]
    %v3908 = vld [vmem:[#allocation2 + $0x2d0] sm:$0xff]
    %v3909 = vld [vmem:[#allocation2 + $0x300] sm:$0xff]
    %v3910 = vld [vmem:[#allocation2 + $0x330] sm:$0xff]
    %v3911 = vld [vmem:[#allocation2 + $0x360] sm:$0xff]
    %v3912 = vld [vmem:[#allocation2 + $0x390] sm:$0xff]
    %v3913 = vld [vmem:[#allocation2 + $0x3c0] sm:$0xff]
    %v3914 = vld [vmem:[#allocation2 + $0x3f0] sm:$0xff]
    %v3915 = vld [vmem:[#allocation2 + $0x420] sm:$0xff]
    %v3916 = vld [vmem:[#allocation2 + $0x450] sm:$0xff]
    %v3917 = vld [vmem:[#allocation2 + $0x480] sm:$0xff]
    %v3918 = vld [vmem:[#allocation2 + $0x4b0] sm:$0xff]
    %v3919 = vld [vmem:[#allocation2 + $0x4e0] sm:$0xff]
    %v3920 = vld [vmem:[#allocation2 + $0x510] sm:$0xff]
    %v3921 = vld [vmem:[#allocation2 + $0x540] sm:$0xff]
    %v3922 = vld [vmem:[#allocation2 + $0x570] sm:$0xff]
    %v3923 = vld [vmem:[#allocation2 + $0x5a0] sm:$0xff]
    %v3924 = vld [vmem:[#allocation2 + $0x5d0] sm:$0xff]
    %v3925 = vld [vmem:[#allocation2 + $0x600] sm:$0xff]
    %v3926 = vld [vmem:[#allocation2 + $0x630] sm:$0xff]
    %v3927 = vld [vmem:[#allocation2 + $0x660] sm:$0xff]
    %v3928 = vld [vmem:[#allocation2 + $0x690] sm:$0xff]
    %v3929 = vpack.c.bf16 %v3894, %v3893
    %v3930 = vpack.c.bf16 %v3896, %v3895
    %v3931 = vpack.c.bf16 %v3898, %v3897
    %v3932 = vpack.c.bf16 %v3900, %v3899
    %v3933 = vpack.c.bf16 %v3902, %v3901
    %v3934 = vpack.c.bf16 %v3904, %v3903
    %v3935 = vpack.c.bf16 %v3906, %v3905
    %v3936 = vpack.c.bf16 %v3908, %v3907
    %v3937 = vpack.c.bf16 %v3910, %v3909
    %v3938 = vpack.c.bf16 %v3912, %v3911
    %v3939 = vpack.c.bf16 %v3914, %v3913
    %v3940 = vpack.c.bf16 %v3916, %v3915
    %v3941 = vpack.c.bf16 %v3918, %v3917
    %v3942 = vpack.c.bf16 %v3920, %v3919
    %v3943 = vpack.c.bf16 %v3922, %v3921
    %v3944 = vpack.c.bf16 %v3924, %v3923
    %v3945 = vpack.c.bf16 %v3926, %v3925
    %v3946 = vpack.c.bf16 %v3928, %v3927
    %v3947 = vld [vmem:[%s25] sm:$0xff]
    %v3948 = vld [vmem:[%s25 + $0x8] sm:$0xff]
    %v3949 = vld [vmem:[%s25 + $0x10] sm:$0xff]
    %v3950 = vld [vmem:[%s25 + $0x18] sm:$0xff]
    %3952 = vset.pattern.permute.xlu0 0
    %3953 = vperm.xlu0 %3952, %v3947
    %v3954 = vpop.permute.xlu0 %3953
    %3957 = vset.pattern.permute.xlu0 0
    %3958 = vperm.xlu0 %3957, %v3948
    %v3959 = vpop.permute.xlu0 %3958
    %3962 = vset.pattern.permute.xlu0 0
    %3963 = vperm.xlu0 %3962, %v3949
    %v3964 = vpop.permute.xlu0 %3963
    %3967 = vset.pattern.permute.xlu0 0
    %3968 = vperm.xlu0 %3967, %v3950
    %v3969 = vpop.permute.xlu0 %3968
    %v3979 = vunpack.c.l.b16 %v3885
    %v3980 = vunpack.c.h.b16 %v3885
    %v3981 = vunpack.c.l.b16 %v3886
    %v3982 = vunpack.c.l.b16 %v3887
    %v3983 = vunpack.c.h.b16 %v3887
    %v3984 = vunpack.c.l.b16 %v3888
    %v3985 = vunpack.c.l.b16 %v3889
    %v3986 = vunpack.c.h.b16 %v3889
    %v3987 = vunpack.c.l.b16 %v3890
    %v3988 = vunpack.c.l.b16 %v3891
    %v3989 = vunpack.c.h.b16 %v3891
    %v3990 = vunpack.c.l.b16 %v3892
    %v3991 = vpack.c.b16 %v3982, %v3979
    %v3992 = vpack.c.b16 %v3983, %v3980
    %v3993 = vpack.c.b16 %v3984, %v3981
    %v3994 = vpack.c.b16 %v3988, %v3985
    %v3995 = vpack.c.b16 %v3989, %v3986
    %v3996 = vpack.c.b16 %v3990, %v3987
    %vm4001 = vcmask 261120
    %v4003 = vsel %vm4001, %v3993, 0
    %v4006 = vsel %vm4001, %v3996, 0
    %4008 = vmatpush.bf16.msra.mxu0 %v3936
    %4009 = vmatpush.bf16.msra.mxu0 %v3935
    %4010 = vmatpush.bf16.msra.mxu0 %v3934
    %4011 = vmatpush.bf16.msra.mxu0 %v3933
    %4012 = vmatpush.bf16.msra.mxu0 %v3932
    %4013 = vmatpush.bf16.msra.mxu0 %v3931
    %4014 = vmatpush.bf16.msra.mxu0 %v3930
    %4015 = vmatpush.bf16.msra.mxu0 %v3929
    %4016 = vmatmul.bf16.gmra.mxu0 %v3991
    %v4017 = vpop.f32.mrf.mxu0
    %v4018 = vadd.f32 %v3954, %v4017
    %v4019 = vpop.f32.mrf.mxu0
    %v4020 = vadd.f32 %v3959, %v4019
    %4021 = vmatmul.bf16.gmra.mxu0 %v3994
    %v4022 = vpop.f32.mrf.mxu0
    %v4023 = vadd.f32 %v3964, %v4022
    %v4024 = vpop.f32.mrf.mxu0
    %v4025 = vadd.f32 %v3969, %v4024
    %4026 = vdwg.mxu0
    %4027 = vmatpush.bf16.msra.mxu0 %v3944
    %4028 = vmatpush.bf16.msra.mxu0 %v3943
    %4029 = vmatpush.bf16.msra.mxu0 %v3942
    %4030 = vmatpush.bf16.msra.mxu0 %v3941
    %4031 = vmatpush.bf16.msra.mxu0 %v3940
    %4032 = vmatpush.bf16.msra.mxu0 %v3939
    %4033 = vmatpush.bf16.msra.mxu0 %v3938
    %4034 = vmatpush.bf16.msra.mxu0 %v3937
    %4035 = vmatmul.bf16.gmra.mxu0 %v3992
    %v4036 = vpop.f32.mrf.mxu0
    %v4037 = vadd.f32 %v4018, %v4036
    %v4038 = vpop.f32.mrf.mxu0
    %v4039 = vadd.f32 %v4020, %v4038
    %4040 = vmatmul.bf16.gmra.mxu0 %v3995
    %v4041 = vpop.f32.mrf.mxu0
    %v4042 = vadd.f32 %v4023, %v4041
    %v4043 = vpop.f32.mrf.mxu0
    %v4044 = vadd.f32 %v4025, %v4043
    %4045 = vdwg.mxu0
    %4046 = vmatpush.bf16.msra.mxu0 0
    %4047 = vmatpush.bf16.msra.mxu0 0
    %4048 = vmatpush.bf16.msra.mxu0 0
    %4049 = vmatpush.bf16.msra.mxu0 0
    %4050 = vmatpush.bf16.msra.mxu0 0
    %4051 = vmatpush.bf16.msra.mxu0 0
    %4052 = vmatpush.bf16.msra.mxu0 %v3946
    %4053 = vmatpush.bf16.msra.mxu0 %v3945
    %4054 = vmatmul.bf16.gmra.mxu0 %v4003
    %v4055 = vpop.f32.mrf.mxu0
    %v4056 = vadd.f32 %v4037, %v4055
    %v4057 = vpop.f32.mrf.mxu0
    %v4058 = vadd.f32 %v4039, %v4057
    %4059 = vmatmul.bf16.gmra.mxu0 %v4006
    %v4060 = vpop.f32.mrf.mxu0
    %v4061 = vadd.f32 %v4042, %v4060
    %v4062 = vpop.f32.mrf.mxu0
    %v4063 = vadd.f32 %v4044, %v4062
    %4064 = vdwg.mxu0
    %v4065 = vmax.f32 %v4056, 0.0
    %v4066 = vmax.f32 %v4058, 0.0
    %v4067 = vmax.f32 %v4061, 0.0
    %v4068 = vmax.f32 %v4063, 0.0
    %v4069 = vld [vmem:[%s51] sm:$0x1]
    %v4071 = vperm.slane %v4069, 0
    %v4073 = vmul.f32 %v4065, %v4071
    %v4074 = vmul.f32 %v4066, %v4071
    %v4075 = vmul.f32 %v4067, %v4071
    %v4076 = vmul.f32 %v4068, %v4071
    %4077 = vst [vmem:[#allocation10 + $0x8] sm:$0xff] %v4073
    %4078 = vst [vmem:[#allocation10 + $0x20] sm:$0xff] %v4074
    %4079 = vst [vmem:[#allocation10 + $0x38] sm:$0xff] %v4075
    %4080 = vst [vmem:[#allocation10 + $0x50] sm:$0xff] %v4076
    %v4081 = vld [vmem:[#allocation10 + $0x8] sm:$0xff]
    %v4082 = vld [vmem:[#allocation10 + $0x20] sm:$0xff]
    %v4083 = vld [vmem:[#allocation10 + $0x38] sm:$0xff]
    %v4084 = vld [vmem:[#allocation10 + $0x50] sm:$0xff]
    %v4085 = vpack.c.bf16 %v4082, %v4081
    %v4086 = vpack.c.bf16 %v4084, %v4083
    %v4087 = vld [vmem:[#allocation18] sm:$0xff]
    %v4088 = vld [vmem:[#allocation18 + $0x8] sm:$0xff]
    %v4089 = vld [vmem:[#allocation18 + $0x10] sm:$0xff]
    %v4090 = vld [vmem:[#allocation18 + $0x18] sm:$0xff]
    %v4091 = vld [vmem:[#allocation18 + $0x20] sm:$0xff]
    %v4092 = vld [vmem:[#allocation18 + $0x28] sm:$0xff]
    %v4093 = vld [vmem:[#allocation18 + $0x30] sm:$0xff]
    %v4094 = vld [vmem:[#allocation18 + $0x38] sm:$0xff]
    %v4095 = vld [vmem:[#allocation18 + $0x40] sm:$0xff]
    %v4096 = vld [vmem:[#allocation18 + $0x48] sm:$0xff]
    %v4097 = vld [vmem:[#allocation18 + $0x50] sm:$0xff]
    %v4098 = vld [vmem:[#allocation18 + $0x58] sm:$0xff]
    %v4099 = vld [vmem:[#allocation18 + $0x60] sm:$0xff]
    %v4100 = vld [vmem:[#allocation18 + $0x68] sm:$0xff]
    %v4101 = vld [vmem:[#allocation18 + $0x70] sm:$0xff]
    %v4102 = vld [vmem:[#allocation18 + $0x78] sm:$0xff]
    %v4119 = vunpack.c.l.b16 %v4087
    %v4120 = vunpack.c.h.b16 %v4087
    %v4121 = vunpack.c.l.b16 %v4088
    %v4122 = vunpack.c.h.b16 %v4088
    %v4123 = vunpack.c.l.b16 %v4089
    %v4124 = vunpack.c.h.b16 %v4089
    %v4125 = vunpack.c.l.b16 %v4090
    %v4126 = vunpack.c.h.b16 %v4090
    %v4127 = vunpack.c.l.b16 %v4091
    %v4128 = vunpack.c.h.b16 %v4091
    %v4129 = vunpack.c.l.b16 %v4092
    %v4130 = vunpack.c.h.b16 %v4092
    %v4131 = vunpack.c.l.b16 %v4093
    %v4132 = vunpack.c.h.b16 %v4093
    %v4133 = vunpack.c.l.b16 %v4094
    %v4134 = vunpack.c.h.b16 %v4094
    %v4135 = vunpack.c.l.b16 %v4095
    %v4136 = vunpack.c.h.b16 %v4095
    %v4137 = vunpack.c.l.b16 %v4096
    %v4138 = vunpack.c.h.b16 %v4096
    %v4139 = vunpack.c.l.b16 %v4097
    %v4140 = vunpack.c.h.b16 %v4097
    %v4141 = vunpack.c.l.b16 %v4098
    %v4142 = vunpack.c.h.b16 %v4098
    %v4143 = vunpack.c.l.b16 %v4099
    %v4144 = vunpack.c.h.b16 %v4099
    %v4145 = vunpack.c.l.b16 %v4100
    %v4146 = vunpack.c.h.b16 %v4100
    %v4147 = vunpack.c.l.b16 %v4101
    %v4148 = vunpack.c.h.b16 %v4101
    %v4149 = vunpack.c.l.b16 %v4102
    %v4150 = vunpack.c.h.b16 %v4102
    %v4151 = vpack.c.b16 %v4121, %v4119
    %v4152 = vpack.c.b16 %v4122, %v4120
    %v4153 = vpack.c.b16 %v4125, %v4123
    %v4154 = vpack.c.b16 %v4126, %v4124
    %v4155 = vpack.c.b16 %v4129, %v4127
    %v4156 = vpack.c.b16 %v4130, %v4128
    %v4157 = vpack.c.b16 %v4133, %v4131
    %v4158 = vpack.c.b16 %v4134, %v4132
    %v4159 = vpack.c.b16 %v4137, %v4135
    %v4160 = vpack.c.b16 %v4138, %v4136
    %v4161 = vpack.c.b16 %v4141, %v4139
    %v4162 = vpack.c.b16 %v4142, %v4140
    %v4163 = vpack.c.b16 %v4145, %v4143
    %v4164 = vpack.c.b16 %v4146, %v4144
    %v4165 = vpack.c.b16 %v4149, %v4147
    %v4166 = vpack.c.b16 %v4150, %v4148
    %4183 = vmatpush.bf16.msra.mxu0 %v4165
    %4184 = vmatpush.bf16.msra.mxu0 %v4163
    %4185 = vmatpush.bf16.msra.mxu0 %v4161
    %4186 = vmatpush.bf16.msra.mxu0 %v4159
    %4187 = vmatpush.bf16.msra.mxu0 %v4157
    %4188 = vmatpush.bf16.msra.mxu0 %v4155
    %4189 = vmatpush.bf16.msra.mxu0 %v4153
    %4190 = vmatpush.bf16.msra.mxu0 %v4151
    %4191 = vmatmul.bf16.gmra.mxu0 %v4085
    %v4192 = vpop.f32.mrf.mxu0
    %v4193 = vadd.f32 0.0, %v4192
    %v4194 = vpop.f32.mrf.mxu0
    %v4195 = vadd.f32 0.0, %v4194
    %4196 = vmatmul.bf16.gmra.mxu0 %v4086
    %v4197 = vpop.f32.mrf.mxu0
    %v4198 = vadd.f32 0.0, %v4197
    %v4199 = vpop.f32.mrf.mxu0
    %v4200 = vadd.f32 0.0, %v4199
    %4201 = vdwg.mxu0
    %4202 = vmatpush.bf16.msra.mxu0 %v4166
    %4203 = vmatpush.bf16.msra.mxu0 %v4164
    %4204 = vmatpush.bf16.msra.mxu0 %v4162
    %4205 = vmatpush.bf16.msra.mxu0 %v4160
    %4206 = vmatpush.bf16.msra.mxu0 %v4158
    %4207 = vmatpush.bf16.msra.mxu0 %v4156
    %4208 = vmatpush.bf16.msra.mxu0 %v4154
    %4209 = vmatpush.bf16.msra.mxu0 %v4152
    %4210 = vmatmul.bf16.gmra.mxu0 %v4085
    %v4211 = vpop.f32.mrf.mxu0
    %v4212 = vadd.f32 0.0, %v4211
    %v4213 = vpop.f32.mrf.mxu0
    %v4214 = vadd.f32 0.0, %v4213
    %4215 = vmatmul.bf16.gmra.mxu0 %v4086
    %v4216 = vpop.f32.mrf.mxu0
    %v4217 = vadd.f32 0.0, %v4216
    %v4218 = vpop.f32.mrf.mxu0
    %v4219 = vadd.f32 0.0, %v4218
    %4220 = vdwg.mxu0
    %4221 = vst [vmem:[#allocation11 + $0x8] sm:$0xff] %v4193
    %4222 = vst [vmem:[#allocation11 + $0x10] sm:$0xff] %v4212
    %4223 = vst [vmem:[#allocation11 + $0x28] sm:$0xff] %v4195
    %4224 = vst [vmem:[#allocation11 + $0x30] sm:$0xff] %v4214
    %4225 = vst [vmem:[#allocation11 + $0x48] sm:$0xff] %v4198
    %4226 = vst [vmem:[#allocation11 + $0x50] sm:$0xff] %v4217
    %4227 = vst [vmem:[#allocation11 + $0x68] sm:$0xff] %v4200
    %4228 = vst [vmem:[#allocation11 + $0x70] sm:$0xff] %v4219
    %v4229 = vld [vmem:[#allocation11] sm:$0xff]
    %v4230 = vld [vmem:[#allocation11 + $0x8] sm:$0xff]
    %v4231 = vld [vmem:[#allocation11 + $0x10] sm:$0xff]
    %v4232 = vld [vmem:[#allocation11 + $0x20] sm:$0xff]
    %v4233 = vld [vmem:[#allocation11 + $0x28] sm:$0xff]
    %v4234 = vld [vmem:[#allocation11 + $0x30] sm:$0xff]
    %v4235 = vld [vmem:[#allocation11 + $0x40] sm:$0xff]
    %v4236 = vld [vmem:[#allocation11 + $0x48] sm:$0xff]
    %v4237 = vld [vmem:[#allocation11 + $0x50] sm:$0xff]
    %v4238 = vld [vmem:[#allocation11 + $0x60] sm:$0xff]
    %v4239 = vld [vmem:[#allocation11 + $0x68] sm:$0xff]
    %v4240 = vld [vmem:[#allocation11 + $0x70] sm:$0xff]
    %4253 = vrot.lane.b32.xlu0 %v4229, 11
    %v4254 = vpop.permute.xlu0 %4253
    %4255 = vrot.lane.b32.xlu0 %v4230, 11
    %v4256 = vpop.permute.xlu0 %4255
    %4257 = vrot.lane.b32.xlu0 %v4231, 11
    %v4258 = vpop.permute.xlu0 %4257
    %4259 = vrot.lane.b32.xlu0 %v4232, 11
    %v4260 = vpop.permute.xlu0 %4259
    %4261 = vrot.lane.b32.xlu0 %v4233, 11
    %v4262 = vpop.permute.xlu0 %4261
    %4263 = vrot.lane.b32.xlu0 %v4234, 11
    %v4264 = vpop.permute.xlu0 %4263
    %4265 = vrot.lane.b32.xlu0 %v4235, 11
    %v4266 = vpop.permute.xlu0 %4265
    %4267 = vrot.lane.b32.xlu0 %v4236, 11
    %v4268 = vpop.permute.xlu0 %4267
    %4269 = vrot.lane.b32.xlu0 %v4237, 11
    %v4270 = vpop.permute.xlu0 %4269
    %4271 = vrot.lane.b32.xlu0 %v4238, 11
    %v4272 = vpop.permute.xlu0 %4271
    %4273 = vrot.lane.b32.xlu0 %v4239, 11
    %v4274 = vpop.permute.xlu0 %4273
    %4275 = vrot.lane.b32.xlu0 %v4240, 11
    %v4276 = vpop.permute.xlu0 %4275
    %v4277 = vsel %vm2273, %v4254, %v4256
    %v4278 = vsel %vm2273, %v4256, %v4258
    %v4279 = vsel %vm2273, %v4260, %v4262
    %v4280 = vsel %vm2273, %v4262, %v4264
    %v4281 = vsel %vm2273, %v4266, %v4268
    %v4282 = vsel %vm2273, %v4268, %v4270
    %v4283 = vsel %vm2273, %v4272, %v4274
    %v4284 = vsel %vm2273, %v4274, %v4276
    %4293 = vst [vmem:[#allocation2] sm:$0xff] %v4277
    %4294 = vst [vmem:[#allocation2 + $0x8] sm:$0xff] %v4278
    %4295 = vst [vmem:[#allocation2 + $0x30] sm:$0xff] %v4279
    %4296 = vst [vmem:[#allocation2 + $0x38] sm:$0xff] %v4280
    %4297 = vst [vmem:[#allocation2 + $0x60] sm:$0xff] %v4281
    %4298 = vst [vmem:[#allocation2 + $0x68] sm:$0xff] %v4282
    %4299 = vst [vmem:[#allocation2 + $0x90] sm:$0xff] %v4283
    %4300 = vst [vmem:[#allocation2 + $0x98] sm:$0xff] %v4284
    %v4301 = vld [vmem:[#allocation11] sm:$0xff]
    %v4302 = vld [vmem:[#allocation11 + $0x8] sm:$0xff]
    %v4303 = vld [vmem:[#allocation11 + $0x10] sm:$0xff]
    %v4304 = vld [vmem:[#allocation11 + $0x20] sm:$0xff]
    %v4305 = vld [vmem:[#allocation11 + $0x28] sm:$0xff]
    %v4306 = vld [vmem:[#allocation11 + $0x30] sm:$0xff]
    %v4307 = vld [vmem:[#allocation11 + $0x40] sm:$0xff]
    %v4308 = vld [vmem:[#allocation11 + $0x48] sm:$0xff]
    %v4309 = vld [vmem:[#allocation11 + $0x50] sm:$0xff]
    %v4310 = vld [vmem:[#allocation11 + $0x60] sm:$0xff]
    %v4311 = vld [vmem:[#allocation11 + $0x68] sm:$0xff]
    %v4312 = vld [vmem:[#allocation11 + $0x70] sm:$0xff]
    %4325 = vrot.lane.b32.xlu0 %v4301, 10
    %v4326 = vpop.permute.xlu0 %4325
    %4327 = vrot.lane.b32.xlu0 %v4302, 10
    %v4328 = vpop.permute.xlu0 %4327
    %4329 = vrot.lane.b32.xlu0 %v4303, 10
    %v4330 = vpop.permute.xlu0 %4329
    %4331 = vrot.lane.b32.xlu0 %v4304, 10
    %v4332 = vpop.permute.xlu0 %4331
    %4333 = vrot.lane.b32.xlu0 %v4305, 10
    %v4334 = vpop.permute.xlu0 %4333
    %4335 = vrot.lane.b32.xlu0 %v4306, 10
    %v4336 = vpop.permute.xlu0 %4335
    %4337 = vrot.lane.b32.xlu0 %v4307, 10
    %v4338 = vpop.permute.xlu0 %4337
    %4339 = vrot.lane.b32.xlu0 %v4308, 10
    %v4340 = vpop.permute.xlu0 %4339
    %4341 = vrot.lane.b32.xlu0 %v4309, 10
    %v4342 = vpop.permute.xlu0 %4341
    %4343 = vrot.lane.b32.xlu0 %v4310, 10
    %v4344 = vpop.permute.xlu0 %4343
    %4345 = vrot.lane.b32.xlu0 %v4311, 10
    %v4346 = vpop.permute.xlu0 %4345
    %4347 = vrot.lane.b32.xlu0 %v4312, 10
    %v4348 = vpop.permute.xlu0 %4347
    %v4349 = vsel %vm2292, %v4326, %v4328
    %v4350 = vsel %vm2292, %v4328, %v4330
    %v4351 = vsel %vm2292, %v4332, %v4334
    %v4352 = vsel %vm2292, %v4334, %v4336
    %v4353 = vsel %vm2292, %v4338, %v4340
    %v4354 = vsel %vm2292, %v4340, %v4342
    %v4355 = vsel %vm2292, %v4344, %v4346
    %v4356 = vsel %vm2292, %v4346, %v4348
    %4365 = vst [vmem:[#allocation2 + $0xc0] sm:$0xff] %v4349
    %4366 = vst [vmem:[#allocation2 + $0xc8] sm:$0xff] %v4350
    %4367 = vst [vmem:[#allocation2 + $0xf0] sm:$0xff] %v4351
    %4368 = vst [vmem:[#allocation2 + $0xf8] sm:$0xff] %v4352
    %4369 = vst [vmem:[#allocation2 + $0x120] sm:$0xff] %v4353
    %4370 = vst [vmem:[#allocation2 + $0x128] sm:$0xff] %v4354
    %4371 = vst [vmem:[#allocation2 + $0x150] sm:$0xff] %v4355
    %4372 = vst [vmem:[#allocation2 + $0x158] sm:$0xff] %v4356
    %v4373 = vld [vmem:[#allocation11] sm:$0xff]
    %v4374 = vld [vmem:[#allocation11 + $0x8] sm:$0xff]
    %v4375 = vld [vmem:[#allocation11 + $0x10] sm:$0xff]
    %v4376 = vld [vmem:[#allocation11 + $0x20] sm:$0xff]
    %v4377 = vld [vmem:[#allocation11 + $0x28] sm:$0xff]
    %v4378 = vld [vmem:[#allocation11 + $0x30] sm:$0xff]
    %v4379 = vld [vmem:[#allocation11 + $0x40] sm:$0xff]
    %v4380 = vld [vmem:[#allocation11 + $0x48] sm:$0xff]
    %v4381 = vld [vmem:[#allocation11 + $0x50] sm:$0xff]
    %v4382 = vld [vmem:[#allocation11 + $0x60] sm:$0xff]
    %v4383 = vld [vmem:[#allocation11 + $0x68] sm:$0xff]
    %v4384 = vld [vmem:[#allocation11 + $0x70] sm:$0xff]
    %4397 = vrot.lane.b32.xlu0 %v4373, 9
    %v4398 = vpop.permute.xlu0 %4397
    %4399 = vrot.lane.b32.xlu0 %v4374, 9
    %v4400 = vpop.permute.xlu0 %4399
    %4401 = vrot.lane.b32.xlu0 %v4375, 9
    %v4402 = vpop.permute.xlu0 %4401
    %4403 = vrot.lane.b32.xlu0 %v4376, 9
    %v4404 = vpop.permute.xlu0 %4403
    %4405 = vrot.lane.b32.xlu0 %v4377, 9
    %v4406 = vpop.permute.xlu0 %4405
    %4407 = vrot.lane.b32.xlu0 %v4378, 9
    %v4408 = vpop.permute.xlu0 %4407
    %4409 = vrot.lane.b32.xlu0 %v4379, 9
    %v4410 = vpop.permute.xlu0 %4409
    %4411 = vrot.lane.b32.xlu0 %v4380, 9
    %v4412 = vpop.permute.xlu0 %4411
    %4413 = vrot.lane.b32.xlu0 %v4381, 9
    %v4414 = vpop.permute.xlu0 %4413
    %4415 = vrot.lane.b32.xlu0 %v4382, 9
    %v4416 = vpop.permute.xlu0 %4415
    %4417 = vrot.lane.b32.xlu0 %v4383, 9
    %v4418 = vpop.permute.xlu0 %4417
    %4419 = vrot.lane.b32.xlu0 %v4384, 9
    %v4420 = vpop.permute.xlu0 %4419
    %v4421 = vsel %vm2311, %v4398, %v4400
    %v4422 = vsel %vm2311, %v4400, %v4402
    %v4423 = vsel %vm2311, %v4404, %v4406
    %v4424 = vsel %vm2311, %v4406, %v4408
    %v4425 = vsel %vm2311, %v4410, %v4412
    %v4426 = vsel %vm2311, %v4412, %v4414
    %v4427 = vsel %vm2311, %v4416, %v4418
    %v4428 = vsel %vm2311, %v4418, %v4420
    %4437 = vst [vmem:[#allocation2 + $0x180] sm:$0xff] %v4421
    %4438 = vst [vmem:[#allocation2 + $0x188] sm:$0xff] %v4422
    %4439 = vst [vmem:[#allocation2 + $0x1b0] sm:$0xff] %v4423
    %4440 = vst [vmem:[#allocation2 + $0x1b8] sm:$0xff] %v4424
    %4441 = vst [vmem:[#allocation2 + $0x1e0] sm:$0xff] %v4425
    %4442 = vst [vmem:[#allocation2 + $0x1e8] sm:$0xff] %v4426
    %4443 = vst [vmem:[#allocation2 + $0x210] sm:$0xff] %v4427
    %4444 = vst [vmem:[#allocation2 + $0x218] sm:$0xff] %v4428
    %v4445 = vld [vmem:[#allocation11] sm:$0xff]
    %v4446 = vld [vmem:[#allocation11 + $0x8] sm:$0xff]
    %v4447 = vld [vmem:[#allocation11 + $0x10] sm:$0xff]
    %v4448 = vld [vmem:[#allocation11 + $0x20] sm:$0xff]
    %v4449 = vld [vmem:[#allocation11 + $0x28] sm:$0xff]
    %v4450 = vld [vmem:[#allocation11 + $0x30] sm:$0xff]
    %v4451 = vld [vmem:[#allocation11 + $0x40] sm:$0xff]
    %v4452 = vld [vmem:[#allocation11 + $0x48] sm:$0xff]
    %v4453 = vld [vmem:[#allocation11 + $0x50] sm:$0xff]
    %v4454 = vld [vmem:[#allocation11 + $0x60] sm:$0xff]
    %v4455 = vld [vmem:[#allocation11 + $0x68] sm:$0xff]
    %v4456 = vld [vmem:[#allocation11 + $0x70] sm:$0xff]
    %4469 = vrot.lane.b32.xlu0 %v4445, 1
    %v4470 = vpop.permute.xlu0 %4469
    %4471 = vrot.lane.b32.xlu0 %v4446, 1
    %v4472 = vpop.permute.xlu0 %4471
    %4473 = vrot.lane.b32.xlu0 %v4447, 1
    %v4474 = vpop.permute.xlu0 %4473
    %4475 = vrot.lane.b32.xlu0 %v4448, 1
    %v4476 = vpop.permute.xlu0 %4475
    %4477 = vrot.lane.b32.xlu0 %v4449, 1
    %v4478 = vpop.permute.xlu0 %4477
    %4479 = vrot.lane.b32.xlu0 %v4450, 1
    %v4480 = vpop.permute.xlu0 %4479
    %4481 = vrot.lane.b32.xlu0 %v4451, 1
    %v4482 = vpop.permute.xlu0 %4481
    %4483 = vrot.lane.b32.xlu0 %v4452, 1
    %v4484 = vpop.permute.xlu0 %4483
    %4485 = vrot.lane.b32.xlu0 %v4453, 1
    %v4486 = vpop.permute.xlu0 %4485
    %4487 = vrot.lane.b32.xlu0 %v4454, 1
    %v4488 = vpop.permute.xlu0 %4487
    %4489 = vrot.lane.b32.xlu0 %v4455, 1
    %v4490 = vpop.permute.xlu0 %4489
    %4491 = vrot.lane.b32.xlu0 %v4456, 1
    %v4492 = vpop.permute.xlu0 %4491
    %v4493 = vsel %vm982, %v4470, %v4472
    %v4494 = vsel %vm982, %v4472, %v4474
    %v4495 = vsel %vm982, %v4476, %v4478
    %v4496 = vsel %vm982, %v4478, %v4480
    %v4497 = vsel %vm982, %v4482, %v4484
    %v4498 = vsel %vm982, %v4484, %v4486
    %v4499 = vsel %vm982, %v4488, %v4490
    %v4500 = vsel %vm982, %v4490, %v4492
    %4509 = vst [vmem:[#allocation2 + $0x240] sm:$0xff] %v4493
    %4510 = vst [vmem:[#allocation2 + $0x248] sm:$0xff] %v4494
    %4511 = vst [vmem:[#allocation2 + $0x270] sm:$0xff] %v4495
    %4512 = vst [vmem:[#allocation2 + $0x278] sm:$0xff] %v4496
    %4513 = vst [vmem:[#allocation2 + $0x2a0] sm:$0xff] %v4497
    %4514 = vst [vmem:[#allocation2 + $0x2a8] sm:$0xff] %v4498
    %4515 = vst [vmem:[#allocation2 + $0x2d0] sm:$0xff] %v4499
    %4516 = vst [vmem:[#allocation2 + $0x2d8] sm:$0xff] %v4500
    %v4517 = vld [vmem:[#allocation11 + $0x8] sm:$0xff]
    %v4518 = vld [vmem:[#allocation11 + $0x10] sm:$0xff]
    %v4519 = vld [vmem:[#allocation11 + $0x28] sm:$0xff]
    %v4520 = vld [vmem:[#allocation11 + $0x30] sm:$0xff]
    %v4521 = vld [vmem:[#allocation11 + $0x48] sm:$0xff]
    %v4522 = vld [vmem:[#allocation11 + $0x50] sm:$0xff]
    %v4523 = vld [vmem:[#allocation11 + $0x68] sm:$0xff]
    %v4524 = vld [vmem:[#allocation11 + $0x70] sm:$0xff]
    %4525 = vst [vmem:[#allocation2 + $0x300] sm:$0xff] %v4517
    %4526 = vst [vmem:[#allocation2 + $0x308] sm:$0xff] %v4518
    %4527 = vst [vmem:[#allocation2 + $0x330] sm:$0xff] %v4519
    %4528 = vst [vmem:[#allocation2 + $0x338] sm:$0xff] %v4520
    %4529 = vst [vmem:[#allocation2 + $0x360] sm:$0xff] %v4521
    %4530 = vst [vmem:[#allocation2 + $0x368] sm:$0xff] %v4522
    %4531 = vst [vmem:[#allocation2 + $0x390] sm:$0xff] %v4523
    %4532 = vst [vmem:[#allocation2 + $0x398] sm:$0xff] %v4524
    %v4533 = vld [vmem:[#allocation11 + $0x8] sm:$0xff]
    %v4534 = vld [vmem:[#allocation11 + $0x10] sm:$0xff]
    %v4535 = vld [vmem:[#allocation11 + $0x18] sm:$0xff]
    %v4536 = vld [vmem:[#allocation11 + $0x28] sm:$0xff]
    %v4537 = vld [vmem:[#allocation11 + $0x30] sm:$0xff]
    %v4538 = vld [vmem:[#allocation11 + $0x38] sm:$0xff]
    %v4539 = vld [vmem:[#allocation11 + $0x48] sm:$0xff]
    %v4540 = vld [vmem:[#allocation11 + $0x50] sm:$0xff]
    %v4541 = vld [vmem:[#allocation11 + $0x58] sm:$0xff]
    %v4542 = vld [vmem:[#allocation11 + $0x68] sm:$0xff]
    %v4543 = vld [vmem:[#allocation11 + $0x70] sm:$0xff]
    %v4544 = vld [vmem:[#allocation11 + $0x78] sm:$0xff]
    %4557 = vrot.lane.b32.xlu0 %v4533, 127
    %v4558 = vpop.permute.xlu0 %4557
    %4559 = vrot.lane.b32.xlu0 %v4534, 127
    %v4560 = vpop.permute.xlu0 %4559
    %4561 = vrot.lane.b32.xlu0 %v4535, 127
    %v4562 = vpop.permute.xlu0 %4561
    %4563 = vrot.lane.b32.xlu0 %v4536, 127
    %v4564 = vpop.permute.xlu0 %4563
    %4565 = vrot.lane.b32.xlu0 %v4537, 127
    %v4566 = vpop.permute.xlu0 %4565
    %4567 = vrot.lane.b32.xlu0 %v4538, 127
    %v4568 = vpop.permute.xlu0 %4567
    %4569 = vrot.lane.b32.xlu0 %v4539, 127
    %v4570 = vpop.permute.xlu0 %4569
    %4571 = vrot.lane.b32.xlu0 %v4540, 127
    %v4572 = vpop.permute.xlu0 %4571
    %4573 = vrot.lane.b32.xlu0 %v4541, 127
    %v4574 = vpop.permute.xlu0 %4573
    %4575 = vrot.lane.b32.xlu0 %v4542, 127
    %v4576 = vpop.permute.xlu0 %4575
    %4577 = vrot.lane.b32.xlu0 %v4543, 127
    %v4578 = vpop.permute.xlu0 %4577
    %4579 = vrot.lane.b32.xlu0 %v4544, 127
    %v4580 = vpop.permute.xlu0 %4579
    %v4581 = vsel %vm298, %v4558, %v4560
    %v4582 = vsel %vm298, %v4560, %v4562
    %v4583 = vsel %vm298, %v4564, %v4566
    %v4584 = vsel %vm298, %v4566, %v4568
    %v4585 = vsel %vm298, %v4570, %v4572
    %v4586 = vsel %vm298, %v4572, %v4574
    %v4587 = vsel %vm298, %v4576, %v4578
    %v4588 = vsel %vm298, %v4578, %v4580
    %4597 = vst [vmem:[#allocation2 + $0x3c0] sm:$0xff] %v4581
    %4598 = vst [vmem:[#allocation2 + $0x3c8] sm:$0xff] %v4582
    %4599 = vst [vmem:[#allocation2 + $0x3f0] sm:$0xff] %v4583
    %4600 = vst [vmem:[#allocation2 + $0x3f8] sm:$0xff] %v4584
    %4601 = vst [vmem:[#allocation2 + $0x420] sm:$0xff] %v4585
    %4602 = vst [vmem:[#allocation2 + $0x428] sm:$0xff] %v4586
    %4603 = vst [vmem:[#allocation2 + $0x450] sm:$0xff] %v4587
    %4604 = vst [vmem:[#allocation2 + $0x458] sm:$0xff] %v4588
    %v4605 = vld [vmem:[#allocation11 + $0x8] sm:$0xff]
    %v4606 = vld [vmem:[#allocation11 + $0x10] sm:$0xff]
    %v4607 = vld [vmem:[#allocation11 + $0x18] sm:$0xff]
    %v4608 = vld [vmem:[#allocation11 + $0x28] sm:$0xff]
    %v4609 = vld [vmem:[#allocation11 + $0x30] sm:$0xff]
    %v4610 = vld [vmem:[#allocation11 + $0x38] sm:$0xff]
    %v4611 = vld [vmem:[#allocation11 + $0x48] sm:$0xff]
    %v4612 = vld [vmem:[#allocation11 + $0x50] sm:$0xff]
    %v4613 = vld [vmem:[#allocation11 + $0x58] sm:$0xff]
    %v4614 = vld [vmem:[#allocation11 + $0x68] sm:$0xff]
    %v4615 = vld [vmem:[#allocation11 + $0x70] sm:$0xff]
    %v4616 = vld [vmem:[#allocation11 + $0x78] sm:$0xff]
    %4629 = vrot.lane.b32.xlu0 %v4605, 119
    %v4630 = vpop.permute.xlu0 %4629
    %4631 = vrot.lane.b32.xlu0 %v4606, 119
    %v4632 = vpop.permute.xlu0 %4631
    %4633 = vrot.lane.b32.xlu0 %v4607, 119
    %v4634 = vpop.permute.xlu0 %4633
    %4635 = vrot.lane.b32.xlu0 %v4608, 119
    %v4636 = vpop.permute.xlu0 %4635
    %4637 = vrot.lane.b32.xlu0 %v4609, 119
    %v4638 = vpop.permute.xlu0 %4637
    %4639 = vrot.lane.b32.xlu0 %v4610, 119
    %v4640 = vpop.permute.xlu0 %4639
    %4641 = vrot.lane.b32.xlu0 %v4611, 119
    %v4642 = vpop.permute.xlu0 %4641
    %4643 = vrot.lane.b32.xlu0 %v4612, 119
    %v4644 = vpop.permute.xlu0 %4643
    %4645 = vrot.lane.b32.xlu0 %v4613, 119
    %v4646 = vpop.permute.xlu0 %4645
    %4647 = vrot.lane.b32.xlu0 %v4614, 119
    %v4648 = vpop.permute.xlu0 %4647
    %4649 = vrot.lane.b32.xlu0 %v4615, 119
    %v4650 = vpop.permute.xlu0 %4649
    %4651 = vrot.lane.b32.xlu0 %v4616, 119
    %v4652 = vpop.permute.xlu0 %4651
    %v4653 = vsel %vm2370, %v4630, %v4632
    %v4654 = vsel %vm2370, %v4632, %v4634
    %v4655 = vsel %vm2370, %v4636, %v4638
    %v4656 = vsel %vm2370, %v4638, %v4640
    %v4657 = vsel %vm2370, %v4642, %v4644
    %v4658 = vsel %vm2370, %v4644, %v4646
    %v4659 = vsel %vm2370, %v4648, %v4650
    %v4660 = vsel %vm2370, %v4650, %v4652
    %4669 = vst [vmem:[#allocation2 + $0x480] sm:$0xff] %v4653
    %4670 = vst [vmem:[#allocation2 + $0x488] sm:$0xff] %v4654
    %4671 = vst [vmem:[#allocation2 + $0x4b0] sm:$0xff] %v4655
    %4672 = vst [vmem:[#allocation2 + $0x4b8] sm:$0xff] %v4656
    %4673 = vst [vmem:[#allocation2 + $0x4e0] sm:$0xff] %v4657
    %4674 = vst [vmem:[#allocation2 + $0x4e8] sm:$0xff] %v4658
    %4675 = vst [vmem:[#allocation2 + $0x510] sm:$0xff] %v4659
    %4676 = vst [vmem:[#allocation2 + $0x518] sm:$0xff] %v4660
    %v4677 = vld [vmem:[#allocation11 + $0x8] sm:$0xff]
    %v4678 = vld [vmem:[#allocation11 + $0x10] sm:$0xff]
    %v4679 = vld [vmem:[#allocation11 + $0x18] sm:$0xff]
    %v4680 = vld [vmem:[#allocation11 + $0x28] sm:$0xff]
    %v4681 = vld [vmem:[#allocation11 + $0x30] sm:$0xff]
    %v4682 = vld [vmem:[#allocation11 + $0x38] sm:$0xff]
    %v4683 = vld [vmem:[#allocation11 + $0x48] sm:$0xff]
    %v4684 = vld [vmem:[#allocation11 + $0x50] sm:$0xff]
    %v4685 = vld [vmem:[#allocation11 + $0x58] sm:$0xff]
    %v4686 = vld [vmem:[#allocation11 + $0x68] sm:$0xff]
    %v4687 = vld [vmem:[#allocation11 + $0x70] sm:$0xff]
    %v4688 = vld [vmem:[#allocation11 + $0x78] sm:$0xff]
    %4701 = vrot.lane.b32.xlu0 %v4677, 118
    %v4702 = vpop.permute.xlu0 %4701
    %4703 = vrot.lane.b32.xlu0 %v4678, 118
    %v4704 = vpop.permute.xlu0 %4703
    %4705 = vrot.lane.b32.xlu0 %v4679, 118
    %v4706 = vpop.permute.xlu0 %4705
    %4707 = vrot.lane.b32.xlu0 %v4680, 118
    %v4708 = vpop.permute.xlu0 %4707
    %4709 = vrot.lane.b32.xlu0 %v4681, 118
    %v4710 = vpop.permute.xlu0 %4709
    %4711 = vrot.lane.b32.xlu0 %v4682, 118
    %v4712 = vpop.permute.xlu0 %4711
    %4713 = vrot.lane.b32.xlu0 %v4683, 118
    %v4714 = vpop.permute.xlu0 %4713
    %4715 = vrot.lane.b32.xlu0 %v4684, 118
    %v4716 = vpop.permute.xlu0 %4715
    %4717 = vrot.lane.b32.xlu0 %v4685, 118
    %v4718 = vpop.permute.xlu0 %4717
    %4719 = vrot.lane.b32.xlu0 %v4686, 118
    %v4720 = vpop.permute.xlu0 %4719
    %4721 = vrot.lane.b32.xlu0 %v4687, 118
    %v4722 = vpop.permute.xlu0 %4721
    %4723 = vrot.lane.b32.xlu0 %v4688, 118
    %v4724 = vpop.permute.xlu0 %4723
    %v4725 = vsel %vm2389, %v4702, %v4704
    %v4726 = vsel %vm2389, %v4704, %v4706
    %v4727 = vsel %vm2389, %v4708, %v4710
    %v4728 = vsel %vm2389, %v4710, %v4712
    %v4729 = vsel %vm2389, %v4714, %v4716
    %v4730 = vsel %vm2389, %v4716, %v4718
    %v4731 = vsel %vm2389, %v4720, %v4722
    %v4732 = vsel %vm2389, %v4722, %v4724
    %4741 = vst [vmem:[#allocation2 + $0x540] sm:$0xff] %v4725
    %4742 = vst [vmem:[#allocation2 + $0x548] sm:$0xff] %v4726
    %4743 = vst [vmem:[#allocation2 + $0x570] sm:$0xff] %v4727
    %4744 = vst [vmem:[#allocation2 + $0x578] sm:$0xff] %v4728
    %4745 = vst [vmem:[#allocation2 + $0x5a0] sm:$0xff] %v4729
    %4746 = vst [vmem:[#allocation2 + $0x5a8] sm:$0xff] %v4730
    %4747 = vst [vmem:[#allocation2 + $0x5d0] sm:$0xff] %v4731
    %4748 = vst [vmem:[#allocation2 + $0x5d8] sm:$0xff] %v4732
    %v4749 = vld [vmem:[#allocation11 + $0x8] sm:$0xff]
    %v4750 = vld [vmem:[#allocation11 + $0x10] sm:$0xff]
    %v4751 = vld [vmem:[#allocation11 + $0x18] sm:$0xff]
    %v4752 = vld [vmem:[#allocation11 + $0x28] sm:$0xff]
    %v4753 = vld [vmem:[#allocation11 + $0x30] sm:$0xff]
    %v4754 = vld [vmem:[#allocation11 + $0x38] sm:$0xff]
    %v4755 = vld [vmem:[#allocation11 + $0x48] sm:$0xff]
    %v4756 = vld [vmem:[#allocation11 + $0x50] sm:$0xff]
    %v4757 = vld [vmem:[#allocation11 + $0x58] sm:$0xff]
    %v4758 = vld [vmem:[#allocation11 + $0x68] sm:$0xff]
    %v4759 = vld [vmem:[#allocation11 + $0x70] sm:$0xff]
    %v4760 = vld [vmem:[#allocation11 + $0x78] sm:$0xff]
    %4773 = vrot.lane.b32.xlu0 %v4749, 117
    %v4774 = vpop.permute.xlu0 %4773
    %4775 = vrot.lane.b32.xlu0 %v4750, 117
    %v4776 = vpop.permute.xlu0 %4775
    %4777 = vrot.lane.b32.xlu0 %v4751, 117
    %v4778 = vpop.permute.xlu0 %4777
    %4779 = vrot.lane.b32.xlu0 %v4752, 117
    %v4780 = vpop.permute.xlu0 %4779
    %4781 = vrot.lane.b32.xlu0 %v4753, 117
    %v4782 = vpop.permute.xlu0 %4781
    %4783 = vrot.lane.b32.xlu0 %v4754, 117
    %v4784 = vpop.permute.xlu0 %4783
    %4785 = vrot.lane.b32.xlu0 %v4755, 117
    %v4786 = vpop.permute.xlu0 %4785
    %4787 = vrot.lane.b32.xlu0 %v4756, 117
    %v4788 = vpop.permute.xlu0 %4787
    %4789 = vrot.lane.b32.xlu0 %v4757, 117
    %v4790 = vpop.permute.xlu0 %4789
    %4791 = vrot.lane.b32.xlu0 %v4758, 117
    %v4792 = vpop.permute.xlu0 %4791
    %4793 = vrot.lane.b32.xlu0 %v4759, 117
    %v4794 = vpop.permute.xlu0 %4793
    %4795 = vrot.lane.b32.xlu0 %v4760, 117
    %v4796 = vpop.permute.xlu0 %4795
    %v4797 = vsel %vm2408, %v4774, %v4776
    %v4798 = vsel %vm2408, %v4776, %v4778
    %v4799 = vsel %vm2408, %v4780, %v4782
    %v4800 = vsel %vm2408, %v4782, %v4784
    %v4801 = vsel %vm2408, %v4786, %v4788
    %v4802 = vsel %vm2408, %v4788, %v4790
    %v4803 = vsel %vm2408, %v4792, %v4794
    %v4804 = vsel %vm2408, %v4794, %v4796
    %4813 = vst [vmem:[#allocation2 + $0x600] sm:$0xff] %v4797
    %4814 = vst [vmem:[#allocation2 + $0x608] sm:$0xff] %v4798
    %4815 = vst [vmem:[#allocation2 + $0x630] sm:$0xff] %v4799
    %4816 = vst [vmem:[#allocation2 + $0x638] sm:$0xff] %v4800
    %4817 = vst [vmem:[#allocation2 + $0x660] sm:$0xff] %v4801
    %4818 = vst [vmem:[#allocation2 + $0x668] sm:$0xff] %v4802
    %4819 = vst [vmem:[#allocation2 + $0x690] sm:$0xff] %v4803
    %4820 = vst [vmem:[#allocation2 + $0x698] sm:$0xff] %v4804
    %v4821 = vld [vmem:[%s27] sm:$0xff]
    %v4822 = vld [vmem:[%s27 + $0x8] sm:$0xf]
    %v4823 = vld [vmem:[%s27 + $0xc] sm:$0xff]
    %v4824 = vld [vmem:[%s27 + $0x14] sm:$0xf]
    %v4825 = vld [vmem:[#allocation2] sm:$0xff]
    %v4826 = vld [vmem:[#allocation2 + $0x8] sm:$0xff]
    %v4827 = vld [vmem:[#allocation2 + $0x30] sm:$0xff]
    %v4828 = vld [vmem:[#allocation2 + $0x38] sm:$0xff]
    %v4829 = vld [vmem:[#allocation2 + $0x60] sm:$0xff]
    %v4830 = vld [vmem:[#allocation2 + $0x68] sm:$0xff]
    %v4831 = vld [vmem:[#allocation2 + $0x90] sm:$0xff]
    %v4832 = vld [vmem:[#allocation2 + $0x98] sm:$0xff]
    %v4833 = vld [vmem:[#allocation2 + $0xc0] sm:$0xff]
    %v4834 = vld [vmem:[#allocation2 + $0xc8] sm:$0xff]
    %v4835 = vld [vmem:[#allocation2 + $0xf0] sm:$0xff]
    %v4836 = vld [vmem:[#allocation2 + $0xf8] sm:$0xff]
    %v4837 = vld [vmem:[#allocation2 + $0x120] sm:$0xff]
    %v4838 = vld [vmem:[#allocation2 + $0x128] sm:$0xff]
    %v4839 = vld [vmem:[#allocation2 + $0x150] sm:$0xff]
    %v4840 = vld [vmem:[#allocation2 + $0x158] sm:$0xff]
    %v4841 = vld [vmem:[#allocation2 + $0x180] sm:$0xff]
    %v4842 = vld [vmem:[#allocation2 + $0x188] sm:$0xff]
    %v4843 = vld [vmem:[#allocation2 + $0x1b0] sm:$0xff]
    %v4844 = vld [vmem:[#allocation2 + $0x1b8] sm:$0xff]
    %v4845 = vld [vmem:[#allocation2 + $0x1e0] sm:$0xff]
    %v4846 = vld [vmem:[#allocation2 + $0x1e8] sm:$0xff]
    %v4847 = vld [vmem:[#allocation2 + $0x210] sm:$0xff]
    %v4848 = vld [vmem:[#allocation2 + $0x218] sm:$0xff]
    %v4849 = vld [vmem:[#allocation2 + $0x240] sm:$0xff]
    %v4850 = vld [vmem:[#allocation2 + $0x248] sm:$0xff]
    %v4851 = vld [vmem:[#allocation2 + $0x270] sm:$0xff]
    %v4852 = vld [vmem:[#allocation2 + $0x278] sm:$0xff]
    %v4853 = vld [vmem:[#allocation2 + $0x2a0] sm:$0xff]
    %v4854 = vld [vmem:[#allocation2 + $0x2a8] sm:$0xff]
    %v4855 = vld [vmem:[#allocation2 + $0x2d0] sm:$0xff]
    %v4856 = vld [vmem:[#allocation2 + $0x2d8] sm:$0xff]
    %v4857 = vld [vmem:[#allocation2 + $0x300] sm:$0xff]
    %v4858 = vld [vmem:[#allocation2 + $0x308] sm:$0xff]
    %v4859 = vld [vmem:[#allocation2 + $0x330] sm:$0xff]
    %v4860 = vld [vmem:[#allocation2 + $0x338] sm:$0xff]
    %v4861 = vld [vmem:[#allocation2 + $0x360] sm:$0xff]
    %v4862 = vld [vmem:[#allocation2 + $0x368] sm:$0xff]
    %v4863 = vld [vmem:[#allocation2 + $0x390] sm:$0xff]
    %v4864 = vld [vmem:[#allocation2 + $0x398] sm:$0xff]
    %v4865 = vld [vmem:[#allocation2 + $0x3c0] sm:$0xff]
    %v4866 = vld [vmem:[#allocation2 + $0x3c8] sm:$0xff]
    %v4867 = vld [vmem:[#allocation2 + $0x3f0] sm:$0xff]
    %v4868 = vld [vmem:[#allocation2 + $0x3f8] sm:$0xff]
    %v4869 = vld [vmem:[#allocation2 + $0x420] sm:$0xff]
    %v4870 = vld [vmem:[#allocation2 + $0x428] sm:$0xff]
    %v4871 = vld [vmem:[#allocation2 + $0x450] sm:$0xff]
    %v4872 = vld [vmem:[#allocation2 + $0x458] sm:$0xff]
    %v4873 = vld [vmem:[#allocation2 + $0x480] sm:$0xff]
    %v4874 = vld [vmem:[#allocation2 + $0x488] sm:$0xff]
    %v4875 = vld [vmem:[#allocation2 + $0x4b0] sm:$0xff]
    %v4876 = vld [vmem:[#allocation2 + $0x4b8] sm:$0xff]
    %v4877 = vld [vmem:[#allocation2 + $0x4e0] sm:$0xff]
    %v4878 = vld [vmem:[#allocation2 + $0x4e8] sm:$0xff]
    %v4879 = vld [vmem:[#allocation2 + $0x510] sm:$0xff]
    %v4880 = vld [vmem:[#allocation2 + $0x518] sm:$0xff]
    %v4881 = vld [vmem:[#allocation2 + $0x540] sm:$0xff]
    %v4882 = vld [vmem:[#allocation2 + $0x548] sm:$0xff]
    %v4883 = vld [vmem:[#allocation2 + $0x570] sm:$0xff]
    %v4884 = vld [vmem:[#allocation2 + $0x578] sm:$0xff]
    %v4885 = vld [vmem:[#allocation2 + $0x5a0] sm:$0xff]
    %v4886 = vld [vmem:[#allocation2 + $0x5a8] sm:$0xff]
    %v4887 = vld [vmem:[#allocation2 + $0x5d0] sm:$0xff]
    %v4888 = vld [vmem:[#allocation2 + $0x5d8] sm:$0xff]
    %v4889 = vld [vmem:[#allocation2 + $0x600] sm:$0xff]
    %v4890 = vld [vmem:[#allocation2 + $0x608] sm:$0xff]
    %v4891 = vld [vmem:[#allocation2 + $0x630] sm:$0xff]
    %v4892 = vld [vmem:[#allocation2 + $0x638] sm:$0xff]
    %v4893 = vld [vmem:[#allocation2 + $0x660] sm:$0xff]
    %v4894 = vld [vmem:[#allocation2 + $0x668] sm:$0xff]
    %v4895 = vld [vmem:[#allocation2 + $0x690] sm:$0xff]
    %v4896 = vld [vmem:[#allocation2 + $0x698] sm:$0xff]
    %v4897 = vpack.c.bf16 %v4827, %v4825
    %v4898 = vpack.c.bf16 %v4828, %v4826
    %v4899 = vpack.c.bf16 %v4831, %v4829
    %v4900 = vpack.c.bf16 %v4832, %v4830
    %v4901 = vpack.c.bf16 %v4835, %v4833
    %v4902 = vpack.c.bf16 %v4836, %v4834
    %v4903 = vpack.c.bf16 %v4839, %v4837
    %v4904 = vpack.c.bf16 %v4840, %v4838
    %v4905 = vpack.c.bf16 %v4843, %v4841
    %v4906 = vpack.c.bf16 %v4844, %v4842
    %v4907 = vpack.c.bf16 %v4847, %v4845
    %v4908 = vpack.c.bf16 %v4848, %v4846
    %v4909 = vpack.c.bf16 %v4851, %v4849
    %v4910 = vpack.c.bf16 %v4852, %v4850
    %v4911 = vpack.c.bf16 %v4855, %v4853
    %v4912 = vpack.c.bf16 %v4856, %v4854
    %v4913 = vpack.c.bf16 %v4859, %v4857
    %v4914 = vpack.c.bf16 %v4860, %v4858
    %v4915 = vpack.c.bf16 %v4863, %v4861
    %v4916 = vpack.c.bf16 %v4864, %v4862
    %v4917 = vpack.c.bf16 %v4867, %v4865
    %v4918 = vpack.c.bf16 %v4868, %v4866
    %v4919 = vpack.c.bf16 %v4871, %v4869
    %v4920 = vpack.c.bf16 %v4872, %v4870
    %v4921 = vpack.c.bf16 %v4875, %v4873
    %v4922 = vpack.c.bf16 %v4876, %v4874
    %v4923 = vpack.c.bf16 %v4879, %v4877
    %v4924 = vpack.c.bf16 %v4880, %v4878
    %v4925 = vpack.c.bf16 %v4883, %v4881
    %v4926 = vpack.c.bf16 %v4884, %v4882
    %v4927 = vpack.c.bf16 %v4887, %v4885
    %v4928 = vpack.c.bf16 %v4888, %v4886
    %v4929 = vpack.c.bf16 %v4891, %v4889
    %v4930 = vpack.c.bf16 %v4892, %v4890
    %v4931 = vpack.c.bf16 %v4895, %v4893
    %v4932 = vpack.c.bf16 %v4896, %v4894
    %v4933 = vld [vmem:[%s29] sm:$0xff]
    %v4934 = vld [vmem:[%s29 + $0x8] sm:$0xff]
    %4936 = vset.pattern.permute.xlu0 0
    %4937 = vperm.xlu0 %4936, %v4933
    %v4938 = vpop.permute.xlu0 %4937
    %4941 = vset.pattern.permute.xlu0 0
    %4942 = vperm.xlu0 %4941, %v4934
    %v4943 = vpop.permute.xlu0 %4942
    %v4949 = vunpack.c.l.b16 %v4821
    %v4950 = vunpack.c.h.b16 %v4821
    %v4951 = vunpack.c.l.b16 %v4822
    %v4952 = vunpack.c.l.b16 %v4823
    %v4953 = vunpack.c.h.b16 %v4823
    %v4954 = vunpack.c.l.b16 %v4824
    %v4955 = vpack.c.b16 %v4952, %v4949
    %v4956 = vpack.c.b16 %v4953, %v4950
    %v4957 = vpack.c.b16 %v4954, %v4951
    %v4961 = vsel %vm4001, %v4957, 0
    %4963 = vmatpush.bf16.msra.mxu0 %v4911
    %4964 = vmatpush.bf16.msra.mxu0 %v4909
    %4965 = vmatpush.bf16.msra.mxu0 %v4907
    %4966 = vmatpush.bf16.msra.mxu0 %v4905
    %4967 = vmatpush.bf16.msra.mxu0 %v4903
    %4968 = vmatpush.bf16.msra.mxu0 %v4901
    %4969 = vmatpush.bf16.msra.mxu0 %v4899
    %4970 = vmatpush.bf16.msra.mxu0 %v4897
    %4971 = vmatmul.bf16.gmra.mxu0 %v4955
    %v4972 = vpop.f32.mrf.mxu0
    %v4973 = vadd.f32 %v4938, %v4972
    %v4974 = vpop.f32.mrf.mxu0
    %v4975 = vadd.f32 %v4943, %v4974
    %4976 = vdwg.mxu0
    %4977 = vmatpush.bf16.msra.mxu0 %v4927
    %4978 = vmatpush.bf16.msra.mxu0 %v4925
    %4979 = vmatpush.bf16.msra.mxu0 %v4923
    %4980 = vmatpush.bf16.msra.mxu0 %v4921
    %4981 = vmatpush.bf16.msra.mxu0 %v4919
    %4982 = vmatpush.bf16.msra.mxu0 %v4917
    %4983 = vmatpush.bf16.msra.mxu0 %v4915
    %4984 = vmatpush.bf16.msra.mxu0 %v4913
    %4985 = vmatmul.bf16.gmra.mxu0 %v4956
    %v4986 = vpop.f32.mrf.mxu0
    %v4987 = vadd.f32 %v4973, %v4986
    %v4988 = vpop.f32.mrf.mxu0
    %v4989 = vadd.f32 %v4975, %v4988
    %4990 = vdwg.mxu0
    %4991 = vmatpush.bf16.msra.mxu0 0
    %4992 = vmatpush.bf16.msra.mxu0 0
    %4993 = vmatpush.bf16.msra.mxu0 0
    %4994 = vmatpush.bf16.msra.mxu0 0
    %4995 = vmatpush.bf16.msra.mxu0 0
    %4996 = vmatpush.bf16.msra.mxu0 0
    %4997 = vmatpush.bf16.msra.mxu0 %v4931
    %4998 = vmatpush.bf16.msra.mxu0 %v4929
    %4999 = vmatmul.bf16.gmra.mxu0 %v4961
    %v5000 = vpop.f32.mrf.mxu0
    %v5001 = vadd.f32 %v4987, %v5000
    %v5002 = vpop.f32.mrf.mxu0
    %v5003 = vadd.f32 %v4989, %v5002
    %5004 = vdwg.mxu0
    %5005 = vmatpush.bf16.msra.mxu0 %v4912
    %5006 = vmatpush.bf16.msra.mxu0 %v4910
    %5007 = vmatpush.bf16.msra.mxu0 %v4908
    %5008 = vmatpush.bf16.msra.mxu0 %v4906
    %5009 = vmatpush.bf16.msra.mxu0 %v4904
    %5010 = vmatpush.bf16.msra.mxu0 %v4902
    %5011 = vmatpush.bf16.msra.mxu0 %v4900
    %5012 = vmatpush.bf16.msra.mxu0 %v4898
    %5013 = vmatmul.bf16.gmra.mxu0 %v4955
    %v5014 = vpop.f32.mrf.mxu0
    %v5015 = vadd.f32 %v4938, %v5014
    %v5016 = vpop.f32.mrf.mxu0
    %v5017 = vadd.f32 %v4943, %v5016
    %5018 = vdwg.mxu0
    %5019 = vmatpush.bf16.msra.mxu0 %v4928
    %5020 = vmatpush.bf16.msra.mxu0 %v4926
    %5021 = vmatpush.bf16.msra.mxu0 %v4924
    %5022 = vmatpush.bf16.msra.mxu0 %v4922
    %5023 = vmatpush.bf16.msra.mxu0 %v4920
    %5024 = vmatpush.bf16.msra.mxu0 %v4918
    %5025 = vmatpush.bf16.msra.mxu0 %v4916
    %5026 = vmatpush.bf16.msra.mxu0 %v4914
    %5027 = vmatmul.bf16.gmra.mxu0 %v4956
    %v5028 = vpop.f32.mrf.mxu0
    %v5029 = vadd.f32 %v5015, %v5028
    %v5030 = vpop.f32.mrf.mxu0
    %v5031 = vadd.f32 %v5017, %v5030
    %5032 = vdwg.mxu0
    %5033 = vmatpush.bf16.msra.mxu0 0
    %5034 = vmatpush.bf16.msra.mxu0 0
    %5035 = vmatpush.bf16.msra.mxu0 0
    %5036 = vmatpush.bf16.msra.mxu0 0
    %5037 = vmatpush.bf16.msra.mxu0 0
    %5038 = vmatpush.bf16.msra.mxu0 0
    %5039 = vmatpush.bf16.msra.mxu0 %v4932
    %5040 = vmatpush.bf16.msra.mxu0 %v4930
    %5041 = vmatmul.bf16.gmra.mxu0 %v4961
    %v5042 = vpop.f32.mrf.mxu0
    %v5043 = vadd.f32 %v5029, %v5042
    %v5044 = vpop.f32.mrf.mxu0
    %v5045 = vadd.f32 %v5031, %v5044
    %5046 = vdwg.mxu0
    %v5047 = vmax.f32 %v5001, 0.0
    %v5048 = vmax.f32 %v5043, 0.0
    %v5049 = vmax.f32 %v5003, 0.0
    %v5050 = vmax.f32 %v5045, 0.0
    %v5051 = vld [vmem:[%s49] sm:$0x3]
    %v5053 = vperm.slane %v5051, 0
    %v5054 = vperm.slane %v5051, 1
    %v5057 = vmul.f32 %v5047, %v5053
    %v5058 = vmul.f32 %v5048, %v5054
    %v5059 = vmul.f32 %v5049, %v5053
    %v5060 = vmul.f32 %v5050, %v5054
    %5061 = vst [vmem:[#allocation12 + $0x8] sm:$0xff] %v5057
    %5062 = vst [vmem:[#allocation12 + $0x10] sm:$0xff] %v5058
    %5063 = vst [vmem:[#allocation12 + $0x28] sm:$0xff] %v5059
    %5064 = vst [vmem:[#allocation12 + $0x30] sm:$0xff] %v5060
    %v5065 = vld [vmem:[#allocation12] sm:$0xff]
    %v5066 = vld [vmem:[#allocation12 + $0x8] sm:$0xff]
    %v5067 = vld [vmem:[#allocation12 + $0x10] sm:$0xff]
    %v5068 = vld [vmem:[#allocation12 + $0x20] sm:$0xff]
    %v5069 = vld [vmem:[#allocation12 + $0x28] sm:$0xff]
    %v5070 = vld [vmem:[#allocation12 + $0x30] sm:$0xff]
    %5077 = vrot.lane.b32.xlu0 %v5065, 11
    %v5078 = vpop.permute.xlu0 %5077
    %5079 = vrot.lane.b32.xlu0 %v5066, 11
    %v5080 = vpop.permute.xlu0 %5079
    %5081 = vrot.lane.b32.xlu0 %v5067, 11
    %v5082 = vpop.permute.xlu0 %5081
    %5083 = vrot.lane.b32.xlu0 %v5068, 11
    %v5084 = vpop.permute.xlu0 %5083
    %5085 = vrot.lane.b32.xlu0 %v5069, 11
    %v5086 = vpop.permute.xlu0 %5085
    %5087 = vrot.lane.b32.xlu0 %v5070, 11
    %v5088 = vpop.permute.xlu0 %5087
    %v5089 = vsel %vm2273, %v5078, %v5080
    %v5090 = vsel %vm2273, %v5080, %v5082
    %v5091 = vsel %vm2273, %v5084, %v5086
    %v5092 = vsel %vm2273, %v5086, %v5088
    %5097 = vst [vmem:[#allocation2] sm:$0xff] %v5089
    %5098 = vst [vmem:[#allocation2 + $0x8] sm:$0xff] %v5090
    %5099 = vst [vmem:[#allocation2 + $0x30] sm:$0xff] %v5091
    %5100 = vst [vmem:[#allocation2 + $0x38] sm:$0xff] %v5092
    %v5101 = vld [vmem:[#allocation12] sm:$0xff]
    %v5102 = vld [vmem:[#allocation12 + $0x8] sm:$0xff]
    %v5103 = vld [vmem:[#allocation12 + $0x10] sm:$0xff]
    %v5104 = vld [vmem:[#allocation12 + $0x20] sm:$0xff]
    %v5105 = vld [vmem:[#allocation12 + $0x28] sm:$0xff]
    %v5106 = vld [vmem:[#allocation12 + $0x30] sm:$0xff]
    %5113 = vrot.lane.b32.xlu0 %v5101, 10
    %v5114 = vpop.permute.xlu0 %5113
    %5115 = vrot.lane.b32.xlu0 %v5102, 10
    %v5116 = vpop.permute.xlu0 %5115
    %5117 = vrot.lane.b32.xlu0 %v5103, 10
    %v5118 = vpop.permute.xlu0 %5117
    %5119 = vrot.lane.b32.xlu0 %v5104, 10
    %v5120 = vpop.permute.xlu0 %5119
    %5121 = vrot.lane.b32.xlu0 %v5105, 10
    %v5122 = vpop.permute.xlu0 %5121
    %5123 = vrot.lane.b32.xlu0 %v5106, 10
    %v5124 = vpop.permute.xlu0 %5123
    %v5125 = vsel %vm2292, %v5114, %v5116
    %v5126 = vsel %vm2292, %v5116, %v5118
    %v5127 = vsel %vm2292, %v5120, %v5122
    %v5128 = vsel %vm2292, %v5122, %v5124
    %5133 = vst [vmem:[#allocation2 + $0x60] sm:$0xff] %v5125
    %5134 = vst [vmem:[#allocation2 + $0x68] sm:$0xff] %v5126
    %5135 = vst [vmem:[#allocation2 + $0x90] sm:$0xff] %v5127
    %5136 = vst [vmem:[#allocation2 + $0x98] sm:$0xff] %v5128
    %v5137 = vld [vmem:[#allocation12] sm:$0xff]
    %v5138 = vld [vmem:[#allocation12 + $0x8] sm:$0xff]
    %v5139 = vld [vmem:[#allocation12 + $0x10] sm:$0xff]
    %v5140 = vld [vmem:[#allocation12 + $0x20] sm:$0xff]
    %v5141 = vld [vmem:[#allocation12 + $0x28] sm:$0xff]
    %v5142 = vld [vmem:[#allocation12 + $0x30] sm:$0xff]
    %5149 = vrot.lane.b32.xlu0 %v5137, 9
    %v5150 = vpop.permute.xlu0 %5149
    %5151 = vrot.lane.b32.xlu0 %v5138, 9
    %v5152 = vpop.permute.xlu0 %5151
    %5153 = vrot.lane.b32.xlu0 %v5139, 9
    %v5154 = vpop.permute.xlu0 %5153
    %5155 = vrot.lane.b32.xlu0 %v5140, 9
    %v5156 = vpop.permute.xlu0 %5155
    %5157 = vrot.lane.b32.xlu0 %v5141, 9
    %v5158 = vpop.permute.xlu0 %5157
    %5159 = vrot.lane.b32.xlu0 %v5142, 9
    %v5160 = vpop.permute.xlu0 %5159
    %v5161 = vsel %vm2311, %v5150, %v5152
    %v5162 = vsel %vm2311, %v5152, %v5154
    %v5163 = vsel %vm2311, %v5156, %v5158
    %v5164 = vsel %vm2311, %v5158, %v5160
    %5169 = vst [vmem:[#allocation2 + $0xc0] sm:$0xff] %v5161
    %5170 = vst [vmem:[#allocation2 + $0xc8] sm:$0xff] %v5162
    %5171 = vst [vmem:[#allocation2 + $0xf0] sm:$0xff] %v5163
    %5172 = vst [vmem:[#allocation2 + $0xf8] sm:$0xff] %v5164
    %v5173 = vld [vmem:[#allocation12] sm:$0xff]
    %v5174 = vld [vmem:[#allocation12 + $0x8] sm:$0xff]
    %v5175 = vld [vmem:[#allocation12 + $0x10] sm:$0xff]
    %v5176 = vld [vmem:[#allocation12 + $0x20] sm:$0xff]
    %v5177 = vld [vmem:[#allocation12 + $0x28] sm:$0xff]
    %v5178 = vld [vmem:[#allocation12 + $0x30] sm:$0xff]
    %5185 = vrot.lane.b32.xlu0 %v5173, 1
    %v5186 = vpop.permute.xlu0 %5185
    %5187 = vrot.lane.b32.xlu0 %v5174, 1
    %v5188 = vpop.permute.xlu0 %5187
    %5189 = vrot.lane.b32.xlu0 %v5175, 1
    %v5190 = vpop.permute.xlu0 %5189
    %5191 = vrot.lane.b32.xlu0 %v5176, 1
    %v5192 = vpop.permute.xlu0 %5191
    %5193 = vrot.lane.b32.xlu0 %v5177, 1
    %v5194 = vpop.permute.xlu0 %5193
    %5195 = vrot.lane.b32.xlu0 %v5178, 1
    %v5196 = vpop.permute.xlu0 %5195
    %v5197 = vsel %vm982, %v5186, %v5188
    %v5198 = vsel %vm982, %v5188, %v5190
    %v5199 = vsel %vm982, %v5192, %v5194
    %v5200 = vsel %vm982, %v5194, %v5196
    %5205 = vst [vmem:[#allocation2 + $0x120] sm:$0xff] %v5197
    %5206 = vst [vmem:[#allocation2 + $0x128] sm:$0xff] %v5198
    %5207 = vst [vmem:[#allocation2 + $0x150] sm:$0xff] %v5199
    %5208 = vst [vmem:[#allocation2 + $0x158] sm:$0xff] %v5200
    %v5209 = vld [vmem:[#allocation12 + $0x8] sm:$0xff]
    %v5210 = vld [vmem:[#allocation12 + $0x10] sm:$0xff]
    %v5211 = vld [vmem:[#allocation12 + $0x28] sm:$0xff]
    %v5212 = vld [vmem:[#allocation12 + $0x30] sm:$0xff]
    %5213 = vst [vmem:[#allocation2 + $0x180] sm:$0xff] %v5209
    %5214 = vst [vmem:[#allocation2 + $0x188] sm:$0xff] %v5210
    %5215 = vst [vmem:[#allocation2 + $0x1b0] sm:$0xff] %v5211
    %5216 = vst [vmem:[#allocation2 + $0x1b8] sm:$0xff] %v5212
    %v5217 = vld [vmem:[#allocation12 + $0x8] sm:$0xff]
    %v5218 = vld [vmem:[#allocation12 + $0x10] sm:$0xff]
    %v5219 = vld [vmem:[#allocation12 + $0x18] sm:$0xff]
    %v5220 = vld [vmem:[#allocation12 + $0x28] sm:$0xff]
    %v5221 = vld [vmem:[#allocation12 + $0x30] sm:$0xff]
    %v5222 = vld [vmem:[#allocation12 + $0x38] sm:$0xff]
    %5229 = vrot.lane.b32.xlu0 %v5217, 127
    %v5230 = vpop.permute.xlu0 %5229
    %5231 = vrot.lane.b32.xlu0 %v5218, 127
    %v5232 = vpop.permute.xlu0 %5231
    %5233 = vrot.lane.b32.xlu0 %v5219, 127
    %v5234 = vpop.permute.xlu0 %5233
    %5235 = vrot.lane.b32.xlu0 %v5220, 127
    %v5236 = vpop.permute.xlu0 %5235
    %5237 = vrot.lane.b32.xlu0 %v5221, 127
    %v5238 = vpop.permute.xlu0 %5237
    %5239 = vrot.lane.b32.xlu0 %v5222, 127
    %v5240 = vpop.permute.xlu0 %5239
    %v5241 = vsel %vm298, %v5230, %v5232
    %v5242 = vsel %vm298, %v5232, %v5234
    %v5243 = vsel %vm298, %v5236, %v5238
    %v5244 = vsel %vm298, %v5238, %v5240
    %5249 = vst [vmem:[#allocation2 + $0x1e0] sm:$0xff] %v5241
    %5250 = vst [vmem:[#allocation2 + $0x1e8] sm:$0xff] %v5242
    %5251 = vst [vmem:[#allocation2 + $0x210] sm:$0xff] %v5243
    %5252 = vst [vmem:[#allocation2 + $0x218] sm:$0xff] %v5244
    %v5253 = vld [vmem:[#allocation12 + $0x8] sm:$0xff]
    %v5254 = vld [vmem:[#allocation12 + $0x10] sm:$0xff]
    %v5255 = vld [vmem:[#allocation12 + $0x18] sm:$0xff]
    %v5256 = vld [vmem:[#allocation12 + $0x28] sm:$0xff]
    %v5257 = vld [vmem:[#allocation12 + $0x30] sm:$0xff]
    %v5258 = vld [vmem:[#allocation12 + $0x38] sm:$0xff]
    %5265 = vrot.lane.b32.xlu0 %v5253, 119
    %v5266 = vpop.permute.xlu0 %5265
    %5267 = vrot.lane.b32.xlu0 %v5254, 119
    %v5268 = vpop.permute.xlu0 %5267
    %5269 = vrot.lane.b32.xlu0 %v5255, 119
    %v5270 = vpop.permute.xlu0 %5269
    %5271 = vrot.lane.b32.xlu0 %v5256, 119
    %v5272 = vpop.permute.xlu0 %5271
    %5273 = vrot.lane.b32.xlu0 %v5257, 119
    %v5274 = vpop.permute.xlu0 %5273
    %5275 = vrot.lane.b32.xlu0 %v5258, 119
    %v5276 = vpop.permute.xlu0 %5275
    %v5277 = vsel %vm2370, %v5266, %v5268
    %v5278 = vsel %vm2370, %v5268, %v5270
    %v5279 = vsel %vm2370, %v5272, %v5274
    %v5280 = vsel %vm2370, %v5274, %v5276
    %5285 = vst [vmem:[#allocation2 + $0x240] sm:$0xff] %v5277
    %5286 = vst [vmem:[#allocation2 + $0x248] sm:$0xff] %v5278
    %5287 = vst [vmem:[#allocation2 + $0x270] sm:$0xff] %v5279
    %5288 = vst [vmem:[#allocation2 + $0x278] sm:$0xff] %v5280
    %v5289 = vld [vmem:[#allocation12 + $0x8] sm:$0xff]
    %v5290 = vld [vmem:[#allocation12 + $0x10] sm:$0xff]
    %v5291 = vld [vmem:[#allocation12 + $0x18] sm:$0xff]
    %v5292 = vld [vmem:[#allocation12 + $0x28] sm:$0xff]
    %v5293 = vld [vmem:[#allocation12 + $0x30] sm:$0xff]
    %v5294 = vld [vmem:[#allocation12 + $0x38] sm:$0xff]
    %5301 = vrot.lane.b32.xlu0 %v5289, 118
    %v5302 = vpop.permute.xlu0 %5301
    %5303 = vrot.lane.b32.xlu0 %v5290, 118
    %v5304 = vpop.permute.xlu0 %5303
    %5305 = vrot.lane.b32.xlu0 %v5291, 118
    %v5306 = vpop.permute.xlu0 %5305
    %5307 = vrot.lane.b32.xlu0 %v5292, 118
    %v5308 = vpop.permute.xlu0 %5307
    %5309 = vrot.lane.b32.xlu0 %v5293, 118
    %v5310 = vpop.permute.xlu0 %5309
    %5311 = vrot.lane.b32.xlu0 %v5294, 118
    %v5312 = vpop.permute.xlu0 %5311
    %v5313 = vsel %vm2389, %v5302, %v5304
    %v5314 = vsel %vm2389, %v5304, %v5306
    %v5315 = vsel %vm2389, %v5308, %v5310
    %v5316 = vsel %vm2389, %v5310, %v5312
    %5321 = vst [vmem:[#allocation2 + $0x2a0] sm:$0xff] %v5313
    %5322 = vst [vmem:[#allocation2 + $0x2a8] sm:$0xff] %v5314
    %5323 = vst [vmem:[#allocation2 + $0x2d0] sm:$0xff] %v5315
    %5324 = vst [vmem:[#allocation2 + $0x2d8] sm:$0xff] %v5316
    %v5325 = vld [vmem:[#allocation12 + $0x8] sm:$0xff]
    %v5326 = vld [vmem:[#allocation12 + $0x10] sm:$0xff]
    %v5327 = vld [vmem:[#allocation12 + $0x18] sm:$0xff]
    %v5328 = vld [vmem:[#allocation12 + $0x28] sm:$0xff]
    %v5329 = vld [vmem:[#allocation12 + $0x30] sm:$0xff]
    %v5330 = vld [vmem:[#allocation12 + $0x38] sm:$0xff]
    %5337 = vrot.lane.b32.xlu0 %v5325, 117
    %v5338 = vpop.permute.xlu0 %5337
    %5339 = vrot.lane.b32.xlu0 %v5326, 117
    %v5340 = vpop.permute.xlu0 %5339
    %5341 = vrot.lane.b32.xlu0 %v5327, 117
    %v5342 = vpop.permute.xlu0 %5341
    %5343 = vrot.lane.b32.xlu0 %v5328, 117
    %v5344 = vpop.permute.xlu0 %5343
    %5345 = vrot.lane.b32.xlu0 %v5329, 117
    %v5346 = vpop.permute.xlu0 %5345
    %5347 = vrot.lane.b32.xlu0 %v5330, 117
    %v5348 = vpop.permute.xlu0 %5347
    %v5349 = vsel %vm2408, %v5338, %v5340
    %v5350 = vsel %vm2408, %v5340, %v5342
    %v5351 = vsel %vm2408, %v5344, %v5346
    %v5352 = vsel %vm2408, %v5346, %v5348
    %5357 = vst [vmem:[#allocation2 + $0x300] sm:$0xff] %v5349
    %5358 = vst [vmem:[#allocation2 + $0x308] sm:$0xff] %v5350
    %5359 = vst [vmem:[#allocation2 + $0x330] sm:$0xff] %v5351
    %5360 = vst [vmem:[#allocation2 + $0x338] sm:$0xff] %v5352
    %v5361 = vld [vmem:[%s31] sm:$0xff]
    %v5362 = vld [vmem:[%s31 + $0x8] sm:$0xff]
    %v5363 = vld [vmem:[#allocation2] sm:$0xff]
    %v5364 = vld [vmem:[#allocation2 + $0x8] sm:$0xff]
    %v5365 = vld [vmem:[#allocation2 + $0x30] sm:$0xff]
    %v5366 = vld [vmem:[#allocation2 + $0x38] sm:$0xff]
    %v5367 = vld [vmem:[#allocation2 + $0x60] sm:$0xff]
    %v5368 = vld [vmem:[#allocation2 + $0x68] sm:$0xff]
    %v5369 = vld [vmem:[#allocation2 + $0x90] sm:$0xff]
    %v5370 = vld [vmem:[#allocation2 + $0x98] sm:$0xff]
    %v5371 = vld [vmem:[#allocation2 + $0xc0] sm:$0xff]
    %v5372 = vld [vmem:[#allocation2 + $0xc8] sm:$0xff]
    %v5373 = vld [vmem:[#allocation2 + $0xf0] sm:$0xff]
    %v5374 = vld [vmem:[#allocation2 + $0xf8] sm:$0xff]
    %v5375 = vld [vmem:[#allocation2 + $0x120] sm:$0xff]
    %v5376 = vld [vmem:[#allocation2 + $0x128] sm:$0xff]
    %v5377 = vld [vmem:[#allocation2 + $0x150] sm:$0xff]
    %v5378 = vld [vmem:[#allocation2 + $0x158] sm:$0xff]
    %v5379 = vld [vmem:[#allocation2 + $0x180] sm:$0xff]
    %v5380 = vld [vmem:[#allocation2 + $0x188] sm:$0xff]
    %v5381 = vld [vmem:[#allocation2 + $0x1b0] sm:$0xff]
    %v5382 = vld [vmem:[#allocation2 + $0x1b8] sm:$0xff]
    %v5383 = vld [vmem:[#allocation2 + $0x1e0] sm:$0xff]
    %v5384 = vld [vmem:[#allocation2 + $0x1e8] sm:$0xff]
    %v5385 = vld [vmem:[#allocation2 + $0x210] sm:$0xff]
    %v5386 = vld [vmem:[#allocation2 + $0x218] sm:$0xff]
    %v5387 = vld [vmem:[#allocation2 + $0x240] sm:$0xff]
    %v5388 = vld [vmem:[#allocation2 + $0x248] sm:$0xff]
    %v5389 = vld [vmem:[#allocation2 + $0x270] sm:$0xff]
    %v5390 = vld [vmem:[#allocation2 + $0x278] sm:$0xff]
    %v5391 = vld [vmem:[#allocation2 + $0x2a0] sm:$0xff]
    %v5392 = vld [vmem:[#allocation2 + $0x2a8] sm:$0xff]
    %v5393 = vld [vmem:[#allocation2 + $0x2d0] sm:$0xff]
    %v5394 = vld [vmem:[#allocation2 + $0x2d8] sm:$0xff]
    %v5395 = vld [vmem:[#allocation2 + $0x300] sm:$0xff]
    %v5396 = vld [vmem:[#allocation2 + $0x308] sm:$0xff]
    %v5397 = vld [vmem:[#allocation2 + $0x330] sm:$0xff]
    %v5398 = vld [vmem:[#allocation2 + $0x338] sm:$0xff]
    %v5399 = vpack.c.bf16 %v5365, %v5363
    %v5400 = vpack.c.bf16 %v5366, %v5364
    %v5401 = vpack.c.bf16 %v5369, %v5367
    %v5402 = vpack.c.bf16 %v5370, %v5368
    %v5403 = vpack.c.bf16 %v5373, %v5371
    %v5404 = vpack.c.bf16 %v5374, %v5372
    %v5405 = vpack.c.bf16 %v5377, %v5375
    %v5406 = vpack.c.bf16 %v5378, %v5376
    %v5407 = vpack.c.bf16 %v5381, %v5379
    %v5408 = vpack.c.bf16 %v5382, %v5380
    %v5409 = vpack.c.bf16 %v5385, %v5383
    %v5410 = vpack.c.bf16 %v5386, %v5384
    %v5411 = vpack.c.bf16 %v5389, %v5387
    %v5412 = vpack.c.bf16 %v5390, %v5388
    %v5413 = vpack.c.bf16 %v5393, %v5391
    %v5414 = vpack.c.bf16 %v5394, %v5392
    %v5415 = vpack.c.bf16 %v5397, %v5395
    %v5416 = vpack.c.bf16 %v5398, %v5396
    %v5417 = vld [vmem:[%s33] sm:$0xff]
    %v5418 = vld [vmem:[%s33 + $0x8] sm:$0xff]
    %5420 = vset.pattern.permute.xlu0 0
    %5421 = vperm.xlu0 %5420, %v5417
    %v5422 = vpop.permute.xlu0 %5421
    %5425 = vset.pattern.permute.xlu0 0
    %5426 = vperm.xlu0 %5425, %v5418
    %v5427 = vpop.permute.xlu0 %5426
    %v5431 = vunpack.c.l.b16 %v5361
    %v5432 = vunpack.c.h.b16 %v5361
    %v5433 = vunpack.c.l.b16 %v5362
    %v5434 = vunpack.c.h.b16 %v5362
    %v5435 = vpack.c.b16 %v5433, %v5431
    %v5436 = vpack.c.b16 %v5434, %v5432
    %v5439 = vsel %vm2890, %v5436, 0
    %5441 = vmatpush.bf16.msra.mxu0 %v5413
    %5442 = vmatpush.bf16.msra.mxu0 %v5411
    %5443 = vmatpush.bf16.msra.mxu0 %v5409
    %5444 = vmatpush.bf16.msra.mxu0 %v5407
    %5445 = vmatpush.bf16.msra.mxu0 %v5405
    %5446 = vmatpush.bf16.msra.mxu0 %v5403
    %5447 = vmatpush.bf16.msra.mxu0 %v5401
    %5448 = vmatpush.bf16.msra.mxu0 %v5399
    %5449 = vmatmul.bf16.gmra.mxu0 %v5435
    %v5450 = vpop.f32.mrf.mxu0
    %v5451 = vadd.f32 %v5422, %v5450
    %v5452 = vpop.f32.mrf.mxu0
    %v5453 = vadd.f32 %v5427, %v5452
    %5454 = vdwg.mxu0
    %5455 = vmatpush.bf16.msra.mxu0 0
    %5456 = vmatpush.bf16.msra.mxu0 0
    %5457 = vmatpush.bf16.msra.mxu0 0
    %5458 = vmatpush.bf16.msra.mxu0 0
    %5459 = vmatpush.bf16.msra.mxu0 0
    %5460 = vmatpush.bf16.msra.mxu0 0
    %5461 = vmatpush.bf16.msra.mxu0 0
    %5462 = vmatpush.bf16.msra.mxu0 %v5415
    %5463 = vmatmul.bf16.gmra.mxu0 %v5439
    %v5464 = vpop.f32.mrf.mxu0
    %v5465 = vadd.f32 %v5451, %v5464
    %v5466 = vpop.f32.mrf.mxu0
    %v5467 = vadd.f32 %v5453, %v5466
    %5468 = vdwg.mxu0
    %5469 = vmatpush.bf16.msra.mxu0 %v5414
    %5470 = vmatpush.bf16.msra.mxu0 %v5412
    %5471 = vmatpush.bf16.msra.mxu0 %v5410
    %5472 = vmatpush.bf16.msra.mxu0 %v5408
    %5473 = vmatpush.bf16.msra.mxu0 %v5406
    %5474 = vmatpush.bf16.msra.mxu0 %v5404
    %5475 = vmatpush.bf16.msra.mxu0 %v5402
    %5476 = vmatpush.bf16.msra.mxu0 %v5400
    %5477 = vmatmul.bf16.gmra.mxu0 %v5435
    %v5478 = vpop.f32.mrf.mxu0
    %v5479 = vadd.f32 %v5422, %v5478
    %v5480 = vpop.f32.mrf.mxu0
    %v5481 = vadd.f32 %v5427, %v5480
    %5482 = vdwg.mxu0
    %5483 = vmatpush.bf16.msra.mxu0 0
    %5484 = vmatpush.bf16.msra.mxu0 0
    %5485 = vmatpush.bf16.msra.mxu0 0
    %5486 = vmatpush.bf16.msra.mxu0 0
    %5487 = vmatpush.bf16.msra.mxu0 0
    %5488 = vmatpush.bf16.msra.mxu0 0
    %5489 = vmatpush.bf16.msra.mxu0 0
    %5490 = vmatpush.bf16.msra.mxu0 %v5416
    %5491 = vmatmul.bf16.gmra.mxu0 %v5439
    %v5492 = vpop.f32.mrf.mxu0
    %v5493 = vadd.f32 %v5479, %v5492
    %v5494 = vpop.f32.mrf.mxu0
    %v5495 = vadd.f32 %v5481, %v5494
    %5496 = vdwg.mxu0
    %v5497 = vmax.f32 %v5465, 0.0
    %v5498 = vmax.f32 %v5493, 0.0
    %v5499 = vmax.f32 %v5467, 0.0
    %v5500 = vmax.f32 %v5495, 0.0
    %v5501 = vld [vmem:[%s49] sm:$0x3]
    %v5503 = vperm.slane %v5501, 0
    %v5504 = vperm.slane %v5501, 1
    %v5507 = vmul.f32 %v5497, %v5503
    %v5508 = vmul.f32 %v5498, %v5504
    %v5509 = vmul.f32 %v5499, %v5503
    %v5510 = vmul.f32 %v5500, %v5504
    %v5511 = vld [vmem:[#allocation7 + $0x8] sm:$0xff]
    %v5512 = vld [vmem:[#allocation7 + $0x10] sm:$0xff]
    %v5513 = vld [vmem:[#allocation7 + $0x28] sm:$0xff]
    %v5514 = vld [vmem:[#allocation7 + $0x30] sm:$0xff]
    %v5515 = vadd.f32 %v5507, %v5511
    %v5516 = vadd.f32 %v5508, %v5512
    %v5517 = vadd.f32 %v5509, %v5513
    %v5518 = vadd.f32 %v5510, %v5514
    %5519 = vst [vmem:[#allocation13 + $0x8] sm:$0xff] %v5515
    %5520 = vst [vmem:[#allocation13 + $0x10] sm:$0xff] %v5516
    %5521 = vst [vmem:[#allocation13 + $0x28] sm:$0xff] %v5517
    %5522 = vst [vmem:[#allocation13 + $0x30] sm:$0xff] %v5518
    %v5523 = vld [vmem:[#allocation13 + $0x8] sm:$0xff]
    %v5524 = vld [vmem:[#allocation13 + $0x10] sm:$0xff]
    %v5525 = vld [vmem:[#allocation13 + $0x28] sm:$0xff]
    %v5526 = vld [vmem:[#allocation13 + $0x30] sm:$0xff]
    %v5527 = vpack.c.bf16 %v5525, %v5523
    %v5528 = vpack.c.bf16 %v5526, %v5524
    %v5529 = vld [vmem:[#allocation20] sm:$0xff]
    %v5530 = vld [vmem:[#allocation20 + $0x8] sm:$0xff]
    %v5531 = vld [vmem:[#allocation20 + $0x10] sm:$0xff]
    %v5532 = vld [vmem:[#allocation20 + $0x18] sm:$0xff]
    %v5533 = vld [vmem:[#allocation20 + $0x20] sm:$0xff]
    %v5534 = vld [vmem:[#allocation20 + $0x28] sm:$0xff]
    %v5535 = vld [vmem:[#allocation20 + $0x30] sm:$0xff]
    %v5536 = vld [vmem:[#allocation20 + $0x38] sm:$0xff]
    %v5537 = vld [vmem:[#allocation20 + $0x40] sm:$0xff]
    %v5538 = vld [vmem:[#allocation20 + $0x48] sm:$0xff]
    %v5539 = vld [vmem:[#allocation20 + $0x50] sm:$0xff]
    %v5540 = vld [vmem:[#allocation20 + $0x58] sm:$0xff]
    %v5541 = vld [vmem:[#allocation20 + $0x60] sm:$0xff]
    %v5542 = vld [vmem:[#allocation20 + $0x68] sm:$0xff]
    %v5543 = vld [vmem:[#allocation20 + $0x70] sm:$0xff]
    %v5544 = vld [vmem:[#allocation20 + $0x78] sm:$0xff]
    %v5545 = vld [vmem:[#allocation20 + $0x80] sm:$0xff]
    %v5546 = vld [vmem:[#allocation20 + $0x88] sm:$0xff]
    %v5547 = vld [vmem:[#allocation20 + $0x90] sm:$0xff]
    %v5548 = vld [vmem:[#allocation20 + $0x98] sm:$0xff]
    %v5549 = vld [vmem:[#allocation20 + $0xa0] sm:$0xff]
    %v5550 = vld [vmem:[#allocation20 + $0xa8] sm:$0xff]
    %v5551 = vld [vmem:[#allocation20 + $0xb0] sm:$0xff]
    %v5552 = vld [vmem:[#allocation20 + $0xb8] sm:$0xff]
    %v5553 = vld [vmem:[#allocation20 + $0xc0] sm:$0xff]
    %v5554 = vld [vmem:[#allocation20 + $0xc8] sm:$0xff]
    %v5555 = vld [vmem:[#allocation20 + $0xd0] sm:$0xff]
    %v5556 = vld [vmem:[#allocation20 + $0xd8] sm:$0xff]
    %v5557 = vld [vmem:[#allocation20 + $0xe0] sm:$0xff]
    %v5558 = vld [vmem:[#allocation20 + $0xe8] sm:$0xff]
    %v5559 = vld [vmem:[#allocation20 + $0xf0] sm:$0xff]
    %v5560 = vld [vmem:[#allocation20 + $0xf8] sm:$0xff]
    %v5561 = vld [vmem:[#allocation20 + $0x100] sm:$0xff]
    %v5562 = vld [vmem:[#allocation20 + $0x108] sm:$0xff]
    %v5563 = vld [vmem:[#allocation20 + $0x110] sm:$0xff]
    %v5564 = vld [vmem:[#allocation20 + $0x118] sm:$0xff]
    %v5565 = vld [vmem:[#allocation20 + $0x120] sm:$0xff]
    %v5566 = vld [vmem:[#allocation20 + $0x128] sm:$0xff]
    %v5567 = vld [vmem:[#allocation20 + $0x130] sm:$0xff]
    %v5568 = vld [vmem:[#allocation20 + $0x138] sm:$0xff]
    %v5569 = vld [vmem:[#allocation20 + $0x140] sm:$0xff]
    %v5570 = vld [vmem:[#allocation20 + $0x148] sm:$0xff]
    %v5571 = vld [vmem:[#allocation20 + $0x150] sm:$0xff]
    %v5572 = vld [vmem:[#allocation20 + $0x158] sm:$0xff]
    %v5573 = vld [vmem:[#allocation20 + $0x160] sm:$0xff]
    %v5574 = vld [vmem:[#allocation20 + $0x168] sm:$0xff]
    %v5575 = vld [vmem:[#allocation20 + $0x170] sm:$0xff]
    %v5576 = vld [vmem:[#allocation20 + $0x178] sm:$0xff]
    %v5577 = vld [vmem:[#allocation20 + $0x180] sm:$0xff]
    %v5578 = vld [vmem:[#allocation20 + $0x188] sm:$0xff]
    %v5579 = vld [vmem:[#allocation20 + $0x190] sm:$0xff]
    %v5580 = vld [vmem:[#allocation20 + $0x198] sm:$0xff]
    %v5581 = vld [vmem:[#allocation20 + $0x1a0] sm:$0xff]
    %v5582 = vld [vmem:[#allocation20 + $0x1a8] sm:$0xff]
    %v5583 = vld [vmem:[#allocation20 + $0x1b0] sm:$0xff]
    %v5584 = vld [vmem:[#allocation20 + $0x1b8] sm:$0xff]
    %v5585 = vld [vmem:[#allocation20 + $0x1c0] sm:$0xff]
    %v5586 = vld [vmem:[#allocation20 + $0x1c8] sm:$0xff]
    %v5587 = vld [vmem:[#allocation20 + $0x1d0] sm:$0xff]
    %v5588 = vld [vmem:[#allocation20 + $0x1d8] sm:$0xff]
    %v5589 = vld [vmem:[#allocation20 + $0x1e0] sm:$0xff]
    %v5590 = vld [vmem:[#allocation20 + $0x1e8] sm:$0xff]
    %v5591 = vld [vmem:[#allocation20 + $0x1f0] sm:$0xff]
    %v5592 = vld [vmem:[#allocation20 + $0x1f8] sm:$0xff]
    %v5593 = vld [vmem:[#allocation20 + $0x200] sm:$0xff]
    %v5594 = vld [vmem:[#allocation20 + $0x208] sm:$0xff]
    %v5595 = vld [vmem:[#allocation20 + $0x210] sm:$0xff]
    %v5596 = vld [vmem:[#allocation20 + $0x218] sm:$0xff]
    %v5597 = vld [vmem:[#allocation20 + $0x220] sm:$0xff]
    %v5598 = vld [vmem:[#allocation20 + $0x228] sm:$0xff]
    %v5599 = vld [vmem:[#allocation20 + $0x230] sm:$0xff]
    %v5600 = vld [vmem:[#allocation20 + $0x238] sm:$0xff]
    %v5601 = vld [vmem:[#allocation20 + $0x240] sm:$0xff]
    %v5602 = vld [vmem:[#allocation20 + $0x248] sm:$0xff]
    %v5603 = vld [vmem:[#allocation20 + $0x250] sm:$0xff]
    %v5604 = vld [vmem:[#allocation20 + $0x258] sm:$0xff]
    %v5605 = vld [vmem:[#allocation20 + $0x260] sm:$0xff]
    %v5606 = vld [vmem:[#allocation20 + $0x268] sm:$0xff]
    %v5607 = vld [vmem:[#allocation20 + $0x270] sm:$0xff]
    %v5608 = vld [vmem:[#allocation20 + $0x278] sm:$0xff]
    %v5609 = vld [vmem:[#allocation20 + $0x280] sm:$0xff]
    %v5610 = vld [vmem:[#allocation20 + $0x288] sm:$0xff]
    %v5611 = vld [vmem:[#allocation20 + $0x290] sm:$0xff]
    %v5612 = vld [vmem:[#allocation20 + $0x298] sm:$0xff]
    %v5613 = vld [vmem:[#allocation20 + $0x2a0] sm:$0xff]
    %v5614 = vld [vmem:[#allocation20 + $0x2a8] sm:$0xff]
    %v5615 = vld [vmem:[#allocation20 + $0x2b0] sm:$0xff]
    %v5616 = vld [vmem:[#allocation20 + $0x2b8] sm:$0xff]
    %v5617 = vld [vmem:[#allocation20 + $0x2c0] sm:$0xff]
    %v5618 = vld [vmem:[#allocation20 + $0x2c8] sm:$0xff]
    %v5619 = vld [vmem:[#allocation20 + $0x2d0] sm:$0xff]
    %v5620 = vld [vmem:[#allocation20 + $0x2d8] sm:$0xff]
    %v5621 = vld [vmem:[#allocation20 + $0x2e0] sm:$0xff]
    %v5622 = vld [vmem:[#allocation20 + $0x2e8] sm:$0xff]
    %v5623 = vld [vmem:[#allocation20 + $0x2f0] sm:$0xff]
    %v5624 = vld [vmem:[#allocation20 + $0x2f8] sm:$0xff]
    %v5721 = vunpack.c.l.b16 %v5529
    %v5722 = vunpack.c.h.b16 %v5529
    %v5723 = vunpack.c.l.b16 %v5530
    %v5724 = vunpack.c.h.b16 %v5530
    %v5725 = vunpack.c.l.b16 %v5531
    %v5726 = vunpack.c.h.b16 %v5531
    %v5727 = vunpack.c.l.b16 %v5532
    %v5728 = vunpack.c.h.b16 %v5532
    %v5729 = vunpack.c.l.b16 %v5533
    %v5730 = vunpack.c.h.b16 %v5533
    %v5731 = vunpack.c.l.b16 %v5534
    %v5732 = vunpack.c.h.b16 %v5534
    %v5733 = vunpack.c.l.b16 %v5535
    %v5734 = vunpack.c.h.b16 %v5535
    %v5735 = vunpack.c.l.b16 %v5536
    %v5736 = vunpack.c.h.b16 %v5536
    %v5737 = vunpack.c.l.b16 %v5537
    %v5738 = vunpack.c.h.b16 %v5537
    %v5739 = vunpack.c.l.b16 %v5538
    %v5740 = vunpack.c.h.b16 %v5538
    %v5741 = vunpack.c.l.b16 %v5539
    %v5742 = vunpack.c.h.b16 %v5539
    %v5743 = vunpack.c.l.b16 %v5540
    %v5744 = vunpack.c.h.b16 %v5540
    %v5745 = vunpack.c.l.b16 %v5541
    %v5746 = vunpack.c.h.b16 %v5541
    %v5747 = vunpack.c.l.b16 %v5542
    %v5748 = vunpack.c.h.b16 %v5542
    %v5749 = vunpack.c.l.b16 %v5543
    %v5750 = vunpack.c.h.b16 %v5543
    %v5751 = vunpack.c.l.b16 %v5544
    %v5752 = vunpack.c.h.b16 %v5544
    %v5753 = vunpack.c.l.b16 %v5545
    %v5754 = vunpack.c.h.b16 %v5545
    %v5755 = vunpack.c.l.b16 %v5546
    %v5756 = vunpack.c.h.b16 %v5546
    %v5757 = vunpack.c.l.b16 %v5547
    %v5758 = vunpack.c.h.b16 %v5547
    %v5759 = vunpack.c.l.b16 %v5548
    %v5760 = vunpack.c.h.b16 %v5548
    %v5761 = vunpack.c.l.b16 %v5549
    %v5762 = vunpack.c.h.b16 %v5549
    %v5763 = vunpack.c.l.b16 %v5550
    %v5764 = vunpack.c.h.b16 %v5550
    %v5765 = vunpack.c.l.b16 %v5551
    %v5766 = vunpack.c.h.b16 %v5551
    %v5767 = vunpack.c.l.b16 %v5552
    %v5768 = vunpack.c.h.b16 %v5552
    %v5769 = vunpack.c.l.b16 %v5553
    %v5770 = vunpack.c.h.b16 %v5553
    %v5771 = vunpack.c.l.b16 %v5554
    %v5772 = vunpack.c.h.b16 %v5554
    %v5773 = vunpack.c.l.b16 %v5555
    %v5774 = vunpack.c.h.b16 %v5555
    %v5775 = vunpack.c.l.b16 %v5556
    %v5776 = vunpack.c.h.b16 %v5556
    %v5777 = vunpack.c.l.b16 %v5557
    %v5778 = vunpack.c.h.b16 %v5557
    %v5779 = vunpack.c.l.b16 %v5558
    %v5780 = vunpack.c.h.b16 %v5558
    %v5781 = vunpack.c.l.b16 %v5559
    %v5782 = vunpack.c.h.b16 %v5559
    %v5783 = vunpack.c.l.b16 %v5560
    %v5784 = vunpack.c.h.b16 %v5560
    %v5785 = vunpack.c.l.b16 %v5561
    %v5786 = vunpack.c.h.b16 %v5561
    %v5787 = vunpack.c.l.b16 %v5562
    %v5788 = vunpack.c.h.b16 %v5562
    %v5789 = vunpack.c.l.b16 %v5563
    %v5790 = vunpack.c.h.b16 %v5563
    %v5791 = vunpack.c.l.b16 %v5564
    %v5792 = vunpack.c.h.b16 %v5564
    %v5793 = vunpack.c.l.b16 %v5565
    %v5794 = vunpack.c.h.b16 %v5565
    %v5795 = vunpack.c.l.b16 %v5566
    %v5796 = vunpack.c.h.b16 %v5566
    %v5797 = vunpack.c.l.b16 %v5567
    %v5798 = vunpack.c.h.b16 %v5567
    %v5799 = vunpack.c.l.b16 %v5568
    %v5800 = vunpack.c.h.b16 %v5568
    %v5801 = vunpack.c.l.b16 %v5569
    %v5802 = vunpack.c.h.b16 %v5569
    %v5803 = vunpack.c.l.b16 %v5570
    %v5804 = vunpack.c.h.b16 %v5570
    %v5805 = vunpack.c.l.b16 %v5571
    %v5806 = vunpack.c.h.b16 %v5571
    %v5807 = vunpack.c.l.b16 %v5572
    %v5808 = vunpack.c.h.b16 %v5572
    %v5809 = vunpack.c.l.b16 %v5573
    %v5810 = vunpack.c.h.b16 %v5573
    %v5811 = vunpack.c.l.b16 %v5574
    %v5812 = vunpack.c.h.b16 %v5574
    %v5813 = vunpack.c.l.b16 %v5575
    %v5814 = vunpack.c.h.b16 %v5575
    %v5815 = vunpack.c.l.b16 %v5576
    %v5816 = vunpack.c.h.b16 %v5576
    %v5817 = vunpack.c.l.b16 %v5577
    %v5818 = vunpack.c.h.b16 %v5577
    %v5819 = vunpack.c.l.b16 %v5578
    %v5820 = vunpack.c.h.b16 %v5578
    %v5821 = vunpack.c.l.b16 %v5579
    %v5822 = vunpack.c.h.b16 %v5579
    %v5823 = vunpack.c.l.b16 %v5580
    %v5824 = vunpack.c.h.b16 %v5580
    %v5825 = vunpack.c.l.b16 %v5581
    %v5826 = vunpack.c.h.b16 %v5581
    %v5827 = vunpack.c.l.b16 %v5582
    %v5828 = vunpack.c.h.b16 %v5582
    %v5829 = vunpack.c.l.b16 %v5583
    %v5830 = vunpack.c.h.b16 %v5583
    %v5831 = vunpack.c.l.b16 %v5584
    %v5832 = vunpack.c.h.b16 %v5584
    %v5833 = vunpack.c.l.b16 %v5585
    %v5834 = vunpack.c.h.b16 %v5585
    %v5835 = vunpack.c.l.b16 %v5586
    %v5836 = vunpack.c.h.b16 %v5586
    %v5837 = vunpack.c.l.b16 %v5587
    %v5838 = vunpack.c.h.b16 %v5587
    %v5839 = vunpack.c.l.b16 %v5588
    %v5840 = vunpack.c.h.b16 %v5588
    %v5841 = vunpack.c.l.b16 %v5589
    %v5842 = vunpack.c.h.b16 %v5589
    %v5843 = vunpack.c.l.b16 %v5590
    %v5844 = vunpack.c.h.b16 %v5590
    %v5845 = vunpack.c.l.b16 %v5591
    %v5846 = vunpack.c.h.b16 %v5591
    %v5847 = vunpack.c.l.b16 %v5592
    %v5848 = vunpack.c.h.b16 %v5592
    %v5849 = vunpack.c.l.b16 %v5593
    %v5850 = vunpack.c.h.b16 %v5593
    %v5851 = vunpack.c.l.b16 %v5594
    %v5852 = vunpack.c.h.b16 %v5594
    %v5853 = vunpack.c.l.b16 %v5595
    %v5854 = vunpack.c.h.b16 %v5595
    %v5855 = vunpack.c.l.b16 %v5596
    %v5856 = vunpack.c.h.b16 %v5596
    %v5857 = vunpack.c.l.b16 %v5597
    %v5858 = vunpack.c.h.b16 %v5597
    %v5859 = vunpack.c.l.b16 %v5598
    %v5860 = vunpack.c.h.b16 %v5598
    %v5861 = vunpack.c.l.b16 %v5599
    %v5862 = vunpack.c.h.b16 %v5599
    %v5863 = vunpack.c.l.b16 %v5600
    %v5864 = vunpack.c.h.b16 %v5600
    %v5865 = vunpack.c.l.b16 %v5601
    %v5866 = vunpack.c.h.b16 %v5601
    %v5867 = vunpack.c.l.b16 %v5602
    %v5868 = vunpack.c.h.b16 %v5602
    %v5869 = vunpack.c.l.b16 %v5603
    %v5870 = vunpack.c.h.b16 %v5603
    %v5871 = vunpack.c.l.b16 %v5604
    %v5872 = vunpack.c.h.b16 %v5604
    %v5873 = vunpack.c.l.b16 %v5605
    %v5874 = vunpack.c.h.b16 %v5605
    %v5875 = vunpack.c.l.b16 %v5606
    %v5876 = vunpack.c.h.b16 %v5606
    %v5877 = vunpack.c.l.b16 %v5607
    %v5878 = vunpack.c.h.b16 %v5607
    %v5879 = vunpack.c.l.b16 %v5608
    %v5880 = vunpack.c.h.b16 %v5608
    %v5881 = vunpack.c.l.b16 %v5609
    %v5882 = vunpack.c.h.b16 %v5609
    %v5883 = vunpack.c.l.b16 %v5610
    %v5884 = vunpack.c.h.b16 %v5610
    %v5885 = vunpack.c.l.b16 %v5611
    %v5886 = vunpack.c.h.b16 %v5611
    %v5887 = vunpack.c.l.b16 %v5612
    %v5888 = vunpack.c.h.b16 %v5612
    %v5889 = vunpack.c.l.b16 %v5613
    %v5890 = vunpack.c.h.b16 %v5613
    %v5891 = vunpack.c.l.b16 %v5614
    %v5892 = vunpack.c.h.b16 %v5614
    %v5893 = vunpack.c.l.b16 %v5615
    %v5894 = vunpack.c.h.b16 %v5615
    %v5895 = vunpack.c.l.b16 %v5616
    %v5896 = vunpack.c.h.b16 %v5616
    %v5897 = vunpack.c.l.b16 %v5617
    %v5898 = vunpack.c.h.b16 %v5617
    %v5899 = vunpack.c.l.b16 %v5618
    %v5900 = vunpack.c.h.b16 %v5618
    %v5901 = vunpack.c.l.b16 %v5619
    %v5902 = vunpack.c.h.b16 %v5619
    %v5903 = vunpack.c.l.b16 %v5620
    %v5904 = vunpack.c.h.b16 %v5620
    %v5905 = vunpack.c.l.b16 %v5621
    %v5906 = vunpack.c.h.b16 %v5621
    %v5907 = vunpack.c.l.b16 %v5622
    %v5908 = vunpack.c.h.b16 %v5622
    %v5909 = vunpack.c.l.b16 %v5623
    %v5910 = vunpack.c.h.b16 %v5623
    %v5911 = vunpack.c.l.b16 %v5624
    %v5912 = vunpack.c.h.b16 %v5624
    %v5913 = vpack.c.b16 %v5727, %v5721
    %v5914 = vpack.c.b16 %v5728, %v5722
    %v5915 = vpack.c.b16 %v5729, %v5723
    %v5916 = vpack.c.b16 %v5730, %v5724
    %v5917 = vpack.c.b16 %v5731, %v5725
    %v5918 = vpack.c.b16 %v5732, %v5726
    %v5919 = vpack.c.b16 %v5739, %v5733
    %v5920 = vpack.c.b16 %v5740, %v5734
    %v5921 = vpack.c.b16 %v5741, %v5735
    %v5922 = vpack.c.b16 %v5742, %v5736
    %v5923 = vpack.c.b16 %v5743, %v5737
    %v5924 = vpack.c.b16 %v5744, %v5738
    %v5925 = vpack.c.b16 %v5751, %v5745
    %v5926 = vpack.c.b16 %v5752, %v5746
    %v5927 = vpack.c.b16 %v5753, %v5747
    %v5928 = vpack.c.b16 %v5754, %v5748
    %v5929 = vpack.c.b16 %v5755, %v5749
    %v5930 = vpack.c.b16 %v5756, %v5750
    %v5931 = vpack.c.b16 %v5763, %v5757
    %v5932 = vpack.c.b16 %v5764, %v5758
    %v5933 = vpack.c.b16 %v5765, %v5759
    %v5934 = vpack.c.b16 %v5766, %v5760
    %v5935 = vpack.c.b16 %v5767, %v5761
    %v5936 = vpack.c.b16 %v5768, %v5762
    %v5937 = vpack.c.b16 %v5775, %v5769
    %v5938 = vpack.c.b16 %v5776, %v5770
    %v5939 = vpack.c.b16 %v5777, %v5771
    %v5940 = vpack.c.b16 %v5778, %v5772
    %v5941 = vpack.c.b16 %v5779, %v5773
    %v5942 = vpack.c.b16 %v5780, %v5774
    %v5943 = vpack.c.b16 %v5787, %v5781
    %v5944 = vpack.c.b16 %v5788, %v5782
    %v5945 = vpack.c.b16 %v5789, %v5783
    %v5946 = vpack.c.b16 %v5790, %v5784
    %v5947 = vpack.c.b16 %v5791, %v5785
    %v5948 = vpack.c.b16 %v5792, %v5786
    %v5949 = vpack.c.b16 %v5799, %v5793
    %v5950 = vpack.c.b16 %v5800, %v5794
    %v5951 = vpack.c.b16 %v5801, %v5795
    %v5952 = vpack.c.b16 %v5802, %v5796
    %v5953 = vpack.c.b16 %v5803, %v5797
    %v5954 = vpack.c.b16 %v5804, %v5798
    %v5955 = vpack.c.b16 %v5811, %v5805
    %v5956 = vpack.c.b16 %v5812, %v5806
    %v5957 = vpack.c.b16 %v5813, %v5807
    %v5958 = vpack.c.b16 %v5814, %v5808
    %v5959 = vpack.c.b16 %v5815, %v5809
    %v5960 = vpack.c.b16 %v5816, %v5810
    %v5961 = vpack.c.b16 %v5823, %v5817
    %v5962 = vpack.c.b16 %v5824, %v5818
    %v5963 = vpack.c.b16 %v5825, %v5819
    %v5964 = vpack.c.b16 %v5826, %v5820
    %v5965 = vpack.c.b16 %v5827, %v5821
    %v5966 = vpack.c.b16 %v5828, %v5822
    %v5967 = vpack.c.b16 %v5835, %v5829
    %v5968 = vpack.c.b16 %v5836, %v5830
    %v5969 = vpack.c.b16 %v5837, %v5831
    %v5970 = vpack.c.b16 %v5838, %v5832
    %v5971 = vpack.c.b16 %v5839, %v5833
    %v5972 = vpack.c.b16 %v5840, %v5834
    %v5973 = vpack.c.b16 %v5847, %v5841
    %v5974 = vpack.c.b16 %v5848, %v5842
    %v5975 = vpack.c.b16 %v5849, %v5843
    %v5976 = vpack.c.b16 %v5850, %v5844
    %v5977 = vpack.c.b16 %v5851, %v5845
    %v5978 = vpack.c.b16 %v5852, %v5846
    %v5979 = vpack.c.b16 %v5859, %v5853
    %v5980 = vpack.c.b16 %v5860, %v5854
    %v5981 = vpack.c.b16 %v5861, %v5855
    %v5982 = vpack.c.b16 %v5862, %v5856
    %v5983 = vpack.c.b16 %v5863, %v5857
    %v5984 = vpack.c.b16 %v5864, %v5858
    %v5985 = vpack.c.b16 %v5871, %v5865
    %v5986 = vpack.c.b16 %v5872, %v5866
    %v5987 = vpack.c.b16 %v5873, %v5867
    %v5988 = vpack.c.b16 %v5874, %v5868
    %v5989 = vpack.c.b16 %v5875, %v5869
    %v5990 = vpack.c.b16 %v5876, %v5870
    %v5991 = vpack.c.b16 %v5883, %v5877
    %v5992 = vpack.c.b16 %v5884, %v5878
    %v5993 = vpack.c.b16 %v5885, %v5879
    %v5994 = vpack.c.b16 %v5886, %v5880
    %v5995 = vpack.c.b16 %v5887, %v5881
    %v5996 = vpack.c.b16 %v5888, %v5882
    %v5997 = vpack.c.b16 %v5895, %v5889
    %v5998 = vpack.c.b16 %v5896, %v5890
    %v5999 = vpack.c.b16 %v5897, %v5891
    %v6000 = vpack.c.b16 %v5898, %v5892
    %v6001 = vpack.c.b16 %v5899, %v5893
    %v6002 = vpack.c.b16 %v5900, %v5894
    %v6003 = vpack.c.b16 %v5907, %v5901
    %v6004 = vpack.c.b16 %v5908, %v5902
    %v6005 = vpack.c.b16 %v5909, %v5903
    %v6006 = vpack.c.b16 %v5910, %v5904
    %v6007 = vpack.c.b16 %v5911, %v5905
    %v6008 = vpack.c.b16 %v5912, %v5906
    %6105 = vmatpush.bf16.msra.mxu0 %v5955
    %6106 = vmatpush.bf16.msra.mxu0 %v5949
    %6107 = vmatpush.bf16.msra.mxu0 %v5943
    %6108 = vmatpush.bf16.msra.mxu0 %v5937
    %6109 = vmatpush.bf16.msra.mxu0 %v5931
    %6110 = vmatpush.bf16.msra.mxu0 %v5925
    %6111 = vmatpush.bf16.msra.mxu0 %v5919
    %6112 = vmatpush.bf16.msra.mxu0 %v5913
    %6113 = vmatmul.bf16.gmra.mxu0 %v5527
    %v6114 = vpop.f32.mrf.mxu0
    %v6115 = vadd.f32 0.0, %v6114
    %v6116 = vpop.f32.mrf.mxu0
    %v6117 = vadd.f32 0.0, %v6116
    %6118 = vdwg.mxu0
    %6119 = vmatpush.bf16.msra.mxu0 %v6003
    %6120 = vmatpush.bf16.msra.mxu0 %v5997
    %6121 = vmatpush.bf16.msra.mxu0 %v5991
    %6122 = vmatpush.bf16.msra.mxu0 %v5985
    %6123 = vmatpush.bf16.msra.mxu0 %v5979
    %6124 = vmatpush.bf16.msra.mxu0 %v5973
    %6125 = vmatpush.bf16.msra.mxu0 %v5967
    %6126 = vmatpush.bf16.msra.mxu0 %v5961
    %6127 = vmatmul.bf16.gmra.mxu0 %v5528
    %v6128 = vpop.f32.mrf.mxu0
    %v6129 = vadd.f32 %v6115, %v6128
    %v6130 = vpop.f32.mrf.mxu0
    %v6131 = vadd.f32 %v6117, %v6130
    %6132 = vdwg.mxu0
    %6133 = vmatpush.bf16.msra.mxu0 %v5956
    %6134 = vmatpush.bf16.msra.mxu0 %v5950
    %6135 = vmatpush.bf16.msra.mxu0 %v5944
    %6136 = vmatpush.bf16.msra.mxu0 %v5938
    %6137 = vmatpush.bf16.msra.mxu0 %v5932
    %6138 = vmatpush.bf16.msra.mxu0 %v5926
    %6139 = vmatpush.bf16.msra.mxu0 %v5920
    %6140 = vmatpush.bf16.msra.mxu0 %v5914
    %6141 = vmatmul.bf16.gmra.mxu0 %v5527
    %v6142 = vpop.f32.mrf.mxu0
    %v6143 = vadd.f32 0.0, %v6142
    %v6144 = vpop.f32.mrf.mxu0
    %v6145 = vadd.f32 0.0, %v6144
    %6146 = vdwg.mxu0
    %6147 = vmatpush.bf16.msra.mxu0 %v6004
    %6148 = vmatpush.bf16.msra.mxu0 %v5998
    %6149 = vmatpush.bf16.msra.mxu0 %v5992
    %6150 = vmatpush.bf16.msra.mxu0 %v5986
    %6151 = vmatpush.bf16.msra.mxu0 %v5980
    %6152 = vmatpush.bf16.msra.mxu0 %v5974
    %6153 = vmatpush.bf16.msra.mxu0 %v5968
    %6154 = vmatpush.bf16.msra.mxu0 %v5962
    %6155 = vmatmul.bf16.gmra.mxu0 %v5528
    %v6156 = vpop.f32.mrf.mxu0
    %v6157 = vadd.f32 %v6143, %v6156
    %v6158 = vpop.f32.mrf.mxu0
    %v6159 = vadd.f32 %v6145, %v6158
    %6160 = vdwg.mxu0
    %6161 = vmatpush.bf16.msra.mxu0 %v5957
    %6162 = vmatpush.bf16.msra.mxu0 %v5951
    %6163 = vmatpush.bf16.msra.mxu0 %v5945
    %6164 = vmatpush.bf16.msra.mxu0 %v5939
    %6165 = vmatpush.bf16.msra.mxu0 %v5933
    %6166 = vmatpush.bf16.msra.mxu0 %v5927
    %6167 = vmatpush.bf16.msra.mxu0 %v5921
    %6168 = vmatpush.bf16.msra.mxu0 %v5915
    %6169 = vmatmul.bf16.gmra.mxu0 %v5527
    %v6170 = vpop.f32.mrf.mxu0
    %v6171 = vadd.f32 0.0, %v6170
    %v6172 = vpop.f32.mrf.mxu0
    %v6173 = vadd.f32 0.0, %v6172
    %6174 = vdwg.mxu0
    %6175 = vmatpush.bf16.msra.mxu0 %v6005
    %6176 = vmatpush.bf16.msra.mxu0 %v5999
    %6177 = vmatpush.bf16.msra.mxu0 %v5993
    %6178 = vmatpush.bf16.msra.mxu0 %v5987
    %6179 = vmatpush.bf16.msra.mxu0 %v5981
    %6180 = vmatpush.bf16.msra.mxu0 %v5975
    %6181 = vmatpush.bf16.msra.mxu0 %v5969
    %6182 = vmatpush.bf16.msra.mxu0 %v5963
    %6183 = vmatmul.bf16.gmra.mxu0 %v5528
    %v6184 = vpop.f32.mrf.mxu0
    %v6185 = vadd.f32 %v6171, %v6184
    %v6186 = vpop.f32.mrf.mxu0
    %v6187 = vadd.f32 %v6173, %v6186
    %6188 = vdwg.mxu0
    %6189 = vmatpush.bf16.msra.mxu0 %v5958
    %6190 = vmatpush.bf16.msra.mxu0 %v5952
    %6191 = vmatpush.bf16.msra.mxu0 %v5946
    %6192 = vmatpush.bf16.msra.mxu0 %v5940
    %6193 = vmatpush.bf16.msra.mxu0 %v5934
    %6194 = vmatpush.bf16.msra.mxu0 %v5928
    %6195 = vmatpush.bf16.msra.mxu0 %v5922
    %6196 = vmatpush.bf16.msra.mxu0 %v5916
    %6197 = vmatmul.bf16.gmra.mxu0 %v5527
    %v6198 = vpop.f32.mrf.mxu0
    %v6199 = vadd.f32 0.0, %v6198
    %v6200 = vpop.f32.mrf.mxu0
    %v6201 = vadd.f32 0.0, %v6200
    %6202 = vdwg.mxu0
    %6203 = vmatpush.bf16.msra.mxu0 %v6006
    %6204 = vmatpush.bf16.msra.mxu0 %v6000
    %6205 = vmatpush.bf16.msra.mxu0 %v5994
    %6206 = vmatpush.bf16.msra.mxu0 %v5988
    %6207 = vmatpush.bf16.msra.mxu0 %v5982
    %6208 = vmatpush.bf16.msra.mxu0 %v5976
    %6209 = vmatpush.bf16.msra.mxu0 %v5970
    %6210 = vmatpush.bf16.msra.mxu0 %v5964
    %6211 = vmatmul.bf16.gmra.mxu0 %v5528
    %v6212 = vpop.f32.mrf.mxu0
    %v6213 = vadd.f32 %v6199, %v6212
    %v6214 = vpop.f32.mrf.mxu0
    %v6215 = vadd.f32 %v6201, %v6214
    %6216 = vdwg.mxu0
    %6217 = vmatpush.bf16.msra.mxu0 %v5959
    %6218 = vmatpush.bf16.msra.mxu0 %v5953
    %6219 = vmatpush.bf16.msra.mxu0 %v5947
    %6220 = vmatpush.bf16.msra.mxu0 %v5941
    %6221 = vmatpush.bf16.msra.mxu0 %v5935
    %6222 = vmatpush.bf16.msra.mxu0 %v5929
    %6223 = vmatpush.bf16.msra.mxu0 %v5923
    %6224 = vmatpush.bf16.msra.mxu0 %v5917
    %6225 = vmatmul.bf16.gmra.mxu0 %v5527
    %v6226 = vpop.f32.mrf.mxu0
    %v6227 = vadd.f32 0.0, %v6226
    %v6228 = vpop.f32.mrf.mxu0
    %v6229 = vadd.f32 0.0, %v6228
    %6230 = vdwg.mxu0
    %6231 = vmatpush.bf16.msra.mxu0 %v6007
    %6232 = vmatpush.bf16.msra.mxu0 %v6001
    %6233 = vmatpush.bf16.msra.mxu0 %v5995
    %6234 = vmatpush.bf16.msra.mxu0 %v5989
    %6235 = vmatpush.bf16.msra.mxu0 %v5983
    %6236 = vmatpush.bf16.msra.mxu0 %v5977
    %6237 = vmatpush.bf16.msra.mxu0 %v5971
    %6238 = vmatpush.bf16.msra.mxu0 %v5965
    %6239 = vmatmul.bf16.gmra.mxu0 %v5528
    %v6240 = vpop.f32.mrf.mxu0
    %v6241 = vadd.f32 %v6227, %v6240
    %v6242 = vpop.f32.mrf.mxu0
    %v6243 = vadd.f32 %v6229, %v6242
    %6244 = vdwg.mxu0
    %6245 = vmatpush.bf16.msra.mxu0 %v5960
    %6246 = vmatpush.bf16.msra.mxu0 %v5954
    %6247 = vmatpush.bf16.msra.mxu0 %v5948
    %6248 = vmatpush.bf16.msra.mxu0 %v5942
    %6249 = vmatpush.bf16.msra.mxu0 %v5936
    %6250 = vmatpush.bf16.msra.mxu0 %v5930
    %6251 = vmatpush.bf16.msra.mxu0 %v5924
    %6252 = vmatpush.bf16.msra.mxu0 %v5918
    %6253 = vmatmul.bf16.gmra.mxu0 %v5527
    %v6254 = vpop.f32.mrf.mxu0
    %v6255 = vadd.f32 0.0, %v6254
    %v6256 = vpop.f32.mrf.mxu0
    %v6257 = vadd.f32 0.0, %v6256
    %6258 = vdwg.mxu0
    %6259 = vmatpush.bf16.msra.mxu0 %v6008
    %6260 = vmatpush.bf16.msra.mxu0 %v6002
    %6261 = vmatpush.bf16.msra.mxu0 %v5996
    %6262 = vmatpush.bf16.msra.mxu0 %v5990
    %6263 = vmatpush.bf16.msra.mxu0 %v5984
    %6264 = vmatpush.bf16.msra.mxu0 %v5978
    %6265 = vmatpush.bf16.msra.mxu0 %v5972
    %6266 = vmatpush.bf16.msra.mxu0 %v5966
    %6267 = vmatmul.bf16.gmra.mxu0 %v5528
    %v6268 = vpop.f32.mrf.mxu0
    %v6269 = vadd.f32 %v6255, %v6268
    %v6270 = vpop.f32.mrf.mxu0
    %v6271 = vadd.f32 %v6257, %v6270
    %6272 = vdwg.mxu0
    %6273 = vst [vmem:[#allocation14 + $0x8] sm:$0xff] %v6129
    %6274 = vst [vmem:[#allocation14 + $0x10] sm:$0xff] %v6157
    %6275 = vst [vmem:[#allocation14 + $0x18] sm:$0xff] %v6185
    %6276 = vst [vmem:[#allocation14 + $0x20] sm:$0xff] %v6213
    %6277 = vst [vmem:[#allocation14 + $0x28] sm:$0xff] %v6241
    %6278 = vst [vmem:[#allocation14 + $0x30] sm:$0xff] %v6269
    %6279 = vst [vmem:[#allocation14 + $0x48] sm:$0xff] %v6131
    %6280 = vst [vmem:[#allocation14 + $0x50] sm:$0xff] %v6159
    %6281 = vst [vmem:[#allocation14 + $0x58] sm:$0xff] %v6187
    %6282 = vst [vmem:[#allocation14 + $0x60] sm:$0xff] %v6215
    %6283 = vst [vmem:[#allocation14 + $0x68] sm:$0xff] %v6243
    %6284 = vst [vmem:[#allocation14 + $0x70] sm:$0xff] %v6271
    %v6285 = vld [vmem:[#allocation14] sm:$0xff]
    %v6286 = vld [vmem:[#allocation14 + $0x8] sm:$0xff]
    %v6287 = vld [vmem:[#allocation14 + $0x10] sm:$0xff]
    %v6288 = vld [vmem:[#allocation14 + $0x18] sm:$0xff]
    %v6289 = vld [vmem:[#allocation14 + $0x20] sm:$0xff]
    %v6290 = vld [vmem:[#allocation14 + $0x28] sm:$0xff]
    %v6291 = vld [vmem:[#allocation14 + $0x30] sm:$0xff]
    %v6292 = vld [vmem:[#allocation14 + $0x40] sm:$0xff]
    %v6293 = vld [vmem:[#allocation14 + $0x48] sm:$0xff]
    %v6294 = vld [vmem:[#allocation14 + $0x50] sm:$0xff]
    %v6295 = vld [vmem:[#allocation14 + $0x58] sm:$0xff]
    %v6296 = vld [vmem:[#allocation14 + $0x60] sm:$0xff]
    %v6297 = vld [vmem:[#allocation14 + $0x68] sm:$0xff]
    %v6298 = vld [vmem:[#allocation14 + $0x70] sm:$0xff]
    %6313 = vrot.lane.b32.xlu0 %v6285, 19
    %v6314 = vpop.permute.xlu0 %6313
    %6315 = vrot.lane.b32.xlu0 %v6286, 19
    %v6316 = vpop.permute.xlu0 %6315
    %6317 = vrot.lane.b32.xlu0 %v6287, 19
    %v6318 = vpop.permute.xlu0 %6317
    %6319 = vrot.lane.b32.xlu0 %v6288, 19
    %v6320 = vpop.permute.xlu0 %6319
    %6321 = vrot.lane.b32.xlu0 %v6289, 19
    %v6322 = vpop.permute.xlu0 %6321
    %6323 = vrot.lane.b32.xlu0 %v6290, 19
    %v6324 = vpop.permute.xlu0 %6323
    %6325 = vrot.lane.b32.xlu0 %v6291, 19
    %v6326 = vpop.permute.xlu0 %6325
    %6327 = vrot.lane.b32.xlu0 %v6292, 19
    %v6328 = vpop.permute.xlu0 %6327
    %6329 = vrot.lane.b32.xlu0 %v6293, 19
    %v6330 = vpop.permute.xlu0 %6329
    %6331 = vrot.lane.b32.xlu0 %v6294, 19
    %v6332 = vpop.permute.xlu0 %6331
    %6333 = vrot.lane.b32.xlu0 %v6295, 19
    %v6334 = vpop.permute.xlu0 %6333
    %6335 = vrot.lane.b32.xlu0 %v6296, 19
    %v6336 = vpop.permute.xlu0 %6335
    %6337 = vrot.lane.b32.xlu0 %v6297, 19
    %v6338 = vpop.permute.xlu0 %6337
    %6339 = vrot.lane.b32.xlu0 %v6298, 19
    %v6340 = vpop.permute.xlu0 %6339
    %v6341 = vsel %vm795, %v6314, %v6316
    %v6342 = vsel %vm795, %v6316, %v6318
    %v6343 = vsel %vm795, %v6318, %v6320
    %v6344 = vsel %vm795, %v6320, %v6322
    %v6345 = vsel %vm795, %v6322, %v6324
    %v6346 = vsel %vm795, %v6324, %v6326
    %v6347 = vsel %vm795, %v6328, %v6330
    %v6348 = vsel %vm795, %v6330, %v6332
    %v6349 = vsel %vm795, %v6332, %v6334
    %v6350 = vsel %vm795, %v6334, %v6336
    %v6351 = vsel %vm795, %v6336, %v6338
    %v6352 = vsel %vm795, %v6338, %v6340
    %6365 = vst [vmem:[#allocation2] sm:$0xff] %v6341
    %6366 = vst [vmem:[#allocation2 + $0x8] sm:$0xff] %v6342
    %6367 = vst [vmem:[#allocation2 + $0x10] sm:$0xff] %v6343
    %6368 = vst [vmem:[#allocation2 + $0x18] sm:$0xff] %v6344
    %6369 = vst [vmem:[#allocation2 + $0x20] sm:$0xff] %v6345
    %6370 = vst [vmem:[#allocation2 + $0x28] sm:$0xff] %v6346
    %6371 = vst [vmem:[#allocation2 + $0x30] sm:$0xff] %v6347
    %6372 = vst [vmem:[#allocation2 + $0x38] sm:$0xff] %v6348
    %6373 = vst [vmem:[#allocation2 + $0x40] sm:$0xff] %v6349
    %6374 = vst [vmem:[#allocation2 + $0x48] sm:$0xff] %v6350
    %6375 = vst [vmem:[#allocation2 + $0x50] sm:$0xff] %v6351
    %6376 = vst [vmem:[#allocation2 + $0x58] sm:$0xff] %v6352
    %v6377 = vld [vmem:[#allocation14] sm:$0xff]
    %v6378 = vld [vmem:[#allocation14 + $0x8] sm:$0xff]
    %v6379 = vld [vmem:[#allocation14 + $0x10] sm:$0xff]
    %v6380 = vld [vmem:[#allocation14 + $0x18] sm:$0xff]
    %v6381 = vld [vmem:[#allocation14 + $0x20] sm:$0xff]
    %v6382 = vld [vmem:[#allocation14 + $0x28] sm:$0xff]
    %v6383 = vld [vmem:[#allocation14 + $0x30] sm:$0xff]
    %v6384 = vld [vmem:[#allocation14 + $0x40] sm:$0xff]
    %v6385 = vld [vmem:[#allocation14 + $0x48] sm:$0xff]
    %v6386 = vld [vmem:[#allocation14 + $0x50] sm:$0xff]
    %v6387 = vld [vmem:[#allocation14 + $0x58] sm:$0xff]
    %v6388 = vld [vmem:[#allocation14 + $0x60] sm:$0xff]
    %v6389 = vld [vmem:[#allocation14 + $0x68] sm:$0xff]
    %v6390 = vld [vmem:[#allocation14 + $0x70] sm:$0xff]
    %6405 = vrot.lane.b32.xlu0 %v6377, 18
    %v6406 = vpop.permute.xlu0 %6405
    %6407 = vrot.lane.b32.xlu0 %v6378, 18
    %v6408 = vpop.permute.xlu0 %6407
    %6409 = vrot.lane.b32.xlu0 %v6379, 18
    %v6410 = vpop.permute.xlu0 %6409
    %6411 = vrot.lane.b32.xlu0 %v6380, 18
    %v6412 = vpop.permute.xlu0 %6411
    %6413 = vrot.lane.b32.xlu0 %v6381, 18
    %v6414 = vpop.permute.xlu0 %6413
    %6415 = vrot.lane.b32.xlu0 %v6382, 18
    %v6416 = vpop.permute.xlu0 %6415
    %6417 = vrot.lane.b32.xlu0 %v6383, 18
    %v6418 = vpop.permute.xlu0 %6417
    %6419 = vrot.lane.b32.xlu0 %v6384, 18
    %v6420 = vpop.permute.xlu0 %6419
    %6421 = vrot.lane.b32.xlu0 %v6385, 18
    %v6422 = vpop.permute.xlu0 %6421
    %6423 = vrot.lane.b32.xlu0 %v6386, 18
    %v6424 = vpop.permute.xlu0 %6423
    %6425 = vrot.lane.b32.xlu0 %v6387, 18
    %v6426 = vpop.permute.xlu0 %6425
    %6427 = vrot.lane.b32.xlu0 %v6388, 18
    %v6428 = vpop.permute.xlu0 %6427
    %6429 = vrot.lane.b32.xlu0 %v6389, 18
    %v6430 = vpop.permute.xlu0 %6429
    %6431 = vrot.lane.b32.xlu0 %v6390, 18
    %v6432 = vpop.permute.xlu0 %6431
    %v6433 = vsel %vm888, %v6406, %v6408
    %v6434 = vsel %vm888, %v6408, %v6410
    %v6435 = vsel %vm888, %v6410, %v6412
    %v6436 = vsel %vm888, %v6412, %v6414
    %v6437 = vsel %vm888, %v6414, %v6416
    %v6438 = vsel %vm888, %v6416, %v6418
    %v6439 = vsel %vm888, %v6420, %v6422
    %v6440 = vsel %vm888, %v6422, %v6424
    %v6441 = vsel %vm888, %v6424, %v6426
    %v6442 = vsel %vm888, %v6426, %v6428
    %v6443 = vsel %vm888, %v6428, %v6430
    %v6444 = vsel %vm888, %v6430, %v6432
    %6457 = vst [vmem:[#allocation2 + $0x60] sm:$0xff] %v6433
    %6458 = vst [vmem:[#allocation2 + $0x68] sm:$0xff] %v6434
    %6459 = vst [vmem:[#allocation2 + $0x70] sm:$0xff] %v6435
    %6460 = vst [vmem:[#allocation2 + $0x78] sm:$0xff] %v6436
    %6461 = vst [vmem:[#allocation2 + $0x80] sm:$0xff] %v6437
    %6462 = vst [vmem:[#allocation2 + $0x88] sm:$0xff] %v6438
    %6463 = vst [vmem:[#allocation2 + $0x90] sm:$0xff] %v6439
    %6464 = vst [vmem:[#allocation2 + $0x98] sm:$0xff] %v6440
    %6465 = vst [vmem:[#allocation2 + $0xa0] sm:$0xff] %v6441
    %6466 = vst [vmem:[#allocation2 + $0xa8] sm:$0xff] %v6442
    %6467 = vst [vmem:[#allocation2 + $0xb0] sm:$0xff] %v6443
    %6468 = vst [vmem:[#allocation2 + $0xb8] sm:$0xff] %v6444
    %v6469 = vld [vmem:[#allocation14] sm:$0xff]
    %v6470 = vld [vmem:[#allocation14 + $0x8] sm:$0xff]
    %v6471 = vld [vmem:[#allocation14 + $0x10] sm:$0xff]
    %v6472 = vld [vmem:[#allocation14 + $0x18] sm:$0xff]
    %v6473 = vld [vmem:[#allocation14 + $0x20] sm:$0xff]
    %v6474 = vld [vmem:[#allocation14 + $0x28] sm:$0xff]
    %v6475 = vld [vmem:[#allocation14 + $0x30] sm:$0xff]
    %v6476 = vld [vmem:[#allocation14 + $0x40] sm:$0xff]
    %v6477 = vld [vmem:[#allocation14 + $0x48] sm:$0xff]
    %v6478 = vld [vmem:[#allocation14 + $0x50] sm:$0xff]
    %v6479 = vld [vmem:[#allocation14 + $0x58] sm:$0xff]
    %v6480 = vld [vmem:[#allocation14 + $0x60] sm:$0xff]
    %v6481 = vld [vmem:[#allocation14 + $0x68] sm:$0xff]
    %v6482 = vld [vmem:[#allocation14 + $0x70] sm:$0xff]
    %6497 = vrot.lane.b32.xlu0 %v6469, 17
    %v6498 = vpop.permute.xlu0 %6497
    %6499 = vrot.lane.b32.xlu0 %v6470, 17
    %v6500 = vpop.permute.xlu0 %6499
    %6501 = vrot.lane.b32.xlu0 %v6471, 17
    %v6502 = vpop.permute.xlu0 %6501
    %6503 = vrot.lane.b32.xlu0 %v6472, 17
    %v6504 = vpop.permute.xlu0 %6503
    %6505 = vrot.lane.b32.xlu0 %v6473, 17
    %v6506 = vpop.permute.xlu0 %6505
    %6507 = vrot.lane.b32.xlu0 %v6474, 17
    %v6508 = vpop.permute.xlu0 %6507
    %6509 = vrot.lane.b32.xlu0 %v6475, 17
    %v6510 = vpop.permute.xlu0 %6509
    %6511 = vrot.lane.b32.xlu0 %v6476, 17
    %v6512 = vpop.permute.xlu0 %6511
    %6513 = vrot.lane.b32.xlu0 %v6477, 17
    %v6514 = vpop.permute.xlu0 %6513
    %6515 = vrot.lane.b32.xlu0 %v6478, 17
    %v6516 = vpop.permute.xlu0 %6515
    %6517 = vrot.lane.b32.xlu0 %v6479, 17
    %v6518 = vpop.permute.xlu0 %6517
    %6519 = vrot.lane.b32.xlu0 %v6480, 17
    %v6520 = vpop.permute.xlu0 %6519
    %6521 = vrot.lane.b32.xlu0 %v6481, 17
    %v6522 = vpop.permute.xlu0 %6521
    %6523 = vrot.lane.b32.xlu0 %v6482, 17
    %v6524 = vpop.permute.xlu0 %6523
    %v6525 = vsel %vm935, %v6498, %v6500
    %v6526 = vsel %vm935, %v6500, %v6502
    %v6527 = vsel %vm935, %v6502, %v6504
    %v6528 = vsel %vm935, %v6504, %v6506
    %v6529 = vsel %vm935, %v6506, %v6508
    %v6530 = vsel %vm935, %v6508, %v6510
    %v6531 = vsel %vm935, %v6512, %v6514
    %v6532 = vsel %vm935, %v6514, %v6516
    %v6533 = vsel %vm935, %v6516, %v6518
    %v6534 = vsel %vm935, %v6518, %v6520
    %v6535 = vsel %vm935, %v6520, %v6522
    %v6536 = vsel %vm935, %v6522, %v6524
    %6549 = vst [vmem:[#allocation2 + $0xc0] sm:$0xff] %v6525
    %6550 = vst [vmem:[#allocation2 + $0xc8] sm:$0xff] %v6526
    %6551 = vst [vmem:[#allocation2 + $0xd0] sm:$0xff] %v6527
    %6552 = vst [vmem:[#allocation2 + $0xd8] sm:$0xff] %v6528
    %6553 = vst [vmem:[#allocation2 + $0xe0] sm:$0xff] %v6529
    %6554 = vst [vmem:[#allocation2 + $0xe8] sm:$0xff] %v6530
    %6555 = vst [vmem:[#allocation2 + $0xf0] sm:$0xff] %v6531
    %6556 = vst [vmem:[#allocation2 + $0xf8] sm:$0xff] %v6532
    %6557 = vst [vmem:[#allocation2 + $0x100] sm:$0xff] %v6533
    %6558 = vst [vmem:[#allocation2 + $0x108] sm:$0xff] %v6534
    %6559 = vst [vmem:[#allocation2 + $0x110] sm:$0xff] %v6535
    %6560 = vst [vmem:[#allocation2 + $0x118] sm:$0xff] %v6536
    %v6561 = vld [vmem:[#allocation14] sm:$0xff]
    %v6562 = vld [vmem:[#allocation14 + $0x8] sm:$0xff]
    %v6563 = vld [vmem:[#allocation14 + $0x10] sm:$0xff]
    %v6564 = vld [vmem:[#allocation14 + $0x18] sm:$0xff]
    %v6565 = vld [vmem:[#allocation14 + $0x20] sm:$0xff]
    %v6566 = vld [vmem:[#allocation14 + $0x28] sm:$0xff]
    %v6567 = vld [vmem:[#allocation14 + $0x30] sm:$0xff]
    %v6568 = vld [vmem:[#allocation14 + $0x40] sm:$0xff]
    %v6569 = vld [vmem:[#allocation14 + $0x48] sm:$0xff]
    %v6570 = vld [vmem:[#allocation14 + $0x50] sm:$0xff]
    %v6571 = vld [vmem:[#allocation14 + $0x58] sm:$0xff]
    %v6572 = vld [vmem:[#allocation14 + $0x60] sm:$0xff]
    %v6573 = vld [vmem:[#allocation14 + $0x68] sm:$0xff]
    %v6574 = vld [vmem:[#allocation14 + $0x70] sm:$0xff]
    %6589 = vrot.lane.b32.xlu0 %v6561, 1
    %v6590 = vpop.permute.xlu0 %6589
    %6591 = vrot.lane.b32.xlu0 %v6562, 1
    %v6592 = vpop.permute.xlu0 %6591
    %6593 = vrot.lane.b32.xlu0 %v6563, 1
    %v6594 = vpop.permute.xlu0 %6593
    %6595 = vrot.lane.b32.xlu0 %v6564, 1
    %v6596 = vpop.permute.xlu0 %6595
    %6597 = vrot.lane.b32.xlu0 %v6565, 1
    %v6598 = vpop.permute.xlu0 %6597
    %6599 = vrot.lane.b32.xlu0 %v6566, 1
    %v6600 = vpop.permute.xlu0 %6599
    %6601 = vrot.lane.b32.xlu0 %v6567, 1
    %v6602 = vpop.permute.xlu0 %6601
    %6603 = vrot.lane.b32.xlu0 %v6568, 1
    %v6604 = vpop.permute.xlu0 %6603
    %6605 = vrot.lane.b32.xlu0 %v6569, 1
    %v6606 = vpop.permute.xlu0 %6605
    %6607 = vrot.lane.b32.xlu0 %v6570, 1
    %v6608 = vpop.permute.xlu0 %6607
    %6609 = vrot.lane.b32.xlu0 %v6571, 1
    %v6610 = vpop.permute.xlu0 %6609
    %6611 = vrot.lane.b32.xlu0 %v6572, 1
    %v6612 = vpop.permute.xlu0 %6611
    %6613 = vrot.lane.b32.xlu0 %v6573, 1
    %v6614 = vpop.permute.xlu0 %6613
    %6615 = vrot.lane.b32.xlu0 %v6574, 1
    %v6616 = vpop.permute.xlu0 %6615
    %v6617 = vsel %vm982, %v6590, %v6592
    %v6618 = vsel %vm982, %v6592, %v6594
    %v6619 = vsel %vm982, %v6594, %v6596
    %v6620 = vsel %vm982, %v6596, %v6598
    %v6621 = vsel %vm982, %v6598, %v6600
    %v6622 = vsel %vm982, %v6600, %v6602
    %v6623 = vsel %vm982, %v6604, %v6606
    %v6624 = vsel %vm982, %v6606, %v6608
    %v6625 = vsel %vm982, %v6608, %v6610
    %v6626 = vsel %vm982, %v6610, %v6612
    %v6627 = vsel %vm982, %v6612, %v6614
    %v6628 = vsel %vm982, %v6614, %v6616
    %6641 = vst [vmem:[#allocation2 + $0x120] sm:$0xff] %v6617
    %6642 = vst [vmem:[#allocation2 + $0x128] sm:$0xff] %v6618
    %6643 = vst [vmem:[#allocation2 + $0x130] sm:$0xff] %v6619
    %6644 = vst [vmem:[#allocation2 + $0x138] sm:$0xff] %v6620
    %6645 = vst [vmem:[#allocation2 + $0x140] sm:$0xff] %v6621
    %6646 = vst [vmem:[#allocation2 + $0x148] sm:$0xff] %v6622
    %6647 = vst [vmem:[#allocation2 + $0x150] sm:$0xff] %v6623
    %6648 = vst [vmem:[#allocation2 + $0x158] sm:$0xff] %v6624
    %6649 = vst [vmem:[#allocation2 + $0x160] sm:$0xff] %v6625
    %6650 = vst [vmem:[#allocation2 + $0x168] sm:$0xff] %v6626
    %6651 = vst [vmem:[#allocation2 + $0x170] sm:$0xff] %v6627
    %6652 = vst [vmem:[#allocation2 + $0x178] sm:$0xff] %v6628
    %v6653 = vld [vmem:[#allocation14 + $0x8] sm:$0xff]
    %v6654 = vld [vmem:[#allocation14 + $0x10] sm:$0xff]
    %v6655 = vld [vmem:[#allocation14 + $0x18] sm:$0xff]
    %v6656 = vld [vmem:[#allocation14 + $0x20] sm:$0xff]
    %v6657 = vld [vmem:[#allocation14 + $0x28] sm:$0xff]
    %v6658 = vld [vmem:[#allocation14 + $0x30] sm:$0xff]
    %v6659 = vld [vmem:[#allocation14 + $0x48] sm:$0xff]
    %v6660 = vld [vmem:[#allocation14 + $0x50] sm:$0xff]
    %v6661 = vld [vmem:[#allocation14 + $0x58] sm:$0xff]
    %v6662 = vld [vmem:[#allocation14 + $0x60] sm:$0xff]
    %v6663 = vld [vmem:[#allocation14 + $0x68] sm:$0xff]
    %v6664 = vld [vmem:[#allocation14 + $0x70] sm:$0xff]
    %6665 = vst [vmem:[#allocation2 + $0x180] sm:$0xff] %v6653
    %6666 = vst [vmem:[#allocation2 + $0x188] sm:$0xff] %v6654
    %6667 = vst [vmem:[#allocation2 + $0x190] sm:$0xff] %v6655
    %6668 = vst [vmem:[#allocation2 + $0x198] sm:$0xff] %v6656
    %6669 = vst [vmem:[#allocation2 + $0x1a0] sm:$0xff] %v6657
    %6670 = vst [vmem:[#allocation2 + $0x1a8] sm:$0xff] %v6658
    %6671 = vst [vmem:[#allocation2 + $0x1b0] sm:$0xff] %v6659
    %6672 = vst [vmem:[#allocation2 + $0x1b8] sm:$0xff] %v6660
    %6673 = vst [vmem:[#allocation2 + $0x1c0] sm:$0xff] %v6661
    %6674 = vst [vmem:[#allocation2 + $0x1c8] sm:$0xff] %v6662
    %6675 = vst [vmem:[#allocation2 + $0x1d0] sm:$0xff] %v6663
    %6676 = vst [vmem:[#allocation2 + $0x1d8] sm:$0xff] %v6664
    %v6677 = vld [vmem:[#allocation14 + $0x8] sm:$0xff]
    %v6678 = vld [vmem:[#allocation14 + $0x10] sm:$0xff]
    %v6679 = vld [vmem:[#allocation14 + $0x18] sm:$0xff]
    %v6680 = vld [vmem:[#allocation14 + $0x20] sm:$0xff]
    %v6681 = vld [vmem:[#allocation14 + $0x28] sm:$0xff]
    %v6682 = vld [vmem:[#allocation14 + $0x30] sm:$0xff]
    %v6683 = vld [vmem:[#allocation14 + $0x38] sm:$0xff]
    %v6684 = vld [vmem:[#allocation14 + $0x48] sm:$0xff]
    %v6685 = vld [vmem:[#allocation14 + $0x50] sm:$0xff]
    %v6686 = vld [vmem:[#allocation14 + $0x58] sm:$0xff]
    %v6687 = vld [vmem:[#allocation14 + $0x60] sm:$0xff]
    %v6688 = vld [vmem:[#allocation14 + $0x68] sm:$0xff]
    %v6689 = vld [vmem:[#allocation14 + $0x70] sm:$0xff]
    %v6690 = vld [vmem:[#allocation14 + $0x78] sm:$0xff]
    %6705 = vrot.lane.b32.xlu0 %v6677, 127
    %v6706 = vpop.permute.xlu0 %6705
    %6707 = vrot.lane.b32.xlu0 %v6678, 127
    %v6708 = vpop.permute.xlu0 %6707
    %6709 = vrot.lane.b32.xlu0 %v6679, 127
    %v6710 = vpop.permute.xlu0 %6709
    %6711 = vrot.lane.b32.xlu0 %v6680, 127
    %v6712 = vpop.permute.xlu0 %6711
    %6713 = vrot.lane.b32.xlu0 %v6681, 127
    %v6714 = vpop.permute.xlu0 %6713
    %6715 = vrot.lane.b32.xlu0 %v6682, 127
    %v6716 = vpop.permute.xlu0 %6715
    %6717 = vrot.lane.b32.xlu0 %v6683, 127
    %v6718 = vpop.permute.xlu0 %6717
    %6719 = vrot.lane.b32.xlu0 %v6684, 127
    %v6720 = vpop.permute.xlu0 %6719
    %6721 = vrot.lane.b32.xlu0 %v6685, 127
    %v6722 = vpop.permute.xlu0 %6721
    %6723 = vrot.lane.b32.xlu0 %v6686, 127
    %v6724 = vpop.permute.xlu0 %6723
    %6725 = vrot.lane.b32.xlu0 %v6687, 127
    %v6726 = vpop.permute.xlu0 %6725
    %6727 = vrot.lane.b32.xlu0 %v6688, 127
    %v6728 = vpop.permute.xlu0 %6727
    %6729 = vrot.lane.b32.xlu0 %v6689, 127
    %v6730 = vpop.permute.xlu0 %6729
    %6731 = vrot.lane.b32.xlu0 %v6690, 127
    %v6732 = vpop.permute.xlu0 %6731
    %v6733 = vsel %vm298, %v6706, %v6708
    %v6734 = vsel %vm298, %v6708, %v6710
    %v6735 = vsel %vm298, %v6710, %v6712
    %v6736 = vsel %vm298, %v6712, %v6714
    %v6737 = vsel %vm298, %v6714, %v6716
    %v6738 = vsel %vm298, %v6716, %v6718
    %v6739 = vsel %vm298, %v6720, %v6722
    %v6740 = vsel %vm298, %v6722, %v6724
    %v6741 = vsel %vm298, %v6724, %v6726
    %v6742 = vsel %vm298, %v6726, %v6728
    %v6743 = vsel %vm298, %v6728, %v6730
    %v6744 = vsel %vm298, %v6730, %v6732
    %6757 = vst [vmem:[#allocation2 + $0x1e0] sm:$0xff] %v6733
    %6758 = vst [vmem:[#allocation2 + $0x1e8] sm:$0xff] %v6734
    %6759 = vst [vmem:[#allocation2 + $0x1f0] sm:$0xff] %v6735
    %6760 = vst [vmem:[#allocation2 + $0x1f8] sm:$0xff] %v6736
    %6761 = vst [vmem:[#allocation2 + $0x200] sm:$0xff] %v6737
    %6762 = vst [vmem:[#allocation2 + $0x208] sm:$0xff] %v6738
    %6763 = vst [vmem:[#allocation2 + $0x210] sm:$0xff] %v6739
    %6764 = vst [vmem:[#allocation2 + $0x218] sm:$0xff] %v6740
    %6765 = vst [vmem:[#allocation2 + $0x220] sm:$0xff] %v6741
    %6766 = vst [vmem:[#allocation2 + $0x228] sm:$0xff] %v6742
    %6767 = vst [vmem:[#allocation2 + $0x230] sm:$0xff] %v6743
    %6768 = vst [vmem:[#allocation2 + $0x238] sm:$0xff] %v6744
    %v6769 = vld [vmem:[#allocation14 + $0x8] sm:$0xff]
    %v6770 = vld [vmem:[#allocation14 + $0x10] sm:$0xff]
    %v6771 = vld [vmem:[#allocation14 + $0x18] sm:$0xff]
    %v6772 = vld [vmem:[#allocation14 + $0x20] sm:$0xff]
    %v6773 = vld [vmem:[#allocation14 + $0x28] sm:$0xff]
    %v6774 = vld [vmem:[#allocation14 + $0x30] sm:$0xff]
    %v6775 = vld [vmem:[#allocation14 + $0x38] sm:$0xff]
    %v6776 = vld [vmem:[#allocation14 + $0x48] sm:$0xff]
    %v6777 = vld [vmem:[#allocation14 + $0x50] sm:$0xff]
    %v6778 = vld [vmem:[#allocation14 + $0x58] sm:$0xff]
    %v6779 = vld [vmem:[#allocation14 + $0x60] sm:$0xff]
    %v6780 = vld [vmem:[#allocation14 + $0x68] sm:$0xff]
    %v6781 = vld [vmem:[#allocation14 + $0x70] sm:$0xff]
    %v6782 = vld [vmem:[#allocation14 + $0x78] sm:$0xff]
    %6797 = vrot.lane.b32.xlu0 %v6769, 111
    %v6798 = vpop.permute.xlu0 %6797
    %6799 = vrot.lane.b32.xlu0 %v6770, 111
    %v6800 = vpop.permute.xlu0 %6799
    %6801 = vrot.lane.b32.xlu0 %v6771, 111
    %v6802 = vpop.permute.xlu0 %6801
    %6803 = vrot.lane.b32.xlu0 %v6772, 111
    %v6804 = vpop.permute.xlu0 %6803
    %6805 = vrot.lane.b32.xlu0 %v6773, 111
    %v6806 = vpop.permute.xlu0 %6805
    %6807 = vrot.lane.b32.xlu0 %v6774, 111
    %v6808 = vpop.permute.xlu0 %6807
    %6809 = vrot.lane.b32.xlu0 %v6775, 111
    %v6810 = vpop.permute.xlu0 %6809
    %6811 = vrot.lane.b32.xlu0 %v6776, 111
    %v6812 = vpop.permute.xlu0 %6811
    %6813 = vrot.lane.b32.xlu0 %v6777, 111
    %v6814 = vpop.permute.xlu0 %6813
    %6815 = vrot.lane.b32.xlu0 %v6778, 111
    %v6816 = vpop.permute.xlu0 %6815
    %6817 = vrot.lane.b32.xlu0 %v6779, 111
    %v6818 = vpop.permute.xlu0 %6817
    %6819 = vrot.lane.b32.xlu0 %v6780, 111
    %v6820 = vpop.permute.xlu0 %6819
    %6821 = vrot.lane.b32.xlu0 %v6781, 111
    %v6822 = vpop.permute.xlu0 %6821
    %6823 = vrot.lane.b32.xlu0 %v6782, 111
    %v6824 = vpop.permute.xlu0 %6823
    %v6825 = vsel %vm1087, %v6798, %v6800
    %v6826 = vsel %vm1087, %v6800, %v6802
    %v6827 = vsel %vm1087, %v6802, %v6804
    %v6828 = vsel %vm1087, %v6804, %v6806
    %v6829 = vsel %vm1087, %v6806, %v6808
    %v6830 = vsel %vm1087, %v6808, %v6810
    %v6831 = vsel %vm1087, %v6812, %v6814
    %v6832 = vsel %vm1087, %v6814, %v6816
    %v6833 = vsel %vm1087, %v6816, %v6818
    %v6834 = vsel %vm1087, %v6818, %v6820
    %v6835 = vsel %vm1087, %v6820, %v6822
    %v6836 = vsel %vm1087, %v6822, %v6824
    %6849 = vst [vmem:[#allocation2 + $0x240] sm:$0xff] %v6825
    %6850 = vst [vmem:[#allocation2 + $0x248] sm:$0xff] %v6826
    %6851 = vst [vmem:[#allocation2 + $0x250] sm:$0xff] %v6827
    %6852 = vst [vmem:[#allocation2 + $0x258] sm:$0xff] %v6828
    %6853 = vst [vmem:[#allocation2 + $0x260] sm:$0xff] %v6829
    %6854 = vst [vmem:[#allocation2 + $0x268] sm:$0xff] %v6830
    %6855 = vst [vmem:[#allocation2 + $0x270] sm:$0xff] %v6831
    %6856 = vst [vmem:[#allocation2 + $0x278] sm:$0xff] %v6832
    %6857 = vst [vmem:[#allocation2 + $0x280] sm:$0xff] %v6833
    %6858 = vst [vmem:[#allocation2 + $0x288] sm:$0xff] %v6834
    %6859 = vst [vmem:[#allocation2 + $0x290] sm:$0xff] %v6835
    %6860 = vst [vmem:[#allocation2 + $0x298] sm:$0xff] %v6836
    %v6861 = vld [vmem:[#allocation14 + $0x8] sm:$0xff]
    %v6862 = vld [vmem:[#allocation14 + $0x10] sm:$0xff]
    %v6863 = vld [vmem:[#allocation14 + $0x18] sm:$0xff]
    %v6864 = vld [vmem:[#allocation14 + $0x20] sm:$0xff]
    %v6865 = vld [vmem:[#allocation14 + $0x28] sm:$0xff]
    %v6866 = vld [vmem:[#allocation14 + $0x30] sm:$0xff]
    %v6867 = vld [vmem:[#allocation14 + $0x38] sm:$0xff]
    %v6868 = vld [vmem:[#allocation14 + $0x48] sm:$0xff]
    %v6869 = vld [vmem:[#allocation14 + $0x50] sm:$0xff]
    %v6870 = vld [vmem:[#allocation14 + $0x58] sm:$0xff]
    %v6871 = vld [vmem:[#allocation14 + $0x60] sm:$0xff]
    %v6872 = vld [vmem:[#allocation14 + $0x68] sm:$0xff]
    %v6873 = vld [vmem:[#allocation14 + $0x70] sm:$0xff]
    %v6874 = vld [vmem:[#allocation14 + $0x78] sm:$0xff]
    %6889 = vrot.lane.b32.xlu0 %v6861, 110
    %v6890 = vpop.permute.xlu0 %6889
    %6891 = vrot.lane.b32.xlu0 %v6862, 110
    %v6892 = vpop.permute.xlu0 %6891
    %6893 = vrot.lane.b32.xlu0 %v6863, 110
    %v6894 = vpop.permute.xlu0 %6893
    %6895 = vrot.lane.b32.xlu0 %v6864, 110
    %v6896 = vpop.permute.xlu0 %6895
    %6897 = vrot.lane.b32.xlu0 %v6865, 110
    %v6898 = vpop.permute.xlu0 %6897
    %6899 = vrot.lane.b32.xlu0 %v6866, 110
    %v6900 = vpop.permute.xlu0 %6899
    %6901 = vrot.lane.b32.xlu0 %v6867, 110
    %v6902 = vpop.permute.xlu0 %6901
    %6903 = vrot.lane.b32.xlu0 %v6868, 110
    %v6904 = vpop.permute.xlu0 %6903
    %6905 = vrot.lane.b32.xlu0 %v6869, 110
    %v6906 = vpop.permute.xlu0 %6905
    %6907 = vrot.lane.b32.xlu0 %v6870, 110
    %v6908 = vpop.permute.xlu0 %6907
    %6909 = vrot.lane.b32.xlu0 %v6871, 110
    %v6910 = vpop.permute.xlu0 %6909
    %6911 = vrot.lane.b32.xlu0 %v6872, 110
    %v6912 = vpop.permute.xlu0 %6911
    %6913 = vrot.lane.b32.xlu0 %v6873, 110
    %v6914 = vpop.permute.xlu0 %6913
    %6915 = vrot.lane.b32.xlu0 %v6874, 110
    %v6916 = vpop.permute.xlu0 %6915
    %v6917 = vsel %vm404, %v6890, %v6892
    %v6918 = vsel %vm404, %v6892, %v6894
    %v6919 = vsel %vm404, %v6894, %v6896
    %v6920 = vsel %vm404, %v6896, %v6898
    %v6921 = vsel %vm404, %v6898, %v6900
    %v6922 = vsel %vm404, %v6900, %v6902
    %v6923 = vsel %vm404, %v6904, %v6906
    %v6924 = vsel %vm404, %v6906, %v6908
    %v6925 = vsel %vm404, %v6908, %v6910
    %v6926 = vsel %vm404, %v6910, %v6912
    %v6927 = vsel %vm404, %v6912, %v6914
    %v6928 = vsel %vm404, %v6914, %v6916
    %6941 = vst [vmem:[#allocation2 + $0x2a0] sm:$0xff] %v6917
    %6942 = vst [vmem:[#allocation2 + $0x2a8] sm:$0xff] %v6918
    %6943 = vst [vmem:[#allocation2 + $0x2b0] sm:$0xff] %v6919
    %6944 = vst [vmem:[#allocation2 + $0x2b8] sm:$0xff] %v6920
    %6945 = vst [vmem:[#allocation2 + $0x2c0] sm:$0xff] %v6921
    %6946 = vst [vmem:[#allocation2 + $0x2c8] sm:$0xff] %v6922
    %6947 = vst [vmem:[#allocation2 + $0x2d0] sm:$0xff] %v6923
    %6948 = vst [vmem:[#allocation2 + $0x2d8] sm:$0xff] %v6924
    %6949 = vst [vmem:[#allocation2 + $0x2e0] sm:$0xff] %v6925
    %6950 = vst [vmem:[#allocation2 + $0x2e8] sm:$0xff] %v6926
    %6951 = vst [vmem:[#allocation2 + $0x2f0] sm:$0xff] %v6927
    %6952 = vst [vmem:[#allocation2 + $0x2f8] sm:$0xff] %v6928
    %v6953 = vld [vmem:[#allocation14 + $0x8] sm:$0xff]
    %v6954 = vld [vmem:[#allocation14 + $0x10] sm:$0xff]
    %v6955 = vld [vmem:[#allocation14 + $0x18] sm:$0xff]
    %v6956 = vld [vmem:[#allocation14 + $0x20] sm:$0xff]
    %v6957 = vld [vmem:[#allocation14 + $0x28] sm:$0xff]
    %v6958 = vld [vmem:[#allocation14 + $0x30] sm:$0xff]
    %v6959 = vld [vmem:[#allocation14 + $0x38] sm:$0xff]
    %v6960 = vld [vmem:[#allocation14 + $0x48] sm:$0xff]
    %v6961 = vld [vmem:[#allocation14 + $0x50] sm:$0xff]
    %v6962 = vld [vmem:[#allocation14 + $0x58] sm:$0xff]
    %v6963 = vld [vmem:[#allocation14 + $0x60] sm:$0xff]
    %v6964 = vld [vmem:[#allocation14 + $0x68] sm:$0xff]
    %v6965 = vld [vmem:[#allocation14 + $0x70] sm:$0xff]
    %v6966 = vld [vmem:[#allocation14 + $0x78] sm:$0xff]
    %6981 = vrot.lane.b32.xlu0 %v6953, 109
    %v6982 = vpop.permute.xlu0 %6981
    %6983 = vrot.lane.b32.xlu0 %v6954, 109
    %v6984 = vpop.permute.xlu0 %6983
    %6985 = vrot.lane.b32.xlu0 %v6955, 109
    %v6986 = vpop.permute.xlu0 %6985
    %6987 = vrot.lane.b32.xlu0 %v6956, 109
    %v6988 = vpop.permute.xlu0 %6987
    %6989 = vrot.lane.b32.xlu0 %v6957, 109
    %v6990 = vpop.permute.xlu0 %6989
    %6991 = vrot.lane.b32.xlu0 %v6958, 109
    %v6992 = vpop.permute.xlu0 %6991
    %6993 = vrot.lane.b32.xlu0 %v6959, 109
    %v6994 = vpop.permute.xlu0 %6993
    %6995 = vrot.lane.b32.xlu0 %v6960, 109
    %v6996 = vpop.permute.xlu0 %6995
    %6997 = vrot.lane.b32.xlu0 %v6961, 109
    %v6998 = vpop.permute.xlu0 %6997
    %6999 = vrot.lane.b32.xlu0 %v6962, 109
    %v7000 = vpop.permute.xlu0 %6999
    %7001 = vrot.lane.b32.xlu0 %v6963, 109
    %v7002 = vpop.permute.xlu0 %7001
    %7003 = vrot.lane.b32.xlu0 %v6964, 109
    %v7004 = vpop.permute.xlu0 %7003
    %7005 = vrot.lane.b32.xlu0 %v6965, 109
    %v7006 = vpop.permute.xlu0 %7005
    %7007 = vrot.lane.b32.xlu0 %v6966, 109
    %v7008 = vpop.permute.xlu0 %7007
    %v7009 = vsel %vm467, %v6982, %v6984
    %v7010 = vsel %vm467, %v6984, %v6986
    %v7011 = vsel %vm467, %v6986, %v6988
    %v7012 = vsel %vm467, %v6988, %v6990
    %v7013 = vsel %vm467, %v6990, %v6992
    %v7014 = vsel %vm467, %v6992, %v6994
    %v7015 = vsel %vm467, %v6996, %v6998
    %v7016 = vsel %vm467, %v6998, %v7000
    %v7017 = vsel %vm467, %v7000, %v7002
    %v7018 = vsel %vm467, %v7002, %v7004
    %v7019 = vsel %vm467, %v7004, %v7006
    %v7020 = vsel %vm467, %v7006, %v7008
    %7033 = vst [vmem:[#allocation2 + $0x300] sm:$0xff] %v7009
    %7034 = vst [vmem:[#allocation2 + $0x308] sm:$0xff] %v7010
    %7035 = vst [vmem:[#allocation2 + $0x310] sm:$0xff] %v7011
    %7036 = vst [vmem:[#allocation2 + $0x318] sm:$0xff] %v7012
    %7037 = vst [vmem:[#allocation2 + $0x320] sm:$0xff] %v7013
    %7038 = vst [vmem:[#allocation2 + $0x328] sm:$0xff] %v7014
    %7039 = vst [vmem:[#allocation2 + $0x330] sm:$0xff] %v7015
    %7040 = vst [vmem:[#allocation2 + $0x338] sm:$0xff] %v7016
    %7041 = vst [vmem:[#allocation2 + $0x340] sm:$0xff] %v7017
    %7042 = vst [vmem:[#allocation2 + $0x348] sm:$0xff] %v7018
    %7043 = vst [vmem:[#allocation2 + $0x350] sm:$0xff] %v7019
    %7044 = vst [vmem:[#allocation2 + $0x358] sm:$0xff] %v7020
    %v7045 = vld [vmem:[%s35] sm:$0xff]
    %v7046 = vld [vmem:[#allocation2] sm:$0xff]
    %v7047 = vld [vmem:[#allocation2 + $0x8] sm:$0xff]
    %v7048 = vld [vmem:[#allocation2 + $0x10] sm:$0xff]
    %v7049 = vld [vmem:[#allocation2 + $0x18] sm:$0xff]
    %v7050 = vld [vmem:[#allocation2 + $0x20] sm:$0xff]
    %v7051 = vld [vmem:[#allocation2 + $0x28] sm:$0xff]
    %v7052 = vld [vmem:[#allocation2 + $0x30] sm:$0xff]
    %v7053 = vld [vmem:[#allocation2 + $0x38] sm:$0xff]
    %v7054 = vld [vmem:[#allocation2 + $0x40] sm:$0xff]
    %v7055 = vld [vmem:[#allocation2 + $0x48] sm:$0xff]
    %v7056 = vld [vmem:[#allocation2 + $0x50] sm:$0xff]
    %v7057 = vld [vmem:[#allocation2 + $0x58] sm:$0xff]
    %v7058 = vld [vmem:[#allocation2 + $0x60] sm:$0xff]
    %v7059 = vld [vmem:[#allocation2 + $0x68] sm:$0xff]
    %v7060 = vld [vmem:[#allocation2 + $0x70] sm:$0xff]
    %v7061 = vld [vmem:[#allocation2 + $0x78] sm:$0xff]
    %v7062 = vld [vmem:[#allocation2 + $0x80] sm:$0xff]
    %v7063 = vld [vmem:[#allocation2 + $0x88] sm:$0xff]
    %v7064 = vld [vmem:[#allocation2 + $0x90] sm:$0xff]
    %v7065 = vld [vmem:[#allocation2 + $0x98] sm:$0xff]
    %v7066 = vld [vmem:[#allocation2 + $0xa0] sm:$0xff]
    %v7067 = vld [vmem:[#allocation2 + $0xa8] sm:$0xff]
    %v7068 = vld [vmem:[#allocation2 + $0xb0] sm:$0xff]
    %v7069 = vld [vmem:[#allocation2 + $0xb8] sm:$0xff]
    %v7070 = vld [vmem:[#allocation2 + $0xc0] sm:$0xff]
    %v7071 = vld [vmem:[#allocation2 + $0xc8] sm:$0xff]
    %v7072 = vld [vmem:[#allocation2 + $0xd0] sm:$0xff]
    %v7073 = vld [vmem:[#allocation2 + $0xd8] sm:$0xff]
    %v7074 = vld [vmem:[#allocation2 + $0xe0] sm:$0xff]
    %v7075 = vld [vmem:[#allocation2 + $0xe8] sm:$0xff]
    %v7076 = vld [vmem:[#allocation2 + $0xf0] sm:$0xff]
    %v7077 = vld [vmem:[#allocation2 + $0xf8] sm:$0xff]
    %v7078 = vld [vmem:[#allocation2 + $0x100] sm:$0xff]
    %v7079 = vld [vmem:[#allocation2 + $0x108] sm:$0xff]
    %v7080 = vld [vmem:[#allocation2 + $0x110] sm:$0xff]
    %v7081 = vld [vmem:[#allocation2 + $0x118] sm:$0xff]
    %v7082 = vld [vmem:[#allocation2 + $0x120] sm:$0xff]
    %v7083 = vld [vmem:[#allocation2 + $0x128] sm:$0xff]
    %v7084 = vld [vmem:[#allocation2 + $0x130] sm:$0xff]
    %v7085 = vld [vmem:[#allocation2 + $0x138] sm:$0xff]
    %v7086 = vld [vmem:[#allocation2 + $0x140] sm:$0xff]
    %v7087 = vld [vmem:[#allocation2 + $0x148] sm:$0xff]
    %v7088 = vld [vmem:[#allocation2 + $0x150] sm:$0xff]
    %v7089 = vld [vmem:[#allocation2 + $0x158] sm:$0xff]
    %v7090 = vld [vmem:[#allocation2 + $0x160] sm:$0xff]
    %v7091 = vld [vmem:[#allocation2 + $0x168] sm:$0xff]
    %v7092 = vld [vmem:[#allocation2 + $0x170] sm:$0xff]
    %v7093 = vld [vmem:[#allocation2 + $0x178] sm:$0xff]
    %v7094 = vld [vmem:[#allocation2 + $0x180] sm:$0xff]
    %v7095 = vld [vmem:[#allocation2 + $0x188] sm:$0xff]
    %v7096 = vld [vmem:[#allocation2 + $0x190] sm:$0xff]
    %v7097 = vld [vmem:[#allocation2 + $0x198] sm:$0xff]
    %v7098 = vld [vmem:[#allocation2 + $0x1a0] sm:$0xff]
    %v7099 = vld [vmem:[#allocation2 + $0x1a8] sm:$0xff]
    %v7100 = vld [vmem:[#allocation2 + $0x1b0] sm:$0xff]
    %v7101 = vld [vmem:[#allocation2 + $0x1b8] sm:$0xff]
    %v7102 = vld [vmem:[#allocation2 + $0x1c0] sm:$0xff]
    %v7103 = vld [vmem:[#allocation2 + $0x1c8] sm:$0xff]
    %v7104 = vld [vmem:[#allocation2 + $0x1d0] sm:$0xff]
    %v7105 = vld [vmem:[#allocation2 + $0x1d8] sm:$0xff]
    %v7106 = vld [vmem:[#allocation2 + $0x1e0] sm:$0xff]
    %v7107 = vld [vmem:[#allocation2 + $0x1e8] sm:$0xff]
    %v7108 = vld [vmem:[#allocation2 + $0x1f0] sm:$0xff]
    %v7109 = vld [vmem:[#allocation2 + $0x1f8] sm:$0xff]
    %v7110 = vld [vmem:[#allocation2 + $0x200] sm:$0xff]
    %v7111 = vld [vmem:[#allocation2 + $0x208] sm:$0xff]
    %v7112 = vld [vmem:[#allocation2 + $0x210] sm:$0xff]
    %v7113 = vld [vmem:[#allocation2 + $0x218] sm:$0xff]
    %v7114 = vld [vmem:[#allocation2 + $0x220] sm:$0xff]
    %v7115 = vld [vmem:[#allocation2 + $0x228] sm:$0xff]
    %v7116 = vld [vmem:[#allocation2 + $0x230] sm:$0xff]
    %v7117 = vld [vmem:[#allocation2 + $0x238] sm:$0xff]
    %v7118 = vld [vmem:[#allocation2 + $0x240] sm:$0xff]
    %v7119 = vld [vmem:[#allocation2 + $0x248] sm:$0xff]
    %v7120 = vld [vmem:[#allocation2 + $0x250] sm:$0xff]
    %v7121 = vld [vmem:[#allocation2 + $0x258] sm:$0xff]
    %v7122 = vld [vmem:[#allocation2 + $0x260] sm:$0xff]
    %v7123 = vld [vmem:[#allocation2 + $0x268] sm:$0xff]
    %v7124 = vld [vmem:[#allocation2 + $0x270] sm:$0xff]
    %v7125 = vld [vmem:[#allocation2 + $0x278] sm:$0xff]
    %v7126 = vld [vmem:[#allocation2 + $0x280] sm:$0xff]
    %v7127 = vld [vmem:[#allocation2 + $0x288] sm:$0xff]
    %v7128 = vld [vmem:[#allocation2 + $0x290] sm:$0xff]
    %v7129 = vld [vmem:[#allocation2 + $0x298] sm:$0xff]
    %v7130 = vld [vmem:[#allocation2 + $0x2a0] sm:$0xff]
    %v7131 = vld [vmem:[#allocation2 + $0x2a8] sm:$0xff]
    %v7132 = vld [vmem:[#allocation2 + $0x2b0] sm:$0xff]
    %v7133 = vld [vmem:[#allocation2 + $0x2b8] sm:$0xff]
    %v7134 = vld [vmem:[#allocation2 + $0x2c0] sm:$0xff]
    %v7135 = vld [vmem:[#allocation2 + $0x2c8] sm:$0xff]
    %v7136 = vld [vmem:[#allocation2 + $0x2d0] sm:$0xff]
    %v7137 = vld [vmem:[#allocation2 + $0x2d8] sm:$0xff]
    %v7138 = vld [vmem:[#allocation2 + $0x2e0] sm:$0xff]
    %v7139 = vld [vmem:[#allocation2 + $0x2e8] sm:$0xff]
    %v7140 = vld [vmem:[#allocation2 + $0x2f0] sm:$0xff]
    %v7141 = vld [vmem:[#allocation2 + $0x2f8] sm:$0xff]
    %v7142 = vld [vmem:[#allocation2 + $0x300] sm:$0xff]
    %v7143 = vld [vmem:[#allocation2 + $0x308] sm:$0xff]
    %v7144 = vld [vmem:[#allocation2 + $0x310] sm:$0xff]
    %v7145 = vld [vmem:[#allocation2 + $0x318] sm:$0xff]
    %v7146 = vld [vmem:[#allocation2 + $0x320] sm:$0xff]
    %v7147 = vld [vmem:[#allocation2 + $0x328] sm:$0xff]
    %v7148 = vld [vmem:[#allocation2 + $0x330] sm:$0xff]
    %v7149 = vld [vmem:[#allocation2 + $0x338] sm:$0xff]
    %v7150 = vld [vmem:[#allocation2 + $0x340] sm:$0xff]
    %v7151 = vld [vmem:[#allocation2 + $0x348] sm:$0xff]
    %v7152 = vld [vmem:[#allocation2 + $0x350] sm:$0xff]
    %v7153 = vld [vmem:[#allocation2 + $0x358] sm:$0xff]
    %v7154 = vpack.c.bf16 %v7052, %v7046
    %v7155 = vpack.c.bf16 %v7053, %v7047
    %v7156 = vpack.c.bf16 %v7054, %v7048
    %v7157 = vpack.c.bf16 %v7055, %v7049
    %v7158 = vpack.c.bf16 %v7056, %v7050
    %v7159 = vpack.c.bf16 %v7057, %v7051
    %v7160 = vpack.c.bf16 %v7064, %v7058
    %v7161 = vpack.c.bf16 %v7065, %v7059
    %v7162 = vpack.c.bf16 %v7066, %v7060
    %v7163 = vpack.c.bf16 %v7067, %v7061
    %v7164 = vpack.c.bf16 %v7068, %v7062
    %v7165 = vpack.c.bf16 %v7069, %v7063
    %v7166 = vpack.c.bf16 %v7076, %v7070
    %v7167 = vpack.c.bf16 %v7077, %v7071
    %v7168 = vpack.c.bf16 %v7078, %v7072
    %v7169 = vpack.c.bf16 %v7079, %v7073
    %v7170 = vpack.c.bf16 %v7080, %v7074
    %v7171 = vpack.c.bf16 %v7081, %v7075
    %v7172 = vpack.c.bf16 %v7088, %v7082
    %v7173 = vpack.c.bf16 %v7089, %v7083
    %v7174 = vpack.c.bf16 %v7090, %v7084
    %v7175 = vpack.c.bf16 %v7091, %v7085
    %v7176 = vpack.c.bf16 %v7092, %v7086
    %v7177 = vpack.c.bf16 %v7093, %v7087
    %v7178 = vpack.c.bf16 %v7100, %v7094
    %v7179 = vpack.c.bf16 %v7101, %v7095
    %v7180 = vpack.c.bf16 %v7102, %v7096
    %v7181 = vpack.c.bf16 %v7103, %v7097
    %v7182 = vpack.c.bf16 %v7104, %v7098
    %v7183 = vpack.c.bf16 %v7105, %v7099
    %v7184 = vpack.c.bf16 %v7112, %v7106
    %v7185 = vpack.c.bf16 %v7113, %v7107
    %v7186 = vpack.c.bf16 %v7114, %v7108
    %v7187 = vpack.c.bf16 %v7115, %v7109
    %v7188 = vpack.c.bf16 %v7116, %v7110
    %v7189 = vpack.c.bf16 %v7117, %v7111
    %v7190 = vpack.c.bf16 %v7124, %v7118
    %v7191 = vpack.c.bf16 %v7125, %v7119
    %v7192 = vpack.c.bf16 %v7126, %v7120
    %v7193 = vpack.c.bf16 %v7127, %v7121
    %v7194 = vpack.c.bf16 %v7128, %v7122
    %v7195 = vpack.c.bf16 %v7129, %v7123
    %v7196 = vpack.c.bf16 %v7136, %v7130
    %v7197 = vpack.c.bf16 %v7137, %v7131
    %v7198 = vpack.c.bf16 %v7138, %v7132
    %v7199 = vpack.c.bf16 %v7139, %v7133
    %v7200 = vpack.c.bf16 %v7140, %v7134
    %v7201 = vpack.c.bf16 %v7141, %v7135
    %v7202 = vpack.c.bf16 %v7148, %v7142
    %v7203 = vpack.c.bf16 %v7149, %v7143
    %v7204 = vpack.c.bf16 %v7150, %v7144
    %v7205 = vpack.c.bf16 %v7151, %v7145
    %v7206 = vpack.c.bf16 %v7152, %v7146
    %v7207 = vpack.c.bf16 %v7153, %v7147
    %v7208 = vld [vmem:[%s37] sm:$0xff]
    %7210 = vset.pattern.permute.xlu0 0
    %7211 = vperm.xlu0 %7210, %v7208
    %v7212 = vpop.permute.xlu0 %7211
    %v7215 = vunpack.c.l.b16 %v7045
    %v7216 = vunpack.c.h.b16 %v7045
    %v7217 = vpack.c.b16 %v7215, %v7215
    %v7218 = vpack.c.b16 %v7216, %v7216
    %v7221 = vsel %vm2890, %v7218, 0
    %7223 = vmatpush.bf16.msra.mxu0 %v7196
    %7224 = vmatpush.bf16.msra.mxu0 %v7190
    %7225 = vmatpush.bf16.msra.mxu0 %v7184
    %7226 = vmatpush.bf16.msra.mxu0 %v7178
    %7227 = vmatpush.bf16.msra.mxu0 %v7172
    %7228 = vmatpush.bf16.msra.mxu0 %v7166
    %7229 = vmatpush.bf16.msra.mxu0 %v7160
    %7230 = vmatpush.bf16.msra.mxu0 %v7154
    %7231 = vmatmul.bf16.gmra.mxu0 %v7217
    %v7232 = vpop.f32.mrf.mxu0
    %v7233 = vadd.f32 %v7212, %v7232
    %v7234 = vpop.f32.mrf.mxu0
    %7235 = vdwg.mxu0
    %7236 = vmatpush.bf16.msra.mxu0 0
    %7237 = vmatpush.bf16.msra.mxu0 0
    %7238 = vmatpush.bf16.msra.mxu0 0
    %7239 = vmatpush.bf16.msra.mxu0 0
    %7240 = vmatpush.bf16.msra.mxu0 0
    %7241 = vmatpush.bf16.msra.mxu0 0
    %7242 = vmatpush.bf16.msra.mxu0 0
    %7243 = vmatpush.bf16.msra.mxu0 %v7202
    %7244 = vmatmul.bf16.gmra.mxu0 %v7221
    %v7245 = vpop.f32.mrf.mxu0
    %v7246 = vadd.f32 %v7233, %v7245
    %v7247 = vpop.f32.mrf.mxu0
    %7248 = vdwg.mxu0
    %7249 = vmatpush.bf16.msra.mxu0 %v7197
    %7250 = vmatpush.bf16.msra.mxu0 %v7191
    %7251 = vmatpush.bf16.msra.mxu0 %v7185
    %7252 = vmatpush.bf16.msra.mxu0 %v7179
    %7253 = vmatpush.bf16.msra.mxu0 %v7173
    %7254 = vmatpush.bf16.msra.mxu0 %v7167
    %7255 = vmatpush.bf16.msra.mxu0 %v7161
    %7256 = vmatpush.bf16.msra.mxu0 %v7155
    %7257 = vmatmul.bf16.gmra.mxu0 %v7217
    %v7258 = vpop.f32.mrf.mxu0
    %v7259 = vadd.f32 %v7212, %v7258
    %v7260 = vpop.f32.mrf.mxu0
    %7261 = vdwg.mxu0
    %7262 = vmatpush.bf16.msra.mxu0 0
    %7263 = vmatpush.bf16.msra.mxu0 0
    %7264 = vmatpush.bf16.msra.mxu0 0
    %7265 = vmatpush.bf16.msra.mxu0 0
    %7266 = vmatpush.bf16.msra.mxu0 0
    %7267 = vmatpush.bf16.msra.mxu0 0
    %7268 = vmatpush.bf16.msra.mxu0 0
    %7269 = vmatpush.bf16.msra.mxu0 %v7203
    %7270 = vmatmul.bf16.gmra.mxu0 %v7221
    %v7271 = vpop.f32.mrf.mxu0
    %v7272 = vadd.f32 %v7259, %v7271
    %v7273 = vpop.f32.mrf.mxu0
    %7274 = vdwg.mxu0
    %7275 = vmatpush.bf16.msra.mxu0 %v7198
    %7276 = vmatpush.bf16.msra.mxu0 %v7192
    %7277 = vmatpush.bf16.msra.mxu0 %v7186
    %7278 = vmatpush.bf16.msra.mxu0 %v7180
    %7279 = vmatpush.bf16.msra.mxu0 %v7174
    %7280 = vmatpush.bf16.msra.mxu0 %v7168
    %7281 = vmatpush.bf16.msra.mxu0 %v7162
    %7282 = vmatpush.bf16.msra.mxu0 %v7156
    %7283 = vmatmul.bf16.gmra.mxu0 %v7217
    %v7284 = vpop.f32.mrf.mxu0
    %v7285 = vadd.f32 %v7212, %v7284
    %v7286 = vpop.f32.mrf.mxu0
    %7287 = vdwg.mxu0
    %7288 = vmatpush.bf16.msra.mxu0 0
    %7289 = vmatpush.bf16.msra.mxu0 0
    %7290 = vmatpush.bf16.msra.mxu0 0
    %7291 = vmatpush.bf16.msra.mxu0 0
    %7292 = vmatpush.bf16.msra.mxu0 0
    %7293 = vmatpush.bf16.msra.mxu0 0
    %7294 = vmatpush.bf16.msra.mxu0 0
    %7295 = vmatpush.bf16.msra.mxu0 %v7204
    %7296 = vmatmul.bf16.gmra.mxu0 %v7221
    %v7297 = vpop.f32.mrf.mxu0
    %v7298 = vadd.f32 %v7285, %v7297
    %v7299 = vpop.f32.mrf.mxu0
    %7300 = vdwg.mxu0
    %7301 = vmatpush.bf16.msra.mxu0 %v7199
    %7302 = vmatpush.bf16.msra.mxu0 %v7193
    %7303 = vmatpush.bf16.msra.mxu0 %v7187
    %7304 = vmatpush.bf16.msra.mxu0 %v7181
    %7305 = vmatpush.bf16.msra.mxu0 %v7175
    %7306 = vmatpush.bf16.msra.mxu0 %v7169
    %7307 = vmatpush.bf16.msra.mxu0 %v7163
    %7308 = vmatpush.bf16.msra.mxu0 %v7157
    %7309 = vmatmul.bf16.gmra.mxu0 %v7217
    %v7310 = vpop.f32.mrf.mxu0
    %v7311 = vadd.f32 %v7212, %v7310
    %v7312 = vpop.f32.mrf.mxu0
    %7313 = vdwg.mxu0
    %7314 = vmatpush.bf16.msra.mxu0 0
    %7315 = vmatpush.bf16.msra.mxu0 0
    %7316 = vmatpush.bf16.msra.mxu0 0
    %7317 = vmatpush.bf16.msra.mxu0 0
    %7318 = vmatpush.bf16.msra.mxu0 0
    %7319 = vmatpush.bf16.msra.mxu0 0
    %7320 = vmatpush.bf16.msra.mxu0 0
    %7321 = vmatpush.bf16.msra.mxu0 %v7205
    %7322 = vmatmul.bf16.gmra.mxu0 %v7221
    %v7323 = vpop.f32.mrf.mxu0
    %v7324 = vadd.f32 %v7311, %v7323
    %v7325 = vpop.f32.mrf.mxu0
    %7326 = vdwg.mxu0
    %7327 = vmatpush.bf16.msra.mxu0 %v7200
    %7328 = vmatpush.bf16.msra.mxu0 %v7194
    %7329 = vmatpush.bf16.msra.mxu0 %v7188
    %7330 = vmatpush.bf16.msra.mxu0 %v7182
    %7331 = vmatpush.bf16.msra.mxu0 %v7176
    %7332 = vmatpush.bf16.msra.mxu0 %v7170
    %7333 = vmatpush.bf16.msra.mxu0 %v7164
    %7334 = vmatpush.bf16.msra.mxu0 %v7158
    %7335 = vmatmul.bf16.gmra.mxu0 %v7217
    %v7336 = vpop.f32.mrf.mxu0
    %v7337 = vadd.f32 %v7212, %v7336
    %v7338 = vpop.f32.mrf.mxu0
    %7339 = vdwg.mxu0
    %7340 = vmatpush.bf16.msra.mxu0 0
    %7341 = vmatpush.bf16.msra.mxu0 0
    %7342 = vmatpush.bf16.msra.mxu0 0
    %7343 = vmatpush.bf16.msra.mxu0 0
    %7344 = vmatpush.bf16.msra.mxu0 0
    %7345 = vmatpush.bf16.msra.mxu0 0
    %7346 = vmatpush.bf16.msra.mxu0 0
    %7347 = vmatpush.bf16.msra.mxu0 %v7206
    %7348 = vmatmul.bf16.gmra.mxu0 %v7221
    %v7349 = vpop.f32.mrf.mxu0
    %v7350 = vadd.f32 %v7337, %v7349
    %v7351 = vpop.f32.mrf.mxu0
    %7352 = vdwg.mxu0
    %7353 = vmatpush.bf16.msra.mxu0 %v7201
    %7354 = vmatpush.bf16.msra.mxu0 %v7195
    %7355 = vmatpush.bf16.msra.mxu0 %v7189
    %7356 = vmatpush.bf16.msra.mxu0 %v7183
    %7357 = vmatpush.bf16.msra.mxu0 %v7177
    %7358 = vmatpush.bf16.msra.mxu0 %v7171
    %7359 = vmatpush.bf16.msra.mxu0 %v7165
    %7360 = vmatpush.bf16.msra.mxu0 %v7159
    %7361 = vmatmul.bf16.gmra.mxu0 %v7217
    %v7362 = vpop.f32.mrf.mxu0
    %v7363 = vadd.f32 %v7212, %v7362
    %v7364 = vpop.f32.mrf.mxu0
    %7365 = vdwg.mxu0
    %7366 = vmatpush.bf16.msra.mxu0 0
    %7367 = vmatpush.bf16.msra.mxu0 0
    %7368 = vmatpush.bf16.msra.mxu0 0
    %7369 = vmatpush.bf16.msra.mxu0 0
    %7370 = vmatpush.bf16.msra.mxu0 0
    %7371 = vmatpush.bf16.msra.mxu0 0
    %7372 = vmatpush.bf16.msra.mxu0 0
    %7373 = vmatpush.bf16.msra.mxu0 %v7207
    %7374 = vmatmul.bf16.gmra.mxu0 %v7221
    %v7375 = vpop.f32.mrf.mxu0
    %v7376 = vadd.f32 %v7363, %v7375
    %v7377 = vpop.f32.mrf.mxu0
    %7378 = vdwg.mxu0
    %v7379 = vmax.f32 %v7246, 0.0
    %v7380 = vmax.f32 %v7272, 0.0
    %v7381 = vmax.f32 %v7298, 0.0
    %v7382 = vmax.f32 %v7324, 0.0
    %v7383 = vmax.f32 %v7350, 0.0
    %v7384 = vmax.f32 %v7376, 0.0
    %v7385 = vld [vmem:[%s47] sm:$0x3f]
    %v7387 = vperm.slane %v7385, 0
    %v7388 = vperm.slane %v7385, 1
    %v7389 = vperm.slane %v7385, 2
    %v7390 = vperm.slane %v7385, 3
    %v7391 = vperm.slane %v7385, 4
    %v7392 = vperm.slane %v7385, 5
    %v7399 = vmul.f32 %v7379, %v7387
    %v7400 = vmul.f32 %v7380, %v7388
    %v7401 = vmul.f32 %v7381, %v7389
    %v7402 = vmul.f32 %v7382, %v7390
    %v7403 = vmul.f32 %v7383, %v7391
    %v7404 = vmul.f32 %v7384, %v7392
    %7405 = vst [vmem:[#allocation15 + $0x8] sm:$0xff] %v7399
    %7406 = vst [vmem:[#allocation15 + $0x10] sm:$0xff] %v7400
    %7407 = vst [vmem:[#allocation15 + $0x18] sm:$0xff] %v7401
    %7408 = vst [vmem:[#allocation15 + $0x20] sm:$0xff] %v7402
    %7409 = vst [vmem:[#allocation15 + $0x28] sm:$0xff] %v7403
    %7410 = vst [vmem:[#allocation15 + $0x30] sm:$0xff] %v7404
    %v7411 = vld [vmem:[#allocation15] sm:$0xff]
    %v7412 = vld [vmem:[#allocation15 + $0x8] sm:$0xff]
    %v7413 = vld [vmem:[#allocation15 + $0x10] sm:$0xff]
    %v7414 = vld [vmem:[#allocation15 + $0x18] sm:$0xff]
    %v7415 = vld [vmem:[#allocation15 + $0x20] sm:$0xff]
    %v7416 = vld [vmem:[#allocation15 + $0x28] sm:$0xff]
    %v7417 = vld [vmem:[#allocation15 + $0x30] sm:$0xff]
    %7425 = vrot.lane.b32.xlu0 %v7411, 19
    %v7426 = vpop.permute.xlu0 %7425
    %7427 = vrot.lane.b32.xlu0 %v7412, 19
    %v7428 = vpop.permute.xlu0 %7427
    %7429 = vrot.lane.b32.xlu0 %v7413, 19
    %v7430 = vpop.permute.xlu0 %7429
    %7431 = vrot.lane.b32.xlu0 %v7414, 19
    %v7432 = vpop.permute.xlu0 %7431
    %7433 = vrot.lane.b32.xlu0 %v7415, 19
    %v7434 = vpop.permute.xlu0 %7433
    %7435 = vrot.lane.b32.xlu0 %v7416, 19
    %v7436 = vpop.permute.xlu0 %7435
    %7437 = vrot.lane.b32.xlu0 %v7417, 19
    %v7438 = vpop.permute.xlu0 %7437
    %v7439 = vsel %vm795, %v7426, %v7428
    %v7440 = vsel %vm795, %v7428, %v7430
    %v7441 = vsel %vm795, %v7430, %v7432
    %v7442 = vsel %vm795, %v7432, %v7434
    %v7443 = vsel %vm795, %v7434, %v7436
    %v7444 = vsel %vm795, %v7436, %v7438
    %7451 = vst [vmem:[#allocation2] sm:$0xff] %v7439
    %7452 = vst [vmem:[#allocation2 + $0x8] sm:$0xff] %v7440
    %7453 = vst [vmem:[#allocation2 + $0x10] sm:$0xff] %v7441
    %7454 = vst [vmem:[#allocation2 + $0x18] sm:$0xff] %v7442
    %7455 = vst [vmem:[#allocation2 + $0x20] sm:$0xff] %v7443
    %7456 = vst [vmem:[#allocation2 + $0x28] sm:$0xff] %v7444
    %v7457 = vld [vmem:[#allocation15] sm:$0xff]
    %v7458 = vld [vmem:[#allocation15 + $0x8] sm:$0xff]
    %v7459 = vld [vmem:[#allocation15 + $0x10] sm:$0xff]
    %v7460 = vld [vmem:[#allocation15 + $0x18] sm:$0xff]
    %v7461 = vld [vmem:[#allocation15 + $0x20] sm:$0xff]
    %v7462 = vld [vmem:[#allocation15 + $0x28] sm:$0xff]
    %v7463 = vld [vmem:[#allocation15 + $0x30] sm:$0xff]
    %7471 = vrot.lane.b32.xlu0 %v7457, 18
    %v7472 = vpop.permute.xlu0 %7471
    %7473 = vrot.lane.b32.xlu0 %v7458, 18
    %v7474 = vpop.permute.xlu0 %7473
    %7475 = vrot.lane.b32.xlu0 %v7459, 18
    %v7476 = vpop.permute.xlu0 %7475
    %7477 = vrot.lane.b32.xlu0 %v7460, 18
    %v7478 = vpop.permute.xlu0 %7477
    %7479 = vrot.lane.b32.xlu0 %v7461, 18
    %v7480 = vpop.permute.xlu0 %7479
    %7481 = vrot.lane.b32.xlu0 %v7462, 18
    %v7482 = vpop.permute.xlu0 %7481
    %7483 = vrot.lane.b32.xlu0 %v7463, 18
    %v7484 = vpop.permute.xlu0 %7483
    %v7485 = vsel %vm888, %v7472, %v7474
    %v7486 = vsel %vm888, %v7474, %v7476
    %v7487 = vsel %vm888, %v7476, %v7478
    %v7488 = vsel %vm888, %v7478, %v7480
    %v7489 = vsel %vm888, %v7480, %v7482
    %v7490 = vsel %vm888, %v7482, %v7484
    %7497 = vst [vmem:[#allocation2 + $0x30] sm:$0xff] %v7485
    %7498 = vst [vmem:[#allocation2 + $0x38] sm:$0xff] %v7486
    %7499 = vst [vmem:[#allocation2 + $0x40] sm:$0xff] %v7487
    %7500 = vst [vmem:[#allocation2 + $0x48] sm:$0xff] %v7488
    %7501 = vst [vmem:[#allocation2 + $0x50] sm:$0xff] %v7489
    %7502 = vst [vmem:[#allocation2 + $0x58] sm:$0xff] %v7490
    %v7503 = vld [vmem:[#allocation15] sm:$0xff]
    %v7504 = vld [vmem:[#allocation15 + $0x8] sm:$0xff]
    %v7505 = vld [vmem:[#allocation15 + $0x10] sm:$0xff]
    %v7506 = vld [vmem:[#allocation15 + $0x18] sm:$0xff]
    %v7507 = vld [vmem:[#allocation15 + $0x20] sm:$0xff]
    %v7508 = vld [vmem:[#allocation15 + $0x28] sm:$0xff]
    %v7509 = vld [vmem:[#allocation15 + $0x30] sm:$0xff]
    %7517 = vrot.lane.b32.xlu0 %v7503, 17
    %v7518 = vpop.permute.xlu0 %7517
    %7519 = vrot.lane.b32.xlu0 %v7504, 17
    %v7520 = vpop.permute.xlu0 %7519
    %7521 = vrot.lane.b32.xlu0 %v7505, 17
    %v7522 = vpop.permute.xlu0 %7521
    %7523 = vrot.lane.b32.xlu0 %v7506, 17
    %v7524 = vpop.permute.xlu0 %7523
    %7525 = vrot.lane.b32.xlu0 %v7507, 17
    %v7526 = vpop.permute.xlu0 %7525
    %7527 = vrot.lane.b32.xlu0 %v7508, 17
    %v7528 = vpop.permute.xlu0 %7527
    %7529 = vrot.lane.b32.xlu0 %v7509, 17
    %v7530 = vpop.permute.xlu0 %7529
    %v7531 = vsel %vm935, %v7518, %v7520
    %v7532 = vsel %vm935, %v7520, %v7522
    %v7533 = vsel %vm935, %v7522, %v7524
    %v7534 = vsel %vm935, %v7524, %v7526
    %v7535 = vsel %vm935, %v7526, %v7528
    %v7536 = vsel %vm935, %v7528, %v7530
    %7543 = vst [vmem:[#allocation2 + $0x60] sm:$0xff] %v7531
    %7544 = vst [vmem:[#allocation2 + $0x68] sm:$0xff] %v7532
    %7545 = vst [vmem:[#allocation2 + $0x70] sm:$0xff] %v7533
    %7546 = vst [vmem:[#allocation2 + $0x78] sm:$0xff] %v7534
    %7547 = vst [vmem:[#allocation2 + $0x80] sm:$0xff] %v7535
    %7548 = vst [vmem:[#allocation2 + $0x88] sm:$0xff] %v7536
    %v7549 = vld [vmem:[#allocation15] sm:$0xff]
    %v7550 = vld [vmem:[#allocation15 + $0x8] sm:$0xff]
    %v7551 = vld [vmem:[#allocation15 + $0x10] sm:$0xff]
    %v7552 = vld [vmem:[#allocation15 + $0x18] sm:$0xff]
    %v7553 = vld [vmem:[#allocation15 + $0x20] sm:$0xff]
    %v7554 = vld [vmem:[#allocation15 + $0x28] sm:$0xff]
    %v7555 = vld [vmem:[#allocation15 + $0x30] sm:$0xff]
    %7563 = vrot.lane.b32.xlu0 %v7549, 1
    %v7564 = vpop.permute.xlu0 %7563
    %7565 = vrot.lane.b32.xlu0 %v7550, 1
    %v7566 = vpop.permute.xlu0 %7565
    %7567 = vrot.lane.b32.xlu0 %v7551, 1
    %v7568 = vpop.permute.xlu0 %7567
    %7569 = vrot.lane.b32.xlu0 %v7552, 1
    %v7570 = vpop.permute.xlu0 %7569
    %7571 = vrot.lane.b32.xlu0 %v7553, 1
    %v7572 = vpop.permute.xlu0 %7571
    %7573 = vrot.lane.b32.xlu0 %v7554, 1
    %v7574 = vpop.permute.xlu0 %7573
    %7575 = vrot.lane.b32.xlu0 %v7555, 1
    %v7576 = vpop.permute.xlu0 %7575
    %v7577 = vsel %vm982, %v7564, %v7566
    %v7578 = vsel %vm982, %v7566, %v7568
    %v7579 = vsel %vm982, %v7568, %v7570
    %v7580 = vsel %vm982, %v7570, %v7572
    %v7581 = vsel %vm982, %v7572, %v7574
    %v7582 = vsel %vm982, %v7574, %v7576
    %7589 = vst [vmem:[#allocation2 + $0x90] sm:$0xff] %v7577
    %7590 = vst [vmem:[#allocation2 + $0x98] sm:$0xff] %v7578
    %7591 = vst [vmem:[#allocation2 + $0xa0] sm:$0xff] %v7579
    %7592 = vst [vmem:[#allocation2 + $0xa8] sm:$0xff] %v7580
    %7593 = vst [vmem:[#allocation2 + $0xb0] sm:$0xff] %v7581
    %7594 = vst [vmem:[#allocation2 + $0xb8] sm:$0xff] %v7582
    %v7595 = vld [vmem:[#allocation15 + $0x8] sm:$0xff]
    %v7596 = vld [vmem:[#allocation15 + $0x10] sm:$0xff]
    %v7597 = vld [vmem:[#allocation15 + $0x18] sm:$0xff]
    %v7598 = vld [vmem:[#allocation15 + $0x20] sm:$0xff]
    %v7599 = vld [vmem:[#allocation15 + $0x28] sm:$0xff]
    %v7600 = vld [vmem:[#allocation15 + $0x30] sm:$0xff]
    %7601 = vst [vmem:[#allocation2 + $0xc0] sm:$0xff] %v7595
    %7602 = vst [vmem:[#allocation2 + $0xc8] sm:$0xff] %v7596
    %7603 = vst [vmem:[#allocation2 + $0xd0] sm:$0xff] %v7597
    %7604 = vst [vmem:[#allocation2 + $0xd8] sm:$0xff] %v7598
    %7605 = vst [vmem:[#allocation2 + $0xe0] sm:$0xff] %v7599
    %7606 = vst [vmem:[#allocation2 + $0xe8] sm:$0xff] %v7600
    %v7607 = vld [vmem:[#allocation15 + $0x8] sm:$0xff]
    %v7608 = vld [vmem:[#allocation15 + $0x10] sm:$0xff]
    %v7609 = vld [vmem:[#allocation15 + $0x18] sm:$0xff]
    %v7610 = vld [vmem:[#allocation15 + $0x20] sm:$0xff]
    %v7611 = vld [vmem:[#allocation15 + $0x28] sm:$0xff]
    %v7612 = vld [vmem:[#allocation15 + $0x30] sm:$0xff]
    %v7613 = vld [vmem:[#allocation15 + $0x38] sm:$0xff]
    %7621 = vrot.lane.b32.xlu0 %v7607, 127
    %v7622 = vpop.permute.xlu0 %7621
    %7623 = vrot.lane.b32.xlu0 %v7608, 127
    %v7624 = vpop.permute.xlu0 %7623
    %7625 = vrot.lane.b32.xlu0 %v7609, 127
    %v7626 = vpop.permute.xlu0 %7625
    %7627 = vrot.lane.b32.xlu0 %v7610, 127
    %v7628 = vpop.permute.xlu0 %7627
    %7629 = vrot.lane.b32.xlu0 %v7611, 127
    %v7630 = vpop.permute.xlu0 %7629
    %7631 = vrot.lane.b32.xlu0 %v7612, 127
    %v7632 = vpop.permute.xlu0 %7631
    %7633 = vrot.lane.b32.xlu0 %v7613, 127
    %v7634 = vpop.permute.xlu0 %7633
    %v7635 = vsel %vm298, %v7622, %v7624
    %v7636 = vsel %vm298, %v7624, %v7626
    %v7637 = vsel %vm298, %v7626, %v7628
    %v7638 = vsel %vm298, %v7628, %v7630
    %v7639 = vsel %vm298, %v7630, %v7632
    %v7640 = vsel %vm298, %v7632, %v7634
    %7647 = vst [vmem:[#allocation2 + $0xf0] sm:$0xff] %v7635
    %7648 = vst [vmem:[#allocation2 + $0xf8] sm:$0xff] %v7636
    %7649 = vst [vmem:[#allocation2 + $0x100] sm:$0xff] %v7637
    %7650 = vst [vmem:[#allocation2 + $0x108] sm:$0xff] %v7638
    %7651 = vst [vmem:[#allocation2 + $0x110] sm:$0xff] %v7639
    %7652 = vst [vmem:[#allocation2 + $0x118] sm:$0xff] %v7640
    %v7653 = vld [vmem:[#allocation15 + $0x8] sm:$0xff]
    %v7654 = vld [vmem:[#allocation15 + $0x10] sm:$0xff]
    %v7655 = vld [vmem:[#allocation15 + $0x18] sm:$0xff]
    %v7656 = vld [vmem:[#allocation15 + $0x20] sm:$0xff]
    %v7657 = vld [vmem:[#allocation15 + $0x28] sm:$0xff]
    %v7658 = vld [vmem:[#allocation15 + $0x30] sm:$0xff]
    %v7659 = vld [vmem:[#allocation15 + $0x38] sm:$0xff]
    %7667 = vrot.lane.b32.xlu0 %v7653, 111
    %v7668 = vpop.permute.xlu0 %7667
    %7669 = vrot.lane.b32.xlu0 %v7654, 111
    %v7670 = vpop.permute.xlu0 %7669
    %7671 = vrot.lane.b32.xlu0 %v7655, 111
    %v7672 = vpop.permute.xlu0 %7671
    %7673 = vrot.lane.b32.xlu0 %v7656, 111
    %v7674 = vpop.permute.xlu0 %7673
    %7675 = vrot.lane.b32.xlu0 %v7657, 111
    %v7676 = vpop.permute.xlu0 %7675
    %7677 = vrot.lane.b32.xlu0 %v7658, 111
    %v7678 = vpop.permute.xlu0 %7677
    %7679 = vrot.lane.b32.xlu0 %v7659, 111
    %v7680 = vpop.permute.xlu0 %7679
    %v7681 = vsel %vm1087, %v7668, %v7670
    %v7682 = vsel %vm1087, %v7670, %v7672
    %v7683 = vsel %vm1087, %v7672, %v7674
    %v7684 = vsel %vm1087, %v7674, %v7676
    %v7685 = vsel %vm1087, %v7676, %v7678
    %v7686 = vsel %vm1087, %v7678, %v7680
    %7693 = vst [vmem:[#allocation2 + $0x120] sm:$0xff] %v7681
    %7694 = vst [vmem:[#allocation2 + $0x128] sm:$0xff] %v7682
    %7695 = vst [vmem:[#allocation2 + $0x130] sm:$0xff] %v7683
    %7696 = vst [vmem:[#allocation2 + $0x138] sm:$0xff] %v7684
    %7697 = vst [vmem:[#allocation2 + $0x140] sm:$0xff] %v7685
    %7698 = vst [vmem:[#allocation2 + $0x148] sm:$0xff] %v7686
    %v7699 = vld [vmem:[#allocation15 + $0x8] sm:$0xff]
    %v7700 = vld [vmem:[#allocation15 + $0x10] sm:$0xff]
    %v7701 = vld [vmem:[#allocation15 + $0x18] sm:$0xff]
    %v7702 = vld [vmem:[#allocation15 + $0x20] sm:$0xff]
    %v7703 = vld [vmem:[#allocation15 + $0x28] sm:$0xff]
    %v7704 = vld [vmem:[#allocation15 + $0x30] sm:$0xff]
    %v7705 = vld [vmem:[#allocation15 + $0x38] sm:$0xff]
    %7713 = vrot.lane.b32.xlu0 %v7699, 110
    %v7714 = vpop.permute.xlu0 %7713
    %7715 = vrot.lane.b32.xlu0 %v7700, 110
    %v7716 = vpop.permute.xlu0 %7715
    %7717 = vrot.lane.b32.xlu0 %v7701, 110
    %v7718 = vpop.permute.xlu0 %7717
    %7719 = vrot.lane.b32.xlu0 %v7702, 110
    %v7720 = vpop.permute.xlu0 %7719
    %7721 = vrot.lane.b32.xlu0 %v7703, 110
    %v7722 = vpop.permute.xlu0 %7721
    %7723 = vrot.lane.b32.xlu0 %v7704, 110
    %v7724 = vpop.permute.xlu0 %7723
    %7725 = vrot.lane.b32.xlu0 %v7705, 110
    %v7726 = vpop.permute.xlu0 %7725
    %v7727 = vsel %vm404, %v7714, %v7716
    %v7728 = vsel %vm404, %v7716, %v7718
    %v7729 = vsel %vm404, %v7718, %v7720
    %v7730 = vsel %vm404, %v7720, %v7722
    %v7731 = vsel %vm404, %v7722, %v7724
    %v7732 = vsel %vm404, %v7724, %v7726
    %7739 = vst [vmem:[#allocation2 + $0x150] sm:$0xff] %v7727
    %7740 = vst [vmem:[#allocation2 + $0x158] sm:$0xff] %v7728
    %7741 = vst [vmem:[#allocation2 + $0x160] sm:$0xff] %v7729
    %7742 = vst [vmem:[#allocation2 + $0x168] sm:$0xff] %v7730
    %7743 = vst [vmem:[#allocation2 + $0x170] sm:$0xff] %v7731
    %7744 = vst [vmem:[#allocation2 + $0x178] sm:$0xff] %v7732
    %v7745 = vld [vmem:[#allocation15 + $0x8] sm:$0xff]
    %v7746 = vld [vmem:[#allocation15 + $0x10] sm:$0xff]
    %v7747 = vld [vmem:[#allocation15 + $0x18] sm:$0xff]
    %v7748 = vld [vmem:[#allocation15 + $0x20] sm:$0xff]
    %v7749 = vld [vmem:[#allocation15 + $0x28] sm:$0xff]
    %v7750 = vld [vmem:[#allocation15 + $0x30] sm:$0xff]
    %v7751 = vld [vmem:[#allocation15 + $0x38] sm:$0xff]
    %7759 = vrot.lane.b32.xlu0 %v7745, 109
    %v7760 = vpop.permute.xlu0 %7759
    %7761 = vrot.lane.b32.xlu0 %v7746, 109
    %v7762 = vpop.permute.xlu0 %7761
    %7763 = vrot.lane.b32.xlu0 %v7747, 109
    %v7764 = vpop.permute.xlu0 %7763
    %7765 = vrot.lane.b32.xlu0 %v7748, 109
    %v7766 = vpop.permute.xlu0 %7765
    %7767 = vrot.lane.b32.xlu0 %v7749, 109
    %v7768 = vpop.permute.xlu0 %7767
    %7769 = vrot.lane.b32.xlu0 %v7750, 109
    %v7770 = vpop.permute.xlu0 %7769
    %7771 = vrot.lane.b32.xlu0 %v7751, 109
    %v7772 = vpop.permute.xlu0 %7771
    %v7773 = vsel %vm467, %v7760, %v7762
    %v7774 = vsel %vm467, %v7762, %v7764
    %v7775 = vsel %vm467, %v7764, %v7766
    %v7776 = vsel %vm467, %v7766, %v7768
    %v7777 = vsel %vm467, %v7768, %v7770
    %v7778 = vsel %vm467, %v7770, %v7772
    %7785 = vst [vmem:[#allocation2 + $0x180] sm:$0xff] %v7773
    %7786 = vst [vmem:[#allocation2 + $0x188] sm:$0xff] %v7774
    %7787 = vst [vmem:[#allocation2 + $0x190] sm:$0xff] %v7775
    %7788 = vst [vmem:[#allocation2 + $0x198] sm:$0xff] %v7776
    %7789 = vst [vmem:[#allocation2 + $0x1a0] sm:$0xff] %v7777
    %7790 = vst [vmem:[#allocation2 + $0x1a8] sm:$0xff] %v7778
    %v7791 = vld [vmem:[%s39] sm:$0xf]
    %v7792 = vld [vmem:[#allocation2] sm:$0xff]
    %v7793 = vld [vmem:[#allocation2 + $0x8] sm:$0xff]
    %v7794 = vld [vmem:[#allocation2 + $0x10] sm:$0xff]
    %v7795 = vld [vmem:[#allocation2 + $0x18] sm:$0xff]
    %v7796 = vld [vmem:[#allocation2 + $0x20] sm:$0xff]
    %v7797 = vld [vmem:[#allocation2 + $0x28] sm:$0xff]
    %v7798 = vld [vmem:[#allocation2 + $0x30] sm:$0xff]
    %v7799 = vld [vmem:[#allocation2 + $0x38] sm:$0xff]
    %v7800 = vld [vmem:[#allocation2 + $0x40] sm:$0xff]
    %v7801 = vld [vmem:[#allocation2 + $0x48] sm:$0xff]
    %v7802 = vld [vmem:[#allocation2 + $0x50] sm:$0xff]
    %v7803 = vld [vmem:[#allocation2 + $0x58] sm:$0xff]
    %v7804 = vld [vmem:[#allocation2 + $0x60] sm:$0xff]
    %v7805 = vld [vmem:[#allocation2 + $0x68] sm:$0xff]
    %v7806 = vld [vmem:[#allocation2 + $0x70] sm:$0xff]
    %v7807 = vld [vmem:[#allocation2 + $0x78] sm:$0xff]
    %v7808 = vld [vmem:[#allocation2 + $0x80] sm:$0xff]
    %v7809 = vld [vmem:[#allocation2 + $0x88] sm:$0xff]
    %v7810 = vld [vmem:[#allocation2 + $0x90] sm:$0xff]
    %v7811 = vld [vmem:[#allocation2 + $0x98] sm:$0xff]
    %v7812 = vld [vmem:[#allocation2 + $0xa0] sm:$0xff]
    %v7813 = vld [vmem:[#allocation2 + $0xa8] sm:$0xff]
    %v7814 = vld [vmem:[#allocation2 + $0xb0] sm:$0xff]
    %v7815 = vld [vmem:[#allocation2 + $0xb8] sm:$0xff]
    %v7816 = vld [vmem:[#allocation2 + $0xc0] sm:$0xff]
    %v7817 = vld [vmem:[#allocation2 + $0xc8] sm:$0xff]
    %v7818 = vld [vmem:[#allocation2 + $0xd0] sm:$0xff]
    %v7819 = vld [vmem:[#allocation2 + $0xd8] sm:$0xff]
    %v7820 = vld [vmem:[#allocation2 + $0xe0] sm:$0xff]
    %v7821 = vld [vmem:[#allocation2 + $0xe8] sm:$0xff]
    %v7822 = vld [vmem:[#allocation2 + $0xf0] sm:$0xff]
    %v7823 = vld [vmem:[#allocation2 + $0xf8] sm:$0xff]
    %v7824 = vld [vmem:[#allocation2 + $0x100] sm:$0xff]
    %v7825 = vld [vmem:[#allocation2 + $0x108] sm:$0xff]
    %v7826 = vld [vmem:[#allocation2 + $0x110] sm:$0xff]
    %v7827 = vld [vmem:[#allocation2 + $0x118] sm:$0xff]
    %v7828 = vld [vmem:[#allocation2 + $0x120] sm:$0xff]
    %v7829 = vld [vmem:[#allocation2 + $0x128] sm:$0xff]
    %v7830 = vld [vmem:[#allocation2 + $0x130] sm:$0xff]
    %v7831 = vld [vmem:[#allocation2 + $0x138] sm:$0xff]
    %v7832 = vld [vmem:[#allocation2 + $0x140] sm:$0xff]
    %v7833 = vld [vmem:[#allocation2 + $0x148] sm:$0xff]
    %v7834 = vld [vmem:[#allocation2 + $0x150] sm:$0xff]
    %v7835 = vld [vmem:[#allocation2 + $0x158] sm:$0xff]
    %v7836 = vld [vmem:[#allocation2 + $0x160] sm:$0xff]
    %v7837 = vld [vmem:[#allocation2 + $0x168] sm:$0xff]
    %v7838 = vld [vmem:[#allocation2 + $0x170] sm:$0xff]
    %v7839 = vld [vmem:[#allocation2 + $0x178] sm:$0xff]
    %v7840 = vld [vmem:[#allocation2 + $0x180] sm:$0xff]
    %v7841 = vld [vmem:[#allocation2 + $0x188] sm:$0xff]
    %v7842 = vld [vmem:[#allocation2 + $0x190] sm:$0xff]
    %v7843 = vld [vmem:[#allocation2 + $0x198] sm:$0xff]
    %v7844 = vld [vmem:[#allocation2 + $0x1a0] sm:$0xff]
    %v7845 = vld [vmem:[#allocation2 + $0x1a8] sm:$0xff]
    %v7846 = vpack.c.bf16 %v7798, %v7792
    %v7847 = vpack.c.bf16 %v7799, %v7793
    %v7848 = vpack.c.bf16 %v7800, %v7794
    %v7849 = vpack.c.bf16 %v7801, %v7795
    %v7850 = vpack.c.bf16 %v7802, %v7796
    %v7851 = vpack.c.bf16 %v7803, %v7797
    %v7852 = vpack.c.bf16 %v7810, %v7804
    %v7853 = vpack.c.bf16 %v7811, %v7805
    %v7854 = vpack.c.bf16 %v7812, %v7806
    %v7855 = vpack.c.bf16 %v7813, %v7807
    %v7856 = vpack.c.bf16 %v7814, %v7808
    %v7857 = vpack.c.bf16 %v7815, %v7809
    %v7858 = vpack.c.bf16 %v7822, %v7816
    %v7859 = vpack.c.bf16 %v7823, %v7817
    %v7860 = vpack.c.bf16 %v7824, %v7818
    %v7861 = vpack.c.bf16 %v7825, %v7819
    %v7862 = vpack.c.bf16 %v7826, %v7820
    %v7863 = vpack.c.bf16 %v7827, %v7821
    %v7864 = vpack.c.bf16 %v7834, %v7828
    %v7865 = vpack.c.bf16 %v7835, %v7829
    %v7866 = vpack.c.bf16 %v7836, %v7830
    %v7867 = vpack.c.bf16 %v7837, %v7831
    %v7868 = vpack.c.bf16 %v7838, %v7832
    %v7869 = vpack.c.bf16 %v7839, %v7833
    %v7870 = vpack.c.bf16 %v7840, %v7840
    %v7871 = vpack.c.bf16 %v7841, %v7841
    %v7872 = vpack.c.bf16 %v7842, %v7842
    %v7873 = vpack.c.bf16 %v7843, %v7843
    %v7874 = vpack.c.bf16 %v7844, %v7844
    %v7875 = vpack.c.bf16 %v7845, %v7845
    %v7876 = vld [vmem:[%s41] sm:$0xff]
    %7878 = vset.pattern.permute.xlu0 0
    %7879 = vperm.xlu0 %7878, %v7876
    %v7880 = vpop.permute.xlu0 %7879
    %v7883 = vsel %vm1289, %v7791, 0
    %v7886 = vsel %vm1293, %v7870, 0
    %v7889 = vsel %vm1293, %v7871, 0
    %v7892 = vsel %vm1293, %v7872, 0
    %v7895 = vsel %vm1293, %v7873, 0
    %v7898 = vsel %vm1293, %v7874, 0
    %v7901 = vsel %vm1293, %v7875, 0
    %7903 = vmatpush.bf16.msra.mxu0 0
    %7904 = vmatpush.bf16.msra.mxu0 0
    %7905 = vmatpush.bf16.msra.mxu0 0
    %7906 = vmatpush.bf16.msra.mxu0 %v7886
    %7907 = vmatpush.bf16.msra.mxu0 %v7864
    %7908 = vmatpush.bf16.msra.mxu0 %v7858
    %7909 = vmatpush.bf16.msra.mxu0 %v7852
    %7910 = vmatpush.bf16.msra.mxu0 %v7846
    %7911 = vmatmul.bf16.gmra.mxu0 %v7883
    %v7912 = vpop.f32.mrf.mxu0
    %v7913 = vadd.f32 %v7880, %v7912
    %v7914 = vpop.f32.mrf.mxu0
    %7915 = vdwg.mxu0
    %7916 = vmatpush.bf16.msra.mxu0 0
    %7917 = vmatpush.bf16.msra.mxu0 0
    %7918 = vmatpush.bf16.msra.mxu0 0
    %7919 = vmatpush.bf16.msra.mxu0 %v7889
    %7920 = vmatpush.bf16.msra.mxu0 %v7865
    %7921 = vmatpush.bf16.msra.mxu0 %v7859
    %7922 = vmatpush.bf16.msra.mxu0 %v7853
    %7923 = vmatpush.bf16.msra.mxu0 %v7847
    %7924 = vmatmul.bf16.gmra.mxu0 %v7883
    %v7925 = vpop.f32.mrf.mxu0
    %v7926 = vadd.f32 %v7880, %v7925
    %v7927 = vpop.f32.mrf.mxu0
    %7928 = vdwg.mxu0
    %7929 = vmatpush.bf16.msra.mxu0 0
    %7930 = vmatpush.bf16.msra.mxu0 0
    %7931 = vmatpush.bf16.msra.mxu0 0
    %7932 = vmatpush.bf16.msra.mxu0 %v7892
    %7933 = vmatpush.bf16.msra.mxu0 %v7866
    %7934 = vmatpush.bf16.msra.mxu0 %v7860
    %7935 = vmatpush.bf16.msra.mxu0 %v7854
    %7936 = vmatpush.bf16.msra.mxu0 %v7848
    %7937 = vmatmul.bf16.gmra.mxu0 %v7883
    %v7938 = vpop.f32.mrf.mxu0
    %v7939 = vadd.f32 %v7880, %v7938
    %v7940 = vpop.f32.mrf.mxu0
    %7941 = vdwg.mxu0
    %7942 = vmatpush.bf16.msra.mxu0 0
    %7943 = vmatpush.bf16.msra.mxu0 0
    %7944 = vmatpush.bf16.msra.mxu0 0
    %7945 = vmatpush.bf16.msra.mxu0 %v7895
    %7946 = vmatpush.bf16.msra.mxu0 %v7867
    %7947 = vmatpush.bf16.msra.mxu0 %v7861
    %7948 = vmatpush.bf16.msra.mxu0 %v7855
    %7949 = vmatpush.bf16.msra.mxu0 %v7849
    %7950 = vmatmul.bf16.gmra.mxu0 %v7883
    %v7951 = vpop.f32.mrf.mxu0
    %v7952 = vadd.f32 %v7880, %v7951
    %v7953 = vpop.f32.mrf.mxu0
    %7954 = vdwg.mxu0
    %7955 = vmatpush.bf16.msra.mxu0 0
    %7956 = vmatpush.bf16.msra.mxu0 0
    %7957 = vmatpush.bf16.msra.mxu0 0
    %7958 = vmatpush.bf16.msra.mxu0 %v7898
    %7959 = vmatpush.bf16.msra.mxu0 %v7868
    %7960 = vmatpush.bf16.msra.mxu0 %v7862
    %7961 = vmatpush.bf16.msra.mxu0 %v7856
    %7962 = vmatpush.bf16.msra.mxu0 %v7850
    %7963 = vmatmul.bf16.gmra.mxu0 %v7883
    %v7964 = vpop.f32.mrf.mxu0
    %v7965 = vadd.f32 %v7880, %v7964
    %v7966 = vpop.f32.mrf.mxu0
    %7967 = vdwg.mxu0
    %7968 = vmatpush.bf16.msra.mxu0 0
    %7969 = vmatpush.bf16.msra.mxu0 0
    %7970 = vmatpush.bf16.msra.mxu0 0
    %7971 = vmatpush.bf16.msra.mxu0 %v7901
    %7972 = vmatpush.bf16.msra.mxu0 %v7869
    %7973 = vmatpush.bf16.msra.mxu0 %v7863
    %7974 = vmatpush.bf16.msra.mxu0 %v7857
    %7975 = vmatpush.bf16.msra.mxu0 %v7851
    %7976 = vmatmul.bf16.gmra.mxu0 %v7883
    %v7977 = vpop.f32.mrf.mxu0
    %v7978 = vadd.f32 %v7880, %v7977
    %v7979 = vpop.f32.mrf.mxu0
    %7980 = vdwg.mxu0
    %v7981 = vmax.f32 %v7913, 0.0
    %v7982 = vmax.f32 %v7926, 0.0
    %v7983 = vmax.f32 %v7939, 0.0
    %v7984 = vmax.f32 %v7952, 0.0
    %v7985 = vmax.f32 %v7965, 0.0
    %v7986 = vmax.f32 %v7978, 0.0
    %v7987 = vld [vmem:[%s47] sm:$0x3f]
    %v7989 = vperm.slane %v7987, 0
    %v7990 = vperm.slane %v7987, 1
    %v7991 = vperm.slane %v7987, 2
    %v7992 = vperm.slane %v7987, 3
    %v7993 = vperm.slane %v7987, 4
    %v7994 = vperm.slane %v7987, 5
    %v8001 = vmul.f32 %v7981, %v7989
    %v8002 = vmul.f32 %v7982, %v7990
    %v8003 = vmul.f32 %v7983, %v7991
    %v8004 = vmul.f32 %v7984, %v7992
    %v8005 = vmul.f32 %v7985, %v7993
    %v8006 = vmul.f32 %v7986, %v7994
    %v8007 = vld [vmem:[#allocation4 + $0x8] sm:$0xff]
    %v8008 = vld [vmem:[#allocation4 + $0x10] sm:$0xff]
    %v8009 = vld [vmem:[#allocation4 + $0x18] sm:$0xff]
    %v8010 = vld [vmem:[#allocation4 + $0x20] sm:$0xff]
    %v8011 = vld [vmem:[#allocation4 + $0x28] sm:$0xff]
    %v8012 = vld [vmem:[#allocation4 + $0x30] sm:$0xff]
    %v8013 = vadd.f32 %v8001, %v8007
    %v8014 = vadd.f32 %v8002, %v8008
    %v8015 = vadd.f32 %v8003, %v8009
    %v8016 = vadd.f32 %v8004, %v8010
    %v8017 = vadd.f32 %v8005, %v8011
    %v8018 = vadd.f32 %v8006, %v8012
    %v8019 = vld [vmem:[%s43] sm:$0x3]
    %v8020 = vld [vmem:[%s45] sm:$0x3]
    %8022 = vset.pattern.permute.xlu0 0
    %8023 = vperm.xlu0 %8022, %v8020
    %v8024 = vpop.permute.xlu0 %8023
    %vm8026 = vcmask 64512
    %v8028 = vsel %vm8026, %v8019, 0
    %8030 = vmatpush.msra.mxu0 0.0
    %8031 = vmatpush.msra.mxu0 0.0
    %8032 = vmatpush.msra.mxu0 0.0
    %8033 = vmatpush.msra.mxu0 0.0
    %8034 = vmatpush.msra.mxu0 0.0
    %8035 = vmatpush.msra.mxu0 0.0
    %8036 = vmatpush.msra.mxu0 0.0
    %8037 = vmatpush.msra.mxu0 0.0
    %8038 = vmatpush.msra.mxu0 0.0
    %8039 = vmatpush.msra.mxu0 0.0
    %8040 = vmatpush.msra.mxu0 0.0
    %8041 = vmatpush.msra.mxu0 0.0
    %8042 = vmatpush.msra.mxu0 0.0
    %8043 = vmatpush.msra.mxu0 0.0
    %8044 = vmatpush.msra.mxu0 0.0
    %8045 = vmatpush.msra.mxu0 %v8013
    %8046 = vmatmul.f32.gmra.mxu0 %v8028
    %v8047 = vpop.f32.mrf.mxu0
    %v8048 = vadd.f32 %v8024, %v8047
    %8049 = vdwg.mxu0
    %8050 = vmatpush.msra.mxu0 0.0
    %8051 = vmatpush.msra.mxu0 0.0
    %8052 = vmatpush.msra.mxu0 0.0
    %8053 = vmatpush.msra.mxu0 0.0
    %8054 = vmatpush.msra.mxu0 0.0
    %8055 = vmatpush.msra.mxu0 0.0
    %8056 = vmatpush.msra.mxu0 0.0
    %8057 = vmatpush.msra.mxu0 0.0
    %8058 = vmatpush.msra.mxu0 0.0
    %8059 = vmatpush.msra.mxu0 0.0
    %8060 = vmatpush.msra.mxu0 0.0
    %8061 = vmatpush.msra.mxu0 0.0
    %8062 = vmatpush.msra.mxu0 0.0
    %8063 = vmatpush.msra.mxu0 0.0
    %8064 = vmatpush.msra.mxu0 0.0
    %8065 = vmatpush.msra.mxu0 %v8014
    %8066 = vmatmul.f32.gmra.mxu0 %v8028
    %v8067 = vpop.f32.mrf.mxu0
    %v8068 = vadd.f32 %v8024, %v8067
    %8069 = vdwg.mxu0
    %8070 = vmatpush.msra.mxu0 0.0
    %8071 = vmatpush.msra.mxu0 0.0
    %8072 = vmatpush.msra.mxu0 0.0
    %8073 = vmatpush.msra.mxu0 0.0
    %8074 = vmatpush.msra.mxu0 0.0
    %8075 = vmatpush.msra.mxu0 0.0
    %8076 = vmatpush.msra.mxu0 0.0
    %8077 = vmatpush.msra.mxu0 0.0
    %8078 = vmatpush.msra.mxu0 0.0
    %8079 = vmatpush.msra.mxu0 0.0
    %8080 = vmatpush.msra.mxu0 0.0
    %8081 = vmatpush.msra.mxu0 0.0
    %8082 = vmatpush.msra.mxu0 0.0
    %8083 = vmatpush.msra.mxu0 0.0
    %8084 = vmatpush.msra.mxu0 0.0
    %8085 = vmatpush.msra.mxu0 %v8015
    %8086 = vmatmul.f32.gmra.mxu0 %v8028
    %v8087 = vpop.f32.mrf.mxu0
    %v8088 = vadd.f32 %v8024, %v8087
    %8089 = vdwg.mxu0
    %8090 = vmatpush.msra.mxu0 0.0
    %8091 = vmatpush.msra.mxu0 0.0
    %8092 = vmatpush.msra.mxu0 0.0
    %8093 = vmatpush.msra.mxu0 0.0
    %8094 = vmatpush.msra.mxu0 0.0
    %8095 = vmatpush.msra.mxu0 0.0
    %8096 = vmatpush.msra.mxu0 0.0
    %8097 = vmatpush.msra.mxu0 0.0
    %8098 = vmatpush.msra.mxu0 0.0
    %8099 = vmatpush.msra.mxu0 0.0
    %8100 = vmatpush.msra.mxu0 0.0
    %8101 = vmatpush.msra.mxu0 0.0
    %8102 = vmatpush.msra.mxu0 0.0
    %8103 = vmatpush.msra.mxu0 0.0
    %8104 = vmatpush.msra.mxu0 0.0
    %8105 = vmatpush.msra.mxu0 %v8016
    %8106 = vmatmul.f32.gmra.mxu0 %v8028
    %v8107 = vpop.f32.mrf.mxu0
    %v8108 = vadd.f32 %v8024, %v8107
    %8109 = vdwg.mxu0
    %8110 = vmatpush.msra.mxu0 0.0
    %8111 = vmatpush.msra.mxu0 0.0
    %8112 = vmatpush.msra.mxu0 0.0
    %8113 = vmatpush.msra.mxu0 0.0
    %8114 = vmatpush.msra.mxu0 0.0
    %8115 = vmatpush.msra.mxu0 0.0
    %8116 = vmatpush.msra.mxu0 0.0
    %8117 = vmatpush.msra.mxu0 0.0
    %8118 = vmatpush.msra.mxu0 0.0
    %8119 = vmatpush.msra.mxu0 0.0
    %8120 = vmatpush.msra.mxu0 0.0
    %8121 = vmatpush.msra.mxu0 0.0
    %8122 = vmatpush.msra.mxu0 0.0
    %8123 = vmatpush.msra.mxu0 0.0
    %8124 = vmatpush.msra.mxu0 0.0
    %8125 = vmatpush.msra.mxu0 %v8017
    %8126 = vmatmul.f32.gmra.mxu0 %v8028
    %v8127 = vpop.f32.mrf.mxu0
    %v8128 = vadd.f32 %v8024, %v8127
    %8129 = vdwg.mxu0
    %8130 = vmatpush.msra.mxu0 0.0
    %8131 = vmatpush.msra.mxu0 0.0
    %8132 = vmatpush.msra.mxu0 0.0
    %8133 = vmatpush.msra.mxu0 0.0
    %8134 = vmatpush.msra.mxu0 0.0
    %8135 = vmatpush.msra.mxu0 0.0
    %8136 = vmatpush.msra.mxu0 0.0
    %8137 = vmatpush.msra.mxu0 0.0
    %8138 = vmatpush.msra.mxu0 0.0
    %8139 = vmatpush.msra.mxu0 0.0
    %8140 = vmatpush.msra.mxu0 0.0
    %8141 = vmatpush.msra.mxu0 0.0
    %8142 = vmatpush.msra.mxu0 0.0
    %8143 = vmatpush.msra.mxu0 0.0
    %8144 = vmatpush.msra.mxu0 0.0
    %8145 = vmatpush.msra.mxu0 %v8018
    %8146 = vmatmul.f32.gmra.mxu0 %v8028
    %v8147 = vpop.f32.mrf.mxu0
    %v8148 = vadd.f32 %v8024, %v8147
    %8149 = vdwg.mxu0
    %v8156 = vrot.slane %v8048, 1
    %v8157 = vrot.slane %v8068, 1
    %v8158 = vrot.slane %v8088, 1
    %v8159 = vrot.slane %v8108, 1
    %v8160 = vrot.slane %v8128, 1
    %v8161 = vrot.slane %v8148, 1
    %v8168 = vmax.f32 %v8048, %v8156
    %v8169 = vmax.f32 %v8068, %v8157
    %v8170 = vmax.f32 %v8088, %v8158
    %v8171 = vmax.f32 %v8108, %v8159
    %v8172 = vmax.f32 %v8128, %v8160
    %v8173 = vmax.f32 %v8148, %v8161
    %v8174 = vperm.slane %v8168, 0
    %v8175 = vperm.slane %v8169, 0
    %v8176 = vperm.slane %v8170, 0
    %v8177 = vperm.slane %v8171, 0
    %v8178 = vperm.slane %v8172, 0
    %v8179 = vperm.slane %v8173, 0
    %v8180 = vsub.f32 %v8048, %v8174
    %v8181 = vsub.f32 %v8068, %v8175
    %v8182 = vsub.f32 %v8088, %v8176
    %v8183 = vsub.f32 %v8108, %v8177
    %v8184 = vsub.f32 %v8128, %v8178
    %v8185 = vsub.f32 %v8148, %v8179
    %v8186 = vmul.f32 %v8180, 1.442695
    %v8187 = vpow.pop %v8186
    %v8188 = vmul.f32 %v8181, 1.442695
    %v8189 = vpow.pop %v8188
    %v8190 = vmul.f32 %v8182, 1.442695
    %v8191 = vpow.pop %v8190
    %v8192 = vmul.f32 %v8183, 1.442695
    %v8193 = vpow.pop %v8192
    %v8194 = vmul.f32 %v8184, 1.442695
    %v8195 = vpow.pop %v8194
    %v8196 = vmul.f32 %v8185, 1.442695
    %v8197 = vpow.pop %v8196
    %v8204 = vrot.slane %v8187, 1
    %v8205 = vrot.slane %v8189, 1
    %v8206 = vrot.slane %v8191, 1
    %v8207 = vrot.slane %v8193, 1
    %v8208 = vrot.slane %v8195, 1
    %v8209 = vrot.slane %v8197, 1
    %v8216 = vadd.f32 %v8187, %v8204
    %v8217 = vadd.f32 %v8189, %v8205
    %v8218 = vadd.f32 %v8191, %v8206
    %v8219 = vadd.f32 %v8193, %v8207
    %v8220 = vadd.f32 %v8195, %v8208
    %v8221 = vadd.f32 %v8197, %v8209
    %v8222 = vrcp.pop %v8216
    %v8223 = vmul.f32 %v8216, %v8222
    %v8224 = vsub.f32 1.0, %v8223
    %v8225 = vmul.f32 %v8222, %v8224
    %v8226 = vadd.f32 %v8222, %v8225
    %vm8227 = vweird.f32 %v8216
    %vm8228 = vweird.f32 %v8222
    %vm8229 = vmor %vm8227, %vm8228
    %v8230 = vsel %vm8229, %v8222, %v8226
    %v8231 = vand.u32 2147483647, %v8216
    %vm8232 = vcmp.eq.f32.partialorder %v8231, 8.507059e+37
    %v8233 = vand.u32 %v8216, 2147483648
    %v8234 = vor.u32 1.1754944e-38, %v8233
    %v8235 = vsel %vm8232, %v8234, %v8230
    %v8236 = vmul.f32 1.0, %v8235
    %v8237 = vrcp.pop %v8217
    %v8238 = vmul.f32 %v8217, %v8237
    %v8239 = vsub.f32 1.0, %v8238
    %v8240 = vmul.f32 %v8237, %v8239
    %v8241 = vadd.f32 %v8237, %v8240
    %vm8242 = vweird.f32 %v8217
    %vm8243 = vweird.f32 %v8237
    %vm8244 = vmor %vm8242, %vm8243
    %v8245 = vsel %vm8244, %v8237, %v8241
    %v8246 = vand.u32 2147483647, %v8217
    %vm8247 = vcmp.eq.f32.partialorder %v8246, 8.507059e+37
    %v8248 = vand.u32 %v8217, 2147483648
    %v8249 = vor.u32 1.1754944e-38, %v8248
    %v8250 = vsel %vm8247, %v8249, %v8245
    %v8251 = vmul.f32 1.0, %v8250
    %v8252 = vrcp.pop %v8218
    %v8253 = vmul.f32 %v8218, %v8252
    %v8254 = vsub.f32 1.0, %v8253
    %v8255 = vmul.f32 %v8252, %v8254
    %v8256 = vadd.f32 %v8252, %v8255
    %vm8257 = vweird.f32 %v8218
    %vm8258 = vweird.f32 %v8252
    %vm8259 = vmor %vm8257, %vm8258
    %v8260 = vsel %vm8259, %v8252, %v8256
    %v8261 = vand.u32 2147483647, %v8218
    %vm8262 = vcmp.eq.f32.partialorder %v8261, 8.507059e+37
    %v8263 = vand.u32 %v8218, 2147483648
    %v8264 = vor.u32 1.1754944e-38, %v8263
    %v8265 = vsel %vm8262, %v8264, %v8260
    %v8266 = vmul.f32 1.0, %v8265
    %v8267 = vrcp.pop %v8219
    %v8268 = vmul.f32 %v8219, %v8267
    %v8269 = vsub.f32 1.0, %v8268
    %v8270 = vmul.f32 %v8267, %v8269
    %v8271 = vadd.f32 %v8267, %v8270
    %vm8272 = vweird.f32 %v8219
    %vm8273 = vweird.f32 %v8267
    %vm8274 = vmor %vm8272, %vm8273
    %v8275 = vsel %vm8274, %v8267, %v8271
    %v8276 = vand.u32 2147483647, %v8219
    %vm8277 = vcmp.eq.f32.partialorder %v8276, 8.507059e+37
    %v8278 = vand.u32 %v8219, 2147483648
    %v8279 = vor.u32 1.1754944e-38, %v8278
    %v8280 = vsel %vm8277, %v8279, %v8275
    %v8281 = vmul.f32 1.0, %v8280
    %v8282 = vrcp.pop %v8220
    %v8283 = vmul.f32 %v8220, %v8282
    %v8284 = vsub.f32 1.0, %v8283
    %v8285 = vmul.f32 %v8282, %v8284
    %v8286 = vadd.f32 %v8282, %v8285
    %vm8287 = vweird.f32 %v8220
    %vm8288 = vweird.f32 %v8282
    %vm8289 = vmor %vm8287, %vm8288
    %v8290 = vsel %vm8289, %v8282, %v8286
    %v8291 = vand.u32 2147483647, %v8220
    %vm8292 = vcmp.eq.f32.partialorder %v8291, 8.507059e+37
    %v8293 = vand.u32 %v8220, 2147483648
    %v8294 = vor.u32 1.1754944e-38, %v8293
    %v8295 = vsel %vm8292, %v8294, %v8290
    %v8296 = vmul.f32 1.0, %v8295
    %v8297 = vrcp.pop %v8221
    %v8298 = vmul.f32 %v8221, %v8297
    %v8299 = vsub.f32 1.0, %v8298
    %v8300 = vmul.f32 %v8297, %v8299
    %v8301 = vadd.f32 %v8297, %v8300
    %vm8302 = vweird.f32 %v8221
    %vm8303 = vweird.f32 %v8297
    %vm8304 = vmor %vm8302, %vm8303
    %v8305 = vsel %vm8304, %v8297, %v8301
    %v8306 = vand.u32 2147483647, %v8221
    %vm8307 = vcmp.eq.f32.partialorder %v8306, 8.507059e+37
    %v8308 = vand.u32 %v8221, 2147483648
    %v8309 = vor.u32 1.1754944e-38, %v8308
    %v8310 = vsel %vm8307, %v8309, %v8305
    %v8311 = vmul.f32 1.0, %v8310
    %v8312 = vperm.slane %v8236, 0
    %v8313 = vperm.slane %v8251, 0
    %v8314 = vperm.slane %v8266, 0
    %v8315 = vperm.slane %v8281, 0
    %v8316 = vperm.slane %v8296, 0
    %v8317 = vperm.slane %v8311, 0
    %v8318 = vmul.f32 %v8187, %v8312
    %v8319 = vmul.f32 %v8189, %v8313
    %v8320 = vmul.f32 %v8191, %v8314
    %v8321 = vmul.f32 %v8193, %v8315
    %v8322 = vmul.f32 %v8195, %v8316
    %v8323 = vmul.f32 %v8197, %v8317
    %v8324 = vld [vmem:[%s1 + $0x1] sm:$0x3f]
    %v8326 = vperm.slane %v8324, 0
    %v8327 = vperm.slane %v8324, 1
    %v8328 = vperm.slane %v8324, 2
    %v8329 = vperm.slane %v8324, 3
    %v8330 = vperm.slane %v8324, 4
    %v8331 = vperm.slane %v8324, 5
    %v8338 = vmul.f32 %v8318, %v8326
    %v8339 = vmul.f32 %v8319, %v8327
    %v8340 = vmul.f32 %v8320, %v8328
    %v8341 = vmul.f32 %v8321, %v8329
    %v8342 = vmul.f32 %v8322, %v8330
    %v8343 = vmul.f32 %v8323, %v8331
    %v8350 = vrot.slane %v8339, 6
    %v8351 = vrot.slane %v8340, 4
    %v8352 = vrot.slane %v8341, 2
    %v8353 = vrot.slane %v8343, 6
    %vm8354 = vcmask 1041408
    %v8355 = vsel %vm8354, %v8338, %v8350
    %vm8356 = vcmask 1045508
    %v8357 = vsel %vm8356, %v8351, %v8352
    %v8358 = vsel %vm1293, %v8355, %v8357
    %v8359 = vsel %vm8354, %v8342, %v8353
    %8362 = vst [vmem:[%s61] sm:$0xff] %v8358
    %8363 = vst [vmem:[%s61 + $0x8] sm:$0xf] %v8359
    // Predicated region
    $region134: #{unet_forward.1} parent=1 // pred_check
      _
    $region135: #{unet_forward.1} parent=1 // pred_check_branch
      %8365 = sbr.rel (0) target = $region137
    $region136: #{unet_forward.1} parent=1 // pred_region
      _
    $region137: #{unet_forward.1} parent=1 // pred_fallthru
      _
    // Predicated region
    $region138: #{unet_forward.1} parent=1 // pred_check
      _
    $region139: #{unet_forward.1} parent=1 // pred_check_branch
      %8367 = sbr.rel (0) target = $region141
    $region140: #{unet_forward.1} parent=1 // pred_region
      _
    $region141: #{unet_forward.1} parent=1 // pred_fallthru
      _
    %8368 = vsyncpa [#allocation17], 1
    %8369 = vsyncpa [#allocation19], 1

</llo_original>
